<compile_context>
chip_gen: v7x
topology: tpu7x:2x2x1
jax: 0.10.0
libtpu: 0.0.40
codegen_flags: <defaults>
</compile_context>

<pallas_src>
import functools

import numpy as np
import jax
import jax.numpy as jnp
from jax import lax
from jax.experimental import pallas as pl
from jax.experimental.pallas import tpu as pltpu


# ---------------------------------------------------------------------------
# Static network geometry
# ---------------------------------------------------------------------------
def _layer_dims(cin0, image_h, image_w, k, channels_out):
    dims = []
    cin, hi, wi = cin0, image_h, image_w
    for cout in channels_out:
        ho, wo = hi - k + 1, wi - k + 1
        hp, wp = ho // 2, wo // 2
        dims.append((cin, cout, hi, wi, ho, wo, hp, wp))
        cin, hi, wi = cout, hp, wp
    return tuple(dims)


# ---------------------------------------------------------------------------
# Wrapper-side weight / selector preparation (all static-shaped, jit-friendly)
# ---------------------------------------------------------------------------
def _toeplitz_conv_weight(w, wi, wo, k):
    """w: (Cout, Cin, k, k) PyTorch layout -> (k, Wi*Cin, Wo*Cout) banded mats.

    T[dy, xin*Cin + ci, xout*Cout + co] = w[co, ci, dy, xin - xout]
    when 0 <= xin - xout < k, else 0.  Then
        conv[y, xout*Cout + co] = sum_dy  A[y+dy, :] @ T[dy]
    on the (H, W*Cin) "x-major / channel-minor" activation layout.
    """
    xin = jnp.arange(wi)[:, None]
    xout = jnp.arange(wo)[None, :]
    dx = xin - xout                                   # (wi, wo)
    valid = (dx >= 0) & (dx < k)
    dxc = jnp.clip(dx, 0, k - 1)
    mats = []
    for dy in range(k):
        g = w[:, :, dy, :][:, :, dxc]                 # (cout, cin, wi, wo)
        g = jnp.where(valid[None, None], g, 0.0)
        mats.append(jnp.transpose(g, (2, 1, 3, 0))    # (wi, cin, wo, cout)
                    .reshape(wi * w.shape[1], wo * w.shape[0]))
    return jnp.stack(mats, axis=0)


def _row_selector(hp, rows):
    """(hp, rows) 0/1 matrix, S[i, 2i] = 1  -> picks even rows (left matmul)."""
    s = np.zeros((hp, rows), np.float32)
    s[np.arange(hp), 2 * np.arange(hp)] = 1.0
    return jnp.asarray(s)


def _col_selector(wo, wp, cout):
    """((wo-1)*cout, wp*cout) 0/1 matrix: picks lanes (2*px)*cout + c."""
    s = np.zeros(((wo - 1) * cout, wp * cout), np.float32)
    px = np.repeat(np.arange(wp), cout)
    c = np.tile(np.arange(cout), wp)
    s[2 * px * cout + c, px * cout + c] = 1.0
    return jnp.asarray(s)


def _full_spec(arr):
    nd = arr.ndim
    return pl.BlockSpec(arr.shape, lambda b, _nd=nd: (0,) * _nd)


# ---------------------------------------------------------------------------
# The fused network kernel (one grid step = one image), straight-line body
# ---------------------------------------------------------------------------
def _net_kernel(x_ref, *refs, k, dims):
    n_conv = 4 * len(dims)
    conv_refs = refs[:n_conv]
    fw1_ref, fb1_ref, fw2_ref, fb2_ref = refs[n_conv:n_conv + 4]
    o_ref = refs[-1]

    act = None
    for li, (cin, cout, hi, wi, ho, wo, hp, wp) in enumerate(dims):
        t_ref, b_ref, srow_ref, scol_ref = conv_refs[4 * li:4 * li + 4]

        # conv: k banded-Toeplitz matmuls (K = wi*cin, N = wo*cout), f32 acc
        acc = None
        for dy in range(k):
            lhs = x_ref[dy:dy + ho, :] if li == 0 else act[dy:dy + ho, :]
            part = jnp.dot(lhs, t_ref[dy], preferred_element_type=jnp.float32)
            acc = part if acc is None else acc + part
        y = jnp.maximum(acc + b_ref[...], 0.0)                     # (ho, wo*cout)

        # 2x2 / stride-2 max-pool (floor mode, like F.max_pool2d)
        hmax = jnp.maximum(y[:ho - 1, :], y[1:ho, :])              # rows y, y+1
        hsel = jnp.dot(srow_ref[...], hmax,
                       preferred_element_type=jnp.float32)         # even rows
        wmax = jnp.maximum(hsel[:, :(wo - 1) * cout],
                           hsel[:, cout:wo * cout])                # cols x, x+1
        act = jnp.dot(wmax, scol_ref[...],
                      preferred_element_type=jnp.float32)          # (hp, wp*cout)

    # ---- fc1 + ReLU (weights pre-permuted for the (h, w*C + c) layout) ------
    h = None
    for r in range(dims[-1][6]):                                   # hp of last layer
        part = jnp.dot(act[r:r + 1, :], fw1_ref[r],
                       preferred_element_type=jnp.float32)
        h = part if h is None else h + part
    h = jnp.maximum(h + fb1_ref[...], 0.0)                         # (1, hidden)

    # ---- fc2 + exact softmax -------------------------------------------------
    logits = jnp.dot(h, fw2_ref[...],
                     preferred_element_type=jnp.float32) + fb2_ref[...]
    m = jnp.max(logits, axis=-1, keepdims=True)
    e = jnp.exp(logits - m)
    o_ref[...] = (e / jnp.sum(e, axis=-1, keepdims=True)).astype(o_ref.dtype)


# ---------------------------------------------------------------------------
# Wrapper
# ---------------------------------------------------------------------------
def net_forward(params, x_nchw, k):
    n, cin0, H, W = x_nchw.shape
    # NCHW -> (N, H, W*Cin): width*channels on the lane axis (lane-dense input)
    x = jnp.transpose(x_nchw, (0, 2, 3, 1)).reshape(n, H, W * cin0)

    channels_out = [w.shape[0] for (w, _) in params["convs"]]
    dims = _layer_dims(cin0, H, W, k, channels_out)

    conv_args = []
    flops = 0
    for (w, b), (cin, cout, hi, wi, ho, wo, hp, wp) in zip(params["convs"], dims):
        t = _toeplitz_conv_weight(w, wi, wo, k)                    # (k, wi*cin, wo*cout)
        b_tile = jnp.tile(b, (wo,))[None, :]                       # (1, wo*cout)
        srow = _row_selector(hp, ho - 1)
        scol = _col_selector(wo, wp, cout)
        conv_args += [t, b_tile, srow, scol]
        flops += 2 * k * ho * (wi * cin) * (wo * cout)
        flops += 2 * hp * (ho - 1) * (wo * cout)
        flops += 2 * hp * ((wo - 1) * cout) * (wp * cout)

    c4, hp4, wp4 = dims[-1][1], dims[-1][6], dims[-1][7]
    hidden = params["fc1_w"].shape[0]
    out_size = params["fc2_w"].shape[0]
    # PyTorch fc1 weight (hidden, C*H*W in c-major order) -> (h, w*C + c, hidden)
    fw1 = (params["fc1_w"].reshape(hidden, c4, hp4, wp4)
           .transpose(2, 3, 1, 0)
           .reshape(hp4, wp4 * c4, hidden))
    fb1 = params["fc1_b"][None, :]
    fw2 = params["fc2_w"].T
    fb2 = params["fc2_b"][None, :]
    flops += 2 * hp4 * (wp4 * c4) * hidden + 2 * hidden * out_size

    all_inputs = [x] + conv_args + [fw1, fb1, fw2, fb2]
    bytes_accessed = sum(int(np.prod(a.shape)) * 4 for a in all_inputs) \
        + n * out_size * 4

    kern = functools.partial(_net_kernel, k=k, dims=dims)
    out = pl.pallas_call(
        kern,
        grid=(n,),
        in_specs=[pl.BlockSpec((None, H, W * cin0), lambda b: (b, 0, 0))]
                 + [_full_spec(a) for a in conv_args]
                 + [_full_spec(fw1), _full_spec(fb1),
                    _full_spec(fw2), _full_spec(fb2)],
        out_specs=pl.BlockSpec((None, 1, out_size), lambda b: (b, 0, 0)),
        out_shape=jax.ShapeDtypeStruct((n, 1, out_size), jnp.float32),
        compiler_params=pltpu.CompilerParams(
            dimension_semantics=("parallel",),
            vmem_limit_bytes=32 * 1024 * 1024),
        cost_estimate=pl.CostEstimate(
            flops=n * flops,
            transcendentals=n * out_size,
            bytes_accessed=bytes_accessed),
    )(*all_inputs)
    return out.reshape(n, out_size)


# ---------------------------------------------------------------------------
# Parameters in native PyTorch layouts (Conv2d: (O,I,kh,kw), Linear: (out,in))
# ---------------------------------------------------------------------------
def init_params(key, input_size, first_hidden, k, image_h, image_w,
                output_size, hidden_fc=64):
    channels = [input_size, first_hidden, first_hidden * 2,
                first_hidden * 4, first_hidden * 8]
    params = {"convs": []}
    h, w = image_h, image_w
    for i in range(4):
        cin, cout = channels[i], channels[i + 1]
        key, kw, kb = jax.random.split(key, 3)
        bound = (cin * k * k) ** -0.5
        wt = jax.random.uniform(kw, (cout, cin, k, k), jnp.float32, -bound, bound)
        b = jax.random.uniform(kb, (cout,), jnp.float32, -bound, bound)
        params["convs"].append((wt, b))
        h, w = (h - k + 1) // 2, (w - k + 1) // 2
    conv_to_linear = channels[-1] * h * w

    key, k1, k2, k3, k4 = jax.random.split(key, 5)
    b1 = conv_to_linear ** -0.5
    params["fc1_w"] = jax.random.uniform(k1, (hidden_fc, conv_to_linear),
                                         jnp.float32, -b1, b1)
    params["fc1_b"] = jax.random.uniform(k2, (hidden_fc,), jnp.float32, -b1, b1)
    b2 = hidden_fc ** -0.5
    params["fc2_w"] = jax.random.uniform(k3, (output_size, hidden_fc),
                                         jnp.float32, -b2, b2)
    params["fc2_b"] = jax.random.uniform(k4, (output_size,), jnp.float32, -b2, b2)
    return params


# ---------------------------------------------------------------------------
# Independent pure-XLA reference (literal PyTorch math on PyTorch layouts)
# ---------------------------------------------------------------------------
def net_forward_reference(params, x_nchw, k):
    x = x_nchw
    for (w, b) in params["convs"]:
        y = lax.conv_general_dilated(
            x, w, window_strides=(1, 1), padding="VALID",
            dimension_numbers=("NCHW", "OIHW", "NCHW"))
        y = jnp.maximum(y + b[None, :, None, None], 0.0)
        n, c, ho, wo = y.shape
        hp, wp = ho // 2, wo // 2
        x = y[:, :, :2 * hp, :2 * wp].reshape(n, c, hp, 2, wp, 2).max(axis=(3, 5))
    n = x.shape[0]
    feats = x.reshape(n, -1)                       # same order as torch .view()
    h = jnp.maximum(feats @ params["fc1_w"].T + params["fc1_b"], 0.0)
    logits = h @ params["fc2_w"].T + params["fc2_b"]
    return jax.nn.softmax(logits, axis=-1)


if __name__ == "__main__":
    # Net(input_size=1, image_width=64, image_height=64,
    #     firstHidden=8, kernel_size=3, output_size=5)
    input_size, first_hidden, kernel_size, output_size = 1, 8, 3, 5
    image_h = image_w = 64
    batch = 2

    key = jax.random.PRNGKey(0)
    key, kp, kx = jax.random.split(key, 3)
    params = init_params(kp, input_size, first_hidden, kernel_size,
                         image_h, image_w, output_size)
    x = jax.random.normal(kx, (batch, input_size, image_h, image_w), jnp.float32)

    fwd = jax.jit(functools.partial(net_forward, k=kernel_size))
    out = jax.block_until_ready(fwd(params, x))

    assert out.shape == (batch, output_size)
    assert bool(jnp.all(jnp.isfinite(out)))
    # exact softmax divide -> rows sum to 1
    assert bool(jnp.allclose(jnp.sum(out, axis=1), 1.0, atol=1e-3))
    # matches an independent pure-XLA reference using PyTorch-layout weights
    ref = net_forward_reference(params, x, kernel_size)
    assert bool(jnp.allclose(out, ref, atol=2e-3, rtol=2e-2))
    print("KERNEL_OK")
</pallas_src>

<mosaic_0001>
module attributes {stable_mosaic.version = 11 : i64} {
  func.func @_net_kernel(%arg0: i32, %arg1: memref<1x64x64xf32, #tpu.memory_space<vmem>>, %arg2: memref<3x64x496xf32, #tpu.memory_space<vmem>>, %arg3: memref<1x496xf32, #tpu.memory_space<vmem>>, %arg4: memref<31x61xf32, #tpu.memory_space<vmem>>, %arg5: memref<488x248xf32, #tpu.memory_space<vmem>>, %arg6: memref<3x248x464xf32, #tpu.memory_space<vmem>>, %arg7: memref<1x464xf32, #tpu.memory_space<vmem>>, %arg8: memref<14x28xf32, #tpu.memory_space<vmem>>, %arg9: memref<448x224xf32, #tpu.memory_space<vmem>>, %arg10: memref<3x224x384xf32, #tpu.memory_space<vmem>>, %arg11: memref<1x384xf32, #tpu.memory_space<vmem>>, %arg12: memref<6x11xf32, #tpu.memory_space<vmem>>, %arg13: memref<352x192xf32, #tpu.memory_space<vmem>>, %arg14: memref<3x192x256xf32, #tpu.memory_space<vmem>>, %arg15: memref<1x256xf32, #tpu.memory_space<vmem>>, %arg16: memref<2x3xf32, #tpu.memory_space<vmem>>, %arg17: memref<192x128xf32, #tpu.memory_space<vmem>>, %arg18: memref<2x128x64xf32, #tpu.memory_space<vmem>>, %arg19: memref<1x64xf32, #tpu.memory_space<vmem>>, %arg20: memref<64x5xf32, #tpu.memory_space<vmem>>, %arg21: memref<1x5xf32, #tpu.memory_space<vmem>>, %arg22: memref<1x1x5xf32, #tpu.memory_space<vmem>>) attributes {dimension_semantics = [#tpu.dimension_semantics<parallel>], iteration_bounds = array<i64: 2>, scalar_prefetch = 0 : i64, scratch_operands = 0 : i64, tpu.core_type = #tpu.core_type<tc>, window_params = [{transform_indices = @transform_0, window_bounds = array<i64: 1, 64, 64>}, {pipeline_mode = #tpu.pipeline_mode<synchronous>, transform_indices = @transform_1, window_bounds = array<i64: 3, 64, 496>}, {pipeline_mode = #tpu.pipeline_mode<synchronous>, transform_indices = @transform_2, window_bounds = array<i64: 1, 496>}, {pipeline_mode = #tpu.pipeline_mode<synchronous>, transform_indices = @transform_3, window_bounds = array<i64: 31, 61>}, {pipeline_mode = #tpu.pipeline_mode<synchronous>, transform_indices = @transform_4, window_bounds = array<i64: 488, 248>}, {pipeline_mode = #tpu.pipeline_mode<synchronous>, transform_indices = @transform_5, window_bounds = array<i64: 3, 248, 464>}, {pipeline_mode = #tpu.pipeline_mode<synchronous>, transform_indices = @transform_6, window_bounds = array<i64: 1, 464>}, {pipeline_mode = #tpu.pipeline_mode<synchronous>, transform_indices = @transform_7, window_bounds = array<i64: 14, 28>}, {pipeline_mode = #tpu.pipeline_mode<synchronous>, transform_indices = @transform_8, window_bounds = array<i64: 448, 224>}, {pipeline_mode = #tpu.pipeline_mode<synchronous>, transform_indices = @transform_9, window_bounds = array<i64: 3, 224, 384>}, {pipeline_mode = #tpu.pipeline_mode<synchronous>, transform_indices = @transform_10, window_bounds = array<i64: 1, 384>}, {pipeline_mode = #tpu.pipeline_mode<synchronous>, transform_indices = @transform_11, window_bounds = array<i64: 6, 11>}, {pipeline_mode = #tpu.pipeline_mode<synchronous>, transform_indices = @transform_12, window_bounds = array<i64: 352, 192>}, {pipeline_mode = #tpu.pipeline_mode<synchronous>, transform_indices = @transform_13, window_bounds = array<i64: 3, 192, 256>}, {pipeline_mode = #tpu.pipeline_mode<synchronous>, transform_indices = @transform_14, window_bounds = array<i64: 1, 256>}, {pipeline_mode = #tpu.pipeline_mode<synchronous>, transform_indices = @transform_15, window_bounds = array<i64: 2, 3>}, {pipeline_mode = #tpu.pipeline_mode<synchronous>, transform_indices = @transform_16, window_bounds = array<i64: 192, 128>}, {pipeline_mode = #tpu.pipeline_mode<synchronous>, transform_indices = @transform_17, window_bounds = array<i64: 2, 128, 64>}, {pipeline_mode = #tpu.pipeline_mode<synchronous>, transform_indices = @transform_18, window_bounds = array<i64: 1, 64>}, {pipeline_mode = #tpu.pipeline_mode<synchronous>, transform_indices = @transform_19, window_bounds = array<i64: 64, 5>}, {pipeline_mode = #tpu.pipeline_mode<synchronous>, transform_indices = @transform_20, window_bounds = array<i64: 1, 5>}, {transform_indices = @transform_21, window_bounds = array<i64: 1, 1, 5>}]} {
    %c0 = arith.constant 0 : index
    %c0_0 = arith.constant 0 : index
    %c0_1 = arith.constant 0 : index
    %0 = vector.load %arg1[%c0, %c0_0, %c0_1] : memref<1x64x64xf32, #tpu.memory_space<vmem>>, vector<1x62x64xf32>
    %1 = vector.shape_cast %0 : vector<1x62x64xf32> to vector<62x64xf32>
    %c0_2 = arith.constant 0 : index
    %c0_3 = arith.constant 0 : index
    %c0_4 = arith.constant 0 : index
    %2 = vector.load %arg2[%c0_2, %c0_3, %c0_4] : memref<3x64x496xf32, #tpu.memory_space<vmem>>, vector<1x64x496xf32>
    %3 = vector.shape_cast %2 : vector<1x64x496xf32> to vector<64x496xf32>
    %cst = arith.constant dense<0.000000e+00> : vector<62x496xf32>
    %4 = tpu.matmul %1, %3, %cst {dimension_numbers = #tpu.dot_dimension_numbers<[1], [0], [0], [1], [0, 0, 1, 1], [], []>} : vector<62x64xf32>, vector<64x496xf32>, vector<62x496xf32> -> vector<62x496xf32>
    %c0_5 = arith.constant 0 : index
    %c1 = arith.constant 1 : index
    %c0_6 = arith.constant 0 : index
    %5 = vector.load %arg1[%c0_5, %c1, %c0_6] : memref<1x64x64xf32, #tpu.memory_space<vmem>>, vector<1x62x64xf32>
    %6 = vector.shape_cast %5 : vector<1x62x64xf32> to vector<62x64xf32>
    %c1_7 = arith.constant 1 : index
    %c0_8 = arith.constant 0 : index
    %c0_9 = arith.constant 0 : index
    %7 = vector.load %arg2[%c1_7, %c0_8, %c0_9] : memref<3x64x496xf32, #tpu.memory_space<vmem>>, vector<1x64x496xf32>
    %8 = vector.shape_cast %7 : vector<1x64x496xf32> to vector<64x496xf32>
    %cst_10 = arith.constant dense<0.000000e+00> : vector<62x496xf32>
    %9 = tpu.matmul %6, %8, %cst_10 {dimension_numbers = #tpu.dot_dimension_numbers<[1], [0], [0], [1], [0, 0, 1, 1], [], []>} : vector<62x64xf32>, vector<64x496xf32>, vector<62x496xf32> -> vector<62x496xf32>
    %10 = arith.addf %4, %9 : vector<62x496xf32>
    %c0_11 = arith.constant 0 : index
    %c2 = arith.constant 2 : index
    %c0_12 = arith.constant 0 : index
    %11 = vector.load %arg1[%c0_11, %c2, %c0_12] : memref<1x64x64xf32, #tpu.memory_space<vmem>>, vector<1x62x64xf32>
    %12 = vector.shape_cast %11 : vector<1x62x64xf32> to vector<62x64xf32>
    %c2_13 = arith.constant 2 : index
    %c0_14 = arith.constant 0 : index
    %c0_15 = arith.constant 0 : index
    %13 = vector.load %arg2[%c2_13, %c0_14, %c0_15] : memref<3x64x496xf32, #tpu.memory_space<vmem>>, vector<1x64x496xf32>
    %14 = vector.shape_cast %13 : vector<1x64x496xf32> to vector<64x496xf32>
    %cst_16 = arith.constant dense<0.000000e+00> : vector<62x496xf32>
    %15 = tpu.matmul %12, %14, %cst_16 {dimension_numbers = #tpu.dot_dimension_numbers<[1], [0], [0], [1], [0, 0, 1, 1], [], []>} : vector<62x64xf32>, vector<64x496xf32>, vector<62x496xf32> -> vector<62x496xf32>
    %16 = arith.addf %10, %15 : vector<62x496xf32>
    %c0_17 = arith.constant 0 : index
    %c0_18 = arith.constant 0 : index
    %17 = vector.load %arg3[%c0_17, %c0_18] : memref<1x496xf32, #tpu.memory_space<vmem>>, vector<1x496xf32>
    %18 = vector.broadcast %17 : vector<1x496xf32> to vector<62x496xf32>
    %19 = arith.addf %16, %18 : vector<62x496xf32>
    %cst_19 = arith.constant 0.000000e+00 : f32
    %20 = vector.broadcast %cst_19 : f32 to vector<62x496xf32>
    %21 = arith.maximumf %19, %20 : vector<62x496xf32>
    %22 = vector.extract_strided_slice %21 {offsets = [0, 0], sizes = [61, 496], strides = [1, 1]} : vector<62x496xf32> to vector<61x496xf32>
    %23 = vector.extract_strided_slice %21 {offsets = [1, 0], sizes = [61, 496], strides = [1, 1]} : vector<62x496xf32> to vector<61x496xf32>
    %24 = arith.maximumf %22, %23 : vector<61x496xf32>
    %c0_20 = arith.constant 0 : index
    %c0_21 = arith.constant 0 : index
    %25 = vector.load %arg4[%c0_20, %c0_21] : memref<31x61xf32, #tpu.memory_space<vmem>>, vector<31x61xf32>
    %cst_22 = arith.constant dense<0.000000e+00> : vector<31x496xf32>
    %26 = tpu.matmul %25, %24, %cst_22 {dimension_numbers = #tpu.dot_dimension_numbers<[1], [0], [0], [1], [0, 0, 1, 1], [], []>} : vector<31x61xf32>, vector<61x496xf32>, vector<31x496xf32> -> vector<31x496xf32>
    %27 = vector.extract_strided_slice %26 {offsets = [0, 0], sizes = [31, 488], strides = [1, 1]} : vector<31x496xf32> to vector<31x488xf32>
    %28 = vector.extract_strided_slice %26 {offsets = [0, 8], sizes = [31, 488], strides = [1, 1]} : vector<31x496xf32> to vector<31x488xf32>
    %29 = arith.maximumf %27, %28 : vector<31x488xf32>
    %c0_23 = arith.constant 0 : index
    %c0_24 = arith.constant 0 : index
    %30 = vector.load %arg5[%c0_23, %c0_24] : memref<488x248xf32, #tpu.memory_space<vmem>>, vector<488x248xf32>
    %cst_25 = arith.constant dense<0.000000e+00> : vector<31x248xf32>
    %31 = tpu.matmul %29, %30, %cst_25 {dimension_numbers = #tpu.dot_dimension_numbers<[1], [0], [0], [1], [0, 0, 1, 1], [], []>} : vector<31x488xf32>, vector<488x248xf32>, vector<31x248xf32> -> vector<31x248xf32>
    %32 = vector.extract_strided_slice %31 {offsets = [0, 0], sizes = [29, 248], strides = [1, 1]} : vector<31x248xf32> to vector<29x248xf32>
    %c0_26 = arith.constant 0 : index
    %c0_27 = arith.constant 0 : index
    %c0_28 = arith.constant 0 : index
    %33 = vector.load %arg6[%c0_26, %c0_27, %c0_28] : memref<3x248x464xf32, #tpu.memory_space<vmem>>, vector<1x248x464xf32>
    %34 = vector.shape_cast %33 : vector<1x248x464xf32> to vector<248x464xf32>
    %cst_29 = arith.constant dense<0.000000e+00> : vector<29x464xf32>
    %35 = tpu.matmul %32, %34, %cst_29 {dimension_numbers = #tpu.dot_dimension_numbers<[1], [0], [0], [1], [0, 0, 1, 1], [], []>} : vector<29x248xf32>, vector<248x464xf32>, vector<29x464xf32> -> vector<29x464xf32>
    %36 = vector.extract_strided_slice %31 {offsets = [1, 0], sizes = [29, 248], strides = [1, 1]} : vector<31x248xf32> to vector<29x248xf32>
    %c1_30 = arith.constant 1 : index
    %c0_31 = arith.constant 0 : index
    %c0_32 = arith.constant 0 : index
    %37 = vector.load %arg6[%c1_30, %c0_31, %c0_32] : memref<3x248x464xf32, #tpu.memory_space<vmem>>, vector<1x248x464xf32>
    %38 = vector.shape_cast %37 : vector<1x248x464xf32> to vector<248x464xf32>
    %cst_33 = arith.constant dense<0.000000e+00> : vector<29x464xf32>
    %39 = tpu.matmul %36, %38, %cst_33 {dimension_numbers = #tpu.dot_dimension_numbers<[1], [0], [0], [1], [0, 0, 1, 1], [], []>} : vector<29x248xf32>, vector<248x464xf32>, vector<29x464xf32> -> vector<29x464xf32>
    %40 = arith.addf %35, %39 : vector<29x464xf32>
    %41 = vector.extract_strided_slice %31 {offsets = [2, 0], sizes = [29, 248], strides = [1, 1]} : vector<31x248xf32> to vector<29x248xf32>
    %c2_34 = arith.constant 2 : index
    %c0_35 = arith.constant 0 : index
    %c0_36 = arith.constant 0 : index
    %42 = vector.load %arg6[%c2_34, %c0_35, %c0_36] : memref<3x248x464xf32, #tpu.memory_space<vmem>>, vector<1x248x464xf32>
    %43 = vector.shape_cast %42 : vector<1x248x464xf32> to vector<248x464xf32>
    %cst_37 = arith.constant dense<0.000000e+00> : vector<29x464xf32>
    %44 = tpu.matmul %41, %43, %cst_37 {dimension_numbers = #tpu.dot_dimension_numbers<[1], [0], [0], [1], [0, 0, 1, 1], [], []>} : vector<29x248xf32>, vector<248x464xf32>, vector<29x464xf32> -> vector<29x464xf32>
    %45 = arith.addf %40, %44 : vector<29x464xf32>
    %c0_38 = arith.constant 0 : index
    %c0_39 = arith.constant 0 : index
    %46 = vector.load %arg7[%c0_38, %c0_39] : memref<1x464xf32, #tpu.memory_space<vmem>>, vector<1x464xf32>
    %47 = vector.broadcast %46 : vector<1x464xf32> to vector<29x464xf32>
    %48 = arith.addf %45, %47 : vector<29x464xf32>
    %cst_40 = arith.constant 0.000000e+00 : f32
    %49 = vector.broadcast %cst_40 : f32 to vector<29x464xf32>
    %50 = arith.maximumf %48, %49 : vector<29x464xf32>
    %51 = vector.extract_strided_slice %50 {offsets = [0, 0], sizes = [28, 464], strides = [1, 1]} : vector<29x464xf32> to vector<28x464xf32>
    %52 = vector.extract_strided_slice %50 {offsets = [1, 0], sizes = [28, 464], strides = [1, 1]} : vector<29x464xf32> to vector<28x464xf32>
    %53 = arith.maximumf %51, %52 : vector<28x464xf32>
    %c0_41 = arith.constant 0 : index
    %c0_42 = arith.constant 0 : index
    %54 = vector.load %arg8[%c0_41, %c0_42] : memref<14x28xf32, #tpu.memory_space<vmem>>, vector<14x28xf32>
    %cst_43 = arith.constant dense<0.000000e+00> : vector<14x464xf32>
    %55 = tpu.matmul %54, %53, %cst_43 {dimension_numbers = #tpu.dot_dimension_numbers<[1], [0], [0], [1], [0, 0, 1, 1], [], []>} : vector<14x28xf32>, vector<28x464xf32>, vector<14x464xf32> -> vector<14x464xf32>
    %56 = vector.extract_strided_slice %55 {offsets = [0, 0], sizes = [14, 448], strides = [1, 1]} : vector<14x464xf32> to vector<14x448xf32>
    %57 = vector.extract_strided_slice %55 {offsets = [0, 16], sizes = [14, 448], strides = [1, 1]} : vector<14x464xf32> to vector<14x448xf32>
    %58 = arith.maximumf %56, %57 : vector<14x448xf32>
    %c0_44 = arith.constant 0 : index
    %c0_45 = arith.constant 0 : index
    %59 = vector.load %arg9[%c0_44, %c0_45] : memref<448x224xf32, #tpu.memory_space<vmem>>, vector<448x224xf32>
    %cst_46 = arith.constant dense<0.000000e+00> : vector<14x224xf32>
    %60 = tpu.matmul %58, %59, %cst_46 {dimension_numbers = #tpu.dot_dimension_numbers<[1], [0], [0], [1], [0, 0, 1, 1], [], []>} : vector<14x448xf32>, vector<448x224xf32>, vector<14x224xf32> -> vector<14x224xf32>
    %61 = vector.extract_strided_slice %60 {offsets = [0, 0], sizes = [12, 224], strides = [1, 1]} : vector<14x224xf32> to vector<12x224xf32>
    %c0_47 = arith.constant 0 : index
    %c0_48 = arith.constant 0 : index
    %c0_49 = arith.constant 0 : index
    %62 = vector.load %arg10[%c0_47, %c0_48, %c0_49] : memref<3x224x384xf32, #tpu.memory_space<vmem>>, vector<1x224x384xf32>
    %63 = vector.shape_cast %62 : vector<1x224x384xf32> to vector<224x384xf32>
    %cst_50 = arith.constant dense<0.000000e+00> : vector<12x384xf32>
    %64 = tpu.matmul %61, %63, %cst_50 {dimension_numbers = #tpu.dot_dimension_numbers<[1], [0], [0], [1], [0, 0, 1, 1], [], []>} : vector<12x224xf32>, vector<224x384xf32>, vector<12x384xf32> -> vector<12x384xf32>
    %65 = vector.extract_strided_slice %60 {offsets = [1, 0], sizes = [12, 224], strides = [1, 1]} : vector<14x224xf32> to vector<12x224xf32>
    %c1_51 = arith.constant 1 : index
    %c0_52 = arith.constant 0 : index
    %c0_53 = arith.constant 0 : index
    %66 = vector.load %arg10[%c1_51, %c0_52, %c0_53] : memref<3x224x384xf32, #tpu.memory_space<vmem>>, vector<1x224x384xf32>
    %67 = vector.shape_cast %66 : vector<1x224x384xf32> to vector<224x384xf32>
    %cst_54 = arith.constant dense<0.000000e+00> : vector<12x384xf32>
    %68 = tpu.matmul %65, %67, %cst_54 {dimension_numbers = #tpu.dot_dimension_numbers<[1], [0], [0], [1], [0, 0, 1, 1], [], []>} : vector<12x224xf32>, vector<224x384xf32>, vector<12x384xf32> -> vector<12x384xf32>
    %69 = arith.addf %64, %68 : vector<12x384xf32>
    %70 = vector.extract_strided_slice %60 {offsets = [2, 0], sizes = [12, 224], strides = [1, 1]} : vector<14x224xf32> to vector<12x224xf32>
    %c2_55 = arith.constant 2 : index
    %c0_56 = arith.constant 0 : index
    %c0_57 = arith.constant 0 : index
    %71 = vector.load %arg10[%c2_55, %c0_56, %c0_57] : memref<3x224x384xf32, #tpu.memory_space<vmem>>, vector<1x224x384xf32>
    %72 = vector.shape_cast %71 : vector<1x224x384xf32> to vector<224x384xf32>
    %cst_58 = arith.constant dense<0.000000e+00> : vector<12x384xf32>
    %73 = tpu.matmul %70, %72, %cst_58 {dimension_numbers = #tpu.dot_dimension_numbers<[1], [0], [0], [1], [0, 0, 1, 1], [], []>} : vector<12x224xf32>, vector<224x384xf32>, vector<12x384xf32> -> vector<12x384xf32>
    %74 = arith.addf %69, %73 : vector<12x384xf32>
    %c0_59 = arith.constant 0 : index
    %c0_60 = arith.constant 0 : index
    %75 = vector.load %arg11[%c0_59, %c0_60] : memref<1x384xf32, #tpu.memory_space<vmem>>, vector<1x384xf32>
    %76 = vector.broadcast %75 : vector<1x384xf32> to vector<12x384xf32>
    %77 = arith.addf %74, %76 : vector<12x384xf32>
    %cst_61 = arith.constant 0.000000e+00 : f32
    %78 = vector.broadcast %cst_61 : f32 to vector<12x384xf32>
    %79 = arith.maximumf %77, %78 : vector<12x384xf32>
    %80 = vector.extract_strided_slice %79 {offsets = [0, 0], sizes = [11, 384], strides = [1, 1]} : vector<12x384xf32> to vector<11x384xf32>
    %81 = vector.extract_strided_slice %79 {offsets = [1, 0], sizes = [11, 384], strides = [1, 1]} : vector<12x384xf32> to vector<11x384xf32>
    %82 = arith.maximumf %80, %81 : vector<11x384xf32>
    %c0_62 = arith.constant 0 : index
    %c0_63 = arith.constant 0 : index
    %83 = vector.load %arg12[%c0_62, %c0_63] : memref<6x11xf32, #tpu.memory_space<vmem>>, vector<6x11xf32>
    %cst_64 = arith.constant dense<0.000000e+00> : vector<6x384xf32>
    %84 = tpu.matmul %83, %82, %cst_64 {dimension_numbers = #tpu.dot_dimension_numbers<[1], [0], [0], [1], [0, 0, 1, 1], [], []>} : vector<6x11xf32>, vector<11x384xf32>, vector<6x384xf32> -> vector<6x384xf32>
    %85 = vector.extract_strided_slice %84 {offsets = [0, 0], sizes = [6, 352], strides = [1, 1]} : vector<6x384xf32> to vector<6x352xf32>
    %86 = vector.extract_strided_slice %84 {offsets = [0, 32], sizes = [6, 352], strides = [1, 1]} : vector<6x384xf32> to vector<6x352xf32>
    %87 = arith.maximumf %85, %86 : vector<6x352xf32>
    %c0_65 = arith.constant 0 : index
    %c0_66 = arith.constant 0 : index
    %88 = vector.load %arg13[%c0_65, %c0_66] : memref<352x192xf32, #tpu.memory_space<vmem>>, vector<352x192xf32>
    %cst_67 = arith.constant dense<0.000000e+00> : vector<6x192xf32>
    %89 = tpu.matmul %87, %88, %cst_67 {dimension_numbers = #tpu.dot_dimension_numbers<[1], [0], [0], [1], [0, 0, 1, 1], [], []>} : vector<6x352xf32>, vector<352x192xf32>, vector<6x192xf32> -> vector<6x192xf32>
    %90 = vector.extract_strided_slice %89 {offsets = [0, 0], sizes = [4, 192], strides = [1, 1]} : vector<6x192xf32> to vector<4x192xf32>
    %c0_68 = arith.constant 0 : index
    %c0_69 = arith.constant 0 : index
    %c0_70 = arith.constant 0 : index
    %91 = vector.load %arg14[%c0_68, %c0_69, %c0_70] : memref<3x192x256xf32, #tpu.memory_space<vmem>>, vector<1x192x256xf32>
    %92 = vector.shape_cast %91 : vector<1x192x256xf32> to vector<192x256xf32>
    %cst_71 = arith.constant dense<0.000000e+00> : vector<4x256xf32>
    %93 = tpu.matmul %90, %92, %cst_71 {dimension_numbers = #tpu.dot_dimension_numbers<[1], [0], [0], [1], [0, 0, 1, 1], [], []>} : vector<4x192xf32>, vector<192x256xf32>, vector<4x256xf32> -> vector<4x256xf32>
    %94 = vector.extract_strided_slice %89 {offsets = [1, 0], sizes = [4, 192], strides = [1, 1]} : vector<6x192xf32> to vector<4x192xf32>
    %c1_72 = arith.constant 1 : index
    %c0_73 = arith.constant 0 : index
    %c0_74 = arith.constant 0 : index
    %95 = vector.load %arg14[%c1_72, %c0_73, %c0_74] : memref<3x192x256xf32, #tpu.memory_space<vmem>>, vector<1x192x256xf32>
    %96 = vector.shape_cast %95 : vector<1x192x256xf32> to vector<192x256xf32>
    %cst_75 = arith.constant dense<0.000000e+00> : vector<4x256xf32>
    %97 = tpu.matmul %94, %96, %cst_75 {dimension_numbers = #tpu.dot_dimension_numbers<[1], [0], [0], [1], [0, 0, 1, 1], [], []>} : vector<4x192xf32>, vector<192x256xf32>, vector<4x256xf32> -> vector<4x256xf32>
    %98 = arith.addf %93, %97 : vector<4x256xf32>
    %99 = vector.extract_strided_slice %89 {offsets = [2, 0], sizes = [4, 192], strides = [1, 1]} : vector<6x192xf32> to vector<4x192xf32>
    %c2_76 = arith.constant 2 : index
    %c0_77 = arith.constant 0 : index
    %c0_78 = arith.constant 0 : index
    %100 = vector.load %arg14[%c2_76, %c0_77, %c0_78] : memref<3x192x256xf32, #tpu.memory_space<vmem>>, vector<1x192x256xf32>
    %101 = vector.shape_cast %100 : vector<1x192x256xf32> to vector<192x256xf32>
    %cst_79 = arith.constant dense<0.000000e+00> : vector<4x256xf32>
    %102 = tpu.matmul %99, %101, %cst_79 {dimension_numbers = #tpu.dot_dimension_numbers<[1], [0], [0], [1], [0, 0, 1, 1], [], []>} : vector<4x192xf32>, vector<192x256xf32>, vector<4x256xf32> -> vector<4x256xf32>
    %103 = arith.addf %98, %102 : vector<4x256xf32>
    %c0_80 = arith.constant 0 : index
    %c0_81 = arith.constant 0 : index
    %104 = vector.load %arg15[%c0_80, %c0_81] : memref<1x256xf32, #tpu.memory_space<vmem>>, vector<1x256xf32>
    %105 = vector.broadcast %104 : vector<1x256xf32> to vector<4x256xf32>
    %106 = arith.addf %103, %105 : vector<4x256xf32>
    %cst_82 = arith.constant 0.000000e+00 : f32
    %107 = vector.broadcast %cst_82 : f32 to vector<4x256xf32>
    %108 = arith.maximumf %106, %107 : vector<4x256xf32>
    %109 = vector.extract_strided_slice %108 {offsets = [0, 0], sizes = [3, 256], strides = [1, 1]} : vector<4x256xf32> to vector<3x256xf32>
    %110 = vector.extract_strided_slice %108 {offsets = [1, 0], sizes = [3, 256], strides = [1, 1]} : vector<4x256xf32> to vector<3x256xf32>
    %111 = arith.maximumf %109, %110 : vector<3x256xf32>
    %c0_83 = arith.constant 0 : index
    %c0_84 = arith.constant 0 : index
    %112 = vector.load %arg16[%c0_83, %c0_84] : memref<2x3xf32, #tpu.memory_space<vmem>>, vector<2x3xf32>
    %cst_85 = arith.constant dense<0.000000e+00> : vector<2x256xf32>
    %113 = tpu.matmul %112, %111, %cst_85 {dimension_numbers = #tpu.dot_dimension_numbers<[1], [0], [0], [1], [0, 0, 1, 1], [], []>} : vector<2x3xf32>, vector<3x256xf32>, vector<2x256xf32> -> vector<2x256xf32>
    %114 = vector.extract_strided_slice %113 {offsets = [0, 0], sizes = [2, 192], strides = [1, 1]} : vector<2x256xf32> to vector<2x192xf32>
    %115 = vector.extract_strided_slice %113 {offsets = [0, 64], sizes = [2, 192], strides = [1, 1]} : vector<2x256xf32> to vector<2x192xf32>
    %116 = arith.maximumf %114, %115 : vector<2x192xf32>
    %c0_86 = arith.constant 0 : index
    %c0_87 = arith.constant 0 : index
    %117 = vector.load %arg17[%c0_86, %c0_87] : memref<192x128xf32, #tpu.memory_space<vmem>>, vector<192x128xf32>
    %cst_88 = arith.constant dense<0.000000e+00> : vector<2x128xf32>
    %118 = tpu.matmul %116, %117, %cst_88 {dimension_numbers = #tpu.dot_dimension_numbers<[1], [0], [0], [1], [0, 0, 1, 1], [], []>} : vector<2x192xf32>, vector<192x128xf32>, vector<2x128xf32> -> vector<2x128xf32>
    %119 = vector.extract_strided_slice %118 {offsets = [0, 0], sizes = [1, 128], strides = [1, 1]} : vector<2x128xf32> to vector<1x128xf32>
    %c0_89 = arith.constant 0 : index
    %c0_90 = arith.constant 0 : index
    %c0_91 = arith.constant 0 : index
    %120 = vector.load %arg18[%c0_89, %c0_90, %c0_91] : memref<2x128x64xf32, #tpu.memory_space<vmem>>, vector<1x128x64xf32>
    %121 = vector.shape_cast %120 : vector<1x128x64xf32> to vector<128x64xf32>
    %cst_92 = arith.constant dense<0.000000e+00> : vector<1x64xf32>
    %122 = tpu.matmul %119, %121, %cst_92 {dimension_numbers = #tpu.dot_dimension_numbers<[1], [0], [0], [1], [0, 0, 1, 1], [], []>} : vector<1x128xf32>, vector<128x64xf32>, vector<1x64xf32> -> vector<1x64xf32>
    %123 = vector.extract_strided_slice %118 {offsets = [1, 0], sizes = [1, 128], strides = [1, 1]} : vector<2x128xf32> to vector<1x128xf32>
    %c1_93 = arith.constant 1 : index
    %c0_94 = arith.constant 0 : index
    %c0_95 = arith.constant 0 : index
    %124 = vector.load %arg18[%c1_93, %c0_94, %c0_95] : memref<2x128x64xf32, #tpu.memory_space<vmem>>, vector<1x128x64xf32>
    %125 = vector.shape_cast %124 : vector<1x128x64xf32> to vector<128x64xf32>
    %cst_96 = arith.constant dense<0.000000e+00> : vector<1x64xf32>
    %126 = tpu.matmul %123, %125, %cst_96 {dimension_numbers = #tpu.dot_dimension_numbers<[1], [0], [0], [1], [0, 0, 1, 1], [], []>} : vector<1x128xf32>, vector<128x64xf32>, vector<1x64xf32> -> vector<1x64xf32>
    %127 = arith.addf %122, %126 : vector<1x64xf32>
    %c0_97 = arith.constant 0 : index
    %c0_98 = arith.constant 0 : index
    %128 = vector.load %arg19[%c0_97, %c0_98] : memref<1x64xf32, #tpu.memory_space<vmem>>, vector<1x64xf32>
    %129 = arith.addf %127, %128 : vector<1x64xf32>
    %cst_99 = arith.constant 0.000000e+00 : f32
    %130 = vector.broadcast %cst_99 : f32 to vector<1x64xf32>
    %131 = arith.maximumf %129, %130 : vector<1x64xf32>
    %c0_100 = arith.constant 0 : index
    %c0_101 = arith.constant 0 : index
    %132 = vector.load %arg20[%c0_100, %c0_101] : memref<64x5xf32, #tpu.memory_space<vmem>>, vector<64x5xf32>
    %cst_102 = arith.constant dense<0.000000e+00> : vector<1x5xf32>
    %133 = tpu.matmul %131, %132, %cst_102 {dimension_numbers = #tpu.dot_dimension_numbers<[1], [0], [0], [1], [0, 0, 1, 1], [], []>} : vector<1x64xf32>, vector<64x5xf32>, vector<1x5xf32> -> vector<1x5xf32>
    %c0_103 = arith.constant 0 : index
    %c0_104 = arith.constant 0 : index
    %134 = vector.load %arg21[%c0_103, %c0_104] : memref<1x5xf32, #tpu.memory_space<vmem>>, vector<1x5xf32>
    %135 = arith.addf %133, %134 : vector<1x5xf32>
    %cst_105 = arith.constant dense<0xFF800000> : vector<1xf32>
    %136 = vector.multi_reduction <maximumf>, %135, %cst_105 [1] : vector<1x5xf32> to vector<1xf32>
    %137 = vector.shape_cast %136 : vector<1xf32> to vector<1x1xf32>
    %138 = vector.broadcast %137 : vector<1x1xf32> to vector<1x5xf32>
    %139 = arith.subf %135, %138 : vector<1x5xf32>
    %140 = math.exp %139 : vector<1x5xf32>
    %cst_106 = arith.constant dense<0.000000e+00> : vector<1xf32>
    %141 = vector.multi_reduction <add>, %140, %cst_106 [1] : vector<1x5xf32> to vector<1xf32>
    %142 = vector.shape_cast %141 : vector<1xf32> to vector<1x1xf32>
    %143 = vector.broadcast %142 : vector<1x1xf32> to vector<1x5xf32>
    %144 = arith.divf %140, %143 : vector<1x5xf32>
    %c0_107 = arith.constant 0 : index
    %c0_108 = arith.constant 0 : index
    %c0_109 = arith.constant 0 : index
    %145 = vector.load %arg22[%c0_107, %c0_108, %c0_109] : memref<1x1x5xf32, #tpu.memory_space<vmem>>, vector<1x1x5xf32>
    %146 = vector.shape_cast %145 : vector<1x1x5xf32> to vector<1x5xf32>
    %147 = vector.shape_cast %144 : vector<1x5xf32> to vector<1x1x5xf32>
    tpu.vector_store %arg22[%c0_107, %c0_108, %c0_109], %147 {strides = array<i32>} : memref<1x1x5xf32, #tpu.memory_space<vmem>>, vector<1x1x5xf32>,
    return
  }
  func.func @transform_0(%arg0: i32) -> (i32, i32, i32) {
    %c0_i32 = arith.constant 0 : i32
    %c0_i32_0 = arith.constant 0 : i32
    %c0_i32_1 = arith.constant 0 : i32
    return %arg0, %c0_i32, %c0_i32_0 : i32, i32, i32
  }
  func.func @transform_1(%arg0: i32) -> (i32, i32, i32) {
    %c0_i32 = arith.constant 0 : i32
    %c0_i32_0 = arith.constant 0 : i32
    %c0_i32_1 = arith.constant 0 : i32
    %c0_i32_2 = arith.constant 0 : i32
    return %c0_i32, %c0_i32_0, %c0_i32_1 : i32, i32, i32
  }
  func.func @transform_2(%arg0: i32) -> (i32, i32) {
    %c0_i32 = arith.constant 0 : i32
    %c0_i32_0 = arith.constant 0 : i32
    %c0_i32_1 = arith.constant 0 : i32
    return %c0_i32, %c0_i32_0 : i32, i32
  }
  func.func @transform_3(%arg0: i32) -> (i32, i32) {
    %c0_i32 = arith.constant 0 : i32
    %c0_i32_0 = arith.constant 0 : i32
    %c0_i32_1 = arith.constant 0 : i32
    return %c0_i32, %c0_i32_0 : i32, i32
  }
  func.func @transform_4(%arg0: i32) -> (i32, i32) {
    %c0_i32 = arith.constant 0 : i32
    %c0_i32_0 = arith.constant 0 : i32
    %c0_i32_1 = arith.constant 0 : i32
    return %c0_i32, %c0_i32_0 : i32, i32
  }
  func.func @transform_5(%arg0: i32) -> (i32, i32, i32) {
    %c0_i32 = arith.constant 0 : i32
    %c0_i32_0 = arith.constant 0 : i32
    %c0_i32_1 = arith.constant 0 : i32
    %c0_i32_2 = arith.constant 0 : i32
    return %c0_i32, %c0_i32_0, %c0_i32_1 : i32, i32, i32
  }
  func.func @transform_6(%arg0: i32) -> (i32, i32) {
    %c0_i32 = arith.constant 0 : i32
    %c0_i32_0 = arith.constant 0 : i32
    %c0_i32_1 = arith.constant 0 : i32
    return %c0_i32, %c0_i32_0 : i32, i32
  }
  func.func @transform_7(%arg0: i32) -> (i32, i32) {
    %c0_i32 = arith.constant 0 : i32
    %c0_i32_0 = arith.constant 0 : i32
    %c0_i32_1 = arith.constant 0 : i32
    return %c0_i32, %c0_i32_0 : i32, i32
  }
  func.func @transform_8(%arg0: i32) -> (i32, i32) {
    %c0_i32 = arith.constant 0 : i32
    %c0_i32_0 = arith.constant 0 : i32
    %c0_i32_1 = arith.constant 0 : i32
    return %c0_i32, %c0_i32_0 : i32, i32
  }
  func.func @transform_9(%arg0: i32) -> (i32, i32, i32) {
    %c0_i32 = arith.constant 0 : i32
    %c0_i32_0 = arith.constant 0 : i32
    %c0_i32_1 = arith.constant 0 : i32
    %c0_i32_2 = arith.constant 0 : i32
    return %c0_i32, %c0_i32_0, %c0_i32_1 : i32, i32, i32
  }
  func.func @transform_10(%arg0: i32) -> (i32, i32) {
    %c0_i32 = arith.constant 0 : i32
    %c0_i32_0 = arith.constant 0 : i32
    %c0_i32_1 = arith.constant 0 : i32
    return %c0_i32, %c0_i32_0 : i32, i32
  }
  func.func @transform_11(%arg0: i32) -> (i32, i32) {
    %c0_i32 = arith.constant 0 : i32
    %c0_i32_0 = arith.constant 0 : i32
    %c0_i32_1 = arith.constant 0 : i32
    return %c0_i32, %c0_i32_0 : i32, i32
  }
  func.func @transform_12(%arg0: i32) -> (i32, i32) {
    %c0_i32 = arith.constant 0 : i32
    %c0_i32_0 = arith.constant 0 : i32
    %c0_i32_1 = arith.constant 0 : i32
    return %c0_i32, %c0_i32_0 : i32, i32
  }
  func.func @transform_13(%arg0: i32) -> (i32, i32, i32) {
    %c0_i32 = arith.constant 0 : i32
    %c0_i32_0 = arith.constant 0 : i32
    %c0_i32_1 = arith.constant 0 : i32
    %c0_i32_2 = arith.constant 0 : i32
    return %c0_i32, %c0_i32_0, %c0_i32_1 : i32, i32, i32
  }
  func.func @transform_14(%arg0: i32) -> (i32, i32) {
    %c0_i32 = arith.constant 0 : i32
    %c0_i32_0 = arith.constant 0 : i32
    %c0_i32_1 = arith.constant 0 : i32
    return %c0_i32, %c0_i32_0 : i32, i32
  }
  func.func @transform_15(%arg0: i32) -> (i32, i32) {
    %c0_i32 = arith.constant 0 : i32
    %c0_i32_0 = arith.constant 0 : i32
    %c0_i32_1 = arith.constant 0 : i32
    return %c0_i32, %c0_i32_0 : i32, i32
  }
  func.func @transform_16(%arg0: i32) -> (i32, i32) {
    %c0_i32 = arith.constant 0 : i32
    %c0_i32_0 = arith.constant 0 : i32
    %c0_i32_1 = arith.constant 0 : i32
    return %c0_i32, %c0_i32_0 : i32, i32
  }
  func.func @transform_17(%arg0: i32) -> (i32, i32, i32) {
    %c0_i32 = arith.constant 0 : i32
    %c0_i32_0 = arith.constant 0 : i32
    %c0_i32_1 = arith.constant 0 : i32
    %c0_i32_2 = arith.constant 0 : i32
    return %c0_i32, %c0_i32_0, %c0_i32_1 : i32, i32, i32
  }
  func.func @transform_18(%arg0: i32) -> (i32, i32) {
    %c0_i32 = arith.constant 0 : i32
    %c0_i32_0 = arith.constant 0 : i32
    %c0_i32_1 = arith.constant 0 : i32
    return %c0_i32, %c0_i32_0 : i32, i32
  }
  func.func @transform_19(%arg0: i32) -> (i32, i32) {
    %c0_i32 = arith.constant 0 : i32
    %c0_i32_0 = arith.constant 0 : i32
    %c0_i32_1 = arith.constant 0 : i32
    return %c0_i32, %c0_i32_0 : i32, i32
  }
  func.func @transform_20(%arg0: i32) -> (i32, i32) {
    %c0_i32 = arith.constant 0 : i32
    %c0_i32_0 = arith.constant 0 : i32
    %c0_i32_1 = arith.constant 0 : i32
    return %c0_i32, %c0_i32_0 : i32, i32
  }
  func.func @transform_21(%arg0: i32) -> (i32, i32, i32) {
    %c0_i32 = arith.constant 0 : i32
    %c0_i32_0 = arith.constant 0 : i32
    %c0_i32_1 = arith.constant 0 : i32
    return %arg0, %c0_i32, %c0_i32_0 : i32, i32, i32
  }
}

</mosaic_0001>

<llo_original>
// kernel: tile.23
$region0: #{tile.23}
  #allocation0 [shape = 's32[1]{0}', space=sflag, size = 0x4, scoped, tag = 'scoped memory for tile.23']
  %s0 = inlined_call_operand.vmem [shape: f32[8], index: 0, kind: input, shape index: {}]
  %s1 = inlined_call_operand.vmem [shape: f32[62,8], index: 1, kind: output, shape index: {}]
  // Predicated region
  $region2: #{tile.23} parent=0 // pred_check
    _
  $region3: #{tile.23} parent=0 // pred_check_branch
    %3 = sbr.rel (0) target = $region5
  $region4: #{tile.23} parent=0 // pred_region
    _
  $region5: #{tile.23} parent=0 // pred_fallthru
    _
  %v4 = vld [vmem:[%s0] ss:$0 sm:$0xff]
  %5 = vst [vmem:[%s1] sm:$0xff] %v4
  %s6 = scalar_lea.vmem %s1, 8
  %7 = vst [vmem:[%s6] sm:$0xff] %v4
  %s8 = scalar_lea.vmem %s1, 16
  %9 = vst [vmem:[%s8] sm:$0xff] %v4
  %s10 = scalar_lea.vmem %s1, 24
  %11 = vst [vmem:[%s10] sm:$0xff] %v4
  %s12 = scalar_lea.vmem %s1, 32
  %13 = vst [vmem:[%s12] sm:$0xff] %v4
  %s14 = scalar_lea.vmem %s1, 40
  %15 = vst [vmem:[%s14] sm:$0xff] %v4
  %s16 = scalar_lea.vmem %s1, 48
  %17 = vst [vmem:[%s16] sm:$0xff] %v4
  %s18 = scalar_lea.vmem %s1, 56
  %19 = vst [vmem:[%s18] sm:$0xff] %v4

// kernel: tile.24
$region0: #{tile.24}
  %s0 = inlined_call_operand.vmem [shape: f32[62,8], index: 0, kind: input, shape index: {}]
  %s1 = inlined_call_operand.vmem [shape: f32[1,496], index: 1, kind: output, shape index: {}]
  $region1: #{tile.24} parent=0
    #allocation0 [shape = 'u8[16384]{0}', space=vmem, size = 0x4000, scoped, tag = 'scoped mem for output reshape']
    %s2 = smov 3
    %v3 = vld [vmem:[%s0] ss:$16 sm:%s2]
    %s4 = smov 12
    %v5 = vld [vmem:[%s0] ss:$16 sm:%s4]
    %vm6 = vcmask 1043458
    %v7 = vsel %vm6, %v5, %v3
    %vm8 = vcmask 64512
    %9 = vst.msk [vmem:[#allocation0] ss:$8 sm:$0xf] %vm8, %v7
    %s10 = scalar_lea.vmem %s0, 15
    %s11 = smov 3
    %v12 = vld [vmem:[%s10] ss:$16 sm:%s11]
    %s13 = scalar_lea.vmem %s0, 45
    %v14 = vld [vmem:[%s13] sm:$0x4]
    %vm15 = vcmask 1042434
    %v16 = vsel %vm15, %v14, %v12
    %17 = vrot.lane.b32.xlu0 %v16, 120
    %v18 = vpop.permute.xlu0 %17
    %vm19 = vcmask 1048512
    %20 = vst.msk [vmem:[#allocation0] ss:$8 sm:$0x7] %vm19, %v18
    %s21 = scalar_lea.vmem %s0, 14
    %s22 = smov 3
    %v23 = vld [vmem:[%s21] ss:$16 sm:%s22]
    %s24 = scalar_lea.vmem %s0, 44
    %v25 = vld [vmem:[%s24] sm:$0x4]
    %vm26 = vcmask 1042434
    %v27 = vsel %vm26, %v25, %v23
    %28 = vrot.lane.b32.xlu0 %v27, 112
    %v29 = vpop.permute.xlu0 %28
    %vm30 = vcmask 982912
    %31 = vst.msk [vmem:[#allocation0] ss:$8 sm:$0x7] %vm30, %v29
    %s32 = scalar_lea.vmem %s0, 13
    %s33 = smov 3
    %v34 = vld [vmem:[%s32] ss:$16 sm:%s33]
    %s35 = scalar_lea.vmem %s0, 13
    %s36 = smov 12
    %v37 = vld [vmem:[%s35] ss:$16 sm:%s36]
    %vm38 = vcmask 1043458
    %v39 = vsel %vm38, %v37, %v34
    %40 = vrot.lane.b32.xlu0 %v39, 104
    %v41 = vpop.permute.xlu0 %40
    %vm42 = vcmask 917312
    %43 = vst.msk [vmem:[#allocation0] ss:$8 sm:$0xf] %vm42, %v41
    %s44 = scalar_lea.vmem %s0, 12
    %s45 = smov 3
    %v46 = vld [vmem:[%s44] ss:$16 sm:%s45]
    %s47 = scalar_lea.vmem %s0, 12
    %s48 = smov 12
    %v49 = vld [vmem:[%s47] ss:$16 sm:%s48]
    %vm50 = vcmask 1043458
    %v51 = vsel %vm50, %v49, %v46
    %52 = vrot.lane.b32.xlu0 %v51, 96
    %v53 = vpop.permute.xlu0 %52
    %vm54 = vcmask 851712
    %55 = vst.msk [vmem:[#allocation0] ss:$8 sm:$0xf] %vm54, %v53
    %s56 = scalar_lea.vmem %s0, 11
    %s57 = smov 3
    %v58 = vld [vmem:[%s56] ss:$16 sm:%s57]
    %s59 = scalar_lea.vmem %s0, 11
    %s60 = smov 12
    %v61 = vld [vmem:[%s59] ss:$16 sm:%s60]
    %vm62 = vcmask 1043458
    %v63 = vsel %vm62, %v61, %v58
    %64 = vrot.lane.b32.xlu0 %v63, 88
    %v65 = vpop.permute.xlu0 %64
    %vm66 = vcmask 786112
    %67 = vst.msk [vmem:[#allocation0] ss:$8 sm:$0xf] %vm66, %v65
    %s68 = scalar_lea.vmem %s0, 10
    %s69 = smov 3
    %v70 = vld [vmem:[%s68] ss:$16 sm:%s69]
    %s71 = scalar_lea.vmem %s0, 10
    %s72 = smov 12
    %v73 = vld [vmem:[%s71] ss:$16 sm:%s72]
    %vm74 = vcmask 1043458
    %v75 = vsel %vm74, %v73, %v70
    %76 = vrot.lane.b32.xlu0 %v75, 80
    %v77 = vpop.permute.xlu0 %76
    %vm78 = vcmask 720512
    %79 = vst.msk [vmem:[#allocation0] ss:$8 sm:$0xf] %vm78, %v77
    %s80 = scalar_lea.vmem %s0, 9
    %s81 = smov 3
    %v82 = vld [vmem:[%s80] ss:$16 sm:%s81]
    %s83 = scalar_lea.vmem %s0, 9
    %s84 = smov 12
    %v85 = vld [vmem:[%s83] ss:$16 sm:%s84]
    %vm86 = vcmask 1043458
    %v87 = vsel %vm86, %v85, %v82
    %88 = vrot.lane.b32.xlu0 %v87, 72
    %v89 = vpop.permute.xlu0 %88
    %vm90 = vcmask 654912
    %91 = vst.msk [vmem:[#allocation0] ss:$8 sm:$0xf] %vm90, %v89
    %s92 = scalar_lea.vmem %s0, 8
    %s93 = smov 3
    %v94 = vld [vmem:[%s92] ss:$16 sm:%s93]
    %s95 = scalar_lea.vmem %s0, 8
    %s96 = smov 12
    %v97 = vld [vmem:[%s95] ss:$16 sm:%s96]
    %vm98 = vcmask 1043458
    %v99 = vsel %vm98, %v97, %v94
    %100 = vrot.lane.b32.xlu0 %v99, 64
    %v101 = vpop.permute.xlu0 %100
    %vm102 = vcmask 589312
    %103 = vst.msk [vmem:[#allocation0] ss:$8 sm:$0xf] %vm102, %v101
    %s104 = scalar_lea.vmem %s0, 7
    %s105 = smov 3
    %v106 = vld [vmem:[%s104] ss:$16 sm:%s105]
    %s107 = scalar_lea.vmem %s0, 7
    %s108 = smov 12
    %v109 = vld [vmem:[%s107] ss:$16 sm:%s108]
    %vm110 = vcmask 1043458
    %v111 = vsel %vm110, %v109, %v106
    %112 = vrot.lane.b32.xlu0 %v111, 56
    %v113 = vpop.permute.xlu0 %112
    %vm114 = vcmask 523712
    %115 = vst.msk [vmem:[#allocation0] ss:$8 sm:$0xf] %vm114, %v113
    %s116 = scalar_lea.vmem %s0, 6
    %s117 = smov 3
    %v118 = vld [vmem:[%s116] ss:$16 sm:%s117]
    %s119 = scalar_lea.vmem %s0, 6
    %s120 = smov 12
    %v121 = vld [vmem:[%s119] ss:$16 sm:%s120]
    %vm122 = vcmask 1043458
    %v123 = vsel %vm122, %v121, %v118
    %124 = vrot.lane.b32.xlu0 %v123, 48
    %v125 = vpop.permute.xlu0 %124
    %vm126 = vcmask 458112
    %127 = vst.msk [vmem:[#allocation0] ss:$8 sm:$0xf] %vm126, %v125
    %s128 = scalar_lea.vmem %s0, 5
    %s129 = smov 3
    %v130 = vld [vmem:[%s128] ss:$16 sm:%s129]
    %s131 = scalar_lea.vmem %s0, 5
    %s132 = smov 12
    %v133 = vld [vmem:[%s131] ss:$16 sm:%s132]
    %vm134 = vcmask 1043458
    %v135 = vsel %vm134, %v133, %v130
    %136 = vrot.lane.b32.xlu0 %v135, 40
    %v137 = vpop.permute.xlu0 %136
    %vm138 = vcmask 392512
    %139 = vst.msk [vmem:[#allocation0] ss:$8 sm:$0xf] %vm138, %v137
    %s140 = scalar_lea.vmem %s0, 4
    %s141 = smov 3
    %v142 = vld [vmem:[%s140] ss:$16 sm:%s141]
    %s143 = scalar_lea.vmem %s0, 4
    %s144 = smov 12
    %v145 = vld [vmem:[%s143] ss:$16 sm:%s144]
    %vm146 = vcmask 1043458
    %v147 = vsel %vm146, %v145, %v142
    %148 = vrot.lane.b32.xlu0 %v147, 32
    %v149 = vpop.permute.xlu0 %148
    %vm150 = vcmask 326912
    %151 = vst.msk [vmem:[#allocation0] ss:$8 sm:$0xf] %vm150, %v149
    %s152 = scalar_lea.vmem %s0, 3
    %s153 = smov 3
    %v154 = vld [vmem:[%s152] ss:$16 sm:%s153]
    %s155 = scalar_lea.vmem %s0, 3
    %s156 = smov 12
    %v157 = vld [vmem:[%s155] ss:$16 sm:%s156]
    %vm158 = vcmask 1043458
    %v159 = vsel %vm158, %v157, %v154
    %160 = vrot.lane.b32.xlu0 %v159, 24
    %v161 = vpop.permute.xlu0 %160
    %vm162 = vcmask 261312
    %163 = vst.msk [vmem:[#allocation0] ss:$8 sm:$0xf] %vm162, %v161
    %s164 = scalar_lea.vmem %s0, 2
    %s165 = smov 3
    %v166 = vld [vmem:[%s164] ss:$16 sm:%s165]
    %s167 = scalar_lea.vmem %s0, 2
    %s168 = smov 12
    %v169 = vld [vmem:[%s167] ss:$16 sm:%s168]
    %vm170 = vcmask 1043458
    %v171 = vsel %vm170, %v169, %v166
    %172 = vrot.lane.b32.xlu0 %v171, 16
    %v173 = vpop.permute.xlu0 %172
    %vm174 = vcmask 195712
    %175 = vst.msk [vmem:[#allocation0] ss:$8 sm:$0xf] %vm174, %v173
    %s176 = scalar_lea.vmem %s0, 1
    %s177 = smov 3
    %v178 = vld [vmem:[%s176] ss:$16 sm:%s177]
    %s179 = scalar_lea.vmem %s0, 1
    %s180 = smov 12
    %v181 = vld [vmem:[%s179] ss:$16 sm:%s180]
    %vm182 = vcmask 1043458
    %v183 = vsel %vm182, %v181, %v178
    %184 = vrot.lane.b32.xlu0 %v183, 8
    %v185 = vpop.permute.xlu0 %184
    %vm186 = vcmask 130112
    %187 = vst.msk [vmem:[#allocation0] ss:$8 sm:$0xf] %vm186, %v185
    %s189 = sshllo.u32 0, 1
    %v191 = vld [vmem:[#allocation0] sm:%s189]
    %s192 = sshllo.u32 0, 1
    %193 = vst [vmem:[%s1] sm:%s192] %v191
    %s194 = scalar_lea.vmem [#allocation0], 8
    %v195 = vld [vmem:[%s194] sm:%s189]
    %s196 = sshllo.u32 0, 1
    %s197 = scalar_lea.vmem %s1, 1
    %198 = vst [vmem:[%s197] sm:%s196] %v195
    %s199 = scalar_lea.vmem [#allocation0], 16
    %v200 = vld [vmem:[%s199] sm:%s189]
    %s201 = sshllo.u32 0, 1
    %s202 = smul.addr 1, 2
    %s203 = scalar_lea.vmem %s1, %s202
    %204 = vst [vmem:[%s203] sm:%s201] %v200
    %s205 = scalar_lea.vmem [#allocation0], 24
    %v206 = vld [vmem:[%s205] sm:%s189]
    %s207 = sshllo.u32 0, 1
    %s208 = smul.addr 1, 3
    %s209 = scalar_lea.vmem %s1, %s208
    %210 = vst [vmem:[%s209] sm:%s207] %v206

// kernel: tile.28
$region0: #{tile.28}
  #allocation0 [shape = 's32[1]{0}', space=sflag, size = 0x4, scoped, tag = 'scoped memory for tile.28']
  %s0 = inlined_call_operand.vmem [shape: f32[16], index: 0, kind: input, shape index: {}]
  %s1 = inlined_call_operand.vmem [shape: f32[29,16], index: 1, kind: output, shape index: {}]
  // Predicated region
  $region2: #{tile.28} parent=0 // pred_check
    _
  $region3: #{tile.28} parent=0 // pred_check_branch
    %3 = sbr.rel (0) target = $region5
  $region4: #{tile.28} parent=0 // pred_region
    _
  $region5: #{tile.28} parent=0 // pred_fallthru
    _
  %v4 = vld [vmem:[%s0] ss:$0 sm:$0xff]
  %5 = vst [vmem:[%s1] sm:$0xff] %v4
  %s6 = scalar_lea.vmem %s1, 8
  %7 = vst [vmem:[%s6] sm:$0xff] %v4
  %s8 = scalar_lea.vmem %s1, 16
  %9 = vst [vmem:[%s8] sm:$0xff] %v4
  %s10 = scalar_lea.vmem %s1, 24
  %11 = vst [vmem:[%s10] sm:$0xff] %v4

// kernel: tile.29
$region0: #{tile.29}
  %s0 = inlined_call_operand.vmem [shape: f32[29,16], index: 0, kind: input, shape index: {}]
  %s1 = inlined_call_operand.vmem [shape: f32[1,464], index: 1, kind: output, shape index: {}]
  $region1: #{tile.29} parent=0
    #allocation0 [shape = 'u8[16384]{0}', space=vmem, size = 0x4000, scoped, tag = 'scoped mem for output reshape']
    %v2 = vld [vmem:[%s0] ss:$8 sm:$0xf]
    %vm3 = vcmask 130048
    %4 = vst.msk [vmem:[#allocation0] ss:$8 sm:$0xf] %vm3, %v2
    %s5 = scalar_lea.vmem %s0, 7
    %v6 = vld [vmem:[%s5] ss:$8 sm:$0x7]
    %7 = vrot.lane.b32.xlu0 %v6, 112
    %v8 = vpop.permute.xlu0 %7
    %vm9 = vcmask 1048448
    %10 = vst.msk [vmem:[#allocation0] ss:$8 sm:$0x7] %vm9, %v8
    %s11 = scalar_lea.vmem %s0, 6
    %v12 = vld [vmem:[%s11] ss:$8 sm:$0x7]
    %13 = vrot.lane.b32.xlu0 %v12, 96
    %v14 = vpop.permute.xlu0 %13
    %vm15 = vcmask 917248
    %16 = vst.msk [vmem:[#allocation0] ss:$8 sm:$0x7] %vm15, %v14
    %s17 = scalar_lea.vmem %s0, 5
    %v18 = vld [vmem:[%s17] ss:$8 sm:$0x7]
    %19 = vrot.lane.b32.xlu0 %v18, 80
    %v20 = vpop.permute.xlu0 %19
    %vm21 = vcmask 786048
    %22 = vst.msk [vmem:[#allocation0] ss:$8 sm:$0x7] %vm21, %v20
    %s23 = scalar_lea.vmem %s0, 4
    %v24 = vld [vmem:[%s23] ss:$8 sm:$0xf]
    %25 = vrot.lane.b32.xlu0 %v24, 64
    %v26 = vpop.permute.xlu0 %25
    %vm27 = vcmask 654848
    %28 = vst.msk [vmem:[#allocation0] ss:$8 sm:$0xf] %vm27, %v26
    %s29 = scalar_lea.vmem %s0, 3
    %v30 = vld [vmem:[%s29] ss:$8 sm:$0xf]
    %31 = vrot.lane.b32.xlu0 %v30, 48
    %v32 = vpop.permute.xlu0 %31
    %vm33 = vcmask 523648
    %34 = vst.msk [vmem:[#allocation0] ss:$8 sm:$0xf] %vm33, %v32
    %s35 = scalar_lea.vmem %s0, 2
    %v36 = vld [vmem:[%s35] ss:$8 sm:$0xf]
    %37 = vrot.lane.b32.xlu0 %v36, 32
    %v38 = vpop.permute.xlu0 %37
    %vm39 = vcmask 392448
    %40 = vst.msk [vmem:[#allocation0] ss:$8 sm:$0xf] %vm39, %v38
    %s41 = scalar_lea.vmem %s0, 1
    %v42 = vld [vmem:[%s41] ss:$8 sm:$0xf]
    %43 = vrot.lane.b32.xlu0 %v42, 16
    %v44 = vpop.permute.xlu0 %43
    %vm45 = vcmask 261248
    %46 = vst.msk [vmem:[#allocation0] ss:$8 sm:$0xf] %vm45, %v44
    %s48 = sshllo.u32 0, 1
    %v50 = vld [vmem:[#allocation0] sm:%s48]
    %s51 = sshllo.u32 0, 1
    %52 = vst [vmem:[%s1] sm:%s51] %v50
    %s53 = scalar_lea.vmem [#allocation0], 8
    %v54 = vld [vmem:[%s53] sm:%s48]
    %s55 = sshllo.u32 0, 1
    %s56 = scalar_lea.vmem %s1, 1
    %57 = vst [vmem:[%s56] sm:%s55] %v54
    %s58 = scalar_lea.vmem [#allocation0], 16
    %v59 = vld [vmem:[%s58] sm:%s48]
    %s60 = sshllo.u32 0, 1
    %s61 = smul.addr 1, 2
    %s62 = scalar_lea.vmem %s1, %s61
    %63 = vst [vmem:[%s62] sm:%s60] %v59
    %s64 = scalar_lea.vmem [#allocation0], 24
    %v65 = vld [vmem:[%s64] sm:%s48]
    %s66 = sshllo.u32 0, 1
    %s67 = smul.addr 1, 3
    %s68 = scalar_lea.vmem %s1, %s67
    %69 = vst [vmem:[%s68] sm:%s66] %v65

// kernel: tile.33
$region0: #{tile.33}
  #allocation0 [shape = 's32[1]{0}', space=sflag, size = 0x4, scoped, tag = 'scoped memory for tile.33']
  %s0 = inlined_call_operand.vmem [shape: f32[32], index: 0, kind: input, shape index: {}]
  %s1 = inlined_call_operand.vmem [shape: f32[12,32], index: 1, kind: output, shape index: {}]
  // Predicated region
  $region2: #{tile.33} parent=0 // pred_check
    _
  $region3: #{tile.33} parent=0 // pred_check_branch
    %3 = sbr.rel (0) target = $region5
  $region4: #{tile.33} parent=0 // pred_region
    _
  $region5: #{tile.33} parent=0 // pred_fallthru
    _
  %v4 = vld [vmem:[%s0] ss:$0 sm:$0xff]
  %5 = vst [vmem:[%s1] sm:$0xff] %v4
  %s6 = scalar_lea.vmem %s1, 8
  %7 = vst [vmem:[%s6] sm:$0xff] %v4

// kernel: tile.34
$region0: #{tile.34}
  %s0 = inlined_call_operand.vmem [shape: f32[12,32], index: 0, kind: input, shape index: {}]
  %s1 = inlined_call_operand.vmem [shape: f32[1,384], index: 1, kind: output, shape index: {}]
  $region1: #{tile.34} parent=0
    #allocation0 [shape = 'u8[12288]{0}', space=vmem, size = 0x3000, scoped, tag = 'scoped mem for output reshape']
    %v2 = vld [vmem:[%s0] ss:$4 sm:$0x7]
    %vm3 = vcmask 261120
    %4 = vst.msk [vmem:[#allocation0] ss:$8 sm:$0x7] %vm3, %v2
    %s5 = scalar_lea.vmem %s0, 3
    %v6 = vld [vmem:[%s5] ss:$4 sm:$0x7]
    %7 = vrot.lane.b32.xlu0 %v6, 96
    %v8 = vpop.permute.xlu0 %7
    %vm9 = vcmask 1048320
    %10 = vst.msk [vmem:[#allocation0] ss:$8 sm:$0x7] %vm9, %v8
    %s11 = scalar_lea.vmem %s0, 2
    %v12 = vld [vmem:[%s11] ss:$4 sm:$0x7]
    %13 = vrot.lane.b32.xlu0 %v12, 64
    %v14 = vpop.permute.xlu0 %13
    %vm15 = vcmask 785920
    %16 = vst.msk [vmem:[#allocation0] ss:$8 sm:$0x7] %vm15, %v14
    %s17 = scalar_lea.vmem %s0, 1
    %v18 = vld [vmem:[%s17] ss:$4 sm:$0x7]
    %19 = vrot.lane.b32.xlu0 %v18, 32
    %v20 = vpop.permute.xlu0 %19
    %vm21 = vcmask 523520
    %22 = vst.msk [vmem:[#allocation0] ss:$8 sm:$0x7] %vm21, %v20
    %s24 = sshllo.u32 0, 1
    %v26 = vld [vmem:[#allocation0] sm:%s24]
    %s27 = sshllo.u32 0, 1
    %28 = vst [vmem:[%s1] sm:%s27] %v26
    %s29 = scalar_lea.vmem [#allocation0], 8
    %v30 = vld [vmem:[%s29] sm:%s24]
    %s31 = sshllo.u32 0, 1
    %s32 = scalar_lea.vmem %s1, 1
    %33 = vst [vmem:[%s32] sm:%s31] %v30
    %s34 = scalar_lea.vmem [#allocation0], 16
    %v35 = vld [vmem:[%s34] sm:%s24]
    %s36 = sshllo.u32 0, 1
    %s37 = smul.addr 1, 2
    %s38 = scalar_lea.vmem %s1, %s37
    %39 = vst [vmem:[%s38] sm:%s36] %v35

// kernel: tile.38
$region0: #{tile.38}
  #allocation0 [shape = 's32[1]{0}', space=sflag, size = 0x4, scoped, tag = 'scoped memory for tile.38']
  %s0 = inlined_call_operand.vmem [shape: f32[64], index: 0, kind: input, shape index: {}]
  %s1 = inlined_call_operand.vmem [shape: f32[4,64], index: 1, kind: output, shape index: {}]
  // Predicated region
  $region2: #{tile.38} parent=0 // pred_check
    _
  $region3: #{tile.38} parent=0 // pred_check_branch
    %3 = sbr.rel (0) target = $region5
  $region4: #{tile.38} parent=0 // pred_region
    _
  $region5: #{tile.38} parent=0 // pred_fallthru
    _
  %v4 = vld [vmem:[%s0] ss:$0 sm:$0xff]
  %5 = vst [vmem:[%s1] sm:$0xf] %v4

// kernel: tile.39
$region0: #{tile.39}
  %s0 = inlined_call_operand.vmem [shape: f32[4,64], index: 0, kind: input, shape index: {}]
  %s1 = inlined_call_operand.vmem [shape: f32[1,256], index: 1, kind: output, shape index: {}]
  $region1: #{tile.39} parent=0
    #allocation0 [shape = 'u8[8192]{0}', space=vmem, size = 0x2000, scoped, tag = 'scoped mem for output reshape']
    #allocation1 [shape = 'u8[4096]{0}', space=vmem, size = 0x1000, scoped, tag = 'scoped mem for input reshape']
    %s3 = sshllo.u32 0, 4
    %v4 = vld [vmem:[%s0] sm:%s3]
    %5 = vst [vmem:[#allocation1] sm:%s3] %v4
    %s6 = smov 3
    %v7 = vld [vmem:[#allocation1] ss:$2 sm:%s6]
    %vm8 = vcmask 523264
    %9 = vst.msk [vmem:[#allocation0] ss:$8 sm:$0x3] %vm8, %v7
    %s10 = scalar_lea.vmem [#allocation1], 1
    %s11 = smov 3
    %v12 = vld [vmem:[%s10] ss:$2 sm:%s11]
    %13 = vrot.lane.b32.xlu0 %v12, 64
    %v14 = vpop.permute.xlu0 %13
    %vm15 = vcmask 1048064
    %16 = vst.msk [vmem:[#allocation0] ss:$8 sm:$0x3] %vm15, %v14
    %s18 = sshllo.u32 0, 1
    %v20 = vld [vmem:[#allocation0] sm:%s18]
    %s21 = sshllo.u32 0, 1
    %22 = vst [vmem:[%s1] sm:%s21] %v20
    %s23 = scalar_lea.vmem [#allocation0], 8
    %v24 = vld [vmem:[%s23] sm:%s18]
    %s25 = sshllo.u32 0, 1
    %s26 = scalar_lea.vmem %s1, 1
    %27 = vst [vmem:[%s26] sm:%s25] %v24

// kernel: net_forward.1
$region0: #{net_forward.1}
  #allocation0 [shape = 'u32[]', space=smem, size = 0x4, offset = 0x4, fixed_abs, tag = 'smem constant byte address 0x4 - core index']
  #allocation1 [shape = 'u32[144,128]{1,0:T(1,128)}', space=vmem, size = 0x12000, scoped, tag = 'internal scratch']
  %s0 = inlined_call_operand.vmem [shape: f32[2,64,64], index: 0, kind: input, shape index: {}]
  %s1 = inlined_call_operand.vmem [shape: f32[3,64,496], index: 1, kind: input, shape index: {}]
  %s2 = inlined_call_operand.vmem [shape: f32[1,496], index: 2, kind: input, shape index: {}]
  %s3 = inlined_call_operand.vmem [shape: f32[31,61], index: 3, kind: input, shape index: {}]
  %s4 = inlined_call_operand.vmem [shape: f32[488,248], index: 4, kind: input, shape index: {}]
  %s5 = inlined_call_operand.vmem [shape: f32[3,248,464], index: 5, kind: input, shape index: {}]
  %s6 = inlined_call_operand.vmem [shape: f32[1,464], index: 6, kind: input, shape index: {}]
  %s7 = inlined_call_operand.vmem [shape: f32[14,28], index: 7, kind: input, shape index: {}]
  %s8 = inlined_call_operand.vmem [shape: f32[448,224], index: 8, kind: input, shape index: {}]
  %s9 = inlined_call_operand.vmem [shape: f32[3,224,384], index: 9, kind: input, shape index: {}]
  %s10 = inlined_call_operand.vmem [shape: f32[1,384], index: 10, kind: input, shape index: {}]
  %s11 = inlined_call_operand.vmem [shape: f32[6,11], index: 11, kind: input, shape index: {}]
  %s12 = inlined_call_operand.vmem [shape: f32[352,192], index: 12, kind: input, shape index: {}]
  %s13 = inlined_call_operand.vmem [shape: f32[3,192,256], index: 13, kind: input, shape index: {}]
  %s14 = inlined_call_operand.vmem [shape: f32[1,256], index: 14, kind: input, shape index: {}]
  %s15 = inlined_call_operand.vmem [shape: f32[2,3], index: 15, kind: input, shape index: {}]
  %s16 = inlined_call_operand.vmem [shape: f32[192,128], index: 16, kind: input, shape index: {}]
  %s17 = inlined_call_operand.vmem [shape: f32[2,128,64], index: 17, kind: input, shape index: {}]
  %s18 = inlined_call_operand.vmem [shape: f32[1,64], index: 18, kind: input, shape index: {}]
  %s19 = inlined_call_operand.vmem [shape: f32[64,5], index: 19, kind: input, shape index: {}]
  %s20 = inlined_call_operand.vmem [shape: f32[1,5], index: 20, kind: input, shape index: {}]
  %s21 = inlined_call_operand.hbm [shape: f32[2,1,5], index: 21, kind: output, shape index: {}]
  %s22 = sld [smem:[#allocation0]]
  $region117: #{net_forward.1} parent=0
    _
  %s24 = ssub.s32 1, %s22
  %s25 = scalar_select 0, %s24, %s22
  $region1: #{net_forward.1} parent=0
    #allocation2 [shape = 'u8[1024]{0}', space=vmem, size = 0x400, scoped, tag = 'output window, operand 0']
    #allocation3 [shape = 's32[2]{0}', space=sflag, size = 0x8, scoped, tag = 'scoped memory for net_forward.1']
    %26 = vsyncpa [#allocation3], 0
    %s27 = scalar_lea.sflag [#allocation3], 1
    %28 = vsyncpa %s27, 0
    loop: start=0, step=1, limit=4
    $region2: #{net_forward.1} parent=1 // loop_pre_header
      _
    $region3: #{net_forward.1} parent=1 // loop_header
      %s30 = sphi 0, %s34
      %p31 = scmp.ge.s32.totalorder %s30, 4
      %s40 = sphi 0, %s42
      %s43 = sphi 0, %s40
      %s44 = sphi 0, %s43
      %s60 = sphi 0, %s44
      %s64 = sphi 0, %s64
      %s66 = sphi 0, %s64
      %s67 = sphi 0, %s66
      %s81 = sphi 0, %s67
      %s85 = sphi 0, %s85
      %s87 = sphi 0, %s85
      %s88 = sphi 0, %s87
      %s102 = sphi 0, %s88
      %s106 = sphi 0, %s106
      %s108 = sphi 0, %s106
      %s109 = sphi 0, %s108
      %s123 = sphi 0, %s109
      %s127 = sphi 0, %s127
      %s129 = sphi 0, %s127
      %s130 = sphi 0, %s129
      %s144 = sphi 0, %s130
      %s148 = sphi 0, %s148
      %s150 = sphi 0, %s148
      %s151 = sphi 0, %s150
      %s165 = sphi 0, %s151
      %s169 = sphi 0, %s169
      %s171 = sphi 0, %s169
      %s172 = sphi 0, %s171
      %s186 = sphi 0, %s172
      %s190 = sphi 0, %s190
      %s192 = sphi 0, %s190
      %s193 = sphi 0, %s192
      %s207 = sphi 0, %s193
      %s211 = sphi 0, %s211
      %s213 = sphi 0, %s211
      %s214 = sphi 0, %s213
      %s228 = sphi 0, %s214
      %s232 = sphi 0, %s232
      %s234 = sphi 0, %s232
      %s235 = sphi 0, %s234
      %s249 = sphi 0, %s235
      %s253 = sphi 0, %s253
      %s255 = sphi 0, %s253
      %s256 = sphi 0, %s255
      %s270 = sphi 0, %s256
      %s274 = sphi 0, %s274
      %s276 = sphi 0, %s274
      %s277 = sphi 0, %s276
      %s291 = sphi 0, %s277
      %s295 = sphi 0, %s295
      %s297 = sphi 0, %s295
      %s298 = sphi 0, %s297
      %s312 = sphi 0, %s298
      %s316 = sphi 0, %s316
      %s318 = sphi 0, %s316
      %s319 = sphi 0, %s318
      %s333 = sphi 0, %s319
      %s337 = sphi 0, %s337
      %s339 = sphi 0, %s337
      %s340 = sphi 0, %s339
      %s354 = sphi 0, %s340
      %s358 = sphi 0, %s358
      %s360 = sphi 0, %s358
      %s361 = sphi 0, %s360
      %s375 = sphi 0, %s361
      %s379 = sphi 0, %s379
      %s381 = sphi 0, %s379
      %s382 = sphi 0, %s381
      %s396 = sphi 0, %s382
      %s400 = sphi 0, %s400
      %s402 = sphi 0, %s400
      %s403 = sphi 0, %s402
      %s417 = sphi 0, %s403
      %s421 = sphi 0, %s421
      %s423 = sphi 0, %s421
      %s424 = sphi 0, %s423
      %s438 = sphi 0, %s424
      %s442 = sphi 0, %s442
      %s444 = sphi 0, %s442
      %s445 = sphi 0, %s444
      %s459 = sphi 0, %s445
      %s463 = sphi 0, %s463
      %s465 = sphi 0, %s463
      %s466 = sphi 0, %s465
      %s480 = sphi 0, %s466
      %s486 = sphi 0, %s488
      %s489 = sphi 0, %s486
      %s490 = sphi 0, %s489
      %s506 = sphi 0, %s490
    $region4: #{net_forward.1} parent=1 // loop_header_branch
      %33 = sbr.rel (%p31) target = $region8
    $region5: #{net_forward.1} parent=1 // loop_body
      %s35 = ssub.s32 %s30, 1
      %s36 = ssub.s32 %s30, 2
      %s37 = sadd.s32 %s30, 1
      %s38 = ssub.s32 %s30, %s37
      %p39 = scmp.eq.s32.totalorder %s38, 0
      %s41 = sadd.s32 %s40, 1
      %s42 = scalar_select %p39, %s40, %s41
      %p45 = pneg %p39
      %p46 = scmp.eq.s32.totalorder %s30, 1
      %p47 = por %p45, %p46
      %p48 = scmp.ne.s32.totalorder %s40, %s43
      %p49 = scmp.eq.s32.totalorder %s30, 0
      %p50 = por %p48, %p49
      %p51 = scmp.ne.s32.totalorder %s40, %s43
      %p52 = scmp.eq.s32.totalorder %s35, 1
      %p53 = por %p51, %p52
      %p54 = scmp.ne.s32.totalorder %s43, %s44
      %p55 = scmp.eq.s32.totalorder %s35, 0
      %p56 = por %p54, %p55
      %p57 = scmp.ne.s32.totalorder %s43, %s44
      %p58 = scmp.eq.s32.totalorder %s36, 1
      %p59 = por %p57, %p58
      %p61 = scmp.ne.s32.totalorder %s44, %s60
      %p62 = scmp.eq.s32.totalorder %s36, 0
      %p63 = por %p61, %p62
      %s65 = sadd.s32 %s64, 1
      %p68 = scmp.eq.s32.totalorder %s30, 1
      %p69 = scmp.ne.s32.totalorder %s64, %s66
      %p70 = scmp.eq.s32.totalorder %s30, 0
      %p71 = por %p69, %p70
      %p72 = scmp.ne.s32.totalorder %s64, %s66
      %p73 = scmp.eq.s32.totalorder %s35, 1
      %p74 = por %p72, %p73
      %p75 = scmp.ne.s32.totalorder %s66, %s67
      %p76 = scmp.eq.s32.totalorder %s35, 0
      %p77 = por %p75, %p76
      %p78 = scmp.ne.s32.totalorder %s66, %s67
      %p79 = scmp.eq.s32.totalorder %s36, 1
      %p80 = por %p78, %p79
      %p82 = scmp.ne.s32.totalorder %s67, %s81
      %p83 = scmp.eq.s32.totalorder %s36, 0
      %p84 = por %p82, %p83
      %s86 = sadd.s32 %s85, 1
      %p89 = scmp.eq.s32.totalorder %s30, 1
      %p90 = scmp.ne.s32.totalorder %s85, %s87
      %p91 = scmp.eq.s32.totalorder %s30, 0
      %p92 = por %p90, %p91
      %p93 = scmp.ne.s32.totalorder %s85, %s87
      %p94 = scmp.eq.s32.totalorder %s35, 1
      %p95 = por %p93, %p94
      %p96 = scmp.ne.s32.totalorder %s87, %s88
      %p97 = scmp.eq.s32.totalorder %s35, 0
      %p98 = por %p96, %p97
      %p99 = scmp.ne.s32.totalorder %s87, %s88
      %p100 = scmp.eq.s32.totalorder %s36, 1
      %p101 = por %p99, %p100
      %p103 = scmp.ne.s32.totalorder %s88, %s102
      %p104 = scmp.eq.s32.totalorder %s36, 0
      %p105 = por %p103, %p104
      %s107 = sadd.s32 %s106, 1
      %p110 = scmp.eq.s32.totalorder %s30, 1
      %p111 = scmp.ne.s32.totalorder %s106, %s108
      %p112 = scmp.eq.s32.totalorder %s30, 0
      %p113 = por %p111, %p112
      %p114 = scmp.ne.s32.totalorder %s106, %s108
      %p115 = scmp.eq.s32.totalorder %s35, 1
      %p116 = por %p114, %p115
      %p117 = scmp.ne.s32.totalorder %s108, %s109
      %p118 = scmp.eq.s32.totalorder %s35, 0
      %p119 = por %p117, %p118
      %p120 = scmp.ne.s32.totalorder %s108, %s109
      %p121 = scmp.eq.s32.totalorder %s36, 1
      %p122 = por %p120, %p121
      %p124 = scmp.ne.s32.totalorder %s109, %s123
      %p125 = scmp.eq.s32.totalorder %s36, 0
      %p126 = por %p124, %p125
      %s128 = sadd.s32 %s127, 1
      %p131 = scmp.eq.s32.totalorder %s30, 1
      %p132 = scmp.ne.s32.totalorder %s127, %s129
      %p133 = scmp.eq.s32.totalorder %s30, 0
      %p134 = por %p132, %p133
      %p135 = scmp.ne.s32.totalorder %s127, %s129
      %p136 = scmp.eq.s32.totalorder %s35, 1
      %p137 = por %p135, %p136
      %p138 = scmp.ne.s32.totalorder %s129, %s130
      %p139 = scmp.eq.s32.totalorder %s35, 0
      %p140 = por %p138, %p139
      %p141 = scmp.ne.s32.totalorder %s129, %s130
      %p142 = scmp.eq.s32.totalorder %s36, 1
      %p143 = por %p141, %p142
      %p145 = scmp.ne.s32.totalorder %s130, %s144
      %p146 = scmp.eq.s32.totalorder %s36, 0
      %p147 = por %p145, %p146
      %s149 = sadd.s32 %s148, 1
      %p152 = scmp.eq.s32.totalorder %s30, 1
      %p153 = scmp.ne.s32.totalorder %s148, %s150
      %p154 = scmp.eq.s32.totalorder %s30, 0
      %p155 = por %p153, %p154
      %p156 = scmp.ne.s32.totalorder %s148, %s150
      %p157 = scmp.eq.s32.totalorder %s35, 1
      %p158 = por %p156, %p157
      %p159 = scmp.ne.s32.totalorder %s150, %s151
      %p160 = scmp.eq.s32.totalorder %s35, 0
      %p161 = por %p159, %p160
      %p162 = scmp.ne.s32.totalorder %s150, %s151
      %p163 = scmp.eq.s32.totalorder %s36, 1
      %p164 = por %p162, %p163
      %p166 = scmp.ne.s32.totalorder %s151, %s165
      %p167 = scmp.eq.s32.totalorder %s36, 0
      %p168 = por %p166, %p167
      %s170 = sadd.s32 %s169, 1
      %p173 = scmp.eq.s32.totalorder %s30, 1
      %p174 = scmp.ne.s32.totalorder %s169, %s171
      %p175 = scmp.eq.s32.totalorder %s30, 0
      %p176 = por %p174, %p175
      %p177 = scmp.ne.s32.totalorder %s169, %s171
      %p178 = scmp.eq.s32.totalorder %s35, 1
      %p179 = por %p177, %p178
      %p180 = scmp.ne.s32.totalorder %s171, %s172
      %p181 = scmp.eq.s32.totalorder %s35, 0
      %p182 = por %p180, %p181
      %p183 = scmp.ne.s32.totalorder %s171, %s172
      %p184 = scmp.eq.s32.totalorder %s36, 1
      %p185 = por %p183, %p184
      %p187 = scmp.ne.s32.totalorder %s172, %s186
      %p188 = scmp.eq.s32.totalorder %s36, 0
      %p189 = por %p187, %p188
      %s191 = sadd.s32 %s190, 1
      %p194 = scmp.eq.s32.totalorder %s30, 1
      %p195 = scmp.ne.s32.totalorder %s190, %s192
      %p196 = scmp.eq.s32.totalorder %s30, 0
      %p197 = por %p195, %p196
      %p198 = scmp.ne.s32.totalorder %s190, %s192
      %p199 = scmp.eq.s32.totalorder %s35, 1
      %p200 = por %p198, %p199
      %p201 = scmp.ne.s32.totalorder %s192, %s193
      %p202 = scmp.eq.s32.totalorder %s35, 0
      %p203 = por %p201, %p202
      %p204 = scmp.ne.s32.totalorder %s192, %s193
      %p205 = scmp.eq.s32.totalorder %s36, 1
      %p206 = por %p204, %p205
      %p208 = scmp.ne.s32.totalorder %s193, %s207
      %p209 = scmp.eq.s32.totalorder %s36, 0
      %p210 = por %p208, %p209
      %s212 = sadd.s32 %s211, 1
      %p215 = scmp.eq.s32.totalorder %s30, 1
      %p216 = scmp.ne.s32.totalorder %s211, %s213
      %p217 = scmp.eq.s32.totalorder %s30, 0
      %p218 = por %p216, %p217
      %p219 = scmp.ne.s32.totalorder %s211, %s213
      %p220 = scmp.eq.s32.totalorder %s35, 1
      %p221 = por %p219, %p220
      %p222 = scmp.ne.s32.totalorder %s213, %s214
      %p223 = scmp.eq.s32.totalorder %s35, 0
      %p224 = por %p222, %p223
      %p225 = scmp.ne.s32.totalorder %s213, %s214
      %p226 = scmp.eq.s32.totalorder %s36, 1
      %p227 = por %p225, %p226
      %p229 = scmp.ne.s32.totalorder %s214, %s228
      %p230 = scmp.eq.s32.totalorder %s36, 0
      %p231 = por %p229, %p230
      %s233 = sadd.s32 %s232, 1
      %p236 = scmp.eq.s32.totalorder %s30, 1
      %p237 = scmp.ne.s32.totalorder %s232, %s234
      %p238 = scmp.eq.s32.totalorder %s30, 0
      %p239 = por %p237, %p238
      %p240 = scmp.ne.s32.totalorder %s232, %s234
      %p241 = scmp.eq.s32.totalorder %s35, 1
      %p242 = por %p240, %p241
      %p243 = scmp.ne.s32.totalorder %s234, %s235
      %p244 = scmp.eq.s32.totalorder %s35, 0
      %p245 = por %p243, %p244
      %p246 = scmp.ne.s32.totalorder %s234, %s235
      %p247 = scmp.eq.s32.totalorder %s36, 1
      %p248 = por %p246, %p247
      %p250 = scmp.ne.s32.totalorder %s235, %s249
      %p251 = scmp.eq.s32.totalorder %s36, 0
      %p252 = por %p250, %p251
      %s254 = sadd.s32 %s253, 1
      %p257 = scmp.eq.s32.totalorder %s30, 1
      %p258 = scmp.ne.s32.totalorder %s253, %s255
      %p259 = scmp.eq.s32.totalorder %s30, 0
      %p260 = por %p258, %p259
      %p261 = scmp.ne.s32.totalorder %s253, %s255
      %p262 = scmp.eq.s32.totalorder %s35, 1
      %p263 = por %p261, %p262
      %p264 = scmp.ne.s32.totalorder %s255, %s256
      %p265 = scmp.eq.s32.totalorder %s35, 0
      %p266 = por %p264, %p265
      %p267 = scmp.ne.s32.totalorder %s255, %s256
      %p268 = scmp.eq.s32.totalorder %s36, 1
      %p269 = por %p267, %p268
      %p271 = scmp.ne.s32.totalorder %s256, %s270
      %p272 = scmp.eq.s32.totalorder %s36, 0
      %p273 = por %p271, %p272
      %s275 = sadd.s32 %s274, 1
      %p278 = scmp.eq.s32.totalorder %s30, 1
      %p279 = scmp.ne.s32.totalorder %s274, %s276
      %p280 = scmp.eq.s32.totalorder %s30, 0
      %p281 = por %p279, %p280
      %p282 = scmp.ne.s32.totalorder %s274, %s276
      %p283 = scmp.eq.s32.totalorder %s35, 1
      %p284 = por %p282, %p283
      %p285 = scmp.ne.s32.totalorder %s276, %s277
      %p286 = scmp.eq.s32.totalorder %s35, 0
      %p287 = por %p285, %p286
      %p288 = scmp.ne.s32.totalorder %s276, %s277
      %p289 = scmp.eq.s32.totalorder %s36, 1
      %p290 = por %p288, %p289
      %p292 = scmp.ne.s32.totalorder %s277, %s291
      %p293 = scmp.eq.s32.totalorder %s36, 0
      %p294 = por %p292, %p293
      %s296 = sadd.s32 %s295, 1
      %p299 = scmp.eq.s32.totalorder %s30, 1
      %p300 = scmp.ne.s32.totalorder %s295, %s297
      %p301 = scmp.eq.s32.totalorder %s30, 0
      %p302 = por %p300, %p301
      %p303 = scmp.ne.s32.totalorder %s295, %s297
      %p304 = scmp.eq.s32.totalorder %s35, 1
      %p305 = por %p303, %p304
      %p306 = scmp.ne.s32.totalorder %s297, %s298
      %p307 = scmp.eq.s32.totalorder %s35, 0
      %p308 = por %p306, %p307
      %p309 = scmp.ne.s32.totalorder %s297, %s298
      %p310 = scmp.eq.s32.totalorder %s36, 1
      %p311 = por %p309, %p310
      %p313 = scmp.ne.s32.totalorder %s298, %s312
      %p314 = scmp.eq.s32.totalorder %s36, 0
      %p315 = por %p313, %p314
      %s317 = sadd.s32 %s316, 1
      %p320 = scmp.eq.s32.totalorder %s30, 1
      %p321 = scmp.ne.s32.totalorder %s316, %s318
      %p322 = scmp.eq.s32.totalorder %s30, 0
      %p323 = por %p321, %p322
      %p324 = scmp.ne.s32.totalorder %s316, %s318
      %p325 = scmp.eq.s32.totalorder %s35, 1
      %p326 = por %p324, %p325
      %p327 = scmp.ne.s32.totalorder %s318, %s319
      %p328 = scmp.eq.s32.totalorder %s35, 0
      %p329 = por %p327, %p328
      %p330 = scmp.ne.s32.totalorder %s318, %s319
      %p331 = scmp.eq.s32.totalorder %s36, 1
      %p332 = por %p330, %p331
      %p334 = scmp.ne.s32.totalorder %s319, %s333
      %p335 = scmp.eq.s32.totalorder %s36, 0
      %p336 = por %p334, %p335
      %s338 = sadd.s32 %s337, 1
      %p341 = scmp.eq.s32.totalorder %s30, 1
      %p342 = scmp.ne.s32.totalorder %s337, %s339
      %p343 = scmp.eq.s32.totalorder %s30, 0
      %p344 = por %p342, %p343
      %p345 = scmp.ne.s32.totalorder %s337, %s339
      %p346 = scmp.eq.s32.totalorder %s35, 1
      %p347 = por %p345, %p346
      %p348 = scmp.ne.s32.totalorder %s339, %s340
      %p349 = scmp.eq.s32.totalorder %s35, 0
      %p350 = por %p348, %p349
      %p351 = scmp.ne.s32.totalorder %s339, %s340
      %p352 = scmp.eq.s32.totalorder %s36, 1
      %p353 = por %p351, %p352
      %p355 = scmp.ne.s32.totalorder %s340, %s354
      %p356 = scmp.eq.s32.totalorder %s36, 0
      %p357 = por %p355, %p356
      %s359 = sadd.s32 %s358, 1
      %p362 = scmp.eq.s32.totalorder %s30, 1
      %p363 = scmp.ne.s32.totalorder %s358, %s360
      %p364 = scmp.eq.s32.totalorder %s30, 0
      %p365 = por %p363, %p364
      %p366 = scmp.ne.s32.totalorder %s358, %s360
      %p367 = scmp.eq.s32.totalorder %s35, 1
      %p368 = por %p366, %p367
      %p369 = scmp.ne.s32.totalorder %s360, %s361
      %p370 = scmp.eq.s32.totalorder %s35, 0
      %p371 = por %p369, %p370
      %p372 = scmp.ne.s32.totalorder %s360, %s361
      %p373 = scmp.eq.s32.totalorder %s36, 1
      %p374 = por %p372, %p373
      %p376 = scmp.ne.s32.totalorder %s361, %s375
      %p377 = scmp.eq.s32.totalorder %s36, 0
      %p378 = por %p376, %p377
      %s380 = sadd.s32 %s379, 1
      %p383 = scmp.eq.s32.totalorder %s30, 1
      %p384 = scmp.ne.s32.totalorder %s379, %s381
      %p385 = scmp.eq.s32.totalorder %s30, 0
      %p386 = por %p384, %p385
      %p387 = scmp.ne.s32.totalorder %s379, %s381
      %p388 = scmp.eq.s32.totalorder %s35, 1
      %p389 = por %p387, %p388
      %p390 = scmp.ne.s32.totalorder %s381, %s382
      %p391 = scmp.eq.s32.totalorder %s35, 0
      %p392 = por %p390, %p391
      %p393 = scmp.ne.s32.totalorder %s381, %s382
      %p394 = scmp.eq.s32.totalorder %s36, 1
      %p395 = por %p393, %p394
      %p397 = scmp.ne.s32.totalorder %s382, %s396
      %p398 = scmp.eq.s32.totalorder %s36, 0
      %p399 = por %p397, %p398
      %s401 = sadd.s32 %s400, 1
      %p404 = scmp.eq.s32.totalorder %s30, 1
      %p405 = scmp.ne.s32.totalorder %s400, %s402
      %p406 = scmp.eq.s32.totalorder %s30, 0
      %p407 = por %p405, %p406
      %p408 = scmp.ne.s32.totalorder %s400, %s402
      %p409 = scmp.eq.s32.totalorder %s35, 1
      %p410 = por %p408, %p409
      %p411 = scmp.ne.s32.totalorder %s402, %s403
      %p412 = scmp.eq.s32.totalorder %s35, 0
      %p413 = por %p411, %p412
      %p414 = scmp.ne.s32.totalorder %s402, %s403
      %p415 = scmp.eq.s32.totalorder %s36, 1
      %p416 = por %p414, %p415
      %p418 = scmp.ne.s32.totalorder %s403, %s417
      %p419 = scmp.eq.s32.totalorder %s36, 0
      %p420 = por %p418, %p419
      %s422 = sadd.s32 %s421, 1
      %p425 = scmp.eq.s32.totalorder %s30, 1
      %p426 = scmp.ne.s32.totalorder %s421, %s423
      %p427 = scmp.eq.s32.totalorder %s30, 0
      %p428 = por %p426, %p427
      %p429 = scmp.ne.s32.totalorder %s421, %s423
      %p430 = scmp.eq.s32.totalorder %s35, 1
      %p431 = por %p429, %p430
      %p432 = scmp.ne.s32.totalorder %s423, %s424
      %p433 = scmp.eq.s32.totalorder %s35, 0
      %p434 = por %p432, %p433
      %p435 = scmp.ne.s32.totalorder %s423, %s424
      %p436 = scmp.eq.s32.totalorder %s36, 1
      %p437 = por %p435, %p436
      %p439 = scmp.ne.s32.totalorder %s424, %s438
      %p440 = scmp.eq.s32.totalorder %s36, 0
      %p441 = por %p439, %p440
      %s443 = sadd.s32 %s442, 1
      %p446 = scmp.eq.s32.totalorder %s30, 1
      %p447 = scmp.ne.s32.totalorder %s442, %s444
      %p448 = scmp.eq.s32.totalorder %s30, 0
      %p449 = por %p447, %p448
      %p450 = scmp.ne.s32.totalorder %s442, %s444
      %p451 = scmp.eq.s32.totalorder %s35, 1
      %p452 = por %p450, %p451
      %p453 = scmp.ne.s32.totalorder %s444, %s445
      %p454 = scmp.eq.s32.totalorder %s35, 0
      %p455 = por %p453, %p454
      %p456 = scmp.ne.s32.totalorder %s444, %s445
      %p457 = scmp.eq.s32.totalorder %s36, 1
      %p458 = por %p456, %p457
      %p460 = scmp.ne.s32.totalorder %s445, %s459
      %p461 = scmp.eq.s32.totalorder %s36, 0
      %p462 = por %p460, %p461
      %s464 = sadd.s32 %s463, 1
      %p467 = scmp.eq.s32.totalorder %s30, 1
      %p468 = scmp.ne.s32.totalorder %s463, %s465
      %p469 = scmp.eq.s32.totalorder %s30, 0
      %p470 = por %p468, %p469
      %p471 = scmp.ne.s32.totalorder %s463, %s465
      %p472 = scmp.eq.s32.totalorder %s35, 1
      %p473 = por %p471, %p472
      %p474 = scmp.ne.s32.totalorder %s465, %s466
      %p475 = scmp.eq.s32.totalorder %s35, 0
      %p476 = por %p474, %p475
      %p477 = scmp.ne.s32.totalorder %s465, %s466
      %p478 = scmp.eq.s32.totalorder %s36, 1
      %p479 = por %p477, %p478
      %p481 = scmp.ne.s32.totalorder %s466, %s480
      %p482 = scmp.eq.s32.totalorder %s36, 0
      %p483 = por %p481, %p482
      %s484 = ssub.s32 %s30, %s37
      %p485 = scmp.eq.s32.totalorder %s484, 0
      %s487 = sadd.s32 %s486, 1
      %s488 = scalar_select %p485, %s486, %s487
      %p491 = pneg %p485
      %p492 = scmp.eq.s32.totalorder %s30, 1
      %p493 = por %p491, %p492
      %p494 = scmp.ne.s32.totalorder %s486, %s489
      %p495 = scmp.eq.s32.totalorder %s30, 0
      %p496 = por %p494, %p495
      %p497 = scmp.ne.s32.totalorder %s486, %s489
      %p498 = scmp.eq.s32.totalorder %s35, 1
      %p499 = por %p497, %p498
      %p500 = scmp.ne.s32.totalorder %s489, %s490
      %p501 = scmp.eq.s32.totalorder %s35, 0
      %p502 = por %p500, %p501
      %p503 = scmp.ne.s32.totalorder %s489, %s490
      %p504 = scmp.eq.s32.totalorder %s36, 1
      %p505 = por %p503, %p504
      %p507 = scmp.ne.s32.totalorder %s490, %s506
      %p508 = scmp.eq.s32.totalorder %s36, 0
      %p509 = por %p507, %p508
      %p510 = scmp.le.s32.totalorder 1, %s30
      %p511 = scmp.lt.s32.totalorder %s30, 3
      %p512 = pnand %p510, %p511
      %p513 = pneg %p512
      // Predicated region
      $region9: #{net_forward.1} parent=5 // pred_check
        _
      $region10: #{net_forward.1} parent=5 // pred_check_branch
        %515 = sbr.rel (%p512) target = $region12
      $region11: #{net_forward.1} parent=5 // pred_region
        %s516 = ssub.s32 %s30, 1
        // Predicated region
        $region13: #{net_forward.1} parent=11 // pred_check
          %p517 = pneg %p77
        $region14: #{net_forward.1} parent=11 // pred_check_branch
          %519 = sbr.rel (%p517) target = $region16
        $region15: #{net_forward.1} parent=11 // pred_region
          _
        $region16: #{net_forward.1} parent=11 // pred_fallthru
          _
        // Predicated region
        $region17: #{net_forward.1} parent=11 // pred_check
          %p520 = pneg %p98
        $region18: #{net_forward.1} parent=11 // pred_check_branch
          %522 = sbr.rel (%p520) target = $region20
        $region19: #{net_forward.1} parent=11 // pred_region
          _
        $region20: #{net_forward.1} parent=11 // pred_fallthru
          _
        // Predicated region
        $region21: #{net_forward.1} parent=11 // pred_check
          %p523 = pneg %p119
        $region22: #{net_forward.1} parent=11 // pred_check_branch
          %525 = sbr.rel (%p523) target = $region24
        $region23: #{net_forward.1} parent=11 // pred_region
          _
        $region24: #{net_forward.1} parent=11 // pred_fallthru
          _
        // Predicated region
        $region25: #{net_forward.1} parent=11 // pred_check
          %p526 = pneg %p140
        $region26: #{net_forward.1} parent=11 // pred_check_branch
          %528 = sbr.rel (%p526) target = $region28
        $region27: #{net_forward.1} parent=11 // pred_region
          _
        $region28: #{net_forward.1} parent=11 // pred_fallthru
          _
        // Predicated region
        $region29: #{net_forward.1} parent=11 // pred_check
          %p529 = pneg %p161
        $region30: #{net_forward.1} parent=11 // pred_check_branch
          %531 = sbr.rel (%p529) target = $region32
        $region31: #{net_forward.1} parent=11 // pred_region
          _
        $region32: #{net_forward.1} parent=11 // pred_fallthru
          _
        // Predicated region
        $region33: #{net_forward.1} parent=11 // pred_check
          %p532 = pneg %p182
        $region34: #{net_forward.1} parent=11 // pred_check_branch
          %534 = sbr.rel (%p532) target = $region36
        $region35: #{net_forward.1} parent=11 // pred_region
          _
        $region36: #{net_forward.1} parent=11 // pred_fallthru
          _
        // Predicated region
        $region37: #{net_forward.1} parent=11 // pred_check
          %p535 = pneg %p203
        $region38: #{net_forward.1} parent=11 // pred_check_branch
          %537 = sbr.rel (%p535) target = $region40
        $region39: #{net_forward.1} parent=11 // pred_region
          _
        $region40: #{net_forward.1} parent=11 // pred_fallthru
          _
        // Predicated region
        $region41: #{net_forward.1} parent=11 // pred_check
          %p538 = pneg %p224
        $region42: #{net_forward.1} parent=11 // pred_check_branch
          %540 = sbr.rel (%p538) target = $region44
        $region43: #{net_forward.1} parent=11 // pred_region
          _
        $region44: #{net_forward.1} parent=11 // pred_fallthru
          _
        // Predicated region
        $region45: #{net_forward.1} parent=11 // pred_check
          %p541 = pneg %p245
        $region46: #{net_forward.1} parent=11 // pred_check_branch
          %543 = sbr.rel (%p541) target = $region48
        $region47: #{net_forward.1} parent=11 // pred_region
          _
        $region48: #{net_forward.1} parent=11 // pred_fallthru
          _
        // Predicated region
        $region49: #{net_forward.1} parent=11 // pred_check
          %p544 = pneg %p266
        $region50: #{net_forward.1} parent=11 // pred_check_branch
          %546 = sbr.rel (%p544) target = $region52
        $region51: #{net_forward.1} parent=11 // pred_region
          _
        $region52: #{net_forward.1} parent=11 // pred_fallthru
          _
        // Predicated region
        $region53: #{net_forward.1} parent=11 // pred_check
          %p547 = pneg %p287
        $region54: #{net_forward.1} parent=11 // pred_check_branch
          %549 = sbr.rel (%p547) target = $region56
        $region55: #{net_forward.1} parent=11 // pred_region
          _
        $region56: #{net_forward.1} parent=11 // pred_fallthru
          _
        // Predicated region
        $region57: #{net_forward.1} parent=11 // pred_check
          %p550 = pneg %p308
        $region58: #{net_forward.1} parent=11 // pred_check_branch
          %552 = sbr.rel (%p550) target = $region60
        $region59: #{net_forward.1} parent=11 // pred_region
          _
        $region60: #{net_forward.1} parent=11 // pred_fallthru
          _
        // Predicated region
        $region61: #{net_forward.1} parent=11 // pred_check
          %p553 = pneg %p329
        $region62: #{net_forward.1} parent=11 // pred_check_branch
          %555 = sbr.rel (%p553) target = $region64
        $region63: #{net_forward.1} parent=11 // pred_region
          _
        $region64: #{net_forward.1} parent=11 // pred_fallthru
          _
        // Predicated region
        $region65: #{net_forward.1} parent=11 // pred_check
          %p556 = pneg %p350
        $region66: #{net_forward.1} parent=11 // pred_check_branch
          %558 = sbr.rel (%p556) target = $region68
        $region67: #{net_forward.1} parent=11 // pred_region
          _
        $region68: #{net_forward.1} parent=11 // pred_fallthru
          _
        // Predicated region
        $region69: #{net_forward.1} parent=11 // pred_check
          %p559 = pneg %p371
        $region70: #{net_forward.1} parent=11 // pred_check_branch
          %561 = sbr.rel (%p559) target = $region72
        $region71: #{net_forward.1} parent=11 // pred_region
          _
        $region72: #{net_forward.1} parent=11 // pred_fallthru
          _
        // Predicated region
        $region73: #{net_forward.1} parent=11 // pred_check
          %p562 = pneg %p392
        $region74: #{net_forward.1} parent=11 // pred_check_branch
          %564 = sbr.rel (%p562) target = $region76
        $region75: #{net_forward.1} parent=11 // pred_region
          _
        $region76: #{net_forward.1} parent=11 // pred_fallthru
          _
        // Predicated region
        $region77: #{net_forward.1} parent=11 // pred_check
          %p565 = pneg %p413
        $region78: #{net_forward.1} parent=11 // pred_check_branch
          %567 = sbr.rel (%p565) target = $region80
        $region79: #{net_forward.1} parent=11 // pred_region
          _
        $region80: #{net_forward.1} parent=11 // pred_fallthru
          _
        // Predicated region
        $region81: #{net_forward.1} parent=11 // pred_check
          %p568 = pneg %p434
        $region82: #{net_forward.1} parent=11 // pred_check_branch
          %570 = sbr.rel (%p568) target = $region84
        $region83: #{net_forward.1} parent=11 // pred_region
          _
        $region84: #{net_forward.1} parent=11 // pred_fallthru
          _
        // Predicated region
        $region85: #{net_forward.1} parent=11 // pred_check
          %p571 = pneg %p455
        $region86: #{net_forward.1} parent=11 // pred_check_branch
          %573 = sbr.rel (%p571) target = $region88
        $region87: #{net_forward.1} parent=11 // pred_region
          _
        $region88: #{net_forward.1} parent=11 // pred_fallthru
          _
        // Predicated region
        $region89: #{net_forward.1} parent=11 // pred_check
          %p574 = pneg %p476
        $region90: #{net_forward.1} parent=11 // pred_check_branch
          %576 = sbr.rel (%p574) target = $region92
        $region91: #{net_forward.1} parent=11 // pred_region
          _
        $region92: #{net_forward.1} parent=11 // pred_fallthru
          _
      $region12: #{net_forward.1} parent=5 // pred_fallthru
        _
      %p577 = scmp.lt.s32.totalorder %s30, 2
      // Predicated region
      $region93: #{net_forward.1} parent=5 // pred_check
        %p578 = pneg %p577
      $region94: #{net_forward.1} parent=5 // pred_check_branch
        %580 = sbr.rel (%p578) target = $region96
      $region95: #{net_forward.1} parent=5 // pred_region
        // Predicated region
        $region97: #{net_forward.1} parent=95 // pred_check
          %p581 = pneg %p50
        $region98: #{net_forward.1} parent=95 // pred_check_branch
          %583 = sbr.rel (%p581) target = $region100
        $region99: #{net_forward.1} parent=95 // pred_region
          %p584 = scmp.lt.s32.totalorder %s30, 1
          %s585 = scalar_select %p584, %s30, 1
          %s586 = smul.addr %s585, 8
          %s587 = smul.addr %s586, 8
          %s588 = scalar_lea.vmem %s0, %s587
        $region100: #{net_forward.1} parent=95 // pred_fallthru
          _
      $region96: #{net_forward.1} parent=5 // pred_fallthru
        _
      %p589 = scmp.le.s32.totalorder 1, %s30
      %p590 = scmp.lt.s32.totalorder %s30, 3
      %p591 = pnand %p589, %p590
      %p592 = pneg %p591
      // Predicated region
      $region101: #{net_forward.1} parent=5 // pred_check
        _
      $region102: #{net_forward.1} parent=5 // pred_check_branch
        %594 = sbr.rel (%p591) target = $region104
      $region103: #{net_forward.1} parent=5 // pred_region
        %s595 = ssub.s32 %s30, 1
        %p596 = scmp.lt.s32.totalorder %s35, 1
        %s597 = scalar_select %p596, %s35, 1
        %s598 = smul.addr %s597, 8
        %s599 = smul.addr %s598, 8
        %s600 = scalar_lea.vmem %s0, %s599
        %p601 = pneg %p56
        %p602 = pneg %p53
        %p603 = pneg %p77
        %p604 = pneg %p74
        %p605 = pneg %p98
        %p606 = pneg %p95
        %p607 = pneg %p119
        %p608 = pneg %p116
        %p609 = pneg %p140
        %p610 = pneg %p137
        %p611 = pneg %p161
        %p612 = pneg %p158
        %p613 = pneg %p182
        %p614 = pneg %p179
        %p615 = pneg %p203
        %p616 = pneg %p200
        %p617 = pneg %p224
        %p618 = pneg %p221
        %p619 = pneg %p245
        %p620 = pneg %p242
        %p621 = pneg %p266
        %p622 = pneg %p263
        %p623 = pneg %p287
        %p624 = pneg %p284
        %p625 = pneg %p308
        %p626 = pneg %p305
        %p627 = pneg %p329
        %p628 = pneg %p326
        %p629 = pneg %p350
        %p630 = pneg %p347
        %p631 = pneg %p371
        %p632 = pneg %p368
        %p633 = pneg %p392
        %p634 = pneg %p389
        %p635 = pneg %p413
        %p636 = pneg %p410
        %p637 = pneg %p434
        %p638 = pneg %p431
        %p639 = pneg %p455
        %p640 = pneg %p452
        %p641 = pneg %p476
        %p642 = pneg %p473
        %p643 = pneg %p502
        %p644 = pneg %p499
        %s645 = sand.u32 %s489, 1
        %s646 = scalar_lea.sflag [#allocation3], %s645
        %s647 = sand.u32 %s489, 1
        %s648 = scalar_lea.vmem [#allocation2], %s647
        %p649 = scmp.lt.s32.totalorder %s35, 1
        %s650 = scalar_select %p649, %s35, 1
        %s651 = smul.addr %s650, 8
        %s652 = smul.addr %s651, 8
        %s653 = scalar_lea.vmem %s0, %s652
        %v654 = vld [vmem:[%s653] sm:$0xff]
        %v655 = vld [vmem:[%s653 + $0x8] sm:$0xff]
        %v656 = vld [vmem:[%s653 + $0x10] sm:$0xff]
        %v657 = vld [vmem:[%s653 + $0x18] sm:$0xff]
        %v658 = vld [vmem:[%s653 + $0x20] sm:$0xff]
        %v659 = vld [vmem:[%s653 + $0x28] sm:$0xff]
        %v660 = vld [vmem:[%s653 + $0x30] sm:$0xff]
        %v661 = vld [vmem:[%s653 + $0x38] sm:$0x3f]
        %v662 = vld [vmem:[%s1] sm:$0xff]
        %v663 = vld [vmem:[%s1 + $0x8] sm:$0xff]
        %v664 = vld [vmem:[%s1 + $0x10] sm:$0xff]
        %v665 = vld [vmem:[%s1 + $0x18] sm:$0xff]
        %v666 = vld [vmem:[%s1 + $0x20] sm:$0xff]
        %v667 = vld [vmem:[%s1 + $0x28] sm:$0xff]
        %v668 = vld [vmem:[%s1 + $0x30] sm:$0xff]
        %v669 = vld [vmem:[%s1 + $0x38] sm:$0xff]
        %v670 = vld [vmem:[%s1 + $0x40] sm:$0xff]
        %v671 = vld [vmem:[%s1 + $0x48] sm:$0xff]
        %v672 = vld [vmem:[%s1 + $0x50] sm:$0xff]
        %v673 = vld [vmem:[%s1 + $0x58] sm:$0xff]
        %v674 = vld [vmem:[%s1 + $0x60] sm:$0xff]
        %v675 = vld [vmem:[%s1 + $0x68] sm:$0xff]
        %v676 = vld [vmem:[%s1 + $0x70] sm:$0xff]
        %v677 = vld [vmem:[%s1 + $0x78] sm:$0xff]
        %v678 = vld [vmem:[%s1 + $0x80] sm:$0xff]
        %v679 = vld [vmem:[%s1 + $0x88] sm:$0xff]
        %v680 = vld [vmem:[%s1 + $0x90] sm:$0xff]
        %v681 = vld [vmem:[%s1 + $0x98] sm:$0xff]
        %v682 = vld [vmem:[%s1 + $0xa0] sm:$0xff]
        %v683 = vld [vmem:[%s1 + $0xa8] sm:$0xff]
        %v684 = vld [vmem:[%s1 + $0xb0] sm:$0xff]
        %v685 = vld [vmem:[%s1 + $0xb8] sm:$0xff]
        %v686 = vld [vmem:[%s1 + $0xc0] sm:$0xff]
        %v687 = vld [vmem:[%s1 + $0xc8] sm:$0xff]
        %v688 = vld [vmem:[%s1 + $0xd0] sm:$0xff]
        %v689 = vld [vmem:[%s1 + $0xd8] sm:$0xff]
        %v690 = vld [vmem:[%s1 + $0xe0] sm:$0xff]
        %v691 = vld [vmem:[%s1 + $0xe8] sm:$0xff]
        %v692 = vld [vmem:[%s1 + $0xf0] sm:$0xff]
        %v693 = vld [vmem:[%s1 + $0xf8] sm:$0xff]
        %v694 = vld [vmem:[%s653 + $0x1] sm:$0xff]
        %v695 = vld [vmem:[%s653 + $0x9] sm:$0xff]
        %v696 = vld [vmem:[%s653 + $0x11] sm:$0xff]
        %v697 = vld [vmem:[%s653 + $0x19] sm:$0xff]
        %v698 = vld [vmem:[%s653 + $0x21] sm:$0xff]
        %v699 = vld [vmem:[%s653 + $0x29] sm:$0xff]
        %v700 = vld [vmem:[%s653 + $0x31] sm:$0xff]
        %v701 = vld [vmem:[%s653 + $0x39] sm:$0x3f]
        %s702 = scalar_lea.vmem %s1, 256
        %v703 = vld [vmem:[%s702] sm:$0xff]
        %v704 = vld [vmem:[%s702 + $0x8] sm:$0xff]
        %v705 = vld [vmem:[%s702 + $0x10] sm:$0xff]
        %v706 = vld [vmem:[%s702 + $0x18] sm:$0xff]
        %v707 = vld [vmem:[%s702 + $0x20] sm:$0xff]
        %v708 = vld [vmem:[%s702 + $0x28] sm:$0xff]
        %v709 = vld [vmem:[%s702 + $0x30] sm:$0xff]
        %v710 = vld [vmem:[%s702 + $0x38] sm:$0xff]
        %v711 = vld [vmem:[%s702 + $0x40] sm:$0xff]
        %v712 = vld [vmem:[%s702 + $0x48] sm:$0xff]
        %v713 = vld [vmem:[%s702 + $0x50] sm:$0xff]
        %v714 = vld [vmem:[%s702 + $0x58] sm:$0xff]
        %v715 = vld [vmem:[%s702 + $0x60] sm:$0xff]
        %v716 = vld [vmem:[%s702 + $0x68] sm:$0xff]
        %v717 = vld [vmem:[%s702 + $0x70] sm:$0xff]
        %v718 = vld [vmem:[%s702 + $0x78] sm:$0xff]
        %v719 = vld [vmem:[%s702 + $0x80] sm:$0xff]
        %v720 = vld [vmem:[%s702 + $0x88] sm:$0xff]
        %v721 = vld [vmem:[%s702 + $0x90] sm:$0xff]
        %v722 = vld [vmem:[%s702 + $0x98] sm:$0xff]
        %v723 = vld [vmem:[%s702 + $0xa0] sm:$0xff]
        %v724 = vld [vmem:[%s702 + $0xa8] sm:$0xff]
        %v725 = vld [vmem:[%s702 + $0xb0] sm:$0xff]
        %v726 = vld [vmem:[%s702 + $0xb8] sm:$0xff]
        %v727 = vld [vmem:[%s702 + $0xc0] sm:$0xff]
        %v728 = vld [vmem:[%s702 + $0xc8] sm:$0xff]
        %v729 = vld [vmem:[%s702 + $0xd0] sm:$0xff]
        %v730 = vld [vmem:[%s702 + $0xd8] sm:$0xff]
        %v731 = vld [vmem:[%s702 + $0xe0] sm:$0xff]
        %v732 = vld [vmem:[%s702 + $0xe8] sm:$0xff]
        %v733 = vld [vmem:[%s702 + $0xf0] sm:$0xff]
        %v734 = vld [vmem:[%s702 + $0xf8] sm:$0xff]
        %vm735 = vcmask 523264
        %v737 = vsel %vm735, %v694, 0
        %v740 = vsel %vm735, %v695, 0
        %v743 = vsel %vm735, %v696, 0
        %v746 = vsel %vm735, %v697, 0
        %v749 = vsel %vm735, %v698, 0
        %v752 = vsel %vm735, %v699, 0
        %v755 = vsel %vm735, %v700, 0
        %v758 = vsel %vm735, %v701, 0
        %760 = vmatprep.subr.mxu0 %v704
        %761 = vmatpush1.msra.mxu0 %v703
        %762 = vmatprep.subr.mxu0 %v708
        %763 = vmatpush1.msra.mxu0 %v707
        %764 = vmatprep.subr.mxu0 %v712
        %765 = vmatpush1.msra.mxu0 %v711
        %766 = vmatprep.subr.mxu0 %v716
        %767 = vmatpush1.msra.mxu0 %v715
        %768 = vmatprep.subr.mxu0 %v720
        %769 = vmatpush1.msra.mxu0 %v719
        %770 = vmatprep.subr.mxu0 %v724
        %771 = vmatpush1.msra.mxu0 %v723
        %772 = vmatprep.subr.mxu0 %v728
        %773 = vmatpush1.msra.mxu0 %v727
        %774 = vmatprep.subr.mxu0 %v732
        %775 = vmatpush1.msra.mxu0 %v731
        %776 = vmatprep.subr.mxu0 0.0
        %777 = vmatpush1.msra.mxu0 0.0
        %778 = vmatprep.subr.mxu0 0.0
        %779 = vmatpush1.msra.mxu0 0.0
        %780 = vmatprep.subr.mxu0 0.0
        %781 = vmatpush1.msra.mxu0 0.0
        %782 = vmatprep.subr.mxu0 0.0
        %783 = vmatpush1.msra.mxu0 0.0
        %784 = vmatprep.subr.mxu0 0.0
        %785 = vmatpush1.msra.mxu0 0.0
        %786 = vmatprep.subr.mxu0 0.0
        %787 = vmatpush1.msra.mxu0 0.0
        %788 = vmatprep.subr.mxu0 0.0
        %789 = vmatpush1.msra.mxu0 0.0
        %790 = vmatprep.subr.mxu0 0.0
        %791 = vmatpush1.msra.mxu0 0.0
        %792 = vmatprep.subr.mxu0 0.0
        %793 = vmatpush1.msra.mxu0 0.0
        %794 = vmatprep.subr.mxu0 0.0
        %795 = vmatpush1.msra.mxu0 0.0
        %796 = vmatprep.subr.mxu0 0.0
        %797 = vmatpush1.msra.mxu0 0.0
        %798 = vmatprep.subr.mxu0 0.0
        %799 = vmatpush1.msra.mxu0 0.0
        %800 = vmatprep.subr.mxu0 0.0
        %801 = vmatpush1.msra.mxu0 0.0
        %802 = vmatprep.subr.mxu0 0.0
        %803 = vmatpush1.msra.mxu0 0.0
        %804 = vmatprep.subr.mxu0 0.0
        %805 = vmatpush1.msra.mxu0 0.0
        %806 = vmatprep.subr.mxu0 0.0
        %807 = vmatpush1.msra.mxu0 0.0
        %808 = vmatprep.subr.mxu0 0.0
        %809 = vmatpush1.msra.mxu0 0.0
        %810 = vmatprep.subr.mxu0 0.0
        %811 = vmatpush1.msra.mxu0 0.0
        %812 = vmatprep.subr.mxu0 0.0
        %813 = vmatpush1.msra.mxu0 0.0
        %814 = vmatprep.subr.mxu0 0.0
        %815 = vmatpush1.msra.mxu0 0.0
        %816 = vmatprep.subr.mxu0 0.0
        %817 = vmatpush1.msra.mxu0 0.0
        %818 = vmatprep.subr.mxu0 0.0
        %819 = vmatpush1.msra.mxu0 0.0
        %820 = vmatprep.subr.mxu0 0.0
        %821 = vmatpush1.msra.mxu0 0.0
        %822 = vmatprep.subr.mxu0 0.0
        %823 = vmatpush1.msra.mxu0 0.0
        %824 = vmatprep.mubr.f32.mxu0 0.0
        %825 = vmatmul.mubr.f32.gmra.mrb[0].mxu0 %v737
        %v826 = vpop.f32.mrb[0].mxu0
        %v827 = vadd.f32 0.0, %v826
        %v828 = vpop.f32.mrb[0].mxu0
        %v829 = vadd.f32 0.0, %v828
        %830 = vmatprep.mubr.f32.mxu0 0.0
        %831 = vmatmul.mubr.f32.gmra.mrb[0].mxu0 %v740
        %v832 = vpop.f32.mrb[0].mxu0
        %v833 = vadd.f32 0.0, %v832
        %v834 = vpop.f32.mrb[0].mxu0
        %v835 = vadd.f32 0.0, %v834
        %836 = vmatprep.mubr.f32.mxu0 0.0
        %837 = vmatmul.mubr.f32.gmra.mrb[0].mxu0 %v743
        %v838 = vpop.f32.mrb[0].mxu0
        %v839 = vadd.f32 0.0, %v838
        %v840 = vpop.f32.mrb[0].mxu0
        %v841 = vadd.f32 0.0, %v840
        %842 = vmatprep.mubr.f32.mxu0 0.0
        %843 = vmatmul.mubr.f32.gmra.mrb[0].mxu0 %v746
        %v844 = vpop.f32.mrb[0].mxu0
        %v845 = vadd.f32 0.0, %v844
        %v846 = vpop.f32.mrb[0].mxu0
        %v847 = vadd.f32 0.0, %v846
        %848 = vmatprep.mubr.f32.mxu0 0.0
        %849 = vmatmul.mubr.f32.gmra.mrb[0].mxu0 %v749
        %v850 = vpop.f32.mrb[0].mxu0
        %v851 = vadd.f32 0.0, %v850
        %v852 = vpop.f32.mrb[0].mxu0
        %v853 = vadd.f32 0.0, %v852
        %854 = vmatprep.mubr.f32.mxu0 0.0
        %855 = vmatmul.mubr.f32.gmra.mrb[0].mxu0 %v752
        %v856 = vpop.f32.mrb[0].mxu0
        %v857 = vadd.f32 0.0, %v856
        %v858 = vpop.f32.mrb[0].mxu0
        %v859 = vadd.f32 0.0, %v858
        %860 = vmatprep.mubr.f32.mxu0 0.0
        %861 = vmatmul.mubr.f32.gmra.mrb[0].mxu0 %v755
        %v862 = vpop.f32.mrb[0].mxu0
        %v863 = vadd.f32 0.0, %v862
        %v864 = vpop.f32.mrb[0].mxu0
        %v865 = vadd.f32 0.0, %v864
        %866 = vmatprep.mubr.f32.mxu0 0.0
        %867 = vmatmul.mubr.f32.gmra.mrb[0].mxu0 %v758
        %v868 = vpop.f32.mrb[0].mxu0
        %v869 = vadd.f32 0.0, %v868
        %v870 = vpop.f32.mrb[0].mxu0
        %v871 = vadd.f32 0.0, %v870
        %872 = vdwg.mxu0
        %873 = vmatprep.subr.mxu0 %v706
        %874 = vmatpush1.msra.mxu0 %v705
        %875 = vmatprep.subr.mxu0 %v710
        %876 = vmatpush1.msra.mxu0 %v709
        %877 = vmatprep.subr.mxu0 %v714
        %878 = vmatpush1.msra.mxu0 %v713
        %879 = vmatprep.subr.mxu0 %v718
        %880 = vmatpush1.msra.mxu0 %v717
        %881 = vmatprep.subr.mxu0 %v722
        %882 = vmatpush1.msra.mxu0 %v721
        %883 = vmatprep.subr.mxu0 %v726
        %884 = vmatpush1.msra.mxu0 %v725
        %885 = vmatprep.subr.mxu0 %v730
        %886 = vmatpush1.msra.mxu0 %v729
        %887 = vmatprep.subr.mxu0 %v734
        %888 = vmatpush1.msra.mxu0 %v733
        %889 = vmatprep.subr.mxu0 0.0
        %890 = vmatpush1.msra.mxu0 0.0
        %891 = vmatprep.subr.mxu0 0.0
        %892 = vmatpush1.msra.mxu0 0.0
        %893 = vmatprep.subr.mxu0 0.0
        %894 = vmatpush1.msra.mxu0 0.0
        %895 = vmatprep.subr.mxu0 0.0
        %896 = vmatpush1.msra.mxu0 0.0
        %897 = vmatprep.subr.mxu0 0.0
        %898 = vmatpush1.msra.mxu0 0.0
        %899 = vmatprep.subr.mxu0 0.0
        %900 = vmatpush1.msra.mxu0 0.0
        %901 = vmatprep.subr.mxu0 0.0
        %902 = vmatpush1.msra.mxu0 0.0
        %903 = vmatprep.subr.mxu0 0.0
        %904 = vmatpush1.msra.mxu0 0.0
        %905 = vmatprep.subr.mxu0 0.0
        %906 = vmatpush1.msra.mxu0 0.0
        %907 = vmatprep.subr.mxu0 0.0
        %908 = vmatpush1.msra.mxu0 0.0
        %909 = vmatprep.subr.mxu0 0.0
        %910 = vmatpush1.msra.mxu0 0.0
        %911 = vmatprep.subr.mxu0 0.0
        %912 = vmatpush1.msra.mxu0 0.0
        %913 = vmatprep.subr.mxu0 0.0
        %914 = vmatpush1.msra.mxu0 0.0
        %915 = vmatprep.subr.mxu0 0.0
        %916 = vmatpush1.msra.mxu0 0.0
        %917 = vmatprep.subr.mxu0 0.0
        %918 = vmatpush1.msra.mxu0 0.0
        %919 = vmatprep.subr.mxu0 0.0
        %920 = vmatpush1.msra.mxu0 0.0
        %921 = vmatprep.subr.mxu0 0.0
        %922 = vmatpush1.msra.mxu0 0.0
        %923 = vmatprep.subr.mxu0 0.0
        %924 = vmatpush1.msra.mxu0 0.0
        %925 = vmatprep.subr.mxu0 0.0
        %926 = vmatpush1.msra.mxu0 0.0
        %927 = vmatprep.subr.mxu0 0.0
        %928 = vmatpush1.msra.mxu0 0.0
        %929 = vmatprep.subr.mxu0 0.0
        %930 = vmatpush1.msra.mxu0 0.0
        %931 = vmatprep.subr.mxu0 0.0
        %932 = vmatpush1.msra.mxu0 0.0
        %933 = vmatprep.subr.mxu0 0.0
        %934 = vmatpush1.msra.mxu0 0.0
        %935 = vmatprep.subr.mxu0 0.0
        %936 = vmatpush1.msra.mxu0 0.0
        %937 = vmatprep.mubr.f32.mxu0 0.0
        %938 = vmatmul.mubr.f32.gmra.mrb[0].mxu0 %v737
        %v939 = vpop.f32.mrb[0].mxu0
        %v940 = vadd.f32 0.0, %v939
        %v941 = vpop.f32.mrb[0].mxu0
        %v942 = vadd.f32 0.0, %v941
        %943 = vmatprep.mubr.f32.mxu0 0.0
        %944 = vmatmul.mubr.f32.gmra.mrb[0].mxu0 %v740
        %v945 = vpop.f32.mrb[0].mxu0
        %v946 = vadd.f32 0.0, %v945
        %v947 = vpop.f32.mrb[0].mxu0
        %v948 = vadd.f32 0.0, %v947
        %949 = vmatprep.mubr.f32.mxu0 0.0
        %950 = vmatmul.mubr.f32.gmra.mrb[0].mxu0 %v743
        %v951 = vpop.f32.mrb[0].mxu0
        %v952 = vadd.f32 0.0, %v951
        %v953 = vpop.f32.mrb[0].mxu0
        %v954 = vadd.f32 0.0, %v953
        %955 = vmatprep.mubr.f32.mxu0 0.0
        %956 = vmatmul.mubr.f32.gmra.mrb[0].mxu0 %v746
        %v957 = vpop.f32.mrb[0].mxu0
        %v958 = vadd.f32 0.0, %v957
        %v959 = vpop.f32.mrb[0].mxu0
        %v960 = vadd.f32 0.0, %v959
        %961 = vmatprep.mubr.f32.mxu0 0.0
        %962 = vmatmul.mubr.f32.gmra.mrb[0].mxu0 %v749
        %v963 = vpop.f32.mrb[0].mxu0
        %v964 = vadd.f32 0.0, %v963
        %v965 = vpop.f32.mrb[0].mxu0
        %v966 = vadd.f32 0.0, %v965
        %967 = vmatprep.mubr.f32.mxu0 0.0
        %968 = vmatmul.mubr.f32.gmra.mrb[0].mxu0 %v752
        %v969 = vpop.f32.mrb[0].mxu0
        %v970 = vadd.f32 0.0, %v969
        %v971 = vpop.f32.mrb[0].mxu0
        %v972 = vadd.f32 0.0, %v971
        %973 = vmatprep.mubr.f32.mxu0 0.0
        %974 = vmatmul.mubr.f32.gmra.mrb[0].mxu0 %v755
        %v975 = vpop.f32.mrb[0].mxu0
        %v976 = vadd.f32 0.0, %v975
        %v977 = vpop.f32.mrb[0].mxu0
        %v978 = vadd.f32 0.0, %v977
        %979 = vmatprep.mubr.f32.mxu0 0.0
        %980 = vmatmul.mubr.f32.gmra.mrb[0].mxu0 %v758
        %v981 = vpop.f32.mrb[0].mxu0
        %v982 = vadd.f32 0.0, %v981
        %v983 = vpop.f32.mrb[0].mxu0
        %v984 = vadd.f32 0.0, %v983
        %985 = vdwg.mxu0
        %v987 = vsel %vm735, %v654, 0
        %v990 = vsel %vm735, %v655, 0
        %v993 = vsel %vm735, %v656, 0
        %v996 = vsel %vm735, %v657, 0
        %v999 = vsel %vm735, %v658, 0
        %v1002 = vsel %vm735, %v659, 0
        %v1005 = vsel %vm735, %v660, 0
        %v1008 = vsel %vm735, %v661, 0
        %1010 = vmatprep.subr.mxu0 %v663
        %1011 = vmatpush1.msra.mxu0 %v662
        %1012 = vmatprep.subr.mxu0 %v667
        %1013 = vmatpush1.msra.mxu0 %v666
        %1014 = vmatprep.subr.mxu0 %v671
        %1015 = vmatpush1.msra.mxu0 %v670
        %1016 = vmatprep.subr.mxu0 %v675
        %1017 = vmatpush1.msra.mxu0 %v674
        %1018 = vmatprep.subr.mxu0 %v679
        %1019 = vmatpush1.msra.mxu0 %v678
        %1020 = vmatprep.subr.mxu0 %v683
        %1021 = vmatpush1.msra.mxu0 %v682
        %1022 = vmatprep.subr.mxu0 %v687
        %1023 = vmatpush1.msra.mxu0 %v686
        %1024 = vmatprep.subr.mxu0 %v691
        %1025 = vmatpush1.msra.mxu0 %v690
        %1026 = vmatprep.subr.mxu0 0.0
        %1027 = vmatpush1.msra.mxu0 0.0
        %1028 = vmatprep.subr.mxu0 0.0
        %1029 = vmatpush1.msra.mxu0 0.0
        %1030 = vmatprep.subr.mxu0 0.0
        %1031 = vmatpush1.msra.mxu0 0.0
        %1032 = vmatprep.subr.mxu0 0.0
        %1033 = vmatpush1.msra.mxu0 0.0
        %1034 = vmatprep.subr.mxu0 0.0
        %1035 = vmatpush1.msra.mxu0 0.0
        %1036 = vmatprep.subr.mxu0 0.0
        %1037 = vmatpush1.msra.mxu0 0.0
        %1038 = vmatprep.subr.mxu0 0.0
        %1039 = vmatpush1.msra.mxu0 0.0
        %1040 = vmatprep.subr.mxu0 0.0
        %1041 = vmatpush1.msra.mxu0 0.0
        %1042 = vmatprep.subr.mxu0 0.0
        %1043 = vmatpush1.msra.mxu0 0.0
        %1044 = vmatprep.subr.mxu0 0.0
        %1045 = vmatpush1.msra.mxu0 0.0
        %1046 = vmatprep.subr.mxu0 0.0
        %1047 = vmatpush1.msra.mxu0 0.0
        %1048 = vmatprep.subr.mxu0 0.0
        %1049 = vmatpush1.msra.mxu0 0.0
        %1050 = vmatprep.subr.mxu0 0.0
        %1051 = vmatpush1.msra.mxu0 0.0
        %1052 = vmatprep.subr.mxu0 0.0
        %1053 = vmatpush1.msra.mxu0 0.0
        %1054 = vmatprep.subr.mxu0 0.0
        %1055 = vmatpush1.msra.mxu0 0.0
        %1056 = vmatprep.subr.mxu0 0.0
        %1057 = vmatpush1.msra.mxu0 0.0
        %1058 = vmatprep.subr.mxu0 0.0
        %1059 = vmatpush1.msra.mxu0 0.0
        %1060 = vmatprep.subr.mxu0 0.0
        %1061 = vmatpush1.msra.mxu0 0.0
        %1062 = vmatprep.subr.mxu0 0.0
        %1063 = vmatpush1.msra.mxu0 0.0
        %1064 = vmatprep.subr.mxu0 0.0
        %1065 = vmatpush1.msra.mxu0 0.0
        %1066 = vmatprep.subr.mxu0 0.0
        %1067 = vmatpush1.msra.mxu0 0.0
        %1068 = vmatprep.subr.mxu0 0.0
        %1069 = vmatpush1.msra.mxu0 0.0
        %1070 = vmatprep.subr.mxu0 0.0
        %1071 = vmatpush1.msra.mxu0 0.0
        %1072 = vmatprep.subr.mxu0 0.0
        %1073 = vmatpush1.msra.mxu0 0.0
        %1074 = vmatprep.mubr.f32.mxu0 0.0
        %1075 = vmatmul.mubr.f32.gmra.mrb[0].mxu0 %v987
        %v1076 = vpop.f32.mrb[0].mxu0
        %v1077 = vadd.f32 %v827, %v1076
        %v1078 = vpop.f32.mrb[0].mxu0
        %v1079 = vadd.f32 %v829, %v1078
        %1080 = vmatprep.mubr.f32.mxu0 0.0
        %1081 = vmatmul.mubr.f32.gmra.mrb[0].mxu0 %v990
        %v1082 = vpop.f32.mrb[0].mxu0
        %v1083 = vadd.f32 %v833, %v1082
        %v1084 = vpop.f32.mrb[0].mxu0
        %v1085 = vadd.f32 %v835, %v1084
        %1086 = vmatprep.mubr.f32.mxu0 0.0
        %1087 = vmatmul.mubr.f32.gmra.mrb[0].mxu0 %v993
        %v1088 = vpop.f32.mrb[0].mxu0
        %v1089 = vadd.f32 %v839, %v1088
        %v1090 = vpop.f32.mrb[0].mxu0
        %v1091 = vadd.f32 %v841, %v1090
        %1092 = vmatprep.mubr.f32.mxu0 0.0
        %1093 = vmatmul.mubr.f32.gmra.mrb[0].mxu0 %v996
        %v1094 = vpop.f32.mrb[0].mxu0
        %v1095 = vadd.f32 %v845, %v1094
        %v1096 = vpop.f32.mrb[0].mxu0
        %v1097 = vadd.f32 %v847, %v1096
        %1098 = vmatprep.mubr.f32.mxu0 0.0
        %1099 = vmatmul.mubr.f32.gmra.mrb[0].mxu0 %v999
        %v1100 = vpop.f32.mrb[0].mxu0
        %v1101 = vadd.f32 %v851, %v1100
        %v1102 = vpop.f32.mrb[0].mxu0
        %v1103 = vadd.f32 %v853, %v1102
        %1104 = vmatprep.mubr.f32.mxu0 0.0
        %1105 = vmatmul.mubr.f32.gmra.mrb[0].mxu0 %v1002
        %v1106 = vpop.f32.mrb[0].mxu0
        %v1107 = vadd.f32 %v857, %v1106
        %v1108 = vpop.f32.mrb[0].mxu0
        %v1109 = vadd.f32 %v859, %v1108
        %1110 = vmatprep.mubr.f32.mxu0 0.0
        %1111 = vmatmul.mubr.f32.gmra.mrb[0].mxu0 %v1005
        %v1112 = vpop.f32.mrb[0].mxu0
        %v1113 = vadd.f32 %v863, %v1112
        %v1114 = vpop.f32.mrb[0].mxu0
        %v1115 = vadd.f32 %v865, %v1114
        %1116 = vmatprep.mubr.f32.mxu0 0.0
        %1117 = vmatmul.mubr.f32.gmra.mrb[0].mxu0 %v1008
        %v1118 = vpop.f32.mrb[0].mxu0
        %v1119 = vadd.f32 %v869, %v1118
        %v1120 = vpop.f32.mrb[0].mxu0
        %v1121 = vadd.f32 %v871, %v1120
        %1122 = vdwg.mxu0
        %1123 = vmatprep.subr.mxu0 %v665
        %1124 = vmatpush1.msra.mxu0 %v664
        %1125 = vmatprep.subr.mxu0 %v669
        %1126 = vmatpush1.msra.mxu0 %v668
        %1127 = vmatprep.subr.mxu0 %v673
        %1128 = vmatpush1.msra.mxu0 %v672
        %1129 = vmatprep.subr.mxu0 %v677
        %1130 = vmatpush1.msra.mxu0 %v676
        %1131 = vmatprep.subr.mxu0 %v681
        %1132 = vmatpush1.msra.mxu0 %v680
        %1133 = vmatprep.subr.mxu0 %v685
        %1134 = vmatpush1.msra.mxu0 %v684
        %1135 = vmatprep.subr.mxu0 %v689
        %1136 = vmatpush1.msra.mxu0 %v688
        %1137 = vmatprep.subr.mxu0 %v693
        %1138 = vmatpush1.msra.mxu0 %v692
        %1139 = vmatprep.subr.mxu0 0.0
        %1140 = vmatpush1.msra.mxu0 0.0
        %1141 = vmatprep.subr.mxu0 0.0
        %1142 = vmatpush1.msra.mxu0 0.0
        %1143 = vmatprep.subr.mxu0 0.0
        %1144 = vmatpush1.msra.mxu0 0.0
        %1145 = vmatprep.subr.mxu0 0.0
        %1146 = vmatpush1.msra.mxu0 0.0
        %1147 = vmatprep.subr.mxu0 0.0
        %1148 = vmatpush1.msra.mxu0 0.0
        %1149 = vmatprep.subr.mxu0 0.0
        %1150 = vmatpush1.msra.mxu0 0.0
        %1151 = vmatprep.subr.mxu0 0.0
        %1152 = vmatpush1.msra.mxu0 0.0
        %1153 = vmatprep.subr.mxu0 0.0
        %1154 = vmatpush1.msra.mxu0 0.0
        %1155 = vmatprep.subr.mxu0 0.0
        %1156 = vmatpush1.msra.mxu0 0.0
        %1157 = vmatprep.subr.mxu0 0.0
        %1158 = vmatpush1.msra.mxu0 0.0
        %1159 = vmatprep.subr.mxu0 0.0
        %1160 = vmatpush1.msra.mxu0 0.0
        %1161 = vmatprep.subr.mxu0 0.0
        %1162 = vmatpush1.msra.mxu0 0.0
        %1163 = vmatprep.subr.mxu0 0.0
        %1164 = vmatpush1.msra.mxu0 0.0
        %1165 = vmatprep.subr.mxu0 0.0
        %1166 = vmatpush1.msra.mxu0 0.0
        %1167 = vmatprep.subr.mxu0 0.0
        %1168 = vmatpush1.msra.mxu0 0.0
        %1169 = vmatprep.subr.mxu0 0.0
        %1170 = vmatpush1.msra.mxu0 0.0
        %1171 = vmatprep.subr.mxu0 0.0
        %1172 = vmatpush1.msra.mxu0 0.0
        %1173 = vmatprep.subr.mxu0 0.0
        %1174 = vmatpush1.msra.mxu0 0.0
        %1175 = vmatprep.subr.mxu0 0.0
        %1176 = vmatpush1.msra.mxu0 0.0
        %1177 = vmatprep.subr.mxu0 0.0
        %1178 = vmatpush1.msra.mxu0 0.0
        %1179 = vmatprep.subr.mxu0 0.0
        %1180 = vmatpush1.msra.mxu0 0.0
        %1181 = vmatprep.subr.mxu0 0.0
        %1182 = vmatpush1.msra.mxu0 0.0
        %1183 = vmatprep.subr.mxu0 0.0
        %1184 = vmatpush1.msra.mxu0 0.0
        %1185 = vmatprep.subr.mxu0 0.0
        %1186 = vmatpush1.msra.mxu0 0.0
        %1187 = vmatprep.mubr.f32.mxu0 0.0
        %1188 = vmatmul.mubr.f32.gmra.mrb[0].mxu0 %v987
        %v1189 = vpop.f32.mrb[0].mxu0
        %v1190 = vadd.f32 %v940, %v1189
        %v1191 = vpop.f32.mrb[0].mxu0
        %v1192 = vadd.f32 %v942, %v1191
        %1193 = vmatprep.mubr.f32.mxu0 0.0
        %1194 = vmatmul.mubr.f32.gmra.mrb[0].mxu0 %v990
        %v1195 = vpop.f32.mrb[0].mxu0
        %v1196 = vadd.f32 %v946, %v1195
        %v1197 = vpop.f32.mrb[0].mxu0
        %v1198 = vadd.f32 %v948, %v1197
        %1199 = vmatprep.mubr.f32.mxu0 0.0
        %1200 = vmatmul.mubr.f32.gmra.mrb[0].mxu0 %v993
        %v1201 = vpop.f32.mrb[0].mxu0
        %v1202 = vadd.f32 %v952, %v1201
        %v1203 = vpop.f32.mrb[0].mxu0
        %v1204 = vadd.f32 %v954, %v1203
        %1205 = vmatprep.mubr.f32.mxu0 0.0
        %1206 = vmatmul.mubr.f32.gmra.mrb[0].mxu0 %v996
        %v1207 = vpop.f32.mrb[0].mxu0
        %v1208 = vadd.f32 %v958, %v1207
        %v1209 = vpop.f32.mrb[0].mxu0
        %v1210 = vadd.f32 %v960, %v1209
        %1211 = vmatprep.mubr.f32.mxu0 0.0
        %1212 = vmatmul.mubr.f32.gmra.mrb[0].mxu0 %v999
        %v1213 = vpop.f32.mrb[0].mxu0
        %v1214 = vadd.f32 %v964, %v1213
        %v1215 = vpop.f32.mrb[0].mxu0
        %v1216 = vadd.f32 %v966, %v1215
        %1217 = vmatprep.mubr.f32.mxu0 0.0
        %1218 = vmatmul.mubr.f32.gmra.mrb[0].mxu0 %v1002
        %v1219 = vpop.f32.mrb[0].mxu0
        %v1220 = vadd.f32 %v970, %v1219
        %v1221 = vpop.f32.mrb[0].mxu0
        %v1222 = vadd.f32 %v972, %v1221
        %1223 = vmatprep.mubr.f32.mxu0 0.0
        %1224 = vmatmul.mubr.f32.gmra.mrb[0].mxu0 %v1005
        %v1225 = vpop.f32.mrb[0].mxu0
        %v1226 = vadd.f32 %v976, %v1225
        %v1227 = vpop.f32.mrb[0].mxu0
        %v1228 = vadd.f32 %v978, %v1227
        %1229 = vmatprep.mubr.f32.mxu0 0.0
        %1230 = vmatmul.mubr.f32.gmra.mrb[0].mxu0 %v1008
        %v1231 = vpop.f32.mrb[0].mxu0
        %v1232 = vadd.f32 %v982, %v1231
        %v1233 = vpop.f32.mrb[0].mxu0
        %v1234 = vadd.f32 %v984, %v1233
        %1235 = vdwg.mxu0
        %v1236 = vld [vmem:[%s653 + $0x2] sm:$0xff]
        %v1237 = vld [vmem:[%s653 + $0xa] sm:$0xff]
        %v1238 = vld [vmem:[%s653 + $0x12] sm:$0xff]
        %v1239 = vld [vmem:[%s653 + $0x1a] sm:$0xff]
        %v1240 = vld [vmem:[%s653 + $0x22] sm:$0xff]
        %v1241 = vld [vmem:[%s653 + $0x2a] sm:$0xff]
        %v1242 = vld [vmem:[%s653 + $0x32] sm:$0xff]
        %v1243 = vld [vmem:[%s653 + $0x3a] sm:$0x3f]
        %s1244 = scalar_lea.vmem %s1, 512
        %v1245 = vld [vmem:[%s1244] sm:$0xff]
        %v1246 = vld [vmem:[%s1244 + $0x8] sm:$0xff]
        %v1247 = vld [vmem:[%s1244 + $0x10] sm:$0xff]
        %v1248 = vld [vmem:[%s1244 + $0x18] sm:$0xff]
        %v1249 = vld [vmem:[%s1244 + $0x20] sm:$0xff]
        %v1250 = vld [vmem:[%s1244 + $0x28] sm:$0xff]
        %v1251 = vld [vmem:[%s1244 + $0x30] sm:$0xff]
        %v1252 = vld [vmem:[%s1244 + $0x38] sm:$0xff]
        %v1253 = vld [vmem:[%s1244 + $0x40] sm:$0xff]
        %v1254 = vld [vmem:[%s1244 + $0x48] sm:$0xff]
        %v1255 = vld [vmem:[%s1244 + $0x50] sm:$0xff]
        %v1256 = vld [vmem:[%s1244 + $0x58] sm:$0xff]
        %v1257 = vld [vmem:[%s1244 + $0x60] sm:$0xff]
        %v1258 = vld [vmem:[%s1244 + $0x68] sm:$0xff]
        %v1259 = vld [vmem:[%s1244 + $0x70] sm:$0xff]
        %v1260 = vld [vmem:[%s1244 + $0x78] sm:$0xff]
        %v1261 = vld [vmem:[%s1244 + $0x80] sm:$0xff]
        %v1262 = vld [vmem:[%s1244 + $0x88] sm:$0xff]
        %v1263 = vld [vmem:[%s1244 + $0x90] sm:$0xff]
        %v1264 = vld [vmem:[%s1244 + $0x98] sm:$0xff]
        %v1265 = vld [vmem:[%s1244 + $0xa0] sm:$0xff]
        %v1266 = vld [vmem:[%s1244 + $0xa8] sm:$0xff]
        %v1267 = vld [vmem:[%s1244 + $0xb0] sm:$0xff]
        %v1268 = vld [vmem:[%s1244 + $0xb8] sm:$0xff]
        %v1269 = vld [vmem:[%s1244 + $0xc0] sm:$0xff]
        %v1270 = vld [vmem:[%s1244 + $0xc8] sm:$0xff]
        %v1271 = vld [vmem:[%s1244 + $0xd0] sm:$0xff]
        %v1272 = vld [vmem:[%s1244 + $0xd8] sm:$0xff]
        %v1273 = vld [vmem:[%s1244 + $0xe0] sm:$0xff]
        %v1274 = vld [vmem:[%s1244 + $0xe8] sm:$0xff]
        %v1275 = vld [vmem:[%s1244 + $0xf0] sm:$0xff]
        %v1276 = vld [vmem:[%s1244 + $0xf8] sm:$0xff]
        %v1278 = vsel %vm735, %v1236, 0
        %v1281 = vsel %vm735, %v1237, 0
        %v1284 = vsel %vm735, %v1238, 0
        %v1287 = vsel %vm735, %v1239, 0
        %v1290 = vsel %vm735, %v1240, 0
        %v1293 = vsel %vm735, %v1241, 0
        %v1296 = vsel %vm735, %v1242, 0
        %v1299 = vsel %vm735, %v1243, 0
        %1301 = vmatprep.subr.mxu0 %v1246
        %1302 = vmatpush1.msra.mxu0 %v1245
        %1303 = vmatprep.subr.mxu0 %v1250
        %1304 = vmatpush1.msra.mxu0 %v1249
        %1305 = vmatprep.subr.mxu0 %v1254
        %1306 = vmatpush1.msra.mxu0 %v1253
        %1307 = vmatprep.subr.mxu0 %v1258
        %1308 = vmatpush1.msra.mxu0 %v1257
        %1309 = vmatprep.subr.mxu0 %v1262
        %1310 = vmatpush1.msra.mxu0 %v1261
        %1311 = vmatprep.subr.mxu0 %v1266
        %1312 = vmatpush1.msra.mxu0 %v1265
        %1313 = vmatprep.subr.mxu0 %v1270
        %1314 = vmatpush1.msra.mxu0 %v1269
        %1315 = vmatprep.subr.mxu0 %v1274
        %1316 = vmatpush1.msra.mxu0 %v1273
        %1317 = vmatprep.subr.mxu0 0.0
        %1318 = vmatpush1.msra.mxu0 0.0
        %1319 = vmatprep.subr.mxu0 0.0
        %1320 = vmatpush1.msra.mxu0 0.0
        %1321 = vmatprep.subr.mxu0 0.0
        %1322 = vmatpush1.msra.mxu0 0.0
        %1323 = vmatprep.subr.mxu0 0.0
        %1324 = vmatpush1.msra.mxu0 0.0
        %1325 = vmatprep.subr.mxu0 0.0
        %1326 = vmatpush1.msra.mxu0 0.0
        %1327 = vmatprep.subr.mxu0 0.0
        %1328 = vmatpush1.msra.mxu0 0.0
        %1329 = vmatprep.subr.mxu0 0.0
        %1330 = vmatpush1.msra.mxu0 0.0
        %1331 = vmatprep.subr.mxu0 0.0
        %1332 = vmatpush1.msra.mxu0 0.0
        %1333 = vmatprep.subr.mxu0 0.0
        %1334 = vmatpush1.msra.mxu0 0.0
        %1335 = vmatprep.subr.mxu0 0.0
        %1336 = vmatpush1.msra.mxu0 0.0
        %1337 = vmatprep.subr.mxu0 0.0
        %1338 = vmatpush1.msra.mxu0 0.0
        %1339 = vmatprep.subr.mxu0 0.0
        %1340 = vmatpush1.msra.mxu0 0.0
        %1341 = vmatprep.subr.mxu0 0.0
        %1342 = vmatpush1.msra.mxu0 0.0
        %1343 = vmatprep.subr.mxu0 0.0
        %1344 = vmatpush1.msra.mxu0 0.0
        %1345 = vmatprep.subr.mxu0 0.0
        %1346 = vmatpush1.msra.mxu0 0.0
        %1347 = vmatprep.subr.mxu0 0.0
        %1348 = vmatpush1.msra.mxu0 0.0
        %1349 = vmatprep.subr.mxu0 0.0
        %1350 = vmatpush1.msra.mxu0 0.0
        %1351 = vmatprep.subr.mxu0 0.0
        %1352 = vmatpush1.msra.mxu0 0.0
        %1353 = vmatprep.subr.mxu0 0.0
        %1354 = vmatpush1.msra.mxu0 0.0
        %1355 = vmatprep.subr.mxu0 0.0
        %1356 = vmatpush1.msra.mxu0 0.0
        %1357 = vmatprep.subr.mxu0 0.0
        %1358 = vmatpush1.msra.mxu0 0.0
        %1359 = vmatprep.subr.mxu0 0.0
        %1360 = vmatpush1.msra.mxu0 0.0
        %1361 = vmatprep.subr.mxu0 0.0
        %1362 = vmatpush1.msra.mxu0 0.0
        %1363 = vmatprep.subr.mxu0 0.0
        %1364 = vmatpush1.msra.mxu0 0.0
        %1365 = vmatprep.mubr.f32.mxu0 0.0
        %1366 = vmatmul.mubr.f32.gmra.mrb[0].mxu0 %v1278
        %v1367 = vpop.f32.mrb[0].mxu0
        %v1368 = vadd.f32 0.0, %v1367
        %v1369 = vpop.f32.mrb[0].mxu0
        %v1370 = vadd.f32 0.0, %v1369
        %1371 = vmatprep.mubr.f32.mxu0 0.0
        %1372 = vmatmul.mubr.f32.gmra.mrb[0].mxu0 %v1281
        %v1373 = vpop.f32.mrb[0].mxu0
        %v1374 = vadd.f32 0.0, %v1373
        %v1375 = vpop.f32.mrb[0].mxu0
        %v1376 = vadd.f32 0.0, %v1375
        %1377 = vmatprep.mubr.f32.mxu0 0.0
        %1378 = vmatmul.mubr.f32.gmra.mrb[0].mxu0 %v1284
        %v1379 = vpop.f32.mrb[0].mxu0
        %v1380 = vadd.f32 0.0, %v1379
        %v1381 = vpop.f32.mrb[0].mxu0
        %v1382 = vadd.f32 0.0, %v1381
        %1383 = vmatprep.mubr.f32.mxu0 0.0
        %1384 = vmatmul.mubr.f32.gmra.mrb[0].mxu0 %v1287
        %v1385 = vpop.f32.mrb[0].mxu0
        %v1386 = vadd.f32 0.0, %v1385
        %v1387 = vpop.f32.mrb[0].mxu0
        %v1388 = vadd.f32 0.0, %v1387
        %1389 = vmatprep.mubr.f32.mxu0 0.0
        %1390 = vmatmul.mubr.f32.gmra.mrb[0].mxu0 %v1290
        %v1391 = vpop.f32.mrb[0].mxu0
        %v1392 = vadd.f32 0.0, %v1391
        %v1393 = vpop.f32.mrb[0].mxu0
        %v1394 = vadd.f32 0.0, %v1393
        %1395 = vmatprep.mubr.f32.mxu0 0.0
        %1396 = vmatmul.mubr.f32.gmra.mrb[0].mxu0 %v1293
        %v1397 = vpop.f32.mrb[0].mxu0
        %v1398 = vadd.f32 0.0, %v1397
        %v1399 = vpop.f32.mrb[0].mxu0
        %v1400 = vadd.f32 0.0, %v1399
        %1401 = vmatprep.mubr.f32.mxu0 0.0
        %1402 = vmatmul.mubr.f32.gmra.mrb[0].mxu0 %v1296
        %v1403 = vpop.f32.mrb[0].mxu0
        %v1404 = vadd.f32 0.0, %v1403
        %v1405 = vpop.f32.mrb[0].mxu0
        %v1406 = vadd.f32 0.0, %v1405
        %1407 = vmatprep.mubr.f32.mxu0 0.0
        %1408 = vmatmul.mubr.f32.gmra.mrb[0].mxu0 %v1299
        %v1409 = vpop.f32.mrb[0].mxu0
        %v1410 = vadd.f32 0.0, %v1409
        %v1411 = vpop.f32.mrb[0].mxu0
        %v1412 = vadd.f32 0.0, %v1411
        %1413 = vdwg.mxu0
        %1414 = vmatprep.subr.mxu0 %v1248
        %1415 = vmatpush1.msra.mxu0 %v1247
        %1416 = vmatprep.subr.mxu0 %v1252
        %1417 = vmatpush1.msra.mxu0 %v1251
        %1418 = vmatprep.subr.mxu0 %v1256
        %1419 = vmatpush1.msra.mxu0 %v1255
        %1420 = vmatprep.subr.mxu0 %v1260
        %1421 = vmatpush1.msra.mxu0 %v1259
        %1422 = vmatprep.subr.mxu0 %v1264
        %1423 = vmatpush1.msra.mxu0 %v1263
        %1424 = vmatprep.subr.mxu0 %v1268
        %1425 = vmatpush1.msra.mxu0 %v1267
        %1426 = vmatprep.subr.mxu0 %v1272
        %1427 = vmatpush1.msra.mxu0 %v1271
        %1428 = vmatprep.subr.mxu0 %v1276
        %1429 = vmatpush1.msra.mxu0 %v1275
        %1430 = vmatprep.subr.mxu0 0.0
        %1431 = vmatpush1.msra.mxu0 0.0
        %1432 = vmatprep.subr.mxu0 0.0
        %1433 = vmatpush1.msra.mxu0 0.0
        %1434 = vmatprep.subr.mxu0 0.0
        %1435 = vmatpush1.msra.mxu0 0.0
        %1436 = vmatprep.subr.mxu0 0.0
        %1437 = vmatpush1.msra.mxu0 0.0
        %1438 = vmatprep.subr.mxu0 0.0
        %1439 = vmatpush1.msra.mxu0 0.0
        %1440 = vmatprep.subr.mxu0 0.0
        %1441 = vmatpush1.msra.mxu0 0.0
        %1442 = vmatprep.subr.mxu0 0.0
        %1443 = vmatpush1.msra.mxu0 0.0
        %1444 = vmatprep.subr.mxu0 0.0
        %1445 = vmatpush1.msra.mxu0 0.0
        %1446 = vmatprep.subr.mxu0 0.0
        %1447 = vmatpush1.msra.mxu0 0.0
        %1448 = vmatprep.subr.mxu0 0.0
        %1449 = vmatpush1.msra.mxu0 0.0
        %1450 = vmatprep.subr.mxu0 0.0
        %1451 = vmatpush1.msra.mxu0 0.0
        %1452 = vmatprep.subr.mxu0 0.0
        %1453 = vmatpush1.msra.mxu0 0.0
        %1454 = vmatprep.subr.mxu0 0.0
        %1455 = vmatpush1.msra.mxu0 0.0
        %1456 = vmatprep.subr.mxu0 0.0
        %1457 = vmatpush1.msra.mxu0 0.0
        %1458 = vmatprep.subr.mxu0 0.0
        %1459 = vmatpush1.msra.mxu0 0.0
        %1460 = vmatprep.subr.mxu0 0.0
        %1461 = vmatpush1.msra.mxu0 0.0
        %1462 = vmatprep.subr.mxu0 0.0
        %1463 = vmatpush1.msra.mxu0 0.0
        %1464 = vmatprep.subr.mxu0 0.0
        %1465 = vmatpush1.msra.mxu0 0.0
        %1466 = vmatprep.subr.mxu0 0.0
        %1467 = vmatpush1.msra.mxu0 0.0
        %1468 = vmatprep.subr.mxu0 0.0
        %1469 = vmatpush1.msra.mxu0 0.0
        %1470 = vmatprep.subr.mxu0 0.0
        %1471 = vmatpush1.msra.mxu0 0.0
        %1472 = vmatprep.subr.mxu0 0.0
        %1473 = vmatpush1.msra.mxu0 0.0
        %1474 = vmatprep.subr.mxu0 0.0
        %1475 = vmatpush1.msra.mxu0 0.0
        %1476 = vmatprep.subr.mxu0 0.0
        %1477 = vmatpush1.msra.mxu0 0.0
        %1478 = vmatprep.mubr.f32.mxu0 0.0
        %1479 = vmatmul.mubr.f32.gmra.mrb[0].mxu0 %v1278
        %v1480 = vpop.f32.mrb[0].mxu0
        %v1481 = vadd.f32 0.0, %v1480
        %v1482 = vpop.f32.mrb[0].mxu0
        %v1483 = vadd.f32 0.0, %v1482
        %1484 = vmatprep.mubr.f32.mxu0 0.0
        %1485 = vmatmul.mubr.f32.gmra.mrb[0].mxu0 %v1281
        %v1486 = vpop.f32.mrb[0].mxu0
        %v1487 = vadd.f32 0.0, %v1486
        %v1488 = vpop.f32.mrb[0].mxu0
        %v1489 = vadd.f32 0.0, %v1488
        %1490 = vmatprep.mubr.f32.mxu0 0.0
        %1491 = vmatmul.mubr.f32.gmra.mrb[0].mxu0 %v1284
        %v1492 = vpop.f32.mrb[0].mxu0
        %v1493 = vadd.f32 0.0, %v1492
        %v1494 = vpop.f32.mrb[0].mxu0
        %v1495 = vadd.f32 0.0, %v1494
        %1496 = vmatprep.mubr.f32.mxu0 0.0
        %1497 = vmatmul.mubr.f32.gmra.mrb[0].mxu0 %v1287
        %v1498 = vpop.f32.mrb[0].mxu0
        %v1499 = vadd.f32 0.0, %v1498
        %v1500 = vpop.f32.mrb[0].mxu0
        %v1501 = vadd.f32 0.0, %v1500
        %1502 = vmatprep.mubr.f32.mxu0 0.0
        %1503 = vmatmul.mubr.f32.gmra.mrb[0].mxu0 %v1290
        %v1504 = vpop.f32.mrb[0].mxu0
        %v1505 = vadd.f32 0.0, %v1504
        %v1506 = vpop.f32.mrb[0].mxu0
        %v1507 = vadd.f32 0.0, %v1506
        %1508 = vmatprep.mubr.f32.mxu0 0.0
        %1509 = vmatmul.mubr.f32.gmra.mrb[0].mxu0 %v1293
        %v1510 = vpop.f32.mrb[0].mxu0
        %v1511 = vadd.f32 0.0, %v1510
        %v1512 = vpop.f32.mrb[0].mxu0
        %v1513 = vadd.f32 0.0, %v1512
        %1514 = vmatprep.mubr.f32.mxu0 0.0
        %1515 = vmatmul.mubr.f32.gmra.mrb[0].mxu0 %v1296
        %v1516 = vpop.f32.mrb[0].mxu0
        %v1517 = vadd.f32 0.0, %v1516
        %v1518 = vpop.f32.mrb[0].mxu0
        %v1519 = vadd.f32 0.0, %v1518
        %1520 = vmatprep.mubr.f32.mxu0 0.0
        %1521 = vmatmul.mubr.f32.gmra.mrb[0].mxu0 %v1299
        %v1522 = vpop.f32.mrb[0].mxu0
        %v1523 = vadd.f32 0.0, %v1522
        %v1524 = vpop.f32.mrb[0].mxu0
        %v1525 = vadd.f32 0.0, %v1524
        %1526 = vdwg.mxu0
        %v1527 = vadd.f32 %v1077, %v1368
        %v1528 = vadd.f32 %v1079, %v1370
        %v1529 = vadd.f32 %v1190, %v1481
        %v1530 = vadd.f32 %v1192, %v1483
        %v1531 = vadd.f32 %v1083, %v1374
        %v1532 = vadd.f32 %v1085, %v1376
        %v1533 = vadd.f32 %v1196, %v1487
        %v1534 = vadd.f32 %v1198, %v1489
        %v1535 = vadd.f32 %v1089, %v1380
        %v1536 = vadd.f32 %v1091, %v1382
        %v1537 = vadd.f32 %v1202, %v1493
        %v1538 = vadd.f32 %v1204, %v1495
        %v1539 = vadd.f32 %v1095, %v1386
        %v1540 = vadd.f32 %v1097, %v1388
        %v1541 = vadd.f32 %v1208, %v1499
        %v1542 = vadd.f32 %v1210, %v1501
        %v1543 = vadd.f32 %v1101, %v1392
        %v1544 = vadd.f32 %v1103, %v1394
        %v1545 = vadd.f32 %v1214, %v1505
        %v1546 = vadd.f32 %v1216, %v1507
        %v1547 = vadd.f32 %v1107, %v1398
        %v1548 = vadd.f32 %v1109, %v1400
        %v1549 = vadd.f32 %v1220, %v1511
        %v1550 = vadd.f32 %v1222, %v1513
        %v1551 = vadd.f32 %v1113, %v1404
        %v1552 = vadd.f32 %v1115, %v1406
        %v1553 = vadd.f32 %v1226, %v1517
        %v1554 = vadd.f32 %v1228, %v1519
        %v1555 = vadd.f32 %v1119, %v1410
        %v1556 = vadd.f32 %v1121, %v1412
        %v1557 = vadd.f32 %v1232, %v1523
        %v1558 = vadd.f32 %v1234, %v1525
        %v1559 = vld [vmem:[%s2] sm:$0xf]
        %v1561 = vlaneseq
        %v1562 = vshrl.u32 %v1561, 7
        %v1563 = vsub.s32 0, %v1562
        %v1564 = vrot.slane %v1559, %v1563
        %v1565 = vlaneseq
        %v1566 = vshrl.u32 %v1565, 7
        %v1567 = vsub.s32 1, %v1566
        %v1568 = vrot.slane %v1559, %v1567
        %v1569 = vlaneseq
        %v1570 = vshrl.u32 %v1569, 7
        %v1571 = vsub.s32 2, %v1570
        %v1572 = vrot.slane %v1559, %v1571
        %v1573 = vlaneseq
        %v1574 = vshrl.u32 %v1573, 7
        %v1575 = vsub.s32 3, %v1574
        %v1576 = vrot.slane %v1559, %v1575
        %v1581 = vadd.f32 %v1527, %v1564
        %v1582 = vadd.f32 %v1528, %v1568
        %v1583 = vadd.f32 %v1529, %v1572
        %v1584 = vadd.f32 %v1530, %v1576
        %v1585 = vadd.f32 %v1531, %v1564
        %v1586 = vadd.f32 %v1532, %v1568
        %v1587 = vadd.f32 %v1533, %v1572
        %v1588 = vadd.f32 %v1534, %v1576
        %v1589 = vadd.f32 %v1535, %v1564
        %v1590 = vadd.f32 %v1536, %v1568
        %v1591 = vadd.f32 %v1537, %v1572
        %v1592 = vadd.f32 %v1538, %v1576
        %v1593 = vadd.f32 %v1539, %v1564
        %v1594 = vadd.f32 %v1540, %v1568
        %v1595 = vadd.f32 %v1541, %v1572
        %v1596 = vadd.f32 %v1542, %v1576
        %v1597 = vadd.f32 %v1543, %v1564
        %v1598 = vadd.f32 %v1544, %v1568
        %v1599 = vadd.f32 %v1545, %v1572
        %v1600 = vadd.f32 %v1546, %v1576
        %v1601 = vadd.f32 %v1547, %v1564
        %v1602 = vadd.f32 %v1548, %v1568
        %v1603 = vadd.f32 %v1549, %v1572
        %v1604 = vadd.f32 %v1550, %v1576
        %v1605 = vadd.f32 %v1551, %v1564
        %v1606 = vadd.f32 %v1552, %v1568
        %v1607 = vadd.f32 %v1553, %v1572
        %v1608 = vadd.f32 %v1554, %v1576
        %v1609 = vadd.f32 %v1555, %v1564
        %v1610 = vadd.f32 %v1556, %v1568
        %v1611 = vadd.f32 %v1557, %v1572
        %v1612 = vadd.f32 %v1558, %v1576
        %v1613 = vmax.f32 %v1581, 0.0
        %v1614 = vmax.f32 %v1582, 0.0
        %v1615 = vmax.f32 %v1583, 0.0
        %v1616 = vmax.f32 %v1584, 0.0
        %v1617 = vmax.f32 %v1585, 0.0
        %v1618 = vmax.f32 %v1586, 0.0
        %v1619 = vmax.f32 %v1587, 0.0
        %v1620 = vmax.f32 %v1588, 0.0
        %v1621 = vmax.f32 %v1589, 0.0
        %v1622 = vmax.f32 %v1590, 0.0
        %v1623 = vmax.f32 %v1591, 0.0
        %v1624 = vmax.f32 %v1592, 0.0
        %v1625 = vmax.f32 %v1593, 0.0
        %v1626 = vmax.f32 %v1594, 0.0
        %v1627 = vmax.f32 %v1595, 0.0
        %v1628 = vmax.f32 %v1596, 0.0
        %v1629 = vmax.f32 %v1597, 0.0
        %v1630 = vmax.f32 %v1598, 0.0
        %v1631 = vmax.f32 %v1599, 0.0
        %v1632 = vmax.f32 %v1600, 0.0
        %v1633 = vmax.f32 %v1601, 0.0
        %v1634 = vmax.f32 %v1602, 0.0
        %v1635 = vmax.f32 %v1603, 0.0
        %v1636 = vmax.f32 %v1604, 0.0
        %v1637 = vmax.f32 %v1605, 0.0
        %v1638 = vmax.f32 %v1606, 0.0
        %v1639 = vmax.f32 %v1607, 0.0
        %v1640 = vmax.f32 %v1608, 0.0
        %v1641 = vmax.f32 %v1609, 0.0
        %v1642 = vmax.f32 %v1610, 0.0
        %v1643 = vmax.f32 %v1611, 0.0
        %v1644 = vmax.f32 %v1612, 0.0
        %vm1677 = vcmask 1046528
        %v1678 = vrot.slane %v1613, 1
        %v1679 = vrot.slane %v1617, 1
        %v1680 = vsel %vm1677, %v1678, %v1679
        %v1681 = vrot.slane %v1614, 1
        %v1682 = vrot.slane %v1618, 1
        %v1683 = vsel %vm1677, %v1681, %v1682
        %v1684 = vrot.slane %v1615, 1
        %v1685 = vrot.slane %v1619, 1
        %v1686 = vsel %vm1677, %v1684, %v1685
        %v1687 = vrot.slane %v1616, 1
        %v1688 = vrot.slane %v1620, 1
        %v1689 = vsel %vm1677, %v1687, %v1688
        %v1690 = vrot.slane %v1621, 1
        %v1691 = vsel %vm1677, %v1679, %v1690
        %v1692 = vrot.slane %v1622, 1
        %v1693 = vsel %vm1677, %v1682, %v1692
        %v1694 = vrot.slane %v1623, 1
        %v1695 = vsel %vm1677, %v1685, %v1694
        %v1696 = vrot.slane %v1624, 1
        %v1697 = vsel %vm1677, %v1688, %v1696
        %v1698 = vrot.slane %v1625, 1
        %v1699 = vsel %vm1677, %v1690, %v1698
        %v1700 = vrot.slane %v1626, 1
        %v1701 = vsel %vm1677, %v1692, %v1700
        %v1702 = vrot.slane %v1627, 1
        %v1703 = vsel %vm1677, %v1694, %v1702
        %v1704 = vrot.slane %v1628, 1
        %v1705 = vsel %vm1677, %v1696, %v1704
        %v1706 = vrot.slane %v1629, 1
        %v1707 = vsel %vm1677, %v1698, %v1706
        %v1708 = vrot.slane %v1630, 1
        %v1709 = vsel %vm1677, %v1700, %v1708
        %v1710 = vrot.slane %v1631, 1
        %v1711 = vsel %vm1677, %v1702, %v1710
        %v1712 = vrot.slane %v1632, 1
        %v1713 = vsel %vm1677, %v1704, %v1712
        %v1714 = vrot.slane %v1633, 1
        %v1715 = vsel %vm1677, %v1706, %v1714
        %v1716 = vrot.slane %v1634, 1
        %v1717 = vsel %vm1677, %v1708, %v1716
        %v1718 = vrot.slane %v1635, 1
        %v1719 = vsel %vm1677, %v1710, %v1718
        %v1720 = vrot.slane %v1636, 1
        %v1721 = vsel %vm1677, %v1712, %v1720
        %v1722 = vrot.slane %v1637, 1
        %v1723 = vsel %vm1677, %v1714, %v1722
        %v1724 = vrot.slane %v1638, 1
        %v1725 = vsel %vm1677, %v1716, %v1724
        %v1726 = vrot.slane %v1639, 1
        %v1727 = vsel %vm1677, %v1718, %v1726
        %v1728 = vrot.slane %v1640, 1
        %v1729 = vsel %vm1677, %v1720, %v1728
        %v1730 = vrot.slane %v1641, 1
        %v1731 = vsel %vm1677, %v1722, %v1730
        %v1732 = vrot.slane %v1642, 1
        %v1733 = vsel %vm1677, %v1724, %v1732
        %v1734 = vrot.slane %v1643, 1
        %v1735 = vsel %vm1677, %v1726, %v1734
        %v1736 = vrot.slane %v1644, 1
        %v1737 = vsel %vm1677, %v1728, %v1736
        %v1770 = vmax.f32 %v1613, %v1680
        %v1771 = vmax.f32 %v1614, %v1683
        %v1772 = vmax.f32 %v1615, %v1686
        %v1773 = vmax.f32 %v1616, %v1689
        %v1774 = vmax.f32 %v1617, %v1691
        %v1775 = vmax.f32 %v1618, %v1693
        %v1776 = vmax.f32 %v1619, %v1695
        %v1777 = vmax.f32 %v1620, %v1697
        %v1778 = vmax.f32 %v1621, %v1699
        %v1779 = vmax.f32 %v1622, %v1701
        %v1780 = vmax.f32 %v1623, %v1703
        %v1781 = vmax.f32 %v1624, %v1705
        %v1782 = vmax.f32 %v1625, %v1707
        %v1783 = vmax.f32 %v1626, %v1709
        %v1784 = vmax.f32 %v1627, %v1711
        %v1785 = vmax.f32 %v1628, %v1713
        %v1786 = vmax.f32 %v1629, %v1715
        %v1787 = vmax.f32 %v1630, %v1717
        %v1788 = vmax.f32 %v1631, %v1719
        %v1789 = vmax.f32 %v1632, %v1721
        %v1790 = vmax.f32 %v1633, %v1723
        %v1791 = vmax.f32 %v1634, %v1725
        %v1792 = vmax.f32 %v1635, %v1727
        %v1793 = vmax.f32 %v1636, %v1729
        %v1794 = vmax.f32 %v1637, %v1731
        %v1795 = vmax.f32 %v1638, %v1733
        %v1796 = vmax.f32 %v1639, %v1735
        %v1797 = vmax.f32 %v1640, %v1737
        %v1798 = vmax.f32 %v1641, %v1730
        %v1799 = vmax.f32 %v1642, %v1732
        %v1800 = vmax.f32 %v1643, %v1734
        %v1801 = vmax.f32 %v1644, %v1736
        %v1802 = vld [vmem:[%s3] sm:$0xff]
        %v1803 = vld [vmem:[%s3 + $0x8] sm:$0xff]
        %v1804 = vld [vmem:[%s3 + $0x10] sm:$0xff]
        %v1805 = vld [vmem:[%s3 + $0x18] sm:$0x7f]
        %vm1806 = vcmask 498688
        %v1808 = vsel %vm1806, %v1802, 0
        %v1811 = vsel %vm1806, %v1803, 0
        %v1814 = vsel %vm1806, %v1804, 0
        %v1817 = vsel %vm1806, %v1805, 0
        %vm1819 = vcmask 1044480
        %v1821 = vsel %vm1819, %v1798, 0
        %v1824 = vsel %vm1819, %v1799, 0
        %v1827 = vsel %vm1819, %v1800, 0
        %v1830 = vsel %vm1819, %v1801, 0
        %1832 = vmatprep.subr.mxu0 %v1771
        %1833 = vmatpush1.msra.mxu0 %v1770
        %1834 = vmatprep.subr.mxu0 %v1775
        %1835 = vmatpush1.msra.mxu0 %v1774
        %1836 = vmatprep.subr.mxu0 %v1779
        %1837 = vmatpush1.msra.mxu0 %v1778
        %1838 = vmatprep.subr.mxu0 %v1783
        %1839 = vmatpush1.msra.mxu0 %v1782
        %1840 = vmatprep.subr.mxu0 %v1787
        %1841 = vmatpush1.msra.mxu0 %v1786
        %1842 = vmatprep.subr.mxu0 %v1791
        %1843 = vmatpush1.msra.mxu0 %v1790
        %1844 = vmatprep.subr.mxu0 %v1795
        %1845 = vmatpush1.msra.mxu0 %v1794
        %1846 = vmatprep.subr.mxu0 %v1824
        %1847 = vmatpush1.msra.mxu0 %v1821
        %1848 = vmatprep.subr.mxu0 0.0
        %1849 = vmatpush1.msra.mxu0 0.0
        %1850 = vmatprep.subr.mxu0 0.0
        %1851 = vmatpush1.msra.mxu0 0.0
        %1852 = vmatprep.subr.mxu0 0.0
        %1853 = vmatpush1.msra.mxu0 0.0
        %1854 = vmatprep.subr.mxu0 0.0
        %1855 = vmatpush1.msra.mxu0 0.0
        %1856 = vmatprep.subr.mxu0 0.0
        %1857 = vmatpush1.msra.mxu0 0.0
        %1858 = vmatprep.subr.mxu0 0.0
        %1859 = vmatpush1.msra.mxu0 0.0
        %1860 = vmatprep.subr.mxu0 0.0
        %1861 = vmatpush1.msra.mxu0 0.0
        %1862 = vmatprep.subr.mxu0 0.0
        %1863 = vmatpush1.msra.mxu0 0.0
        %1864 = vmatprep.subr.mxu0 0.0
        %1865 = vmatpush1.msra.mxu0 0.0
        %1866 = vmatprep.subr.mxu0 0.0
        %1867 = vmatpush1.msra.mxu0 0.0
        %1868 = vmatprep.subr.mxu0 0.0
        %1869 = vmatpush1.msra.mxu0 0.0
        %1870 = vmatprep.subr.mxu0 0.0
        %1871 = vmatpush1.msra.mxu0 0.0
        %1872 = vmatprep.subr.mxu0 0.0
        %1873 = vmatpush1.msra.mxu0 0.0
        %1874 = vmatprep.subr.mxu0 0.0
        %1875 = vmatpush1.msra.mxu0 0.0
        %1876 = vmatprep.subr.mxu0 0.0
        %1877 = vmatpush1.msra.mxu0 0.0
        %1878 = vmatprep.subr.mxu0 0.0
        %1879 = vmatpush1.msra.mxu0 0.0
        %1880 = vmatprep.subr.mxu0 0.0
        %1881 = vmatpush1.msra.mxu0 0.0
        %1882 = vmatprep.subr.mxu0 0.0
        %1883 = vmatpush1.msra.mxu0 0.0
        %1884 = vmatprep.subr.mxu0 0.0
        %1885 = vmatpush1.msra.mxu0 0.0
        %1886 = vmatprep.subr.mxu0 0.0
        %1887 = vmatpush1.msra.mxu0 0.0
        %1888 = vmatprep.subr.mxu0 0.0
        %1889 = vmatpush1.msra.mxu0 0.0
        %1890 = vmatprep.subr.mxu0 0.0
        %1891 = vmatpush1.msra.mxu0 0.0
        %1892 = vmatprep.subr.mxu0 0.0
        %1893 = vmatpush1.msra.mxu0 0.0
        %1894 = vmatprep.subr.mxu0 0.0
        %1895 = vmatpush1.msra.mxu0 0.0
        %1896 = vmatprep.mubr.f32.mxu0 0.0
        %1897 = vmatmul.mubr.f32.gmra.mrb[0].mxu0 %v1808
        %v1898 = vpop.f32.mrb[0].mxu0
        %v1899 = vadd.f32 0.0, %v1898
        %v1900 = vpop.f32.mrb[0].mxu0
        %v1901 = vadd.f32 0.0, %v1900
        %1902 = vmatprep.mubr.f32.mxu0 0.0
        %1903 = vmatmul.mubr.f32.gmra.mrb[0].mxu0 %v1811
        %v1904 = vpop.f32.mrb[0].mxu0
        %v1905 = vadd.f32 0.0, %v1904
        %v1906 = vpop.f32.mrb[0].mxu0
        %v1907 = vadd.f32 0.0, %v1906
        %1908 = vmatprep.mubr.f32.mxu0 0.0
        %1909 = vmatmul.mubr.f32.gmra.mrb[0].mxu0 %v1814
        %v1910 = vpop.f32.mrb[0].mxu0
        %v1911 = vadd.f32 0.0, %v1910
        %v1912 = vpop.f32.mrb[0].mxu0
        %v1913 = vadd.f32 0.0, %v1912
        %1914 = vmatprep.mubr.f32.mxu0 0.0
        %1915 = vmatmul.mubr.f32.gmra.mrb[0].mxu0 %v1817
        %v1916 = vpop.f32.mrb[0].mxu0
        %v1917 = vadd.f32 0.0, %v1916
        %v1918 = vpop.f32.mrb[0].mxu0
        %v1919 = vadd.f32 0.0, %v1918
        %1920 = vdwg.mxu0
        %1921 = vmatprep.subr.mxu0 %v1773
        %1922 = vmatpush1.msra.mxu0 %v1772
        %1923 = vmatprep.subr.mxu0 %v1777
        %1924 = vmatpush1.msra.mxu0 %v1776
        %1925 = vmatprep.subr.mxu0 %v1781
        %1926 = vmatpush1.msra.mxu0 %v1780
        %1927 = vmatprep.subr.mxu0 %v1785
        %1928 = vmatpush1.msra.mxu0 %v1784
        %1929 = vmatprep.subr.mxu0 %v1789
        %1930 = vmatpush1.msra.mxu0 %v1788
        %1931 = vmatprep.subr.mxu0 %v1793
        %1932 = vmatpush1.msra.mxu0 %v1792
        %1933 = vmatprep.subr.mxu0 %v1797
        %1934 = vmatpush1.msra.mxu0 %v1796
        %1935 = vmatprep.subr.mxu0 %v1830
        %1936 = vmatpush1.msra.mxu0 %v1827
        %1937 = vmatprep.subr.mxu0 0.0
        %1938 = vmatpush1.msra.mxu0 0.0
        %1939 = vmatprep.subr.mxu0 0.0
        %1940 = vmatpush1.msra.mxu0 0.0
        %1941 = vmatprep.subr.mxu0 0.0
        %1942 = vmatpush1.msra.mxu0 0.0
        %1943 = vmatprep.subr.mxu0 0.0
        %1944 = vmatpush1.msra.mxu0 0.0
        %1945 = vmatprep.subr.mxu0 0.0
        %1946 = vmatpush1.msra.mxu0 0.0
        %1947 = vmatprep.subr.mxu0 0.0
        %1948 = vmatpush1.msra.mxu0 0.0
        %1949 = vmatprep.subr.mxu0 0.0
        %1950 = vmatpush1.msra.mxu0 0.0
        %1951 = vmatprep.subr.mxu0 0.0
        %1952 = vmatpush1.msra.mxu0 0.0
        %1953 = vmatprep.subr.mxu0 0.0
        %1954 = vmatpush1.msra.mxu0 0.0
        %1955 = vmatprep.subr.mxu0 0.0
        %1956 = vmatpush1.msra.mxu0 0.0
        %1957 = vmatprep.subr.mxu0 0.0
        %1958 = vmatpush1.msra.mxu0 0.0
        %1959 = vmatprep.subr.mxu0 0.0
        %1960 = vmatpush1.msra.mxu0 0.0
        %1961 = vmatprep.subr.mxu0 0.0
        %1962 = vmatpush1.msra.mxu0 0.0
        %1963 = vmatprep.subr.mxu0 0.0
        %1964 = vmatpush1.msra.mxu0 0.0
        %1965 = vmatprep.subr.mxu0 0.0
        %1966 = vmatpush1.msra.mxu0 0.0
        %1967 = vmatprep.subr.mxu0 0.0
        %1968 = vmatpush1.msra.mxu0 0.0
        %1969 = vmatprep.subr.mxu0 0.0
        %1970 = vmatpush1.msra.mxu0 0.0
        %1971 = vmatprep.subr.mxu0 0.0
        %1972 = vmatpush1.msra.mxu0 0.0
        %1973 = vmatprep.subr.mxu0 0.0
        %1974 = vmatpush1.msra.mxu0 0.0
        %1975 = vmatprep.subr.mxu0 0.0
        %1976 = vmatpush1.msra.mxu0 0.0
        %1977 = vmatprep.subr.mxu0 0.0
        %1978 = vmatpush1.msra.mxu0 0.0
        %1979 = vmatprep.subr.mxu0 0.0
        %1980 = vmatpush1.msra.mxu0 0.0
        %1981 = vmatprep.subr.mxu0 0.0
        %1982 = vmatpush1.msra.mxu0 0.0
        %1983 = vmatprep.subr.mxu0 0.0
        %1984 = vmatpush1.msra.mxu0 0.0
        %1985 = vmatprep.mubr.f32.mxu0 0.0
        %1986 = vmatmul.mubr.f32.gmra.mrb[0].mxu0 %v1808
        %v1987 = vpop.f32.mrb[0].mxu0
        %v1988 = vadd.f32 0.0, %v1987
        %v1989 = vpop.f32.mrb[0].mxu0
        %v1990 = vadd.f32 0.0, %v1989
        %1991 = vmatprep.mubr.f32.mxu0 0.0
        %1992 = vmatmul.mubr.f32.gmra.mrb[0].mxu0 %v1811
        %v1993 = vpop.f32.mrb[0].mxu0
        %v1994 = vadd.f32 0.0, %v1993
        %v1995 = vpop.f32.mrb[0].mxu0
        %v1996 = vadd.f32 0.0, %v1995
        %1997 = vmatprep.mubr.f32.mxu0 0.0
        %1998 = vmatmul.mubr.f32.gmra.mrb[0].mxu0 %v1814
        %v1999 = vpop.f32.mrb[0].mxu0
        %v2000 = vadd.f32 0.0, %v1999
        %v2001 = vpop.f32.mrb[0].mxu0
        %v2002 = vadd.f32 0.0, %v2001
        %2003 = vmatprep.mubr.f32.mxu0 0.0
        %2004 = vmatmul.mubr.f32.gmra.mrb[0].mxu0 %v1817
        %v2005 = vpop.f32.mrb[0].mxu0
        %v2006 = vadd.f32 0.0, %v2005
        %v2007 = vpop.f32.mrb[0].mxu0
        %v2008 = vadd.f32 0.0, %v2007
        %2009 = vdwg.mxu0
        %2026 = vrot.lane.b32.xlu0 %v1899, 120
        %v2027 = vpop.permute.xlu0 %2026
        %2028 = vrot.lane.b32.xlu0 %v1901, 120
        %v2029 = vpop.permute.xlu0 %2028
        %2030 = vrot.lane.b32.xlu0 %v1988, 120
        %v2031 = vpop.permute.xlu0 %2030
        %2032 = vrot.lane.b32.xlu0 %v1990, 120
        %v2033 = vpop.permute.xlu0 %2032
        %2034 = vrot.lane.b32.xlu0 %v1905, 120
        %v2035 = vpop.permute.xlu0 %2034
        %2036 = vrot.lane.b32.xlu0 %v1907, 120
        %v2037 = vpop.permute.xlu0 %2036
        %2038 = vrot.lane.b32.xlu0 %v1994, 120
        %v2039 = vpop.permute.xlu0 %2038
        %2040 = vrot.lane.b32.xlu0 %v1996, 120
        %v2041 = vpop.permute.xlu0 %2040
        %2042 = vrot.lane.b32.xlu0 %v1911, 120
        %v2043 = vpop.permute.xlu0 %2042
        %2044 = vrot.lane.b32.xlu0 %v1913, 120
        %v2045 = vpop.permute.xlu0 %2044
        %2046 = vrot.lane.b32.xlu0 %v2000, 120
        %v2047 = vpop.permute.xlu0 %2046
        %2048 = vrot.lane.b32.xlu0 %v2002, 120
        %v2049 = vpop.permute.xlu0 %2048
        %2050 = vrot.lane.b32.xlu0 %v1917, 120
        %v2051 = vpop.permute.xlu0 %2050
        %2052 = vrot.lane.b32.xlu0 %v1919, 120
        %v2053 = vpop.permute.xlu0 %2052
        %2054 = vrot.lane.b32.xlu0 %v2006, 120
        %v2055 = vpop.permute.xlu0 %2054
        %2056 = vrot.lane.b32.xlu0 %v2008, 120
        %v2057 = vpop.permute.xlu0 %2056
        %vm2058 = vcmask 982016
        %v2059 = vsel %vm2058, %v2027, %v2029
        %v2060 = vsel %vm2058, %v2029, %v2031
        %v2061 = vsel %vm2058, %v2031, %v2033
        %v2062 = vsel %vm2058, %v2035, %v2037
        %v2063 = vsel %vm2058, %v2037, %v2039
        %v2064 = vsel %vm2058, %v2039, %v2041
        %v2065 = vsel %vm2058, %v2043, %v2045
        %v2066 = vsel %vm2058, %v2045, %v2047
        %v2067 = vsel %vm2058, %v2047, %v2049
        %v2068 = vsel %vm2058, %v2051, %v2053
        %v2069 = vsel %vm2058, %v2053, %v2055
        %v2070 = vsel %vm2058, %v2055, %v2057
        %v2087 = vmax.f32 %v1899, %v2059
        %v2088 = vmax.f32 %v1901, %v2060
        %v2089 = vmax.f32 %v1988, %v2061
        %v2090 = vmax.f32 %v1990, %v2033
        %v2091 = vmax.f32 %v1905, %v2062
        %v2092 = vmax.f32 %v1907, %v2063
        %v2093 = vmax.f32 %v1994, %v2064
        %v2094 = vmax.f32 %v1996, %v2041
        %v2095 = vmax.f32 %v1911, %v2065
        %v2096 = vmax.f32 %v1913, %v2066
        %v2097 = vmax.f32 %v2000, %v2067
        %v2098 = vmax.f32 %v2002, %v2049
        %v2099 = vmax.f32 %v1917, %v2068
        %v2100 = vmax.f32 %v1919, %v2069
        %v2101 = vmax.f32 %v2006, %v2070
        %v2102 = vmax.f32 %v2008, %v2057
        %v2103 = vld [vmem:[%s4] sm:$0xff]
        %v2104 = vld [vmem:[%s4 + $0x8] sm:$0xff]
        %v2105 = vld [vmem:[%s4 + $0x10] sm:$0xff]
        %v2106 = vld [vmem:[%s4 + $0x18] sm:$0xff]
        %v2107 = vld [vmem:[%s4 + $0x20] sm:$0xff]
        %v2108 = vld [vmem:[%s4 + $0x28] sm:$0xff]
        %v2109 = vld [vmem:[%s4 + $0x30] sm:$0xff]
        %v2110 = vld [vmem:[%s4 + $0x38] sm:$0xff]
        %v2111 = vld [vmem:[%s4 + $0x40] sm:$0xff]
        %v2112 = vld [vmem:[%s4 + $0x48] sm:$0xff]
        %v2113 = vld [vmem:[%s4 + $0x50] sm:$0xff]
        %v2114 = vld [vmem:[%s4 + $0x58] sm:$0xff]
        %v2115 = vld [vmem:[%s4 + $0x60] sm:$0xff]
        %v2116 = vld [vmem:[%s4 + $0x68] sm:$0xff]
        %v2117 = vld [vmem:[%s4 + $0x70] sm:$0xff]
        %v2118 = vld [vmem:[%s4 + $0x78] sm:$0xff]
        %v2119 = vld [vmem:[%s4 + $0x80] sm:$0xff]
        %v2120 = vld [vmem:[%s4 + $0x88] sm:$0xff]
        %v2121 = vld [vmem:[%s4 + $0x90] sm:$0xff]
        %v2122 = vld [vmem:[%s4 + $0x98] sm:$0xff]
        %v2123 = vld [vmem:[%s4 + $0xa0] sm:$0xff]
        %v2124 = vld [vmem:[%s4 + $0xa8] sm:$0xff]
        %v2125 = vld [vmem:[%s4 + $0xb0] sm:$0xff]
        %v2126 = vld [vmem:[%s4 + $0xb8] sm:$0xff]
        %v2127 = vld [vmem:[%s4 + $0xc0] sm:$0xff]
        %v2128 = vld [vmem:[%s4 + $0xc8] sm:$0xff]
        %v2129 = vld [vmem:[%s4 + $0xd0] sm:$0xff]
        %v2130 = vld [vmem:[%s4 + $0xd8] sm:$0xff]
        %v2131 = vld [vmem:[%s4 + $0xe0] sm:$0xff]
        %v2132 = vld [vmem:[%s4 + $0xe8] sm:$0xff]
        %v2133 = vld [vmem:[%s4 + $0xf0] sm:$0xff]
        %v2134 = vld [vmem:[%s4 + $0xf8] sm:$0xff]
        %v2135 = vld [vmem:[%s4 + $0x100] sm:$0xff]
        %v2136 = vld [vmem:[%s4 + $0x108] sm:$0xff]
        %v2137 = vld [vmem:[%s4 + $0x110] sm:$0xff]
        %v2138 = vld [vmem:[%s4 + $0x118] sm:$0xff]
        %v2139 = vld [vmem:[%s4 + $0x120] sm:$0xff]
        %v2140 = vld [vmem:[%s4 + $0x128] sm:$0xff]
        %v2141 = vld [vmem:[%s4 + $0x130] sm:$0xff]
        %v2142 = vld [vmem:[%s4 + $0x138] sm:$0xff]
        %v2143 = vld [vmem:[%s4 + $0x140] sm:$0xff]
        %v2144 = vld [vmem:[%s4 + $0x148] sm:$0xff]
        %v2145 = vld [vmem:[%s4 + $0x150] sm:$0xff]
        %v2146 = vld [vmem:[%s4 + $0x158] sm:$0xff]
        %v2147 = vld [vmem:[%s4 + $0x160] sm:$0xff]
        %v2148 = vld [vmem:[%s4 + $0x168] sm:$0xff]
        %v2149 = vld [vmem:[%s4 + $0x170] sm:$0xff]
        %v2150 = vld [vmem:[%s4 + $0x178] sm:$0xff]
        %v2151 = vld [vmem:[%s4 + $0x180] sm:$0xff]
        %v2152 = vld [vmem:[%s4 + $0x188] sm:$0xff]
        %v2153 = vld [vmem:[%s4 + $0x190] sm:$0xff]
        %v2154 = vld [vmem:[%s4 + $0x198] sm:$0xff]
        %v2155 = vld [vmem:[%s4 + $0x1a0] sm:$0xff]
        %v2156 = vld [vmem:[%s4 + $0x1a8] sm:$0xff]
        %v2157 = vld [vmem:[%s4 + $0x1b0] sm:$0xff]
        %v2158 = vld [vmem:[%s4 + $0x1b8] sm:$0xff]
        %v2159 = vld [vmem:[%s4 + $0x1c0] sm:$0xff]
        %v2160 = vld [vmem:[%s4 + $0x1c8] sm:$0xff]
        %v2161 = vld [vmem:[%s4 + $0x1d0] sm:$0xff]
        %v2162 = vld [vmem:[%s4 + $0x1d8] sm:$0xff]
        %v2163 = vld [vmem:[%s4 + $0x1e0] sm:$0xff]
        %v2164 = vld [vmem:[%s4 + $0x1e8] sm:$0xff]
        %v2165 = vld [vmem:[%s4 + $0x1f0] sm:$0xff]
        %v2166 = vld [vmem:[%s4 + $0x1f8] sm:$0xff]
        %v2167 = vld [vmem:[%s4 + $0x200] sm:$0xff]
        %v2168 = vld [vmem:[%s4 + $0x208] sm:$0xff]
        %v2169 = vld [vmem:[%s4 + $0x210] sm:$0xff]
        %v2170 = vld [vmem:[%s4 + $0x218] sm:$0xff]
        %v2171 = vld [vmem:[%s4 + $0x220] sm:$0xff]
        %v2172 = vld [vmem:[%s4 + $0x228] sm:$0xff]
        %v2173 = vld [vmem:[%s4 + $0x230] sm:$0xff]
        %v2174 = vld [vmem:[%s4 + $0x238] sm:$0xff]
        %v2175 = vld [vmem:[%s4 + $0x240] sm:$0xff]
        %v2176 = vld [vmem:[%s4 + $0x248] sm:$0xff]
        %v2177 = vld [vmem:[%s4 + $0x250] sm:$0xff]
        %v2178 = vld [vmem:[%s4 + $0x258] sm:$0xff]
        %v2179 = vld [vmem:[%s4 + $0x260] sm:$0xff]
        %v2180 = vld [vmem:[%s4 + $0x268] sm:$0xff]
        %v2181 = vld [vmem:[%s4 + $0x270] sm:$0xff]
        %v2182 = vld [vmem:[%s4 + $0x278] sm:$0xff]
        %v2183 = vld [vmem:[%s4 + $0x280] sm:$0xff]
        %v2184 = vld [vmem:[%s4 + $0x288] sm:$0xff]
        %v2185 = vld [vmem:[%s4 + $0x290] sm:$0xff]
        %v2186 = vld [vmem:[%s4 + $0x298] sm:$0xff]
        %v2187 = vld [vmem:[%s4 + $0x2a0] sm:$0xff]
        %v2188 = vld [vmem:[%s4 + $0x2a8] sm:$0xff]
        %v2189 = vld [vmem:[%s4 + $0x2b0] sm:$0xff]
        %v2190 = vld [vmem:[%s4 + $0x2b8] sm:$0xff]
        %v2191 = vld [vmem:[%s4 + $0x2c0] sm:$0xff]
        %v2192 = vld [vmem:[%s4 + $0x2c8] sm:$0xff]
        %v2193 = vld [vmem:[%s4 + $0x2d0] sm:$0xff]
        %v2194 = vld [vmem:[%s4 + $0x2d8] sm:$0xff]
        %v2195 = vld [vmem:[%s4 + $0x2e0] sm:$0xff]
        %v2196 = vld [vmem:[%s4 + $0x2e8] sm:$0xff]
        %v2197 = vld [vmem:[%s4 + $0x2f0] sm:$0xff]
        %v2198 = vld [vmem:[%s4 + $0x2f8] sm:$0xff]
        %v2199 = vld [vmem:[%s4 + $0x300] sm:$0xff]
        %v2200 = vld [vmem:[%s4 + $0x308] sm:$0xff]
        %v2201 = vld [vmem:[%s4 + $0x310] sm:$0xff]
        %v2202 = vld [vmem:[%s4 + $0x318] sm:$0xff]
        %v2203 = vld [vmem:[%s4 + $0x320] sm:$0xff]
        %v2204 = vld [vmem:[%s4 + $0x328] sm:$0xff]
        %v2205 = vld [vmem:[%s4 + $0x330] sm:$0xff]
        %v2206 = vld [vmem:[%s4 + $0x338] sm:$0xff]
        %v2207 = vld [vmem:[%s4 + $0x340] sm:$0xff]
        %v2208 = vld [vmem:[%s4 + $0x348] sm:$0xff]
        %v2209 = vld [vmem:[%s4 + $0x350] sm:$0xff]
        %v2210 = vld [vmem:[%s4 + $0x358] sm:$0xff]
        %v2211 = vld [vmem:[%s4 + $0x360] sm:$0xff]
        %v2212 = vld [vmem:[%s4 + $0x368] sm:$0xff]
        %v2213 = vld [vmem:[%s4 + $0x370] sm:$0xff]
        %v2214 = vld [vmem:[%s4 + $0x378] sm:$0xff]
        %v2215 = vld [vmem:[%s4 + $0x380] sm:$0xff]
        %v2216 = vld [vmem:[%s4 + $0x388] sm:$0xff]
        %v2217 = vld [vmem:[%s4 + $0x390] sm:$0xff]
        %v2218 = vld [vmem:[%s4 + $0x398] sm:$0xff]
        %v2219 = vld [vmem:[%s4 + $0x3a0] sm:$0xff]
        %v2220 = vld [vmem:[%s4 + $0x3a8] sm:$0xff]
        %v2221 = vld [vmem:[%s4 + $0x3b0] sm:$0xff]
        %v2222 = vld [vmem:[%s4 + $0x3b8] sm:$0xff]
        %v2223 = vld [vmem:[%s4 + $0x3c0] sm:$0xff]
        %v2224 = vld [vmem:[%s4 + $0x3c8] sm:$0xff]
        %vm2225 = vcmask 850944
        %v2227 = vsel %vm2225, %v2090, 0
        %v2230 = vsel %vm2225, %v2094, 0
        %v2233 = vsel %vm2225, %v2098, 0
        %v2236 = vsel %vm2225, %v2102, 0
        %2238 = vmatprep.subr.mxu0 %v2104
        %2239 = vmatpush1.msra.mxu0 %v2103
        %2240 = vmatprep.subr.mxu0 %v2106
        %2241 = vmatpush1.msra.mxu0 %v2105
        %2242 = vmatprep.subr.mxu0 %v2108
        %2243 = vmatpush1.msra.mxu0 %v2107
        %2244 = vmatprep.subr.mxu0 %v2110
        %2245 = vmatpush1.msra.mxu0 %v2109
        %2246 = vmatprep.subr.mxu0 %v2112
        %2247 = vmatpush1.msra.mxu0 %v2111
        %2248 = vmatprep.subr.mxu0 %v2114
        %2249 = vmatpush1.msra.mxu0 %v2113
        %2250 = vmatprep.subr.mxu0 %v2116
        %2251 = vmatpush1.msra.mxu0 %v2115
        %2252 = vmatprep.subr.mxu0 %v2118
        %2253 = vmatpush1.msra.mxu0 %v2117
        %2254 = vmatprep.subr.mxu0 %v2120
        %2255 = vmatpush1.msra.mxu0 %v2119
        %2256 = vmatprep.subr.mxu0 %v2122
        %2257 = vmatpush1.msra.mxu0 %v2121
        %2258 = vmatprep.subr.mxu0 %v2124
        %2259 = vmatpush1.msra.mxu0 %v2123
        %2260 = vmatprep.subr.mxu0 %v2126
        %2261 = vmatpush1.msra.mxu0 %v2125
        %2262 = vmatprep.subr.mxu0 %v2128
        %2263 = vmatpush1.msra.mxu0 %v2127
        %2264 = vmatprep.subr.mxu0 %v2130
        %2265 = vmatpush1.msra.mxu0 %v2129
        %2266 = vmatprep.subr.mxu0 %v2132
        %2267 = vmatpush1.msra.mxu0 %v2131
        %2268 = vmatprep.subr.mxu0 %v2134
        %2269 = vmatpush1.msra.mxu0 %v2133
        %2270 = vmatprep.subr.mxu0 %v2136
        %2271 = vmatpush1.msra.mxu0 %v2135
        %2272 = vmatprep.subr.mxu0 %v2138
        %2273 = vmatpush1.msra.mxu0 %v2137
        %2274 = vmatprep.subr.mxu0 %v2140
        %2275 = vmatpush1.msra.mxu0 %v2139
        %2276 = vmatprep.subr.mxu0 %v2142
        %2277 = vmatpush1.msra.mxu0 %v2141
        %2278 = vmatprep.subr.mxu0 %v2144
        %2279 = vmatpush1.msra.mxu0 %v2143
        %2280 = vmatprep.subr.mxu0 %v2146
        %2281 = vmatpush1.msra.mxu0 %v2145
        %2282 = vmatprep.subr.mxu0 %v2148
        %2283 = vmatpush1.msra.mxu0 %v2147
        %2284 = vmatprep.subr.mxu0 %v2150
        %2285 = vmatpush1.msra.mxu0 %v2149
        %2286 = vmatprep.subr.mxu0 %v2152
        %2287 = vmatpush1.msra.mxu0 %v2151
        %2288 = vmatprep.subr.mxu0 %v2154
        %2289 = vmatpush1.msra.mxu0 %v2153
        %2290 = vmatprep.subr.mxu0 %v2156
        %2291 = vmatpush1.msra.mxu0 %v2155
        %2292 = vmatprep.subr.mxu0 %v2158
        %2293 = vmatpush1.msra.mxu0 %v2157
        %2294 = vmatprep.subr.mxu0 %v2160
        %2295 = vmatpush1.msra.mxu0 %v2159
        %2296 = vmatprep.subr.mxu0 %v2162
        %2297 = vmatpush1.msra.mxu0 %v2161
        %2298 = vmatprep.subr.mxu0 %v2164
        %2299 = vmatpush1.msra.mxu0 %v2163
        %2300 = vmatprep.subr.mxu0 %v2166
        %2301 = vmatpush1.msra.mxu0 %v2165
        %2302 = vmatprep.mubr.f32.mxu0 %v2088
        %2303 = vmatmul.mubr.f32.gmra.mrb[0].mxu0 %v2087
        %v2304 = vpop.f32.mrb[0].mxu0
        %v2305 = vadd.f32 0.0, %v2304
        %v2306 = vpop.f32.mrb[0].mxu0
        %v2307 = vadd.f32 0.0, %v2306
        %2308 = vmatprep.mubr.f32.mxu0 %v2092
        %2309 = vmatmul.mubr.f32.gmra.mrb[0].mxu0 %v2091
        %v2310 = vpop.f32.mrb[0].mxu0
        %v2311 = vadd.f32 0.0, %v2310
        %v2312 = vpop.f32.mrb[0].mxu0
        %v2313 = vadd.f32 0.0, %v2312
        %2314 = vmatprep.mubr.f32.mxu0 %v2096
        %2315 = vmatmul.mubr.f32.gmra.mrb[0].mxu0 %v2095
        %v2316 = vpop.f32.mrb[0].mxu0
        %v2317 = vadd.f32 0.0, %v2316
        %v2318 = vpop.f32.mrb[0].mxu0
        %v2319 = vadd.f32 0.0, %v2318
        %2320 = vmatprep.mubr.f32.mxu0 %v2100
        %2321 = vmatmul.mubr.f32.gmra.mrb[0].mxu0 %v2099
        %v2322 = vpop.f32.mrb[0].mxu0
        %v2323 = vadd.f32 0.0, %v2322
        %v2324 = vpop.f32.mrb[0].mxu0
        %v2325 = vadd.f32 0.0, %v2324
        %2326 = vdwg.mxu0
        %2327 = vmatprep.subr.mxu0 %v2168
        %2328 = vmatpush1.msra.mxu0 %v2167
        %2329 = vmatprep.subr.mxu0 %v2170
        %2330 = vmatpush1.msra.mxu0 %v2169
        %2331 = vmatprep.subr.mxu0 %v2172
        %2332 = vmatpush1.msra.mxu0 %v2171
        %2333 = vmatprep.subr.mxu0 %v2174
        %2334 = vmatpush1.msra.mxu0 %v2173
        %2335 = vmatprep.subr.mxu0 %v2176
        %2336 = vmatpush1.msra.mxu0 %v2175
        %2337 = vmatprep.subr.mxu0 %v2178
        %2338 = vmatpush1.msra.mxu0 %v2177
        %2339 = vmatprep.subr.mxu0 %v2180
        %2340 = vmatpush1.msra.mxu0 %v2179
        %2341 = vmatprep.subr.mxu0 %v2182
        %2342 = vmatpush1.msra.mxu0 %v2181
        %2343 = vmatprep.subr.mxu0 %v2184
        %2344 = vmatpush1.msra.mxu0 %v2183
        %2345 = vmatprep.subr.mxu0 %v2186
        %2346 = vmatpush1.msra.mxu0 %v2185
        %2347 = vmatprep.subr.mxu0 %v2188
        %2348 = vmatpush1.msra.mxu0 %v2187
        %2349 = vmatprep.subr.mxu0 %v2190
        %2350 = vmatpush1.msra.mxu0 %v2189
        %2351 = vmatprep.subr.mxu0 %v2192
        %2352 = vmatpush1.msra.mxu0 %v2191
        %2353 = vmatprep.subr.mxu0 %v2194
        %2354 = vmatpush1.msra.mxu0 %v2193
        %2355 = vmatprep.subr.mxu0 %v2196
        %2356 = vmatpush1.msra.mxu0 %v2195
        %2357 = vmatprep.subr.mxu0 %v2198
        %2358 = vmatpush1.msra.mxu0 %v2197
        %2359 = vmatprep.subr.mxu0 %v2200
        %2360 = vmatpush1.msra.mxu0 %v2199
        %2361 = vmatprep.subr.mxu0 %v2202
        %2362 = vmatpush1.msra.mxu0 %v2201
        %2363 = vmatprep.subr.mxu0 %v2204
        %2364 = vmatpush1.msra.mxu0 %v2203
        %2365 = vmatprep.subr.mxu0 %v2206
        %2366 = vmatpush1.msra.mxu0 %v2205
        %2367 = vmatprep.subr.mxu0 %v2208
        %2368 = vmatpush1.msra.mxu0 %v2207
        %2369 = vmatprep.subr.mxu0 %v2210
        %2370 = vmatpush1.msra.mxu0 %v2209
        %2371 = vmatprep.subr.mxu0 %v2212
        %2372 = vmatpush1.msra.mxu0 %v2211
        %2373 = vmatprep.subr.mxu0 %v2214
        %2374 = vmatpush1.msra.mxu0 %v2213
        %2375 = vmatprep.subr.mxu0 %v2216
        %2376 = vmatpush1.msra.mxu0 %v2215
        %2377 = vmatprep.subr.mxu0 %v2218
        %2378 = vmatpush1.msra.mxu0 %v2217
        %2379 = vmatprep.subr.mxu0 %v2220
        %2380 = vmatpush1.msra.mxu0 %v2219
        %2381 = vmatprep.subr.mxu0 %v2222
        %2382 = vmatpush1.msra.mxu0 %v2221
        %2383 = vmatprep.subr.mxu0 %v2224
        %2384 = vmatpush1.msra.mxu0 %v2223
        %2385 = vmatprep.subr.mxu0 0.0
        %2386 = vmatpush1.msra.mxu0 0.0
        %2387 = vmatprep.subr.mxu0 0.0
        %2388 = vmatpush1.msra.mxu0 0.0
        %2389 = vmatprep.subr.mxu0 0.0
        %2390 = vmatpush1.msra.mxu0 0.0
        %2391 = vmatprep.mubr.f32.mxu0 %v2227
        %2392 = vmatmul.mubr.f32.gmra.mrb[0].mxu0 %v2089
        %v2393 = vpop.f32.mrb[0].mxu0
        %v2394 = vadd.f32 %v2305, %v2393
        %v2395 = vpop.f32.mrb[0].mxu0
        %v2396 = vadd.f32 %v2307, %v2395
        %2397 = vmatprep.mubr.f32.mxu0 %v2230
        %2398 = vmatmul.mubr.f32.gmra.mrb[0].mxu0 %v2093
        %v2399 = vpop.f32.mrb[0].mxu0
        %v2400 = vadd.f32 %v2311, %v2399
        %v2401 = vpop.f32.mrb[0].mxu0
        %v2402 = vadd.f32 %v2313, %v2401
        %2403 = vmatprep.mubr.f32.mxu0 %v2233
        %2404 = vmatmul.mubr.f32.gmra.mrb[0].mxu0 %v2097
        %v2405 = vpop.f32.mrb[0].mxu0
        %v2406 = vadd.f32 %v2317, %v2405
        %v2407 = vpop.f32.mrb[0].mxu0
        %v2408 = vadd.f32 %v2319, %v2407
        %2409 = vmatprep.mubr.f32.mxu0 %v2236
        %2410 = vmatmul.mubr.f32.gmra.mrb[0].mxu0 %v2101
        %v2411 = vpop.f32.mrb[0].mxu0
        %v2412 = vadd.f32 %v2323, %v2411
        %v2413 = vpop.f32.mrb[0].mxu0
        %v2414 = vadd.f32 %v2325, %v2413
        %2415 = vdwg.mxu0
        %v2416 = vld [vmem:[%s5] sm:$0xff]
        %v2417 = vld [vmem:[%s5 + $0x8] sm:$0xff]
        %v2418 = vld [vmem:[%s5 + $0x10] sm:$0xff]
        %v2419 = vld [vmem:[%s5 + $0x18] sm:$0xff]
        %v2420 = vld [vmem:[%s5 + $0x20] sm:$0xff]
        %v2421 = vld [vmem:[%s5 + $0x28] sm:$0xff]
        %v2422 = vld [vmem:[%s5 + $0x30] sm:$0xff]
        %v2423 = vld [vmem:[%s5 + $0x38] sm:$0xff]
        %v2424 = vld [vmem:[%s5 + $0x40] sm:$0xff]
        %v2425 = vld [vmem:[%s5 + $0x48] sm:$0xff]
        %v2426 = vld [vmem:[%s5 + $0x50] sm:$0xff]
        %v2427 = vld [vmem:[%s5 + $0x58] sm:$0xff]
        %v2428 = vld [vmem:[%s5 + $0x60] sm:$0xff]
        %v2429 = vld [vmem:[%s5 + $0x68] sm:$0xff]
        %v2430 = vld [vmem:[%s5 + $0x70] sm:$0xff]
        %v2431 = vld [vmem:[%s5 + $0x78] sm:$0xff]
        %v2432 = vld [vmem:[%s5 + $0x80] sm:$0xff]
        %v2433 = vld [vmem:[%s5 + $0x88] sm:$0xff]
        %v2434 = vld [vmem:[%s5 + $0x90] sm:$0xff]
        %v2435 = vld [vmem:[%s5 + $0x98] sm:$0xff]
        %v2436 = vld [vmem:[%s5 + $0xa0] sm:$0xff]
        %v2437 = vld [vmem:[%s5 + $0xa8] sm:$0xff]
        %v2438 = vld [vmem:[%s5 + $0xb0] sm:$0xff]
        %v2439 = vld [vmem:[%s5 + $0xb8] sm:$0xff]
        %v2440 = vld [vmem:[%s5 + $0xc0] sm:$0xff]
        %v2441 = vld [vmem:[%s5 + $0xc8] sm:$0xff]
        %v2442 = vld [vmem:[%s5 + $0xd0] sm:$0xff]
        %v2443 = vld [vmem:[%s5 + $0xd8] sm:$0xff]
        %v2444 = vld [vmem:[%s5 + $0xe0] sm:$0xff]
        %v2445 = vld [vmem:[%s5 + $0xe8] sm:$0xff]
        %v2446 = vld [vmem:[%s5 + $0xf0] sm:$0xff]
        %v2447 = vld [vmem:[%s5 + $0xf8] sm:$0xff]
        %v2448 = vld [vmem:[%s5 + $0x100] sm:$0xff]
        %v2449 = vld [vmem:[%s5 + $0x108] sm:$0xff]
        %v2450 = vld [vmem:[%s5 + $0x110] sm:$0xff]
        %v2451 = vld [vmem:[%s5 + $0x118] sm:$0xff]
        %v2452 = vld [vmem:[%s5 + $0x120] sm:$0xff]
        %v2453 = vld [vmem:[%s5 + $0x128] sm:$0xff]
        %v2454 = vld [vmem:[%s5 + $0x130] sm:$0xff]
        %v2455 = vld [vmem:[%s5 + $0x138] sm:$0xff]
        %v2456 = vld [vmem:[%s5 + $0x140] sm:$0xff]
        %v2457 = vld [vmem:[%s5 + $0x148] sm:$0xff]
        %v2458 = vld [vmem:[%s5 + $0x150] sm:$0xff]
        %v2459 = vld [vmem:[%s5 + $0x158] sm:$0xff]
        %v2460 = vld [vmem:[%s5 + $0x160] sm:$0xff]
        %v2461 = vld [vmem:[%s5 + $0x168] sm:$0xff]
        %v2462 = vld [vmem:[%s5 + $0x170] sm:$0xff]
        %v2463 = vld [vmem:[%s5 + $0x178] sm:$0xff]
        %v2464 = vld [vmem:[%s5 + $0x180] sm:$0xff]
        %v2465 = vld [vmem:[%s5 + $0x188] sm:$0xff]
        %v2466 = vld [vmem:[%s5 + $0x190] sm:$0xff]
        %v2467 = vld [vmem:[%s5 + $0x198] sm:$0xff]
        %v2468 = vld [vmem:[%s5 + $0x1a0] sm:$0xff]
        %v2469 = vld [vmem:[%s5 + $0x1a8] sm:$0xff]
        %v2470 = vld [vmem:[%s5 + $0x1b0] sm:$0xff]
        %v2471 = vld [vmem:[%s5 + $0x1b8] sm:$0xff]
        %v2472 = vld [vmem:[%s5 + $0x1c0] sm:$0xff]
        %v2473 = vld [vmem:[%s5 + $0x1c8] sm:$0xff]
        %v2474 = vld [vmem:[%s5 + $0x1d0] sm:$0xff]
        %v2475 = vld [vmem:[%s5 + $0x1d8] sm:$0xff]
        %v2476 = vld [vmem:[%s5 + $0x1e0] sm:$0xff]
        %v2477 = vld [vmem:[%s5 + $0x1e8] sm:$0xff]
        %v2478 = vld [vmem:[%s5 + $0x1f0] sm:$0xff]
        %v2479 = vld [vmem:[%s5 + $0x1f8] sm:$0xff]
        %v2480 = vld [vmem:[%s5 + $0x200] sm:$0xff]
        %v2481 = vld [vmem:[%s5 + $0x208] sm:$0xff]
        %v2482 = vld [vmem:[%s5 + $0x210] sm:$0xff]
        %v2483 = vld [vmem:[%s5 + $0x218] sm:$0xff]
        %v2484 = vld [vmem:[%s5 + $0x220] sm:$0xff]
        %v2485 = vld [vmem:[%s5 + $0x228] sm:$0xff]
        %v2486 = vld [vmem:[%s5 + $0x230] sm:$0xff]
        %v2487 = vld [vmem:[%s5 + $0x238] sm:$0xff]
        %v2488 = vld [vmem:[%s5 + $0x240] sm:$0xff]
        %v2489 = vld [vmem:[%s5 + $0x248] sm:$0xff]
        %v2490 = vld [vmem:[%s5 + $0x250] sm:$0xff]
        %v2491 = vld [vmem:[%s5 + $0x258] sm:$0xff]
        %v2492 = vld [vmem:[%s5 + $0x260] sm:$0xff]
        %v2493 = vld [vmem:[%s5 + $0x268] sm:$0xff]
        %v2494 = vld [vmem:[%s5 + $0x270] sm:$0xff]
        %v2495 = vld [vmem:[%s5 + $0x278] sm:$0xff]
        %v2496 = vld [vmem:[%s5 + $0x280] sm:$0xff]
        %v2497 = vld [vmem:[%s5 + $0x288] sm:$0xff]
        %v2498 = vld [vmem:[%s5 + $0x290] sm:$0xff]
        %v2499 = vld [vmem:[%s5 + $0x298] sm:$0xff]
        %v2500 = vld [vmem:[%s5 + $0x2a0] sm:$0xff]
        %v2501 = vld [vmem:[%s5 + $0x2a8] sm:$0xff]
        %v2502 = vld [vmem:[%s5 + $0x2b0] sm:$0xff]
        %v2503 = vld [vmem:[%s5 + $0x2b8] sm:$0xff]
        %v2504 = vld [vmem:[%s5 + $0x2c0] sm:$0xff]
        %v2505 = vld [vmem:[%s5 + $0x2c8] sm:$0xff]
        %v2506 = vld [vmem:[%s5 + $0x2d0] sm:$0xff]
        %v2507 = vld [vmem:[%s5 + $0x2d8] sm:$0xff]
        %v2508 = vld [vmem:[%s5 + $0x2e0] sm:$0xff]
        %v2509 = vld [vmem:[%s5 + $0x2e8] sm:$0xff]
        %v2510 = vld [vmem:[%s5 + $0x2f0] sm:$0xff]
        %v2511 = vld [vmem:[%s5 + $0x2f8] sm:$0xff]
        %v2512 = vld [vmem:[%s5 + $0x300] sm:$0xff]
        %v2513 = vld [vmem:[%s5 + $0x308] sm:$0xff]
        %v2514 = vld [vmem:[%s5 + $0x310] sm:$0xff]
        %v2515 = vld [vmem:[%s5 + $0x318] sm:$0xff]
        %v2516 = vld [vmem:[%s5 + $0x320] sm:$0xff]
        %v2517 = vld [vmem:[%s5 + $0x328] sm:$0xff]
        %v2518 = vld [vmem:[%s5 + $0x330] sm:$0xff]
        %v2519 = vld [vmem:[%s5 + $0x338] sm:$0xff]
        %v2520 = vld [vmem:[%s5 + $0x340] sm:$0xff]
        %v2521 = vld [vmem:[%s5 + $0x348] sm:$0xff]
        %v2522 = vld [vmem:[%s5 + $0x350] sm:$0xff]
        %v2523 = vld [vmem:[%s5 + $0x358] sm:$0xff]
        %v2524 = vld [vmem:[%s5 + $0x360] sm:$0xff]
        %v2525 = vld [vmem:[%s5 + $0x368] sm:$0xff]
        %v2526 = vld [vmem:[%s5 + $0x370] sm:$0xff]
        %v2527 = vld [vmem:[%s5 + $0x378] sm:$0xff]
        %v2528 = vld [vmem:[%s5 + $0x380] sm:$0xff]
        %v2529 = vld [vmem:[%s5 + $0x388] sm:$0xff]
        %v2530 = vld [vmem:[%s5 + $0x390] sm:$0xff]
        %v2531 = vld [vmem:[%s5 + $0x398] sm:$0xff]
        %v2532 = vld [vmem:[%s5 + $0x3a0] sm:$0xff]
        %v2533 = vld [vmem:[%s5 + $0x3a8] sm:$0xff]
        %v2534 = vld [vmem:[%s5 + $0x3b0] sm:$0xff]
        %v2535 = vld [vmem:[%s5 + $0x3b8] sm:$0xff]
        %v2536 = vld [vmem:[%s5 + $0x3c0] sm:$0xff]
        %v2537 = vld [vmem:[%s5 + $0x3c8] sm:$0xff]
        %v2538 = vld [vmem:[%s5 + $0x3d0] sm:$0xff]
        %v2539 = vld [vmem:[%s5 + $0x3d8] sm:$0xff]
        %s2540 = scalar_lea.vmem %s5, 992
        %v2541 = vld [vmem:[%s2540] sm:$0xff]
        %v2542 = vld [vmem:[%s2540 + $0x8] sm:$0xff]
        %v2543 = vld [vmem:[%s2540 + $0x10] sm:$0xff]
        %v2544 = vld [vmem:[%s2540 + $0x18] sm:$0xff]
        %v2545 = vld [vmem:[%s2540 + $0x20] sm:$0xff]
        %v2546 = vld [vmem:[%s2540 + $0x28] sm:$0xff]
        %v2547 = vld [vmem:[%s2540 + $0x30] sm:$0xff]
        %v2548 = vld [vmem:[%s2540 + $0x38] sm:$0xff]
        %v2549 = vld [vmem:[%s2540 + $0x40] sm:$0xff]
        %v2550 = vld [vmem:[%s2540 + $0x48] sm:$0xff]
        %v2551 = vld [vmem:[%s2540 + $0x50] sm:$0xff]
        %v2552 = vld [vmem:[%s2540 + $0x58] sm:$0xff]
        %v2553 = vld [vmem:[%s2540 + $0x60] sm:$0xff]
        %v2554 = vld [vmem:[%s2540 + $0x68] sm:$0xff]
        %v2555 = vld [vmem:[%s2540 + $0x70] sm:$0xff]
        %v2556 = vld [vmem:[%s2540 + $0x78] sm:$0xff]
        %v2557 = vld [vmem:[%s2540 + $0x80] sm:$0xff]
        %v2558 = vld [vmem:[%s2540 + $0x88] sm:$0xff]
        %v2559 = vld [vmem:[%s2540 + $0x90] sm:$0xff]
        %v2560 = vld [vmem:[%s2540 + $0x98] sm:$0xff]
        %v2561 = vld [vmem:[%s2540 + $0xa0] sm:$0xff]
        %v2562 = vld [vmem:[%s2540 + $0xa8] sm:$0xff]
        %v2563 = vld [vmem:[%s2540 + $0xb0] sm:$0xff]
        %v2564 = vld [vmem:[%s2540 + $0xb8] sm:$0xff]
        %v2565 = vld [vmem:[%s2540 + $0xc0] sm:$0xff]
        %v2566 = vld [vmem:[%s2540 + $0xc8] sm:$0xff]
        %v2567 = vld [vmem:[%s2540 + $0xd0] sm:$0xff]
        %v2568 = vld [vmem:[%s2540 + $0xd8] sm:$0xff]
        %v2569 = vld [vmem:[%s2540 + $0xe0] sm:$0xff]
        %v2570 = vld [vmem:[%s2540 + $0xe8] sm:$0xff]
        %v2571 = vld [vmem:[%s2540 + $0xf0] sm:$0xff]
        %v2572 = vld [vmem:[%s2540 + $0xf8] sm:$0xff]
        %v2573 = vld [vmem:[%s2540 + $0x100] sm:$0xff]
        %v2574 = vld [vmem:[%s2540 + $0x108] sm:$0xff]
        %v2575 = vld [vmem:[%s2540 + $0x110] sm:$0xff]
        %v2576 = vld [vmem:[%s2540 + $0x118] sm:$0xff]
        %v2577 = vld [vmem:[%s2540 + $0x120] sm:$0xff]
        %v2578 = vld [vmem:[%s2540 + $0x128] sm:$0xff]
        %v2579 = vld [vmem:[%s2540 + $0x130] sm:$0xff]
        %v2580 = vld [vmem:[%s2540 + $0x138] sm:$0xff]
        %v2581 = vld [vmem:[%s2540 + $0x140] sm:$0xff]
        %v2582 = vld [vmem:[%s2540 + $0x148] sm:$0xff]
        %v2583 = vld [vmem:[%s2540 + $0x150] sm:$0xff]
        %v2584 = vld [vmem:[%s2540 + $0x158] sm:$0xff]
        %v2585 = vld [vmem:[%s2540 + $0x160] sm:$0xff]
        %v2586 = vld [vmem:[%s2540 + $0x168] sm:$0xff]
        %v2587 = vld [vmem:[%s2540 + $0x170] sm:$0xff]
        %v2588 = vld [vmem:[%s2540 + $0x178] sm:$0xff]
        %v2589 = vld [vmem:[%s2540 + $0x180] sm:$0xff]
        %v2590 = vld [vmem:[%s2540 + $0x188] sm:$0xff]
        %v2591 = vld [vmem:[%s2540 + $0x190] sm:$0xff]
        %v2592 = vld [vmem:[%s2540 + $0x198] sm:$0xff]
        %v2593 = vld [vmem:[%s2540 + $0x1a0] sm:$0xff]
        %v2594 = vld [vmem:[%s2540 + $0x1a8] sm:$0xff]
        %v2595 = vld [vmem:[%s2540 + $0x1b0] sm:$0xff]
        %v2596 = vld [vmem:[%s2540 + $0x1b8] sm:$0xff]
        %v2597 = vld [vmem:[%s2540 + $0x1c0] sm:$0xff]
        %v2598 = vld [vmem:[%s2540 + $0x1c8] sm:$0xff]
        %v2599 = vld [vmem:[%s2540 + $0x1d0] sm:$0xff]
        %v2600 = vld [vmem:[%s2540 + $0x1d8] sm:$0xff]
        %v2601 = vld [vmem:[%s2540 + $0x1e0] sm:$0xff]
        %v2602 = vld [vmem:[%s2540 + $0x1e8] sm:$0xff]
        %v2603 = vld [vmem:[%s2540 + $0x1f0] sm:$0xff]
        %v2604 = vld [vmem:[%s2540 + $0x1f8] sm:$0xff]
        %v2605 = vld [vmem:[%s2540 + $0x200] sm:$0xff]
        %v2606 = vld [vmem:[%s2540 + $0x208] sm:$0xff]
        %v2607 = vld [vmem:[%s2540 + $0x210] sm:$0xff]
        %v2608 = vld [vmem:[%s2540 + $0x218] sm:$0xff]
        %v2609 = vld [vmem:[%s2540 + $0x220] sm:$0xff]
        %v2610 = vld [vmem:[%s2540 + $0x228] sm:$0xff]
        %v2611 = vld [vmem:[%s2540 + $0x230] sm:$0xff]
        %v2612 = vld [vmem:[%s2540 + $0x238] sm:$0xff]
        %v2613 = vld [vmem:[%s2540 + $0x240] sm:$0xff]
        %v2614 = vld [vmem:[%s2540 + $0x248] sm:$0xff]
        %v2615 = vld [vmem:[%s2540 + $0x250] sm:$0xff]
        %v2616 = vld [vmem:[%s2540 + $0x258] sm:$0xff]
        %v2617 = vld [vmem:[%s2540 + $0x260] sm:$0xff]
        %v2618 = vld [vmem:[%s2540 + $0x268] sm:$0xff]
        %v2619 = vld [vmem:[%s2540 + $0x270] sm:$0xff]
        %v2620 = vld [vmem:[%s2540 + $0x278] sm:$0xff]
        %v2621 = vld [vmem:[%s2540 + $0x280] sm:$0xff]
        %v2622 = vld [vmem:[%s2540 + $0x288] sm:$0xff]
        %v2623 = vld [vmem:[%s2540 + $0x290] sm:$0xff]
        %v2624 = vld [vmem:[%s2540 + $0x298] sm:$0xff]
        %v2625 = vld [vmem:[%s2540 + $0x2a0] sm:$0xff]
        %v2626 = vld [vmem:[%s2540 + $0x2a8] sm:$0xff]
        %v2627 = vld [vmem:[%s2540 + $0x2b0] sm:$0xff]
        %v2628 = vld [vmem:[%s2540 + $0x2b8] sm:$0xff]
        %v2629 = vld [vmem:[%s2540 + $0x2c0] sm:$0xff]
        %v2630 = vld [vmem:[%s2540 + $0x2c8] sm:$0xff]
        %v2631 = vld [vmem:[%s2540 + $0x2d0] sm:$0xff]
        %v2632 = vld [vmem:[%s2540 + $0x2d8] sm:$0xff]
        %v2633 = vld [vmem:[%s2540 + $0x2e0] sm:$0xff]
        %v2634 = vld [vmem:[%s2540 + $0x2e8] sm:$0xff]
        %v2635 = vld [vmem:[%s2540 + $0x2f0] sm:$0xff]
        %v2636 = vld [vmem:[%s2540 + $0x2f8] sm:$0xff]
        %v2637 = vld [vmem:[%s2540 + $0x300] sm:$0xff]
        %v2638 = vld [vmem:[%s2540 + $0x308] sm:$0xff]
        %v2639 = vld [vmem:[%s2540 + $0x310] sm:$0xff]
        %v2640 = vld [vmem:[%s2540 + $0x318] sm:$0xff]
        %v2641 = vld [vmem:[%s2540 + $0x320] sm:$0xff]
        %v2642 = vld [vmem:[%s2540 + $0x328] sm:$0xff]
        %v2643 = vld [vmem:[%s2540 + $0x330] sm:$0xff]
        %v2644 = vld [vmem:[%s2540 + $0x338] sm:$0xff]
        %v2645 = vld [vmem:[%s2540 + $0x340] sm:$0xff]
        %v2646 = vld [vmem:[%s2540 + $0x348] sm:$0xff]
        %v2647 = vld [vmem:[%s2540 + $0x350] sm:$0xff]
        %v2648 = vld [vmem:[%s2540 + $0x358] sm:$0xff]
        %v2649 = vld [vmem:[%s2540 + $0x360] sm:$0xff]
        %v2650 = vld [vmem:[%s2540 + $0x368] sm:$0xff]
        %v2651 = vld [vmem:[%s2540 + $0x370] sm:$0xff]
        %v2652 = vld [vmem:[%s2540 + $0x378] sm:$0xff]
        %v2653 = vld [vmem:[%s2540 + $0x380] sm:$0xff]
        %v2654 = vld [vmem:[%s2540 + $0x388] sm:$0xff]
        %v2655 = vld [vmem:[%s2540 + $0x390] sm:$0xff]
        %v2656 = vld [vmem:[%s2540 + $0x398] sm:$0xff]
        %v2657 = vld [vmem:[%s2540 + $0x3a0] sm:$0xff]
        %v2658 = vld [vmem:[%s2540 + $0x3a8] sm:$0xff]
        %v2659 = vld [vmem:[%s2540 + $0x3b0] sm:$0xff]
        %v2660 = vld [vmem:[%s2540 + $0x3b8] sm:$0xff]
        %v2661 = vld [vmem:[%s2540 + $0x3c0] sm:$0xff]
        %v2662 = vld [vmem:[%s2540 + $0x3c8] sm:$0xff]
        %v2663 = vld [vmem:[%s2540 + $0x3d0] sm:$0xff]
        %v2664 = vld [vmem:[%s2540 + $0x3d8] sm:$0xff]
        %v2673 = vrot.slane %v2394, 1
        %v2674 = vrot.slane %v2400, 1
        %v2675 = vsel %vm1677, %v2673, %v2674
        %v2676 = vrot.slane %v2396, 1
        %v2677 = vrot.slane %v2402, 1
        %v2678 = vsel %vm1677, %v2676, %v2677
        %v2679 = vrot.slane %v2406, 1
        %v2680 = vsel %vm1677, %v2674, %v2679
        %v2681 = vrot.slane %v2408, 1
        %v2682 = vsel %vm1677, %v2677, %v2681
        %v2683 = vrot.slane %v2412, 1
        %v2684 = vsel %vm1677, %v2679, %v2683
        %v2685 = vrot.slane %v2414, 1
        %v2686 = vsel %vm1677, %v2681, %v2685
        %v2691 = vsel %vm2058, %v2678, 0
        %v2693 = vsel %vm2058, %v2682, 0
        %v2695 = vsel %vm2058, %v2686, 0
        %v2697 = vsel %vm2058, %v2685, 0
        %2699 = vmatprep.subr.mxu0 %v2542
        %2700 = vmatpush1.msra.mxu0 %v2541
        %2701 = vmatprep.subr.mxu0 %v2546
        %2702 = vmatpush1.msra.mxu0 %v2545
        %2703 = vmatprep.subr.mxu0 %v2550
        %2704 = vmatpush1.msra.mxu0 %v2549
        %2705 = vmatprep.subr.mxu0 %v2554
        %2706 = vmatpush1.msra.mxu0 %v2553
        %2707 = vmatprep.subr.mxu0 %v2558
        %2708 = vmatpush1.msra.mxu0 %v2557
        %2709 = vmatprep.subr.mxu0 %v2562
        %2710 = vmatpush1.msra.mxu0 %v2561
        %2711 = vmatprep.subr.mxu0 %v2566
        %2712 = vmatpush1.msra.mxu0 %v2565
        %2713 = vmatprep.subr.mxu0 %v2570
        %2714 = vmatpush1.msra.mxu0 %v2569
        %2715 = vmatprep.subr.mxu0 %v2574
        %2716 = vmatpush1.msra.mxu0 %v2573
        %2717 = vmatprep.subr.mxu0 %v2578
        %2718 = vmatpush1.msra.mxu0 %v2577
        %2719 = vmatprep.subr.mxu0 %v2582
        %2720 = vmatpush1.msra.mxu0 %v2581
        %2721 = vmatprep.subr.mxu0 %v2586
        %2722 = vmatpush1.msra.mxu0 %v2585
        %2723 = vmatprep.subr.mxu0 %v2590
        %2724 = vmatpush1.msra.mxu0 %v2589
        %2725 = vmatprep.subr.mxu0 %v2594
        %2726 = vmatpush1.msra.mxu0 %v2593
        %2727 = vmatprep.subr.mxu0 %v2598
        %2728 = vmatpush1.msra.mxu0 %v2597
        %2729 = vmatprep.subr.mxu0 %v2602
        %2730 = vmatpush1.msra.mxu0 %v2601
        %2731 = vmatprep.subr.mxu0 %v2606
        %2732 = vmatpush1.msra.mxu0 %v2605
        %2733 = vmatprep.subr.mxu0 %v2610
        %2734 = vmatpush1.msra.mxu0 %v2609
        %2735 = vmatprep.subr.mxu0 %v2614
        %2736 = vmatpush1.msra.mxu0 %v2613
        %2737 = vmatprep.subr.mxu0 %v2618
        %2738 = vmatpush1.msra.mxu0 %v2617
        %2739 = vmatprep.subr.mxu0 %v2622
        %2740 = vmatpush1.msra.mxu0 %v2621
        %2741 = vmatprep.subr.mxu0 %v2626
        %2742 = vmatpush1.msra.mxu0 %v2625
        %2743 = vmatprep.subr.mxu0 %v2630
        %2744 = vmatpush1.msra.mxu0 %v2629
        %2745 = vmatprep.subr.mxu0 %v2634
        %2746 = vmatpush1.msra.mxu0 %v2633
        %2747 = vmatprep.subr.mxu0 %v2638
        %2748 = vmatpush1.msra.mxu0 %v2637
        %2749 = vmatprep.subr.mxu0 %v2642
        %2750 = vmatpush1.msra.mxu0 %v2641
        %2751 = vmatprep.subr.mxu0 %v2646
        %2752 = vmatpush1.msra.mxu0 %v2645
        %2753 = vmatprep.subr.mxu0 %v2650
        %2754 = vmatpush1.msra.mxu0 %v2649
        %2755 = vmatprep.subr.mxu0 %v2654
        %2756 = vmatpush1.msra.mxu0 %v2653
        %2757 = vmatprep.subr.mxu0 %v2658
        %2758 = vmatpush1.msra.mxu0 %v2657
        %2759 = vmatprep.subr.mxu0 %v2662
        %2760 = vmatpush1.msra.mxu0 %v2661
        %2761 = vmatprep.subr.mxu0 0.0
        %2762 = vmatpush1.msra.mxu0 0.0
        %2763 = vmatprep.mubr.f32.mxu0 %v2691
        %2764 = vmatmul.mubr.f32.gmra.mrb[0].mxu0 %v2675
        %v2765 = vpop.f32.mrb[0].mxu0
        %v2766 = vadd.f32 0.0, %v2765
        %v2767 = vpop.f32.mrb[0].mxu0
        %v2768 = vadd.f32 0.0, %v2767
        %2769 = vmatprep.mubr.f32.mxu0 %v2693
        %2770 = vmatmul.mubr.f32.gmra.mrb[0].mxu0 %v2680
        %v2771 = vpop.f32.mrb[0].mxu0
        %v2772 = vadd.f32 0.0, %v2771
        %v2773 = vpop.f32.mrb[0].mxu0
        %v2774 = vadd.f32 0.0, %v2773
        %2775 = vmatprep.mubr.f32.mxu0 %v2695
        %2776 = vmatmul.mubr.f32.gmra.mrb[0].mxu0 %v2684
        %v2777 = vpop.f32.mrb[0].mxu0
        %v2778 = vadd.f32 0.0, %v2777
        %v2779 = vpop.f32.mrb[0].mxu0
        %v2780 = vadd.f32 0.0, %v2779
        %2781 = vmatprep.mubr.f32.mxu0 %v2697
        %2782 = vmatmul.mubr.f32.gmra.mrb[0].mxu0 %v2683
        %v2783 = vpop.f32.mrb[0].mxu0
        %v2784 = vadd.f32 0.0, %v2783
        %v2785 = vpop.f32.mrb[0].mxu0
        %v2786 = vadd.f32 0.0, %v2785
        %2787 = vdwg.mxu0
        %2788 = vmatprep.subr.mxu0 %v2544
        %2789 = vmatpush1.msra.mxu0 %v2543
        %2790 = vmatprep.subr.mxu0 %v2548
        %2791 = vmatpush1.msra.mxu0 %v2547
        %2792 = vmatprep.subr.mxu0 %v2552
        %2793 = vmatpush1.msra.mxu0 %v2551
        %2794 = vmatprep.subr.mxu0 %v2556
        %2795 = vmatpush1.msra.mxu0 %v2555
        %2796 = vmatprep.subr.mxu0 %v2560
        %2797 = vmatpush1.msra.mxu0 %v2559
        %2798 = vmatprep.subr.mxu0 %v2564
        %2799 = vmatpush1.msra.mxu0 %v2563
        %2800 = vmatprep.subr.mxu0 %v2568
        %2801 = vmatpush1.msra.mxu0 %v2567
        %2802 = vmatprep.subr.mxu0 %v2572
        %2803 = vmatpush1.msra.mxu0 %v2571
        %2804 = vmatprep.subr.mxu0 %v2576
        %2805 = vmatpush1.msra.mxu0 %v2575
        %2806 = vmatprep.subr.mxu0 %v2580
        %2807 = vmatpush1.msra.mxu0 %v2579
        %2808 = vmatprep.subr.mxu0 %v2584
        %2809 = vmatpush1.msra.mxu0 %v2583
        %2810 = vmatprep.subr.mxu0 %v2588
        %2811 = vmatpush1.msra.mxu0 %v2587
        %2812 = vmatprep.subr.mxu0 %v2592
        %2813 = vmatpush1.msra.mxu0 %v2591
        %2814 = vmatprep.subr.mxu0 %v2596
        %2815 = vmatpush1.msra.mxu0 %v2595
        %2816 = vmatprep.subr.mxu0 %v2600
        %2817 = vmatpush1.msra.mxu0 %v2599
        %2818 = vmatprep.subr.mxu0 %v2604
        %2819 = vmatpush1.msra.mxu0 %v2603
        %2820 = vmatprep.subr.mxu0 %v2608
        %2821 = vmatpush1.msra.mxu0 %v2607
        %2822 = vmatprep.subr.mxu0 %v2612
        %2823 = vmatpush1.msra.mxu0 %v2611
        %2824 = vmatprep.subr.mxu0 %v2616
        %2825 = vmatpush1.msra.mxu0 %v2615
        %2826 = vmatprep.subr.mxu0 %v2620
        %2827 = vmatpush1.msra.mxu0 %v2619
        %2828 = vmatprep.subr.mxu0 %v2624
        %2829 = vmatpush1.msra.mxu0 %v2623
        %2830 = vmatprep.subr.mxu0 %v2628
        %2831 = vmatpush1.msra.mxu0 %v2627
        %2832 = vmatprep.subr.mxu0 %v2632
        %2833 = vmatpush1.msra.mxu0 %v2631
        %2834 = vmatprep.subr.mxu0 %v2636
        %2835 = vmatpush1.msra.mxu0 %v2635
        %2836 = vmatprep.subr.mxu0 %v2640
        %2837 = vmatpush1.msra.mxu0 %v2639
        %2838 = vmatprep.subr.mxu0 %v2644
        %2839 = vmatpush1.msra.mxu0 %v2643
        %2840 = vmatprep.subr.mxu0 %v2648
        %2841 = vmatpush1.msra.mxu0 %v2647
        %2842 = vmatprep.subr.mxu0 %v2652
        %2843 = vmatpush1.msra.mxu0 %v2651
        %2844 = vmatprep.subr.mxu0 %v2656
        %2845 = vmatpush1.msra.mxu0 %v2655
        %2846 = vmatprep.subr.mxu0 %v2660
        %2847 = vmatpush1.msra.mxu0 %v2659
        %2848 = vmatprep.subr.mxu0 %v2664
        %2849 = vmatpush1.msra.mxu0 %v2663
        %2850 = vmatprep.subr.mxu0 0.0
        %2851 = vmatpush1.msra.mxu0 0.0
        %2852 = vmatprep.mubr.f32.mxu0 %v2691
        %2853 = vmatmul.mubr.f32.gmra.mrb[0].mxu0 %v2675
        %v2854 = vpop.f32.mrb[0].mxu0
        %v2855 = vadd.f32 0.0, %v2854
        %v2856 = vpop.f32.mrb[0].mxu0
        %v2857 = vadd.f32 0.0, %v2856
        %2858 = vmatprep.mubr.f32.mxu0 %v2693
        %2859 = vmatmul.mubr.f32.gmra.mrb[0].mxu0 %v2680
        %v2860 = vpop.f32.mrb[0].mxu0
        %v2861 = vadd.f32 0.0, %v2860
        %v2862 = vpop.f32.mrb[0].mxu0
        %v2863 = vadd.f32 0.0, %v2862
        %2864 = vmatprep.mubr.f32.mxu0 %v2695
        %2865 = vmatmul.mubr.f32.gmra.mrb[0].mxu0 %v2684
        %v2866 = vpop.f32.mrb[0].mxu0
        %v2867 = vadd.f32 0.0, %v2866
        %v2868 = vpop.f32.mrb[0].mxu0
        %v2869 = vadd.f32 0.0, %v2868
        %2870 = vmatprep.mubr.f32.mxu0 %v2697
        %2871 = vmatmul.mubr.f32.gmra.mrb[0].mxu0 %v2683
        %v2872 = vpop.f32.mrb[0].mxu0
        %v2873 = vadd.f32 0.0, %v2872
        %v2874 = vpop.f32.mrb[0].mxu0
        %v2875 = vadd.f32 0.0, %v2874
        %2876 = vdwg.mxu0
        %v2877 = vsel %vm2058, %v2396, 0
        %v2879 = vsel %vm2058, %v2402, 0
        %v2881 = vsel %vm2058, %v2408, 0
        %v2883 = vsel %vm2058, %v2414, 0
        %2885 = vmatprep.subr.mxu0 %v2417
        %2886 = vmatpush1.msra.mxu0 %v2416
        %2887 = vmatprep.subr.mxu0 %v2421
        %2888 = vmatpush1.msra.mxu0 %v2420
        %2889 = vmatprep.subr.mxu0 %v2425
        %2890 = vmatpush1.msra.mxu0 %v2424
        %2891 = vmatprep.subr.mxu0 %v2429
        %2892 = vmatpush1.msra.mxu0 %v2428
        %2893 = vmatprep.subr.mxu0 %v2433
        %2894 = vmatpush1.msra.mxu0 %v2432
        %2895 = vmatprep.subr.mxu0 %v2437
        %2896 = vmatpush1.msra.mxu0 %v2436
        %2897 = vmatprep.subr.mxu0 %v2441
        %2898 = vmatpush1.msra.mxu0 %v2440
        %2899 = vmatprep.subr.mxu0 %v2445
        %2900 = vmatpush1.msra.mxu0 %v2444
        %2901 = vmatprep.subr.mxu0 %v2449
        %2902 = vmatpush1.msra.mxu0 %v2448
        %2903 = vmatprep.subr.mxu0 %v2453
        %2904 = vmatpush1.msra.mxu0 %v2452
        %2905 = vmatprep.subr.mxu0 %v2457
        %2906 = vmatpush1.msra.mxu0 %v2456
        %2907 = vmatprep.subr.mxu0 %v2461
        %2908 = vmatpush1.msra.mxu0 %v2460
        %2909 = vmatprep.subr.mxu0 %v2465
        %2910 = vmatpush1.msra.mxu0 %v2464
        %2911 = vmatprep.subr.mxu0 %v2469
        %2912 = vmatpush1.msra.mxu0 %v2468
        %2913 = vmatprep.subr.mxu0 %v2473
        %2914 = vmatpush1.msra.mxu0 %v2472
        %2915 = vmatprep.subr.mxu0 %v2477
        %2916 = vmatpush1.msra.mxu0 %v2476
        %2917 = vmatprep.subr.mxu0 %v2481
        %2918 = vmatpush1.msra.mxu0 %v2480
        %2919 = vmatprep.subr.mxu0 %v2485
        %2920 = vmatpush1.msra.mxu0 %v2484
        %2921 = vmatprep.subr.mxu0 %v2489
        %2922 = vmatpush1.msra.mxu0 %v2488
        %2923 = vmatprep.subr.mxu0 %v2493
        %2924 = vmatpush1.msra.mxu0 %v2492
        %2925 = vmatprep.subr.mxu0 %v2497
        %2926 = vmatpush1.msra.mxu0 %v2496
        %2927 = vmatprep.subr.mxu0 %v2501
        %2928 = vmatpush1.msra.mxu0 %v2500
        %2929 = vmatprep.subr.mxu0 %v2505
        %2930 = vmatpush1.msra.mxu0 %v2504
        %2931 = vmatprep.subr.mxu0 %v2509
        %2932 = vmatpush1.msra.mxu0 %v2508
        %2933 = vmatprep.subr.mxu0 %v2513
        %2934 = vmatpush1.msra.mxu0 %v2512
        %2935 = vmatprep.subr.mxu0 %v2517
        %2936 = vmatpush1.msra.mxu0 %v2516
        %2937 = vmatprep.subr.mxu0 %v2521
        %2938 = vmatpush1.msra.mxu0 %v2520
        %2939 = vmatprep.subr.mxu0 %v2525
        %2940 = vmatpush1.msra.mxu0 %v2524
        %2941 = vmatprep.subr.mxu0 %v2529
        %2942 = vmatpush1.msra.mxu0 %v2528
        %2943 = vmatprep.subr.mxu0 %v2533
        %2944 = vmatpush1.msra.mxu0 %v2532
        %2945 = vmatprep.subr.mxu0 %v2537
        %2946 = vmatpush1.msra.mxu0 %v2536
        %2947 = vmatprep.subr.mxu0 0.0
        %2948 = vmatpush1.msra.mxu0 0.0
        %2949 = vmatprep.mubr.f32.mxu0 %v2877
        %2950 = vmatmul.mubr.f32.gmra.mrb[0].mxu0 %v2394
        %v2951 = vpop.f32.mrb[0].mxu0
        %v2952 = vadd.f32 %v2766, %v2951
        %v2953 = vpop.f32.mrb[0].mxu0
        %v2954 = vadd.f32 %v2768, %v2953
        %2955 = vmatprep.mubr.f32.mxu0 %v2879
        %2956 = vmatmul.mubr.f32.gmra.mrb[0].mxu0 %v2400
        %v2957 = vpop.f32.mrb[0].mxu0
        %v2958 = vadd.f32 %v2772, %v2957
        %v2959 = vpop.f32.mrb[0].mxu0
        %v2960 = vadd.f32 %v2774, %v2959
        %2961 = vmatprep.mubr.f32.mxu0 %v2881
        %2962 = vmatmul.mubr.f32.gmra.mrb[0].mxu0 %v2406
        %v2963 = vpop.f32.mrb[0].mxu0
        %v2964 = vadd.f32 %v2778, %v2963
        %v2965 = vpop.f32.mrb[0].mxu0
        %v2966 = vadd.f32 %v2780, %v2965
        %2967 = vmatprep.mubr.f32.mxu0 %v2883
        %2968 = vmatmul.mubr.f32.gmra.mrb[0].mxu0 %v2412
        %v2969 = vpop.f32.mrb[0].mxu0
        %v2970 = vadd.f32 %v2784, %v2969
        %v2971 = vpop.f32.mrb[0].mxu0
        %v2972 = vadd.f32 %v2786, %v2971
        %2973 = vdwg.mxu0
        %2974 = vmatprep.subr.mxu0 %v2419
        %2975 = vmatpush1.msra.mxu0 %v2418
        %2976 = vmatprep.subr.mxu0 %v2423
        %2977 = vmatpush1.msra.mxu0 %v2422
        %2978 = vmatprep.subr.mxu0 %v2427
        %2979 = vmatpush1.msra.mxu0 %v2426
        %2980 = vmatprep.subr.mxu0 %v2431
        %2981 = vmatpush1.msra.mxu0 %v2430
        %2982 = vmatprep.subr.mxu0 %v2435
        %2983 = vmatpush1.msra.mxu0 %v2434
        %2984 = vmatprep.subr.mxu0 %v2439
        %2985 = vmatpush1.msra.mxu0 %v2438
        %2986 = vmatprep.subr.mxu0 %v2443
        %2987 = vmatpush1.msra.mxu0 %v2442
        %2988 = vmatprep.subr.mxu0 %v2447
        %2989 = vmatpush1.msra.mxu0 %v2446
        %2990 = vmatprep.subr.mxu0 %v2451
        %2991 = vmatpush1.msra.mxu0 %v2450
        %2992 = vmatprep.subr.mxu0 %v2455
        %2993 = vmatpush1.msra.mxu0 %v2454
        %2994 = vmatprep.subr.mxu0 %v2459
        %2995 = vmatpush1.msra.mxu0 %v2458
        %2996 = vmatprep.subr.mxu0 %v2463
        %2997 = vmatpush1.msra.mxu0 %v2462
        %2998 = vmatprep.subr.mxu0 %v2467
        %2999 = vmatpush1.msra.mxu0 %v2466
        %3000 = vmatprep.subr.mxu0 %v2471
        %3001 = vmatpush1.msra.mxu0 %v2470
        %3002 = vmatprep.subr.mxu0 %v2475
        %3003 = vmatpush1.msra.mxu0 %v2474
        %3004 = vmatprep.subr.mxu0 %v2479
        %3005 = vmatpush1.msra.mxu0 %v2478
        %3006 = vmatprep.subr.mxu0 %v2483
        %3007 = vmatpush1.msra.mxu0 %v2482
        %3008 = vmatprep.subr.mxu0 %v2487
        %3009 = vmatpush1.msra.mxu0 %v2486
        %3010 = vmatprep.subr.mxu0 %v2491
        %3011 = vmatpush1.msra.mxu0 %v2490
        %3012 = vmatprep.subr.mxu0 %v2495
        %3013 = vmatpush1.msra.mxu0 %v2494
        %3014 = vmatprep.subr.mxu0 %v2499
        %3015 = vmatpush1.msra.mxu0 %v2498
        %3016 = vmatprep.subr.mxu0 %v2503
        %3017 = vmatpush1.msra.mxu0 %v2502
        %3018 = vmatprep.subr.mxu0 %v2507
        %3019 = vmatpush1.msra.mxu0 %v2506
        %3020 = vmatprep.subr.mxu0 %v2511
        %3021 = vmatpush1.msra.mxu0 %v2510
        %3022 = vmatprep.subr.mxu0 %v2515
        %3023 = vmatpush1.msra.mxu0 %v2514
        %3024 = vmatprep.subr.mxu0 %v2519
        %3025 = vmatpush1.msra.mxu0 %v2518
        %3026 = vmatprep.subr.mxu0 %v2523
        %3027 = vmatpush1.msra.mxu0 %v2522
        %3028 = vmatprep.subr.mxu0 %v2527
        %3029 = vmatpush1.msra.mxu0 %v2526
        %3030 = vmatprep.subr.mxu0 %v2531
        %3031 = vmatpush1.msra.mxu0 %v2530
        %3032 = vmatprep.subr.mxu0 %v2535
        %3033 = vmatpush1.msra.mxu0 %v2534
        %3034 = vmatprep.subr.mxu0 %v2539
        %3035 = vmatpush1.msra.mxu0 %v2538
        %3036 = vmatprep.subr.mxu0 0.0
        %3037 = vmatpush1.msra.mxu0 0.0
        %3038 = vmatprep.mubr.f32.mxu0 %v2877
        %3039 = vmatmul.mubr.f32.gmra.mrb[0].mxu0 %v2394
        %v3040 = vpop.f32.mrb[0].mxu0
        %v3041 = vadd.f32 %v2855, %v3040
        %v3042 = vpop.f32.mrb[0].mxu0
        %v3043 = vadd.f32 %v2857, %v3042
        %3044 = vmatprep.mubr.f32.mxu0 %v2879
        %3045 = vmatmul.mubr.f32.gmra.mrb[0].mxu0 %v2400
        %v3046 = vpop.f32.mrb[0].mxu0
        %v3047 = vadd.f32 %v2861, %v3046
        %v3048 = vpop.f32.mrb[0].mxu0
        %v3049 = vadd.f32 %v2863, %v3048
        %3050 = vmatprep.mubr.f32.mxu0 %v2881
        %3051 = vmatmul.mubr.f32.gmra.mrb[0].mxu0 %v2406
        %v3052 = vpop.f32.mrb[0].mxu0
        %v3053 = vadd.f32 %v2867, %v3052
        %v3054 = vpop.f32.mrb[0].mxu0
        %v3055 = vadd.f32 %v2869, %v3054
        %3056 = vmatprep.mubr.f32.mxu0 %v2883
        %3057 = vmatmul.mubr.f32.gmra.mrb[0].mxu0 %v2412
        %v3058 = vpop.f32.mrb[0].mxu0
        %v3059 = vadd.f32 %v2873, %v3058
        %v3060 = vpop.f32.mrb[0].mxu0
        %v3061 = vadd.f32 %v2875, %v3060
        %3062 = vdwg.mxu0
        %s3063 = scalar_lea.vmem %s5, 1984
        %v3064 = vld [vmem:[%s3063] sm:$0xff]
        %v3065 = vld [vmem:[%s3063 + $0x8] sm:$0xff]
        %v3066 = vld [vmem:[%s3063 + $0x10] sm:$0xff]
        %v3067 = vld [vmem:[%s3063 + $0x18] sm:$0xff]
        %v3068 = vld [vmem:[%s3063 + $0x20] sm:$0xff]
        %v3069 = vld [vmem:[%s3063 + $0x28] sm:$0xff]
        %v3070 = vld [vmem:[%s3063 + $0x30] sm:$0xff]
        %v3071 = vld [vmem:[%s3063 + $0x38] sm:$0xff]
        %v3072 = vld [vmem:[%s3063 + $0x40] sm:$0xff]
        %v3073 = vld [vmem:[%s3063 + $0x48] sm:$0xff]
        %v3074 = vld [vmem:[%s3063 + $0x50] sm:$0xff]
        %v3075 = vld [vmem:[%s3063 + $0x58] sm:$0xff]
        %v3076 = vld [vmem:[%s3063 + $0x60] sm:$0xff]
        %v3077 = vld [vmem:[%s3063 + $0x68] sm:$0xff]
        %v3078 = vld [vmem:[%s3063 + $0x70] sm:$0xff]
        %v3079 = vld [vmem:[%s3063 + $0x78] sm:$0xff]
        %v3080 = vld [vmem:[%s3063 + $0x80] sm:$0xff]
        %v3081 = vld [vmem:[%s3063 + $0x88] sm:$0xff]
        %v3082 = vld [vmem:[%s3063 + $0x90] sm:$0xff]
        %v3083 = vld [vmem:[%s3063 + $0x98] sm:$0xff]
        %v3084 = vld [vmem:[%s3063 + $0xa0] sm:$0xff]
        %v3085 = vld [vmem:[%s3063 + $0xa8] sm:$0xff]
        %v3086 = vld [vmem:[%s3063 + $0xb0] sm:$0xff]
        %v3087 = vld [vmem:[%s3063 + $0xb8] sm:$0xff]
        %v3088 = vld [vmem:[%s3063 + $0xc0] sm:$0xff]
        %v3089 = vld [vmem:[%s3063 + $0xc8] sm:$0xff]
        %v3090 = vld [vmem:[%s3063 + $0xd0] sm:$0xff]
        %v3091 = vld [vmem:[%s3063 + $0xd8] sm:$0xff]
        %v3092 = vld [vmem:[%s3063 + $0xe0] sm:$0xff]
        %v3093 = vld [vmem:[%s3063 + $0xe8] sm:$0xff]
        %v3094 = vld [vmem:[%s3063 + $0xf0] sm:$0xff]
        %v3095 = vld [vmem:[%s3063 + $0xf8] sm:$0xff]
        %v3096 = vld [vmem:[%s3063 + $0x100] sm:$0xff]
        %v3097 = vld [vmem:[%s3063 + $0x108] sm:$0xff]
        %v3098 = vld [vmem:[%s3063 + $0x110] sm:$0xff]
        %v3099 = vld [vmem:[%s3063 + $0x118] sm:$0xff]
        %v3100 = vld [vmem:[%s3063 + $0x120] sm:$0xff]
        %v3101 = vld [vmem:[%s3063 + $0x128] sm:$0xff]
        %v3102 = vld [vmem:[%s3063 + $0x130] sm:$0xff]
        %v3103 = vld [vmem:[%s3063 + $0x138] sm:$0xff]
        %v3104 = vld [vmem:[%s3063 + $0x140] sm:$0xff]
        %v3105 = vld [vmem:[%s3063 + $0x148] sm:$0xff]
        %v3106 = vld [vmem:[%s3063 + $0x150] sm:$0xff]
        %v3107 = vld [vmem:[%s3063 + $0x158] sm:$0xff]
        %v3108 = vld [vmem:[%s3063 + $0x160] sm:$0xff]
        %v3109 = vld [vmem:[%s3063 + $0x168] sm:$0xff]
        %v3110 = vld [vmem:[%s3063 + $0x170] sm:$0xff]
        %v3111 = vld [vmem:[%s3063 + $0x178] sm:$0xff]
        %v3112 = vld [vmem:[%s3063 + $0x180] sm:$0xff]
        %v3113 = vld [vmem:[%s3063 + $0x188] sm:$0xff]
        %v3114 = vld [vmem:[%s3063 + $0x190] sm:$0xff]
        %v3115 = vld [vmem:[%s3063 + $0x198] sm:$0xff]
        %v3116 = vld [vmem:[%s3063 + $0x1a0] sm:$0xff]
        %v3117 = vld [vmem:[%s3063 + $0x1a8] sm:$0xff]
        %v3118 = vld [vmem:[%s3063 + $0x1b0] sm:$0xff]
        %v3119 = vld [vmem:[%s3063 + $0x1b8] sm:$0xff]
        %v3120 = vld [vmem:[%s3063 + $0x1c0] sm:$0xff]
        %v3121 = vld [vmem:[%s3063 + $0x1c8] sm:$0xff]
        %v3122 = vld [vmem:[%s3063 + $0x1d0] sm:$0xff]
        %v3123 = vld [vmem:[%s3063 + $0x1d8] sm:$0xff]
        %v3124 = vld [vmem:[%s3063 + $0x1e0] sm:$0xff]
        %v3125 = vld [vmem:[%s3063 + $0x1e8] sm:$0xff]
        %v3126 = vld [vmem:[%s3063 + $0x1f0] sm:$0xff]
        %v3127 = vld [vmem:[%s3063 + $0x1f8] sm:$0xff]
        %v3128 = vld [vmem:[%s3063 + $0x200] sm:$0xff]
        %v3129 = vld [vmem:[%s3063 + $0x208] sm:$0xff]
        %v3130 = vld [vmem:[%s3063 + $0x210] sm:$0xff]
        %v3131 = vld [vmem:[%s3063 + $0x218] sm:$0xff]
        %v3132 = vld [vmem:[%s3063 + $0x220] sm:$0xff]
        %v3133 = vld [vmem:[%s3063 + $0x228] sm:$0xff]
        %v3134 = vld [vmem:[%s3063 + $0x230] sm:$0xff]
        %v3135 = vld [vmem:[%s3063 + $0x238] sm:$0xff]
        %v3136 = vld [vmem:[%s3063 + $0x240] sm:$0xff]
        %v3137 = vld [vmem:[%s3063 + $0x248] sm:$0xff]
        %v3138 = vld [vmem:[%s3063 + $0x250] sm:$0xff]
        %v3139 = vld [vmem:[%s3063 + $0x258] sm:$0xff]
        %v3140 = vld [vmem:[%s3063 + $0x260] sm:$0xff]
        %v3141 = vld [vmem:[%s3063 + $0x268] sm:$0xff]
        %v3142 = vld [vmem:[%s3063 + $0x270] sm:$0xff]
        %v3143 = vld [vmem:[%s3063 + $0x278] sm:$0xff]
        %v3144 = vld [vmem:[%s3063 + $0x280] sm:$0xff]
        %v3145 = vld [vmem:[%s3063 + $0x288] sm:$0xff]
        %v3146 = vld [vmem:[%s3063 + $0x290] sm:$0xff]
        %v3147 = vld [vmem:[%s3063 + $0x298] sm:$0xff]
        %v3148 = vld [vmem:[%s3063 + $0x2a0] sm:$0xff]
        %v3149 = vld [vmem:[%s3063 + $0x2a8] sm:$0xff]
        %v3150 = vld [vmem:[%s3063 + $0x2b0] sm:$0xff]
        %v3151 = vld [vmem:[%s3063 + $0x2b8] sm:$0xff]
        %v3152 = vld [vmem:[%s3063 + $0x2c0] sm:$0xff]
        %v3153 = vld [vmem:[%s3063 + $0x2c8] sm:$0xff]
        %v3154 = vld [vmem:[%s3063 + $0x2d0] sm:$0xff]
        %v3155 = vld [vmem:[%s3063 + $0x2d8] sm:$0xff]
        %v3156 = vld [vmem:[%s3063 + $0x2e0] sm:$0xff]
        %v3157 = vld [vmem:[%s3063 + $0x2e8] sm:$0xff]
        %v3158 = vld [vmem:[%s3063 + $0x2f0] sm:$0xff]
        %v3159 = vld [vmem:[%s3063 + $0x2f8] sm:$0xff]
        %v3160 = vld [vmem:[%s3063 + $0x300] sm:$0xff]
        %v3161 = vld [vmem:[%s3063 + $0x308] sm:$0xff]
        %v3162 = vld [vmem:[%s3063 + $0x310] sm:$0xff]
        %v3163 = vld [vmem:[%s3063 + $0x318] sm:$0xff]
        %v3164 = vld [vmem:[%s3063 + $0x320] sm:$0xff]
        %v3165 = vld [vmem:[%s3063 + $0x328] sm:$0xff]
        %v3166 = vld [vmem:[%s3063 + $0x330] sm:$0xff]
        %v3167 = vld [vmem:[%s3063 + $0x338] sm:$0xff]
        %v3168 = vld [vmem:[%s3063 + $0x340] sm:$0xff]
        %v3169 = vld [vmem:[%s3063 + $0x348] sm:$0xff]
        %v3170 = vld [vmem:[%s3063 + $0x350] sm:$0xff]
        %v3171 = vld [vmem:[%s3063 + $0x358] sm:$0xff]
        %v3172 = vld [vmem:[%s3063 + $0x360] sm:$0xff]
        %v3173 = vld [vmem:[%s3063 + $0x368] sm:$0xff]
        %v3174 = vld [vmem:[%s3063 + $0x370] sm:$0xff]
        %v3175 = vld [vmem:[%s3063 + $0x378] sm:$0xff]
        %v3176 = vld [vmem:[%s3063 + $0x380] sm:$0xff]
        %v3177 = vld [vmem:[%s3063 + $0x388] sm:$0xff]
        %v3178 = vld [vmem:[%s3063 + $0x390] sm:$0xff]
        %v3179 = vld [vmem:[%s3063 + $0x398] sm:$0xff]
        %v3180 = vld [vmem:[%s3063 + $0x3a0] sm:$0xff]
        %v3181 = vld [vmem:[%s3063 + $0x3a8] sm:$0xff]
        %v3182 = vld [vmem:[%s3063 + $0x3b0] sm:$0xff]
        %v3183 = vld [vmem:[%s3063 + $0x3b8] sm:$0xff]
        %v3184 = vld [vmem:[%s3063 + $0x3c0] sm:$0xff]
        %v3185 = vld [vmem:[%s3063 + $0x3c8] sm:$0xff]
        %v3186 = vld [vmem:[%s3063 + $0x3d0] sm:$0xff]
        %v3187 = vld [vmem:[%s3063 + $0x3d8] sm:$0xff]
        %vm3188 = vcmask 1045504
        %v3189 = vrot.slane %v2394, 2
        %v3190 = vrot.slane %v2400, 2
        %v3191 = vsel %vm3188, %v3189, %v3190
        %v3192 = vrot.slane %v2396, 2
        %v3193 = vrot.slane %v2402, 2
        %v3194 = vsel %vm3188, %v3192, %v3193
        %v3195 = vrot.slane %v2406, 2
        %v3196 = vsel %vm3188, %v3190, %v3195
        %v3197 = vrot.slane %v2408, 2
        %v3198 = vsel %vm3188, %v3193, %v3197
        %v3199 = vrot.slane %v2412, 2
        %v3200 = vsel %vm3188, %v3195, %v3199
        %v3201 = vrot.slane %v2414, 2
        %v3202 = vsel %vm3188, %v3197, %v3201
        %v3207 = vsel %vm2058, %v3194, 0
        %v3209 = vsel %vm2058, %v3198, 0
        %v3211 = vsel %vm2058, %v3202, 0
        %v3213 = vsel %vm2058, %v3201, 0
        %3215 = vmatprep.subr.mxu0 %v3065
        %3216 = vmatpush1.msra.mxu0 %v3064
        %3217 = vmatprep.subr.mxu0 %v3069
        %3218 = vmatpush1.msra.mxu0 %v3068
        %3219 = vmatprep.subr.mxu0 %v3073
        %3220 = vmatpush1.msra.mxu0 %v3072
        %3221 = vmatprep.subr.mxu0 %v3077
        %3222 = vmatpush1.msra.mxu0 %v3076
        %3223 = vmatprep.subr.mxu0 %v3081
        %3224 = vmatpush1.msra.mxu0 %v3080
        %3225 = vmatprep.subr.mxu0 %v3085
        %3226 = vmatpush1.msra.mxu0 %v3084
        %3227 = vmatprep.subr.mxu0 %v3089
        %3228 = vmatpush1.msra.mxu0 %v3088
        %3229 = vmatprep.subr.mxu0 %v3093
        %3230 = vmatpush1.msra.mxu0 %v3092
        %3231 = vmatprep.subr.mxu0 %v3097
        %3232 = vmatpush1.msra.mxu0 %v3096
        %3233 = vmatprep.subr.mxu0 %v3101
        %3234 = vmatpush1.msra.mxu0 %v3100
        %3235 = vmatprep.subr.mxu0 %v3105
        %3236 = vmatpush1.msra.mxu0 %v3104
        %3237 = vmatprep.subr.mxu0 %v3109
        %3238 = vmatpush1.msra.mxu0 %v3108
        %3239 = vmatprep.subr.mxu0 %v3113
        %3240 = vmatpush1.msra.mxu0 %v3112
        %3241 = vmatprep.subr.mxu0 %v3117
        %3242 = vmatpush1.msra.mxu0 %v3116
        %3243 = vmatprep.subr.mxu0 %v3121
        %3244 = vmatpush1.msra.mxu0 %v3120
        %3245 = vmatprep.subr.mxu0 %v3125
        %3246 = vmatpush1.msra.mxu0 %v3124
        %3247 = vmatprep.subr.mxu0 %v3129
        %3248 = vmatpush1.msra.mxu0 %v3128
        %3249 = vmatprep.subr.mxu0 %v3133
        %3250 = vmatpush1.msra.mxu0 %v3132
        %3251 = vmatprep.subr.mxu0 %v3137
        %3252 = vmatpush1.msra.mxu0 %v3136
        %3253 = vmatprep.subr.mxu0 %v3141
        %3254 = vmatpush1.msra.mxu0 %v3140
        %3255 = vmatprep.subr.mxu0 %v3145
        %3256 = vmatpush1.msra.mxu0 %v3144
        %3257 = vmatprep.subr.mxu0 %v3149
        %3258 = vmatpush1.msra.mxu0 %v3148
        %3259 = vmatprep.subr.mxu0 %v3153
        %3260 = vmatpush1.msra.mxu0 %v3152
        %3261 = vmatprep.subr.mxu0 %v3157
        %3262 = vmatpush1.msra.mxu0 %v3156
        %3263 = vmatprep.subr.mxu0 %v3161
        %3264 = vmatpush1.msra.mxu0 %v3160
        %3265 = vmatprep.subr.mxu0 %v3165
        %3266 = vmatpush1.msra.mxu0 %v3164
        %3267 = vmatprep.subr.mxu0 %v3169
        %3268 = vmatpush1.msra.mxu0 %v3168
        %3269 = vmatprep.subr.mxu0 %v3173
        %3270 = vmatpush1.msra.mxu0 %v3172
        %3271 = vmatprep.subr.mxu0 %v3177
        %3272 = vmatpush1.msra.mxu0 %v3176
        %3273 = vmatprep.subr.mxu0 %v3181
        %3274 = vmatpush1.msra.mxu0 %v3180
        %3275 = vmatprep.subr.mxu0 %v3185
        %3276 = vmatpush1.msra.mxu0 %v3184
        %3277 = vmatprep.subr.mxu0 0.0
        %3278 = vmatpush1.msra.mxu0 0.0
        %3279 = vmatprep.mubr.f32.mxu0 %v3207
        %3280 = vmatmul.mubr.f32.gmra.mrb[0].mxu0 %v3191
        %v3281 = vpop.f32.mrb[0].mxu0
        %v3282 = vadd.f32 0.0, %v3281
        %v3283 = vpop.f32.mrb[0].mxu0
        %v3284 = vadd.f32 0.0, %v3283
        %3285 = vmatprep.mubr.f32.mxu0 %v3209
        %3286 = vmatmul.mubr.f32.gmra.mrb[0].mxu0 %v3196
        %v3287 = vpop.f32.mrb[0].mxu0
        %v3288 = vadd.f32 0.0, %v3287
        %v3289 = vpop.f32.mrb[0].mxu0
        %v3290 = vadd.f32 0.0, %v3289
        %3291 = vmatprep.mubr.f32.mxu0 %v3211
        %3292 = vmatmul.mubr.f32.gmra.mrb[0].mxu0 %v3200
        %v3293 = vpop.f32.mrb[0].mxu0
        %v3294 = vadd.f32 0.0, %v3293
        %v3295 = vpop.f32.mrb[0].mxu0
        %v3296 = vadd.f32 0.0, %v3295
        %3297 = vmatprep.mubr.f32.mxu0 %v3213
        %3298 = vmatmul.mubr.f32.gmra.mrb[0].mxu0 %v3199
        %v3299 = vpop.f32.mrb[0].mxu0
        %v3300 = vadd.f32 0.0, %v3299
        %v3301 = vpop.f32.mrb[0].mxu0
        %v3302 = vadd.f32 0.0, %v3301
        %3303 = vdwg.mxu0
        %3304 = vmatprep.subr.mxu0 %v3067
        %3305 = vmatpush1.msra.mxu0 %v3066
        %3306 = vmatprep.subr.mxu0 %v3071
        %3307 = vmatpush1.msra.mxu0 %v3070
        %3308 = vmatprep.subr.mxu0 %v3075
        %3309 = vmatpush1.msra.mxu0 %v3074
        %3310 = vmatprep.subr.mxu0 %v3079
        %3311 = vmatpush1.msra.mxu0 %v3078
        %3312 = vmatprep.subr.mxu0 %v3083
        %3313 = vmatpush1.msra.mxu0 %v3082
        %3314 = vmatprep.subr.mxu0 %v3087
        %3315 = vmatpush1.msra.mxu0 %v3086
        %3316 = vmatprep.subr.mxu0 %v3091
        %3317 = vmatpush1.msra.mxu0 %v3090
        %3318 = vmatprep.subr.mxu0 %v3095
        %3319 = vmatpush1.msra.mxu0 %v3094
        %3320 = vmatprep.subr.mxu0 %v3099
        %3321 = vmatpush1.msra.mxu0 %v3098
        %3322 = vmatprep.subr.mxu0 %v3103
        %3323 = vmatpush1.msra.mxu0 %v3102
        %3324 = vmatprep.subr.mxu0 %v3107
        %3325 = vmatpush1.msra.mxu0 %v3106
        %3326 = vmatprep.subr.mxu0 %v3111
        %3327 = vmatpush1.msra.mxu0 %v3110
        %3328 = vmatprep.subr.mxu0 %v3115
        %3329 = vmatpush1.msra.mxu0 %v3114
        %3330 = vmatprep.subr.mxu0 %v3119
        %3331 = vmatpush1.msra.mxu0 %v3118
        %3332 = vmatprep.subr.mxu0 %v3123
        %3333 = vmatpush1.msra.mxu0 %v3122
        %3334 = vmatprep.subr.mxu0 %v3127
        %3335 = vmatpush1.msra.mxu0 %v3126
        %3336 = vmatprep.subr.mxu0 %v3131
        %3337 = vmatpush1.msra.mxu0 %v3130
        %3338 = vmatprep.subr.mxu0 %v3135
        %3339 = vmatpush1.msra.mxu0 %v3134
        %3340 = vmatprep.subr.mxu0 %v3139
        %3341 = vmatpush1.msra.mxu0 %v3138
        %3342 = vmatprep.subr.mxu0 %v3143
        %3343 = vmatpush1.msra.mxu0 %v3142
        %3344 = vmatprep.subr.mxu0 %v3147
        %3345 = vmatpush1.msra.mxu0 %v3146
        %3346 = vmatprep.subr.mxu0 %v3151
        %3347 = vmatpush1.msra.mxu0 %v3150
        %3348 = vmatprep.subr.mxu0 %v3155
        %3349 = vmatpush1.msra.mxu0 %v3154
        %3350 = vmatprep.subr.mxu0 %v3159
        %3351 = vmatpush1.msra.mxu0 %v3158
        %3352 = vmatprep.subr.mxu0 %v3163
        %3353 = vmatpush1.msra.mxu0 %v3162
        %3354 = vmatprep.subr.mxu0 %v3167
        %3355 = vmatpush1.msra.mxu0 %v3166
        %3356 = vmatprep.subr.mxu0 %v3171
        %3357 = vmatpush1.msra.mxu0 %v3170
        %3358 = vmatprep.subr.mxu0 %v3175
        %3359 = vmatpush1.msra.mxu0 %v3174
        %3360 = vmatprep.subr.mxu0 %v3179
        %3361 = vmatpush1.msra.mxu0 %v3178
        %3362 = vmatprep.subr.mxu0 %v3183
        %3363 = vmatpush1.msra.mxu0 %v3182
        %3364 = vmatprep.subr.mxu0 %v3187
        %3365 = vmatpush1.msra.mxu0 %v3186
        %3366 = vmatprep.subr.mxu0 0.0
        %3367 = vmatpush1.msra.mxu0 0.0
        %3368 = vmatprep.mubr.f32.mxu0 %v3207
        %3369 = vmatmul.mubr.f32.gmra.mrb[0].mxu0 %v3191
        %v3370 = vpop.f32.mrb[0].mxu0
        %v3371 = vadd.f32 0.0, %v3370
        %v3372 = vpop.f32.mrb[0].mxu0
        %v3373 = vadd.f32 0.0, %v3372
        %3374 = vmatprep.mubr.f32.mxu0 %v3209
        %3375 = vmatmul.mubr.f32.gmra.mrb[0].mxu0 %v3196
        %v3376 = vpop.f32.mrb[0].mxu0
        %v3377 = vadd.f32 0.0, %v3376
        %v3378 = vpop.f32.mrb[0].mxu0
        %v3379 = vadd.f32 0.0, %v3378
        %3380 = vmatprep.mubr.f32.mxu0 %v3211
        %3381 = vmatmul.mubr.f32.gmra.mrb[0].mxu0 %v3200
        %v3382 = vpop.f32.mrb[0].mxu0
        %v3383 = vadd.f32 0.0, %v3382
        %v3384 = vpop.f32.mrb[0].mxu0
        %v3385 = vadd.f32 0.0, %v3384
        %3386 = vmatprep.mubr.f32.mxu0 %v3213
        %3387 = vmatmul.mubr.f32.gmra.mrb[0].mxu0 %v3199
        %v3388 = vpop.f32.mrb[0].mxu0
        %v3389 = vadd.f32 0.0, %v3388
        %v3390 = vpop.f32.mrb[0].mxu0
        %v3391 = vadd.f32 0.0, %v3390
        %3392 = vdwg.mxu0
        %v3393 = vadd.f32 %v2952, %v3282
        %v3394 = vadd.f32 %v2954, %v3284
        %v3395 = vadd.f32 %v3041, %v3371
        %v3396 = vadd.f32 %v3043, %v3373
        %v3397 = vadd.f32 %v2958, %v3288
        %v3398 = vadd.f32 %v2960, %v3290
        %v3399 = vadd.f32 %v3047, %v3377
        %v3400 = vadd.f32 %v3049, %v3379
        %v3401 = vadd.f32 %v2964, %v3294
        %v3402 = vadd.f32 %v2966, %v3296
        %v3403 = vadd.f32 %v3053, %v3383
        %v3404 = vadd.f32 %v3055, %v3385
        %v3405 = vadd.f32 %v2970, %v3300
        %v3406 = vadd.f32 %v2972, %v3302
        %v3407 = vadd.f32 %v3059, %v3389
        %v3408 = vadd.f32 %v3061, %v3391
        %v3409 = vld [vmem:[%s6] sm:$0xf]
        %v3411 = vlaneseq
        %v3412 = vshrl.u32 %v3411, 7
        %v3413 = vsub.s32 0, %v3412
        %v3414 = vrot.slane %v3409, %v3413
        %v3415 = vlaneseq
        %v3416 = vshrl.u32 %v3415, 7
        %v3417 = vsub.s32 1, %v3416
        %v3418 = vrot.slane %v3409, %v3417
        %v3419 = vlaneseq
        %v3420 = vshrl.u32 %v3419, 7
        %v3421 = vsub.s32 2, %v3420
        %v3422 = vrot.slane %v3409, %v3421
        %v3423 = vlaneseq
        %v3424 = vshrl.u32 %v3423, 7
        %v3425 = vsub.s32 3, %v3424
        %v3426 = vrot.slane %v3409, %v3425
        %v3431 = vadd.f32 %v3393, %v3414
        %v3432 = vadd.f32 %v3394, %v3418
        %v3433 = vadd.f32 %v3395, %v3422
        %v3434 = vadd.f32 %v3396, %v3426
        %v3435 = vadd.f32 %v3397, %v3414
        %v3436 = vadd.f32 %v3398, %v3418
        %v3437 = vadd.f32 %v3399, %v3422
        %v3438 = vadd.f32 %v3400, %v3426
        %v3439 = vadd.f32 %v3401, %v3414
        %v3440 = vadd.f32 %v3402, %v3418
        %v3441 = vadd.f32 %v3403, %v3422
        %v3442 = vadd.f32 %v3404, %v3426
        %v3443 = vadd.f32 %v3405, %v3414
        %v3444 = vadd.f32 %v3406, %v3418
        %v3445 = vadd.f32 %v3407, %v3422
        %v3446 = vadd.f32 %v3408, %v3426
        %v3447 = vmax.f32 %v3431, 0.0
        %v3448 = vmax.f32 %v3432, 0.0
        %v3449 = vmax.f32 %v3433, 0.0
        %v3450 = vmax.f32 %v3434, 0.0
        %v3451 = vmax.f32 %v3435, 0.0
        %v3452 = vmax.f32 %v3436, 0.0
        %v3453 = vmax.f32 %v3437, 0.0
        %v3454 = vmax.f32 %v3438, 0.0
        %v3455 = vmax.f32 %v3439, 0.0
        %v3456 = vmax.f32 %v3440, 0.0
        %v3457 = vmax.f32 %v3441, 0.0
        %v3458 = vmax.f32 %v3442, 0.0
        %v3459 = vmax.f32 %v3443, 0.0
        %v3460 = vmax.f32 %v3444, 0.0
        %v3461 = vmax.f32 %v3445, 0.0
        %v3462 = vmax.f32 %v3446, 0.0
        %v3479 = vrot.slane %v3447, 1
        %v3480 = vrot.slane %v3451, 1
        %v3481 = vsel %vm1677, %v3479, %v3480
        %v3482 = vrot.slane %v3448, 1
        %v3483 = vrot.slane %v3452, 1
        %v3484 = vsel %vm1677, %v3482, %v3483
        %v3485 = vrot.slane %v3449, 1
        %v3486 = vrot.slane %v3453, 1
        %v3487 = vsel %vm1677, %v3485, %v3486
        %v3488 = vrot.slane %v3450, 1
        %v3489 = vrot.slane %v3454, 1
        %v3490 = vsel %vm1677, %v3488, %v3489
        %v3491 = vrot.slane %v3455, 1
        %v3492 = vsel %vm1677, %v3480, %v3491
        %v3493 = vrot.slane %v3456, 1
        %v3494 = vsel %vm1677, %v3483, %v3493
        %v3495 = vrot.slane %v3457, 1
        %v3496 = vsel %vm1677, %v3486, %v3495
        %v3497 = vrot.slane %v3458, 1
        %v3498 = vsel %vm1677, %v3489, %v3497
        %v3499 = vrot.slane %v3459, 1
        %v3500 = vsel %vm1677, %v3491, %v3499
        %v3501 = vrot.slane %v3460, 1
        %v3502 = vsel %vm1677, %v3493, %v3501
        %v3503 = vrot.slane %v3461, 1
        %v3504 = vsel %vm1677, %v3495, %v3503
        %v3505 = vrot.slane %v3462, 1
        %v3506 = vsel %vm1677, %v3497, %v3505
        %v3523 = vmax.f32 %v3447, %v3481
        %v3524 = vmax.f32 %v3448, %v3484
        %v3525 = vmax.f32 %v3449, %v3487
        %v3526 = vmax.f32 %v3450, %v3490
        %v3527 = vmax.f32 %v3451, %v3492
        %v3528 = vmax.f32 %v3452, %v3494
        %v3529 = vmax.f32 %v3453, %v3496
        %v3530 = vmax.f32 %v3454, %v3498
        %v3531 = vmax.f32 %v3455, %v3500
        %v3532 = vmax.f32 %v3456, %v3502
        %v3533 = vmax.f32 %v3457, %v3504
        %v3534 = vmax.f32 %v3458, %v3506
        %v3535 = vmax.f32 %v3459, %v3499
        %v3536 = vmax.f32 %v3460, %v3501
        %v3537 = vmax.f32 %v3461, %v3503
        %v3538 = vmax.f32 %v3462, %v3505
        %v3539 = vld [vmem:[%s7] sm:$0xff]
        %v3540 = vld [vmem:[%s7 + $0x8] sm:$0x3f]
        %vm3541 = vcmask 228352
        %v3543 = vsel %vm3541, %v3539, 0
        %v3546 = vsel %vm3541, %v3540, 0
        %vm3548 = vcmask 1043456
        %v3550 = vsel %vm3548, %v3535, 0
        %v3553 = vsel %vm3548, %v3536, 0
        %v3556 = vsel %vm3548, %v3537, 0
        %v3559 = vsel %vm3548, %v3538, 0
        %3561 = vmatprep.subr.mxu0 %v3524
        %3562 = vmatpush1.msra.mxu0 %v3523
        %3563 = vmatprep.subr.mxu0 %v3528
        %3564 = vmatpush1.msra.mxu0 %v3527
        %3565 = vmatprep.subr.mxu0 %v3532
        %3566 = vmatpush1.msra.mxu0 %v3531
        %3567 = vmatprep.subr.mxu0 %v3553
        %3568 = vmatpush1.msra.mxu0 %v3550
        %3569 = vmatprep.subr.mxu0 0.0
        %3570 = vmatpush1.msra.mxu0 0.0
        %3571 = vmatprep.subr.mxu0 0.0
        %3572 = vmatpush1.msra.mxu0 0.0
        %3573 = vmatprep.subr.mxu0 0.0
        %3574 = vmatpush1.msra.mxu0 0.0
        %3575 = vmatprep.subr.mxu0 0.0
        %3576 = vmatpush1.msra.mxu0 0.0
        %3577 = vmatprep.subr.mxu0 0.0
        %3578 = vmatpush1.msra.mxu0 0.0
        %3579 = vmatprep.subr.mxu0 0.0
        %3580 = vmatpush1.msra.mxu0 0.0
        %3581 = vmatprep.subr.mxu0 0.0
        %3582 = vmatpush1.msra.mxu0 0.0
        %3583 = vmatprep.subr.mxu0 0.0
        %3584 = vmatpush1.msra.mxu0 0.0
        %3585 = vmatprep.subr.mxu0 0.0
        %3586 = vmatpush1.msra.mxu0 0.0
        %3587 = vmatprep.subr.mxu0 0.0
        %3588 = vmatpush1.msra.mxu0 0.0
        %3589 = vmatprep.subr.mxu0 0.0
        %3590 = vmatpush1.msra.mxu0 0.0
        %3591 = vmatprep.subr.mxu0 0.0
        %3592 = vmatpush1.msra.mxu0 0.0
        %3593 = vmatprep.subr.mxu0 0.0
        %3594 = vmatpush1.msra.mxu0 0.0
        %3595 = vmatprep.subr.mxu0 0.0
        %3596 = vmatpush1.msra.mxu0 0.0
        %3597 = vmatprep.subr.mxu0 0.0
        %3598 = vmatpush1.msra.mxu0 0.0
        %3599 = vmatprep.subr.mxu0 0.0
        %3600 = vmatpush1.msra.mxu0 0.0
        %3601 = vmatprep.subr.mxu0 0.0
        %3602 = vmatpush1.msra.mxu0 0.0
        %3603 = vmatprep.subr.mxu0 0.0
        %3604 = vmatpush1.msra.mxu0 0.0
        %3605 = vmatprep.subr.mxu0 0.0
        %3606 = vmatpush1.msra.mxu0 0.0
        %3607 = vmatprep.subr.mxu0 0.0
        %3608 = vmatpush1.msra.mxu0 0.0
        %3609 = vmatprep.subr.mxu0 0.0
        %3610 = vmatpush1.msra.mxu0 0.0
        %3611 = vmatprep.subr.mxu0 0.0
        %3612 = vmatpush1.msra.mxu0 0.0
        %3613 = vmatprep.subr.mxu0 0.0
        %3614 = vmatpush1.msra.mxu0 0.0
        %3615 = vmatprep.subr.mxu0 0.0
        %3616 = vmatpush1.msra.mxu0 0.0
        %3617 = vmatprep.subr.mxu0 0.0
        %3618 = vmatpush1.msra.mxu0 0.0
        %3619 = vmatprep.subr.mxu0 0.0
        %3620 = vmatpush1.msra.mxu0 0.0
        %3621 = vmatprep.subr.mxu0 0.0
        %3622 = vmatpush1.msra.mxu0 0.0
        %3623 = vmatprep.subr.mxu0 0.0
        %3624 = vmatpush1.msra.mxu0 0.0
        %3625 = vmatprep.mubr.f32.mxu0 0.0
        %3626 = vmatmul.mubr.f32.gmra.mrb[0].mxu0 %v3543
        %v3627 = vpop.f32.mrb[0].mxu0
        %v3628 = vadd.f32 0.0, %v3627
        %v3629 = vpop.f32.mrb[0].mxu0
        %v3630 = vadd.f32 0.0, %v3629
        %3631 = vmatprep.mubr.f32.mxu0 0.0
        %3632 = vmatmul.mubr.f32.gmra.mrb[0].mxu0 %v3546
        %v3633 = vpop.f32.mrb[0].mxu0
        %v3634 = vadd.f32 0.0, %v3633
        %v3635 = vpop.f32.mrb[0].mxu0
        %v3636 = vadd.f32 0.0, %v3635
        %3637 = vdwg.mxu0
        %3638 = vmatprep.subr.mxu0 %v3526
        %3639 = vmatpush1.msra.mxu0 %v3525
        %3640 = vmatprep.subr.mxu0 %v3530
        %3641 = vmatpush1.msra.mxu0 %v3529
        %3642 = vmatprep.subr.mxu0 %v3534
        %3643 = vmatpush1.msra.mxu0 %v3533
        %3644 = vmatprep.subr.mxu0 %v3559
        %3645 = vmatpush1.msra.mxu0 %v3556
        %3646 = vmatprep.subr.mxu0 0.0
        %3647 = vmatpush1.msra.mxu0 0.0
        %3648 = vmatprep.subr.mxu0 0.0
        %3649 = vmatpush1.msra.mxu0 0.0
        %3650 = vmatprep.subr.mxu0 0.0
        %3651 = vmatpush1.msra.mxu0 0.0
        %3652 = vmatprep.subr.mxu0 0.0
        %3653 = vmatpush1.msra.mxu0 0.0
        %3654 = vmatprep.subr.mxu0 0.0
        %3655 = vmatpush1.msra.mxu0 0.0
        %3656 = vmatprep.subr.mxu0 0.0
        %3657 = vmatpush1.msra.mxu0 0.0
        %3658 = vmatprep.subr.mxu0 0.0
        %3659 = vmatpush1.msra.mxu0 0.0
        %3660 = vmatprep.subr.mxu0 0.0
        %3661 = vmatpush1.msra.mxu0 0.0
        %3662 = vmatprep.subr.mxu0 0.0
        %3663 = vmatpush1.msra.mxu0 0.0
        %3664 = vmatprep.subr.mxu0 0.0
        %3665 = vmatpush1.msra.mxu0 0.0
        %3666 = vmatprep.subr.mxu0 0.0
        %3667 = vmatpush1.msra.mxu0 0.0
        %3668 = vmatprep.subr.mxu0 0.0
        %3669 = vmatpush1.msra.mxu0 0.0
        %3670 = vmatprep.subr.mxu0 0.0
        %3671 = vmatpush1.msra.mxu0 0.0
        %3672 = vmatprep.subr.mxu0 0.0
        %3673 = vmatpush1.msra.mxu0 0.0
        %3674 = vmatprep.subr.mxu0 0.0
        %3675 = vmatpush1.msra.mxu0 0.0
        %3676 = vmatprep.subr.mxu0 0.0
        %3677 = vmatpush1.msra.mxu0 0.0
        %3678 = vmatprep.subr.mxu0 0.0
        %3679 = vmatpush1.msra.mxu0 0.0
        %3680 = vmatprep.subr.mxu0 0.0
        %3681 = vmatpush1.msra.mxu0 0.0
        %3682 = vmatprep.subr.mxu0 0.0
        %3683 = vmatpush1.msra.mxu0 0.0
        %3684 = vmatprep.subr.mxu0 0.0
        %3685 = vmatpush1.msra.mxu0 0.0
        %3686 = vmatprep.subr.mxu0 0.0
        %3687 = vmatpush1.msra.mxu0 0.0
        %3688 = vmatprep.subr.mxu0 0.0
        %3689 = vmatpush1.msra.mxu0 0.0
        %3690 = vmatprep.subr.mxu0 0.0
        %3691 = vmatpush1.msra.mxu0 0.0
        %3692 = vmatprep.subr.mxu0 0.0
        %3693 = vmatpush1.msra.mxu0 0.0
        %3694 = vmatprep.subr.mxu0 0.0
        %3695 = vmatpush1.msra.mxu0 0.0
        %3696 = vmatprep.subr.mxu0 0.0
        %3697 = vmatpush1.msra.mxu0 0.0
        %3698 = vmatprep.subr.mxu0 0.0
        %3699 = vmatpush1.msra.mxu0 0.0
        %3700 = vmatprep.subr.mxu0 0.0
        %3701 = vmatpush1.msra.mxu0 0.0
        %3702 = vmatprep.mubr.f32.mxu0 0.0
        %3703 = vmatmul.mubr.f32.gmra.mrb[0].mxu0 %v3543
        %v3704 = vpop.f32.mrb[0].mxu0
        %v3705 = vadd.f32 0.0, %v3704
        %v3706 = vpop.f32.mrb[0].mxu0
        %v3707 = vadd.f32 0.0, %v3706
        %3708 = vmatprep.mubr.f32.mxu0 0.0
        %3709 = vmatmul.mubr.f32.gmra.mrb[0].mxu0 %v3546
        %v3710 = vpop.f32.mrb[0].mxu0
        %v3711 = vadd.f32 0.0, %v3710
        %v3712 = vpop.f32.mrb[0].mxu0
        %v3713 = vadd.f32 0.0, %v3712
        %3714 = vdwg.mxu0
        %3723 = vrot.lane.b32.xlu0 %v3628, 112
        %v3724 = vpop.permute.xlu0 %3723
        %3725 = vrot.lane.b32.xlu0 %v3630, 112
        %v3726 = vpop.permute.xlu0 %3725
        %3727 = vrot.lane.b32.xlu0 %v3705, 112
        %v3728 = vpop.permute.xlu0 %3727
        %3729 = vrot.lane.b32.xlu0 %v3707, 112
        %v3730 = vpop.permute.xlu0 %3729
        %3731 = vrot.lane.b32.xlu0 %v3634, 112
        %v3732 = vpop.permute.xlu0 %3731
        %3733 = vrot.lane.b32.xlu0 %v3636, 112
        %v3734 = vpop.permute.xlu0 %3733
        %3735 = vrot.lane.b32.xlu0 %v3711, 112
        %v3736 = vpop.permute.xlu0 %3735
        %3737 = vrot.lane.b32.xlu0 %v3713, 112
        %v3738 = vpop.permute.xlu0 %3737
        %vm3739 = vcmask 916480
        %v3740 = vsel %vm3739, %v3724, %v3726
        %v3741 = vsel %vm3739, %v3726, %v3728
        %v3742 = vsel %vm3739, %v3728, %v3730
        %v3743 = vsel %vm3739, %v3732, %v3734
        %v3744 = vsel %vm3739, %v3734, %v3736
        %v3745 = vsel %vm3739, %v3736, %v3738
        %v3754 = vmax.f32 %v3628, %v3740
        %v3755 = vmax.f32 %v3630, %v3741
        %v3756 = vmax.f32 %v3705, %v3742
        %v3757 = vmax.f32 %v3707, %v3730
        %v3758 = vmax.f32 %v3634, %v3743
        %v3759 = vmax.f32 %v3636, %v3744
        %v3760 = vmax.f32 %v3711, %v3745
        %v3761 = vmax.f32 %v3713, %v3738
        %v3762 = vld [vmem:[%s8] sm:$0xff]
        %v3763 = vld [vmem:[%s8 + $0x8] sm:$0xff]
        %v3764 = vld [vmem:[%s8 + $0x10] sm:$0xff]
        %v3765 = vld [vmem:[%s8 + $0x18] sm:$0xff]
        %v3766 = vld [vmem:[%s8 + $0x20] sm:$0xff]
        %v3767 = vld [vmem:[%s8 + $0x28] sm:$0xff]
        %v3768 = vld [vmem:[%s8 + $0x30] sm:$0xff]
        %v3769 = vld [vmem:[%s8 + $0x38] sm:$0xff]
        %v3770 = vld [vmem:[%s8 + $0x40] sm:$0xff]
        %v3771 = vld [vmem:[%s8 + $0x48] sm:$0xff]
        %v3772 = vld [vmem:[%s8 + $0x50] sm:$0xff]
        %v3773 = vld [vmem:[%s8 + $0x58] sm:$0xff]
        %v3774 = vld [vmem:[%s8 + $0x60] sm:$0xff]
        %v3775 = vld [vmem:[%s8 + $0x68] sm:$0xff]
        %v3776 = vld [vmem:[%s8 + $0x70] sm:$0xff]
        %v3777 = vld [vmem:[%s8 + $0x78] sm:$0xff]
        %v3778 = vld [vmem:[%s8 + $0x80] sm:$0xff]
        %v3779 = vld [vmem:[%s8 + $0x88] sm:$0xff]
        %v3780 = vld [vmem:[%s8 + $0x90] sm:$0xff]
        %v3781 = vld [vmem:[%s8 + $0x98] sm:$0xff]
        %v3782 = vld [vmem:[%s8 + $0xa0] sm:$0xff]
        %v3783 = vld [vmem:[%s8 + $0xa8] sm:$0xff]
        %v3784 = vld [vmem:[%s8 + $0xb0] sm:$0xff]
        %v3785 = vld [vmem:[%s8 + $0xb8] sm:$0xff]
        %v3786 = vld [vmem:[%s8 + $0xc0] sm:$0xff]
        %v3787 = vld [vmem:[%s8 + $0xc8] sm:$0xff]
        %v3788 = vld [vmem:[%s8 + $0xd0] sm:$0xff]
        %v3789 = vld [vmem:[%s8 + $0xd8] sm:$0xff]
        %v3790 = vld [vmem:[%s8 + $0xe0] sm:$0xff]
        %v3791 = vld [vmem:[%s8 + $0xe8] sm:$0xff]
        %v3792 = vld [vmem:[%s8 + $0xf0] sm:$0xff]
        %v3793 = vld [vmem:[%s8 + $0xf8] sm:$0xff]
        %v3794 = vld [vmem:[%s8 + $0x100] sm:$0xff]
        %v3795 = vld [vmem:[%s8 + $0x108] sm:$0xff]
        %v3796 = vld [vmem:[%s8 + $0x110] sm:$0xff]
        %v3797 = vld [vmem:[%s8 + $0x118] sm:$0xff]
        %v3798 = vld [vmem:[%s8 + $0x120] sm:$0xff]
        %v3799 = vld [vmem:[%s8 + $0x128] sm:$0xff]
        %v3800 = vld [vmem:[%s8 + $0x130] sm:$0xff]
        %v3801 = vld [vmem:[%s8 + $0x138] sm:$0xff]
        %v3802 = vld [vmem:[%s8 + $0x140] sm:$0xff]
        %v3803 = vld [vmem:[%s8 + $0x148] sm:$0xff]
        %v3804 = vld [vmem:[%s8 + $0x150] sm:$0xff]
        %v3805 = vld [vmem:[%s8 + $0x158] sm:$0xff]
        %v3806 = vld [vmem:[%s8 + $0x160] sm:$0xff]
        %v3807 = vld [vmem:[%s8 + $0x168] sm:$0xff]
        %v3808 = vld [vmem:[%s8 + $0x170] sm:$0xff]
        %v3809 = vld [vmem:[%s8 + $0x178] sm:$0xff]
        %v3810 = vld [vmem:[%s8 + $0x180] sm:$0xff]
        %v3811 = vld [vmem:[%s8 + $0x188] sm:$0xff]
        %v3812 = vld [vmem:[%s8 + $0x190] sm:$0xff]
        %v3813 = vld [vmem:[%s8 + $0x198] sm:$0xff]
        %v3814 = vld [vmem:[%s8 + $0x1a0] sm:$0xff]
        %v3815 = vld [vmem:[%s8 + $0x1a8] sm:$0xff]
        %v3816 = vld [vmem:[%s8 + $0x1b0] sm:$0xff]
        %v3817 = vld [vmem:[%s8 + $0x1b8] sm:$0xff]
        %v3818 = vld [vmem:[%s8 + $0x1c0] sm:$0xff]
        %v3819 = vld [vmem:[%s8 + $0x1c8] sm:$0xff]
        %v3820 = vld [vmem:[%s8 + $0x1d0] sm:$0xff]
        %v3821 = vld [vmem:[%s8 + $0x1d8] sm:$0xff]
        %v3822 = vld [vmem:[%s8 + $0x1e0] sm:$0xff]
        %v3823 = vld [vmem:[%s8 + $0x1e8] sm:$0xff]
        %v3824 = vld [vmem:[%s8 + $0x1f0] sm:$0xff]
        %v3825 = vld [vmem:[%s8 + $0x1f8] sm:$0xff]
        %v3826 = vld [vmem:[%s8 + $0x200] sm:$0xff]
        %v3827 = vld [vmem:[%s8 + $0x208] sm:$0xff]
        %v3828 = vld [vmem:[%s8 + $0x210] sm:$0xff]
        %v3829 = vld [vmem:[%s8 + $0x218] sm:$0xff]
        %v3830 = vld [vmem:[%s8 + $0x220] sm:$0xff]
        %v3831 = vld [vmem:[%s8 + $0x228] sm:$0xff]
        %v3832 = vld [vmem:[%s8 + $0x230] sm:$0xff]
        %v3833 = vld [vmem:[%s8 + $0x238] sm:$0xff]
        %v3834 = vld [vmem:[%s8 + $0x240] sm:$0xff]
        %v3835 = vld [vmem:[%s8 + $0x248] sm:$0xff]
        %v3836 = vld [vmem:[%s8 + $0x250] sm:$0xff]
        %v3837 = vld [vmem:[%s8 + $0x258] sm:$0xff]
        %v3838 = vld [vmem:[%s8 + $0x260] sm:$0xff]
        %v3839 = vld [vmem:[%s8 + $0x268] sm:$0xff]
        %v3840 = vld [vmem:[%s8 + $0x270] sm:$0xff]
        %v3841 = vld [vmem:[%s8 + $0x278] sm:$0xff]
        %v3842 = vld [vmem:[%s8 + $0x280] sm:$0xff]
        %v3843 = vld [vmem:[%s8 + $0x288] sm:$0xff]
        %v3844 = vld [vmem:[%s8 + $0x290] sm:$0xff]
        %v3845 = vld [vmem:[%s8 + $0x298] sm:$0xff]
        %v3846 = vld [vmem:[%s8 + $0x2a0] sm:$0xff]
        %v3847 = vld [vmem:[%s8 + $0x2a8] sm:$0xff]
        %v3848 = vld [vmem:[%s8 + $0x2b0] sm:$0xff]
        %v3849 = vld [vmem:[%s8 + $0x2b8] sm:$0xff]
        %v3850 = vld [vmem:[%s8 + $0x2c0] sm:$0xff]
        %v3851 = vld [vmem:[%s8 + $0x2c8] sm:$0xff]
        %v3852 = vld [vmem:[%s8 + $0x2d0] sm:$0xff]
        %v3853 = vld [vmem:[%s8 + $0x2d8] sm:$0xff]
        %v3854 = vld [vmem:[%s8 + $0x2e0] sm:$0xff]
        %v3855 = vld [vmem:[%s8 + $0x2e8] sm:$0xff]
        %v3856 = vld [vmem:[%s8 + $0x2f0] sm:$0xff]
        %v3857 = vld [vmem:[%s8 + $0x2f8] sm:$0xff]
        %v3858 = vld [vmem:[%s8 + $0x300] sm:$0xff]
        %v3859 = vld [vmem:[%s8 + $0x308] sm:$0xff]
        %v3860 = vld [vmem:[%s8 + $0x310] sm:$0xff]
        %v3861 = vld [vmem:[%s8 + $0x318] sm:$0xff]
        %v3862 = vld [vmem:[%s8 + $0x320] sm:$0xff]
        %v3863 = vld [vmem:[%s8 + $0x328] sm:$0xff]
        %v3864 = vld [vmem:[%s8 + $0x330] sm:$0xff]
        %v3865 = vld [vmem:[%s8 + $0x338] sm:$0xff]
        %v3866 = vld [vmem:[%s8 + $0x340] sm:$0xff]
        %v3867 = vld [vmem:[%s8 + $0x348] sm:$0xff]
        %v3868 = vld [vmem:[%s8 + $0x350] sm:$0xff]
        %v3869 = vld [vmem:[%s8 + $0x358] sm:$0xff]
        %v3870 = vld [vmem:[%s8 + $0x360] sm:$0xff]
        %v3871 = vld [vmem:[%s8 + $0x368] sm:$0xff]
        %v3872 = vld [vmem:[%s8 + $0x370] sm:$0xff]
        %v3873 = vld [vmem:[%s8 + $0x378] sm:$0xff]
        %v3875 = vsel %vm735, %v3757, 0
        %v3878 = vsel %vm735, %v3761, 0
        %3880 = vmatprep.subr.mxu0 %v3763
        %3881 = vmatpush1.msra.mxu0 %v3762
        %3882 = vmatprep.subr.mxu0 %v3765
        %3883 = vmatpush1.msra.mxu0 %v3764
        %3884 = vmatprep.subr.mxu0 %v3767
        %3885 = vmatpush1.msra.mxu0 %v3766
        %3886 = vmatprep.subr.mxu0 %v3769
        %3887 = vmatpush1.msra.mxu0 %v3768
        %3888 = vmatprep.subr.mxu0 %v3771
        %3889 = vmatpush1.msra.mxu0 %v3770
        %3890 = vmatprep.subr.mxu0 %v3773
        %3891 = vmatpush1.msra.mxu0 %v3772
        %3892 = vmatprep.subr.mxu0 %v3775
        %3893 = vmatpush1.msra.mxu0 %v3774
        %3894 = vmatprep.subr.mxu0 %v3777
        %3895 = vmatpush1.msra.mxu0 %v3776
        %3896 = vmatprep.subr.mxu0 %v3779
        %3897 = vmatpush1.msra.mxu0 %v3778
        %3898 = vmatprep.subr.mxu0 %v3781
        %3899 = vmatpush1.msra.mxu0 %v3780
        %3900 = vmatprep.subr.mxu0 %v3783
        %3901 = vmatpush1.msra.mxu0 %v3782
        %3902 = vmatprep.subr.mxu0 %v3785
        %3903 = vmatpush1.msra.mxu0 %v3784
        %3904 = vmatprep.subr.mxu0 %v3787
        %3905 = vmatpush1.msra.mxu0 %v3786
        %3906 = vmatprep.subr.mxu0 %v3789
        %3907 = vmatpush1.msra.mxu0 %v3788
        %3908 = vmatprep.subr.mxu0 %v3791
        %3909 = vmatpush1.msra.mxu0 %v3790
        %3910 = vmatprep.subr.mxu0 %v3793
        %3911 = vmatpush1.msra.mxu0 %v3792
        %3912 = vmatprep.subr.mxu0 %v3795
        %3913 = vmatpush1.msra.mxu0 %v3794
        %3914 = vmatprep.subr.mxu0 %v3797
        %3915 = vmatpush1.msra.mxu0 %v3796
        %3916 = vmatprep.subr.mxu0 %v3799
        %3917 = vmatpush1.msra.mxu0 %v3798
        %3918 = vmatprep.subr.mxu0 %v3801
        %3919 = vmatpush1.msra.mxu0 %v3800
        %3920 = vmatprep.subr.mxu0 %v3803
        %3921 = vmatpush1.msra.mxu0 %v3802
        %3922 = vmatprep.subr.mxu0 %v3805
        %3923 = vmatpush1.msra.mxu0 %v3804
        %3924 = vmatprep.subr.mxu0 %v3807
        %3925 = vmatpush1.msra.mxu0 %v3806
        %3926 = vmatprep.subr.mxu0 %v3809
        %3927 = vmatpush1.msra.mxu0 %v3808
        %3928 = vmatprep.subr.mxu0 %v3811
        %3929 = vmatpush1.msra.mxu0 %v3810
        %3930 = vmatprep.subr.mxu0 %v3813
        %3931 = vmatpush1.msra.mxu0 %v3812
        %3932 = vmatprep.subr.mxu0 %v3815
        %3933 = vmatpush1.msra.mxu0 %v3814
        %3934 = vmatprep.subr.mxu0 %v3817
        %3935 = vmatpush1.msra.mxu0 %v3816
        %3936 = vmatprep.subr.mxu0 %v3819
        %3937 = vmatpush1.msra.mxu0 %v3818
        %3938 = vmatprep.subr.mxu0 %v3821
        %3939 = vmatpush1.msra.mxu0 %v3820
        %3940 = vmatprep.subr.mxu0 %v3823
        %3941 = vmatpush1.msra.mxu0 %v3822
        %3942 = vmatprep.subr.mxu0 %v3825
        %3943 = vmatpush1.msra.mxu0 %v3824
        %3944 = vmatprep.mubr.f32.mxu0 %v3755
        %3945 = vmatmul.mubr.f32.gmra.mrb[0].mxu0 %v3754
        %v3946 = vpop.f32.mrb[0].mxu0
        %v3947 = vadd.f32 0.0, %v3946
        %v3948 = vpop.f32.mrb[0].mxu0
        %v3949 = vadd.f32 0.0, %v3948
        %3950 = vmatprep.mubr.f32.mxu0 %v3759
        %3951 = vmatmul.mubr.f32.gmra.mrb[0].mxu0 %v3758
        %v3952 = vpop.f32.mrb[0].mxu0
        %v3953 = vadd.f32 0.0, %v3952
        %v3954 = vpop.f32.mrb[0].mxu0
        %v3955 = vadd.f32 0.0, %v3954
        %3956 = vdwg.mxu0
        %3957 = vmatprep.subr.mxu0 %v3827
        %3958 = vmatpush1.msra.mxu0 %v3826
        %3959 = vmatprep.subr.mxu0 %v3829
        %3960 = vmatpush1.msra.mxu0 %v3828
        %3961 = vmatprep.subr.mxu0 %v3831
        %3962 = vmatpush1.msra.mxu0 %v3830
        %3963 = vmatprep.subr.mxu0 %v3833
        %3964 = vmatpush1.msra.mxu0 %v3832
        %3965 = vmatprep.subr.mxu0 %v3835
        %3966 = vmatpush1.msra.mxu0 %v3834
        %3967 = vmatprep.subr.mxu0 %v3837
        %3968 = vmatpush1.msra.mxu0 %v3836
        %3969 = vmatprep.subr.mxu0 %v3839
        %3970 = vmatpush1.msra.mxu0 %v3838
        %3971 = vmatprep.subr.mxu0 %v3841
        %3972 = vmatpush1.msra.mxu0 %v3840
        %3973 = vmatprep.subr.mxu0 %v3843
        %3974 = vmatpush1.msra.mxu0 %v3842
        %3975 = vmatprep.subr.mxu0 %v3845
        %3976 = vmatpush1.msra.mxu0 %v3844
        %3977 = vmatprep.subr.mxu0 %v3847
        %3978 = vmatpush1.msra.mxu0 %v3846
        %3979 = vmatprep.subr.mxu0 %v3849
        %3980 = vmatpush1.msra.mxu0 %v3848
        %3981 = vmatprep.subr.mxu0 %v3851
        %3982 = vmatpush1.msra.mxu0 %v3850
        %3983 = vmatprep.subr.mxu0 %v3853
        %3984 = vmatpush1.msra.mxu0 %v3852
        %3985 = vmatprep.subr.mxu0 %v3855
        %3986 = vmatpush1.msra.mxu0 %v3854
        %3987 = vmatprep.subr.mxu0 %v3857
        %3988 = vmatpush1.msra.mxu0 %v3856
        %3989 = vmatprep.subr.mxu0 %v3859
        %3990 = vmatpush1.msra.mxu0 %v3858
        %3991 = vmatprep.subr.mxu0 %v3861
        %3992 = vmatpush1.msra.mxu0 %v3860
        %3993 = vmatprep.subr.mxu0 %v3863
        %3994 = vmatpush1.msra.mxu0 %v3862
        %3995 = vmatprep.subr.mxu0 %v3865
        %3996 = vmatpush1.msra.mxu0 %v3864
        %3997 = vmatprep.subr.mxu0 %v3867
        %3998 = vmatpush1.msra.mxu0 %v3866
        %3999 = vmatprep.subr.mxu0 %v3869
        %4000 = vmatpush1.msra.mxu0 %v3868
        %4001 = vmatprep.subr.mxu0 %v3871
        %4002 = vmatpush1.msra.mxu0 %v3870
        %4003 = vmatprep.subr.mxu0 %v3873
        %4004 = vmatpush1.msra.mxu0 %v3872
        %4005 = vmatprep.subr.mxu0 0.0
        %4006 = vmatpush1.msra.mxu0 0.0
        %4007 = vmatprep.subr.mxu0 0.0
        %4008 = vmatpush1.msra.mxu0 0.0
        %4009 = vmatprep.subr.mxu0 0.0
        %4010 = vmatpush1.msra.mxu0 0.0
        %4011 = vmatprep.subr.mxu0 0.0
        %4012 = vmatpush1.msra.mxu0 0.0
        %4013 = vmatprep.subr.mxu0 0.0
        %4014 = vmatpush1.msra.mxu0 0.0
        %4015 = vmatprep.subr.mxu0 0.0
        %4016 = vmatpush1.msra.mxu0 0.0
        %4017 = vmatprep.subr.mxu0 0.0
        %4018 = vmatpush1.msra.mxu0 0.0
        %4019 = vmatprep.subr.mxu0 0.0
        %4020 = vmatpush1.msra.mxu0 0.0
        %4021 = vmatprep.mubr.f32.mxu0 %v3875
        %4022 = vmatmul.mubr.f32.gmra.mrb[0].mxu0 %v3756
        %v4023 = vpop.f32.mrb[0].mxu0
        %v4024 = vadd.f32 %v3947, %v4023
        %v4025 = vpop.f32.mrb[0].mxu0
        %v4026 = vadd.f32 %v3949, %v4025
        %4027 = vmatprep.mubr.f32.mxu0 %v3878
        %4028 = vmatmul.mubr.f32.gmra.mrb[0].mxu0 %v3760
        %v4029 = vpop.f32.mrb[0].mxu0
        %v4030 = vadd.f32 %v3953, %v4029
        %v4031 = vpop.f32.mrb[0].mxu0
        %v4032 = vadd.f32 %v3955, %v4031
        %4033 = vdwg.mxu0
        %v4034 = vld [vmem:[%s9] sm:$0xff]
        %v4035 = vld [vmem:[%s9 + $0x8] sm:$0xff]
        %v4036 = vld [vmem:[%s9 + $0x10] sm:$0xff]
        %v4037 = vld [vmem:[%s9 + $0x18] sm:$0xff]
        %v4038 = vld [vmem:[%s9 + $0x20] sm:$0xff]
        %v4039 = vld [vmem:[%s9 + $0x28] sm:$0xff]
        %v4040 = vld [vmem:[%s9 + $0x30] sm:$0xff]
        %v4041 = vld [vmem:[%s9 + $0x38] sm:$0xff]
        %v4042 = vld [vmem:[%s9 + $0x40] sm:$0xff]
        %v4043 = vld [vmem:[%s9 + $0x48] sm:$0xff]
        %v4044 = vld [vmem:[%s9 + $0x50] sm:$0xff]
        %v4045 = vld [vmem:[%s9 + $0x58] sm:$0xff]
        %v4046 = vld [vmem:[%s9 + $0x60] sm:$0xff]
        %v4047 = vld [vmem:[%s9 + $0x68] sm:$0xff]
        %v4048 = vld [vmem:[%s9 + $0x70] sm:$0xff]
        %v4049 = vld [vmem:[%s9 + $0x78] sm:$0xff]
        %v4050 = vld [vmem:[%s9 + $0x80] sm:$0xff]
        %v4051 = vld [vmem:[%s9 + $0x88] sm:$0xff]
        %v4052 = vld [vmem:[%s9 + $0x90] sm:$0xff]
        %v4053 = vld [vmem:[%s9 + $0x98] sm:$0xff]
        %v4054 = vld [vmem:[%s9 + $0xa0] sm:$0xff]
        %v4055 = vld [vmem:[%s9 + $0xa8] sm:$0xff]
        %v4056 = vld [vmem:[%s9 + $0xb0] sm:$0xff]
        %v4057 = vld [vmem:[%s9 + $0xb8] sm:$0xff]
        %v4058 = vld [vmem:[%s9 + $0xc0] sm:$0xff]
        %v4059 = vld [vmem:[%s9 + $0xc8] sm:$0xff]
        %v4060 = vld [vmem:[%s9 + $0xd0] sm:$0xff]
        %v4061 = vld [vmem:[%s9 + $0xd8] sm:$0xff]
        %v4062 = vld [vmem:[%s9 + $0xe0] sm:$0xff]
        %v4063 = vld [vmem:[%s9 + $0xe8] sm:$0xff]
        %v4064 = vld [vmem:[%s9 + $0xf0] sm:$0xff]
        %v4065 = vld [vmem:[%s9 + $0xf8] sm:$0xff]
        %v4066 = vld [vmem:[%s9 + $0x100] sm:$0xff]
        %v4067 = vld [vmem:[%s9 + $0x108] sm:$0xff]
        %v4068 = vld [vmem:[%s9 + $0x110] sm:$0xff]
        %v4069 = vld [vmem:[%s9 + $0x118] sm:$0xff]
        %v4070 = vld [vmem:[%s9 + $0x120] sm:$0xff]
        %v4071 = vld [vmem:[%s9 + $0x128] sm:$0xff]
        %v4072 = vld [vmem:[%s9 + $0x130] sm:$0xff]
        %v4073 = vld [vmem:[%s9 + $0x138] sm:$0xff]
        %v4074 = vld [vmem:[%s9 + $0x140] sm:$0xff]
        %v4075 = vld [vmem:[%s9 + $0x148] sm:$0xff]
        %v4076 = vld [vmem:[%s9 + $0x150] sm:$0xff]
        %v4077 = vld [vmem:[%s9 + $0x158] sm:$0xff]
        %v4078 = vld [vmem:[%s9 + $0x160] sm:$0xff]
        %v4079 = vld [vmem:[%s9 + $0x168] sm:$0xff]
        %v4080 = vld [vmem:[%s9 + $0x170] sm:$0xff]
        %v4081 = vld [vmem:[%s9 + $0x178] sm:$0xff]
        %v4082 = vld [vmem:[%s9 + $0x180] sm:$0xff]
        %v4083 = vld [vmem:[%s9 + $0x188] sm:$0xff]
        %v4084 = vld [vmem:[%s9 + $0x190] sm:$0xff]
        %v4085 = vld [vmem:[%s9 + $0x198] sm:$0xff]
        %v4086 = vld [vmem:[%s9 + $0x1a0] sm:$0xff]
        %v4087 = vld [vmem:[%s9 + $0x1a8] sm:$0xff]
        %v4088 = vld [vmem:[%s9 + $0x1b0] sm:$0xff]
        %v4089 = vld [vmem:[%s9 + $0x1b8] sm:$0xff]
        %v4090 = vld [vmem:[%s9 + $0x1c0] sm:$0xff]
        %v4091 = vld [vmem:[%s9 + $0x1c8] sm:$0xff]
        %v4092 = vld [vmem:[%s9 + $0x1d0] sm:$0xff]
        %v4093 = vld [vmem:[%s9 + $0x1d8] sm:$0xff]
        %v4094 = vld [vmem:[%s9 + $0x1e0] sm:$0xff]
        %v4095 = vld [vmem:[%s9 + $0x1e8] sm:$0xff]
        %v4096 = vld [vmem:[%s9 + $0x1f0] sm:$0xff]
        %v4097 = vld [vmem:[%s9 + $0x1f8] sm:$0xff]
        %v4098 = vld [vmem:[%s9 + $0x200] sm:$0xff]
        %v4099 = vld [vmem:[%s9 + $0x208] sm:$0xff]
        %v4100 = vld [vmem:[%s9 + $0x210] sm:$0xff]
        %v4101 = vld [vmem:[%s9 + $0x218] sm:$0xff]
        %v4102 = vld [vmem:[%s9 + $0x220] sm:$0xff]
        %v4103 = vld [vmem:[%s9 + $0x228] sm:$0xff]
        %v4104 = vld [vmem:[%s9 + $0x230] sm:$0xff]
        %v4105 = vld [vmem:[%s9 + $0x238] sm:$0xff]
        %v4106 = vld [vmem:[%s9 + $0x240] sm:$0xff]
        %v4107 = vld [vmem:[%s9 + $0x248] sm:$0xff]
        %v4108 = vld [vmem:[%s9 + $0x250] sm:$0xff]
        %v4109 = vld [vmem:[%s9 + $0x258] sm:$0xff]
        %v4110 = vld [vmem:[%s9 + $0x260] sm:$0xff]
        %v4111 = vld [vmem:[%s9 + $0x268] sm:$0xff]
        %v4112 = vld [vmem:[%s9 + $0x270] sm:$0xff]
        %v4113 = vld [vmem:[%s9 + $0x278] sm:$0xff]
        %v4114 = vld [vmem:[%s9 + $0x280] sm:$0xff]
        %v4115 = vld [vmem:[%s9 + $0x288] sm:$0xff]
        %v4116 = vld [vmem:[%s9 + $0x290] sm:$0xff]
        %v4117 = vld [vmem:[%s9 + $0x298] sm:$0xff]
        %s4118 = scalar_lea.vmem %s9, 672
        %v4119 = vld [vmem:[%s4118] sm:$0xff]
        %v4120 = vld [vmem:[%s4118 + $0x8] sm:$0xff]
        %v4121 = vld [vmem:[%s4118 + $0x10] sm:$0xff]
        %v4122 = vld [vmem:[%s4118 + $0x18] sm:$0xff]
        %v4123 = vld [vmem:[%s4118 + $0x20] sm:$0xff]
        %v4124 = vld [vmem:[%s4118 + $0x28] sm:$0xff]
        %v4125 = vld [vmem:[%s4118 + $0x30] sm:$0xff]
        %v4126 = vld [vmem:[%s4118 + $0x38] sm:$0xff]
        %v4127 = vld [vmem:[%s4118 + $0x40] sm:$0xff]
        %v4128 = vld [vmem:[%s4118 + $0x48] sm:$0xff]
        %v4129 = vld [vmem:[%s4118 + $0x50] sm:$0xff]
        %v4130 = vld [vmem:[%s4118 + $0x58] sm:$0xff]
        %v4131 = vld [vmem:[%s4118 + $0x60] sm:$0xff]
        %v4132 = vld [vmem:[%s4118 + $0x68] sm:$0xff]
        %v4133 = vld [vmem:[%s4118 + $0x70] sm:$0xff]
        %v4134 = vld [vmem:[%s4118 + $0x78] sm:$0xff]
        %v4135 = vld [vmem:[%s4118 + $0x80] sm:$0xff]
        %v4136 = vld [vmem:[%s4118 + $0x88] sm:$0xff]
        %v4137 = vld [vmem:[%s4118 + $0x90] sm:$0xff]
        %v4138 = vld [vmem:[%s4118 + $0x98] sm:$0xff]
        %v4139 = vld [vmem:[%s4118 + $0xa0] sm:$0xff]
        %v4140 = vld [vmem:[%s4118 + $0xa8] sm:$0xff]
        %v4141 = vld [vmem:[%s4118 + $0xb0] sm:$0xff]
        %v4142 = vld [vmem:[%s4118 + $0xb8] sm:$0xff]
        %v4143 = vld [vmem:[%s4118 + $0xc0] sm:$0xff]
        %v4144 = vld [vmem:[%s4118 + $0xc8] sm:$0xff]
        %v4145 = vld [vmem:[%s4118 + $0xd0] sm:$0xff]
        %v4146 = vld [vmem:[%s4118 + $0xd8] sm:$0xff]
        %v4147 = vld [vmem:[%s4118 + $0xe0] sm:$0xff]
        %v4148 = vld [vmem:[%s4118 + $0xe8] sm:$0xff]
        %v4149 = vld [vmem:[%s4118 + $0xf0] sm:$0xff]
        %v4150 = vld [vmem:[%s4118 + $0xf8] sm:$0xff]
        %v4151 = vld [vmem:[%s4118 + $0x100] sm:$0xff]
        %v4152 = vld [vmem:[%s4118 + $0x108] sm:$0xff]
        %v4153 = vld [vmem:[%s4118 + $0x110] sm:$0xff]
        %v4154 = vld [vmem:[%s4118 + $0x118] sm:$0xff]
        %v4155 = vld [vmem:[%s4118 + $0x120] sm:$0xff]
        %v4156 = vld [vmem:[%s4118 + $0x128] sm:$0xff]
        %v4157 = vld [vmem:[%s4118 + $0x130] sm:$0xff]
        %v4158 = vld [vmem:[%s4118 + $0x138] sm:$0xff]
        %v4159 = vld [vmem:[%s4118 + $0x140] sm:$0xff]
        %v4160 = vld [vmem:[%s4118 + $0x148] sm:$0xff]
        %v4161 = vld [vmem:[%s4118 + $0x150] sm:$0xff]
        %v4162 = vld [vmem:[%s4118 + $0x158] sm:$0xff]
        %v4163 = vld [vmem:[%s4118 + $0x160] sm:$0xff]
        %v4164 = vld [vmem:[%s4118 + $0x168] sm:$0xff]
        %v4165 = vld [vmem:[%s4118 + $0x170] sm:$0xff]
        %v4166 = vld [vmem:[%s4118 + $0x178] sm:$0xff]
        %v4167 = vld [vmem:[%s4118 + $0x180] sm:$0xff]
        %v4168 = vld [vmem:[%s4118 + $0x188] sm:$0xff]
        %v4169 = vld [vmem:[%s4118 + $0x190] sm:$0xff]
        %v4170 = vld [vmem:[%s4118 + $0x198] sm:$0xff]
        %v4171 = vld [vmem:[%s4118 + $0x1a0] sm:$0xff]
        %v4172 = vld [vmem:[%s4118 + $0x1a8] sm:$0xff]
        %v4173 = vld [vmem:[%s4118 + $0x1b0] sm:$0xff]
        %v4174 = vld [vmem:[%s4118 + $0x1b8] sm:$0xff]
        %v4175 = vld [vmem:[%s4118 + $0x1c0] sm:$0xff]
        %v4176 = vld [vmem:[%s4118 + $0x1c8] sm:$0xff]
        %v4177 = vld [vmem:[%s4118 + $0x1d0] sm:$0xff]
        %v4178 = vld [vmem:[%s4118 + $0x1d8] sm:$0xff]
        %v4179 = vld [vmem:[%s4118 + $0x1e0] sm:$0xff]
        %v4180 = vld [vmem:[%s4118 + $0x1e8] sm:$0xff]
        %v4181 = vld [vmem:[%s4118 + $0x1f0] sm:$0xff]
        %v4182 = vld [vmem:[%s4118 + $0x1f8] sm:$0xff]
        %v4183 = vld [vmem:[%s4118 + $0x200] sm:$0xff]
        %v4184 = vld [vmem:[%s4118 + $0x208] sm:$0xff]
        %v4185 = vld [vmem:[%s4118 + $0x210] sm:$0xff]
        %v4186 = vld [vmem:[%s4118 + $0x218] sm:$0xff]
        %v4187 = vld [vmem:[%s4118 + $0x220] sm:$0xff]
        %v4188 = vld [vmem:[%s4118 + $0x228] sm:$0xff]
        %v4189 = vld [vmem:[%s4118 + $0x230] sm:$0xff]
        %v4190 = vld [vmem:[%s4118 + $0x238] sm:$0xff]
        %v4191 = vld [vmem:[%s4118 + $0x240] sm:$0xff]
        %v4192 = vld [vmem:[%s4118 + $0x248] sm:$0xff]
        %v4193 = vld [vmem:[%s4118 + $0x250] sm:$0xff]
        %v4194 = vld [vmem:[%s4118 + $0x258] sm:$0xff]
        %v4195 = vld [vmem:[%s4118 + $0x260] sm:$0xff]
        %v4196 = vld [vmem:[%s4118 + $0x268] sm:$0xff]
        %v4197 = vld [vmem:[%s4118 + $0x270] sm:$0xff]
        %v4198 = vld [vmem:[%s4118 + $0x278] sm:$0xff]
        %v4199 = vld [vmem:[%s4118 + $0x280] sm:$0xff]
        %v4200 = vld [vmem:[%s4118 + $0x288] sm:$0xff]
        %v4201 = vld [vmem:[%s4118 + $0x290] sm:$0xff]
        %v4202 = vld [vmem:[%s4118 + $0x298] sm:$0xff]
        %v4207 = vrot.slane %v4024, 1
        %v4208 = vrot.slane %v4030, 1
        %v4209 = vsel %vm1677, %v4207, %v4208
        %v4210 = vrot.slane %v4026, 1
        %v4211 = vrot.slane %v4032, 1
        %v4212 = vsel %vm1677, %v4210, %v4211
        %vm4215 = vcmask 785408
        %v4216 = vsel %vm4215, %v4212, 0
        %v4218 = vsel %vm4215, %v4211, 0
        %4220 = vmatprep.subr.mxu0 %v4120
        %4221 = vmatpush1.msra.mxu0 %v4119
        %4222 = vmatprep.subr.mxu0 %v4123
        %4223 = vmatpush1.msra.mxu0 %v4122
        %4224 = vmatprep.subr.mxu0 %v4126
        %4225 = vmatpush1.msra.mxu0 %v4125
        %4226 = vmatprep.subr.mxu0 %v4129
        %4227 = vmatpush1.msra.mxu0 %v4128
        %4228 = vmatprep.subr.mxu0 %v4132
        %4229 = vmatpush1.msra.mxu0 %v4131
        %4230 = vmatprep.subr.mxu0 %v4135
        %4231 = vmatpush1.msra.mxu0 %v4134
        %4232 = vmatprep.subr.mxu0 %v4138
        %4233 = vmatpush1.msra.mxu0 %v4137
        %4234 = vmatprep.subr.mxu0 %v4141
        %4235 = vmatpush1.msra.mxu0 %v4140
        %4236 = vmatprep.subr.mxu0 %v4144
        %4237 = vmatpush1.msra.mxu0 %v4143
        %4238 = vmatprep.subr.mxu0 %v4147
        %4239 = vmatpush1.msra.mxu0 %v4146
        %4240 = vmatprep.subr.mxu0 %v4150
        %4241 = vmatpush1.msra.mxu0 %v4149
        %4242 = vmatprep.subr.mxu0 %v4153
        %4243 = vmatpush1.msra.mxu0 %v4152
        %4244 = vmatprep.subr.mxu0 %v4156
        %4245 = vmatpush1.msra.mxu0 %v4155
        %4246 = vmatprep.subr.mxu0 %v4159
        %4247 = vmatpush1.msra.mxu0 %v4158
        %4248 = vmatprep.subr.mxu0 %v4162
        %4249 = vmatpush1.msra.mxu0 %v4161
        %4250 = vmatprep.subr.mxu0 %v4165
        %4251 = vmatpush1.msra.mxu0 %v4164
        %4252 = vmatprep.subr.mxu0 %v4168
        %4253 = vmatpush1.msra.mxu0 %v4167
        %4254 = vmatprep.subr.mxu0 %v4171
        %4255 = vmatpush1.msra.mxu0 %v4170
        %4256 = vmatprep.subr.mxu0 %v4174
        %4257 = vmatpush1.msra.mxu0 %v4173
        %4258 = vmatprep.subr.mxu0 %v4177
        %4259 = vmatpush1.msra.mxu0 %v4176
        %4260 = vmatprep.subr.mxu0 %v4180
        %4261 = vmatpush1.msra.mxu0 %v4179
        %4262 = vmatprep.subr.mxu0 %v4183
        %4263 = vmatpush1.msra.mxu0 %v4182
        %4264 = vmatprep.subr.mxu0 %v4186
        %4265 = vmatpush1.msra.mxu0 %v4185
        %4266 = vmatprep.subr.mxu0 %v4189
        %4267 = vmatpush1.msra.mxu0 %v4188
        %4268 = vmatprep.subr.mxu0 %v4192
        %4269 = vmatpush1.msra.mxu0 %v4191
        %4270 = vmatprep.subr.mxu0 %v4195
        %4271 = vmatpush1.msra.mxu0 %v4194
        %4272 = vmatprep.subr.mxu0 %v4198
        %4273 = vmatpush1.msra.mxu0 %v4197
        %4274 = vmatprep.subr.mxu0 %v4201
        %4275 = vmatpush1.msra.mxu0 %v4200
        %4276 = vmatprep.subr.mxu0 0.0
        %4277 = vmatpush1.msra.mxu0 0.0
        %4278 = vmatprep.subr.mxu0 0.0
        %4279 = vmatpush1.msra.mxu0 0.0
        %4280 = vmatprep.subr.mxu0 0.0
        %4281 = vmatpush1.msra.mxu0 0.0
        %4282 = vmatprep.subr.mxu0 0.0
        %4283 = vmatpush1.msra.mxu0 0.0
        %4284 = vmatprep.mubr.f32.mxu0 %v4216
        %4285 = vmatmul.mubr.f32.gmra.mrb[0].mxu0 %v4209
        %v4286 = vpop.f32.mrb[0].mxu0
        %v4287 = vadd.f32 0.0, %v4286
        %v4288 = vpop.f32.mrb[0].mxu0
        %v4289 = vadd.f32 0.0, %v4288
        %4290 = vmatprep.mubr.f32.mxu0 %v4218
        %4291 = vmatmul.mubr.f32.gmra.mrb[0].mxu0 %v4208
        %v4292 = vpop.f32.mrb[0].mxu0
        %v4293 = vadd.f32 0.0, %v4292
        %v4294 = vpop.f32.mrb[0].mxu0
        %v4295 = vadd.f32 0.0, %v4294
        %4296 = vdwg.mxu0
        %4297 = vmatprep.subr.mxu0 0.0
        %4298 = vmatpush1.msra.mxu0 %v4121
        %4299 = vmatprep.subr.mxu0 0.0
        %4300 = vmatpush1.msra.mxu0 %v4124
        %4301 = vmatprep.subr.mxu0 0.0
        %4302 = vmatpush1.msra.mxu0 %v4127
        %4303 = vmatprep.subr.mxu0 0.0
        %4304 = vmatpush1.msra.mxu0 %v4130
        %4305 = vmatprep.subr.mxu0 0.0
        %4306 = vmatpush1.msra.mxu0 %v4133
        %4307 = vmatprep.subr.mxu0 0.0
        %4308 = vmatpush1.msra.mxu0 %v4136
        %4309 = vmatprep.subr.mxu0 0.0
        %4310 = vmatpush1.msra.mxu0 %v4139
        %4311 = vmatprep.subr.mxu0 0.0
        %4312 = vmatpush1.msra.mxu0 %v4142
        %4313 = vmatprep.subr.mxu0 0.0
        %4314 = vmatpush1.msra.mxu0 %v4145
        %4315 = vmatprep.subr.mxu0 0.0
        %4316 = vmatpush1.msra.mxu0 %v4148
        %4317 = vmatprep.subr.mxu0 0.0
        %4318 = vmatpush1.msra.mxu0 %v4151
        %4319 = vmatprep.subr.mxu0 0.0
        %4320 = vmatpush1.msra.mxu0 %v4154
        %4321 = vmatprep.subr.mxu0 0.0
        %4322 = vmatpush1.msra.mxu0 %v4157
        %4323 = vmatprep.subr.mxu0 0.0
        %4324 = vmatpush1.msra.mxu0 %v4160
        %4325 = vmatprep.subr.mxu0 0.0
        %4326 = vmatpush1.msra.mxu0 %v4163
        %4327 = vmatprep.subr.mxu0 0.0
        %4328 = vmatpush1.msra.mxu0 %v4166
        %4329 = vmatprep.subr.mxu0 0.0
        %4330 = vmatpush1.msra.mxu0 %v4169
        %4331 = vmatprep.subr.mxu0 0.0
        %4332 = vmatpush1.msra.mxu0 %v4172
        %4333 = vmatprep.subr.mxu0 0.0
        %4334 = vmatpush1.msra.mxu0 %v4175
        %4335 = vmatprep.subr.mxu0 0.0
        %4336 = vmatpush1.msra.mxu0 %v4178
        %4337 = vmatprep.subr.mxu0 0.0
        %4338 = vmatpush1.msra.mxu0 %v4181
        %4339 = vmatprep.subr.mxu0 0.0
        %4340 = vmatpush1.msra.mxu0 %v4184
        %4341 = vmatprep.subr.mxu0 0.0
        %4342 = vmatpush1.msra.mxu0 %v4187
        %4343 = vmatprep.subr.mxu0 0.0
        %4344 = vmatpush1.msra.mxu0 %v4190
        %4345 = vmatprep.subr.mxu0 0.0
        %4346 = vmatpush1.msra.mxu0 %v4193
        %4347 = vmatprep.subr.mxu0 0.0
        %4348 = vmatpush1.msra.mxu0 %v4196
        %4349 = vmatprep.subr.mxu0 0.0
        %4350 = vmatpush1.msra.mxu0 %v4199
        %4351 = vmatprep.subr.mxu0 0.0
        %4352 = vmatpush1.msra.mxu0 %v4202
        %4353 = vmatprep.subr.mxu0 0.0
        %4354 = vmatpush1.msra.mxu0 0.0
        %4355 = vmatprep.subr.mxu0 0.0
        %4356 = vmatpush1.msra.mxu0 0.0
        %4357 = vmatprep.subr.mxu0 0.0
        %4358 = vmatpush1.msra.mxu0 0.0
        %4359 = vmatprep.subr.mxu0 0.0
        %4360 = vmatpush1.msra.mxu0 0.0
        %4361 = vmatprep.mubr.f32.mxu0 %v4216
        %4362 = vmatmul.mubr.f32.gmra.mrb[0].mxu0 %v4209
        %v4363 = vpop.f32.mrb[0].mxu0
        %v4364 = vadd.f32 0.0, %v4363
        %v4365 = vpop.f32.mrb[0].mxu0
        %4366 = vmatprep.mubr.f32.mxu0 %v4218
        %4367 = vmatmul.mubr.f32.gmra.mrb[0].mxu0 %v4208
        %v4368 = vpop.f32.mrb[0].mxu0
        %v4369 = vadd.f32 0.0, %v4368
        %v4370 = vpop.f32.mrb[0].mxu0
        %4371 = vdwg.mxu0
        %v4372 = vsel %vm4215, %v4026, 0
        %v4374 = vsel %vm4215, %v4032, 0
        %4376 = vmatprep.subr.mxu0 %v4035
        %4377 = vmatpush1.msra.mxu0 %v4034
        %4378 = vmatprep.subr.mxu0 %v4038
        %4379 = vmatpush1.msra.mxu0 %v4037
        %4380 = vmatprep.subr.mxu0 %v4041
        %4381 = vmatpush1.msra.mxu0 %v4040
        %4382 = vmatprep.subr.mxu0 %v4044
        %4383 = vmatpush1.msra.mxu0 %v4043
        %4384 = vmatprep.subr.mxu0 %v4047
        %4385 = vmatpush1.msra.mxu0 %v4046
        %4386 = vmatprep.subr.mxu0 %v4050
        %4387 = vmatpush1.msra.mxu0 %v4049
        %4388 = vmatprep.subr.mxu0 %v4053
        %4389 = vmatpush1.msra.mxu0 %v4052
        %4390 = vmatprep.subr.mxu0 %v4056
        %4391 = vmatpush1.msra.mxu0 %v4055
        %4392 = vmatprep.subr.mxu0 %v4059
        %4393 = vmatpush1.msra.mxu0 %v4058
        %4394 = vmatprep.subr.mxu0 %v4062
        %4395 = vmatpush1.msra.mxu0 %v4061
        %4396 = vmatprep.subr.mxu0 %v4065
        %4397 = vmatpush1.msra.mxu0 %v4064
        %4398 = vmatprep.subr.mxu0 %v4068
        %4399 = vmatpush1.msra.mxu0 %v4067
        %4400 = vmatprep.subr.mxu0 %v4071
        %4401 = vmatpush1.msra.mxu0 %v4070
        %4402 = vmatprep.subr.mxu0 %v4074
        %4403 = vmatpush1.msra.mxu0 %v4073
        %4404 = vmatprep.subr.mxu0 %v4077
        %4405 = vmatpush1.msra.mxu0 %v4076
        %4406 = vmatprep.subr.mxu0 %v4080
        %4407 = vmatpush1.msra.mxu0 %v4079
        %4408 = vmatprep.subr.mxu0 %v4083
        %4409 = vmatpush1.msra.mxu0 %v4082
        %4410 = vmatprep.subr.mxu0 %v4086
        %4411 = vmatpush1.msra.mxu0 %v4085
        %4412 = vmatprep.subr.mxu0 %v4089
        %4413 = vmatpush1.msra.mxu0 %v4088
        %4414 = vmatprep.subr.mxu0 %v4092
        %4415 = vmatpush1.msra.mxu0 %v4091
        %4416 = vmatprep.subr.mxu0 %v4095
        %4417 = vmatpush1.msra.mxu0 %v4094
        %4418 = vmatprep.subr.mxu0 %v4098
        %4419 = vmatpush1.msra.mxu0 %v4097
        %4420 = vmatprep.subr.mxu0 %v4101
        %4421 = vmatpush1.msra.mxu0 %v4100
        %4422 = vmatprep.subr.mxu0 %v4104
        %4423 = vmatpush1.msra.mxu0 %v4103
        %4424 = vmatprep.subr.mxu0 %v4107
        %4425 = vmatpush1.msra.mxu0 %v4106
        %4426 = vmatprep.subr.mxu0 %v4110
        %4427 = vmatpush1.msra.mxu0 %v4109
        %4428 = vmatprep.subr.mxu0 %v4113
        %4429 = vmatpush1.msra.mxu0 %v4112
        %4430 = vmatprep.subr.mxu0 %v4116
        %4431 = vmatpush1.msra.mxu0 %v4115
        %4432 = vmatprep.subr.mxu0 0.0
        %4433 = vmatpush1.msra.mxu0 0.0
        %4434 = vmatprep.subr.mxu0 0.0
        %4435 = vmatpush1.msra.mxu0 0.0
        %4436 = vmatprep.subr.mxu0 0.0
        %4437 = vmatpush1.msra.mxu0 0.0
        %4438 = vmatprep.subr.mxu0 0.0
        %4439 = vmatpush1.msra.mxu0 0.0
        %4440 = vmatprep.mubr.f32.mxu0 %v4372
        %4441 = vmatmul.mubr.f32.gmra.mrb[0].mxu0 %v4024
        %v4442 = vpop.f32.mrb[0].mxu0
        %v4443 = vadd.f32 %v4287, %v4442
        %v4444 = vpop.f32.mrb[0].mxu0
        %v4445 = vadd.f32 %v4289, %v4444
        %4446 = vmatprep.mubr.f32.mxu0 %v4374
        %4447 = vmatmul.mubr.f32.gmra.mrb[0].mxu0 %v4030
        %v4448 = vpop.f32.mrb[0].mxu0
        %v4449 = vadd.f32 %v4293, %v4448
        %v4450 = vpop.f32.mrb[0].mxu0
        %v4451 = vadd.f32 %v4295, %v4450
        %4452 = vdwg.mxu0
        %4453 = vmatprep.subr.mxu0 0.0
        %4454 = vmatpush1.msra.mxu0 %v4036
        %4455 = vmatprep.subr.mxu0 0.0
        %4456 = vmatpush1.msra.mxu0 %v4039
        %4457 = vmatprep.subr.mxu0 0.0
        %4458 = vmatpush1.msra.mxu0 %v4042
        %4459 = vmatprep.subr.mxu0 0.0
        %4460 = vmatpush1.msra.mxu0 %v4045
        %4461 = vmatprep.subr.mxu0 0.0
        %4462 = vmatpush1.msra.mxu0 %v4048
        %4463 = vmatprep.subr.mxu0 0.0
        %4464 = vmatpush1.msra.mxu0 %v4051
        %4465 = vmatprep.subr.mxu0 0.0
        %4466 = vmatpush1.msra.mxu0 %v4054
        %4467 = vmatprep.subr.mxu0 0.0
        %4468 = vmatpush1.msra.mxu0 %v4057
        %4469 = vmatprep.subr.mxu0 0.0
        %4470 = vmatpush1.msra.mxu0 %v4060
        %4471 = vmatprep.subr.mxu0 0.0
        %4472 = vmatpush1.msra.mxu0 %v4063
        %4473 = vmatprep.subr.mxu0 0.0
        %4474 = vmatpush1.msra.mxu0 %v4066
        %4475 = vmatprep.subr.mxu0 0.0
        %4476 = vmatpush1.msra.mxu0 %v4069
        %4477 = vmatprep.subr.mxu0 0.0
        %4478 = vmatpush1.msra.mxu0 %v4072
        %4479 = vmatprep.subr.mxu0 0.0
        %4480 = vmatpush1.msra.mxu0 %v4075
        %4481 = vmatprep.subr.mxu0 0.0
        %4482 = vmatpush1.msra.mxu0 %v4078
        %4483 = vmatprep.subr.mxu0 0.0
        %4484 = vmatpush1.msra.mxu0 %v4081
        %4485 = vmatprep.subr.mxu0 0.0
        %4486 = vmatpush1.msra.mxu0 %v4084
        %4487 = vmatprep.subr.mxu0 0.0
        %4488 = vmatpush1.msra.mxu0 %v4087
        %4489 = vmatprep.subr.mxu0 0.0
        %4490 = vmatpush1.msra.mxu0 %v4090
        %4491 = vmatprep.subr.mxu0 0.0
        %4492 = vmatpush1.msra.mxu0 %v4093
        %4493 = vmatprep.subr.mxu0 0.0
        %4494 = vmatpush1.msra.mxu0 %v4096
        %4495 = vmatprep.subr.mxu0 0.0
        %4496 = vmatpush1.msra.mxu0 %v4099
        %4497 = vmatprep.subr.mxu0 0.0
        %4498 = vmatpush1.msra.mxu0 %v4102
        %4499 = vmatprep.subr.mxu0 0.0
        %4500 = vmatpush1.msra.mxu0 %v4105
        %4501 = vmatprep.subr.mxu0 0.0
        %4502 = vmatpush1.msra.mxu0 %v4108
        %4503 = vmatprep.subr.mxu0 0.0
        %4504 = vmatpush1.msra.mxu0 %v4111
        %4505 = vmatprep.subr.mxu0 0.0
        %4506 = vmatpush1.msra.mxu0 %v4114
        %4507 = vmatprep.subr.mxu0 0.0
        %4508 = vmatpush1.msra.mxu0 %v4117
        %4509 = vmatprep.subr.mxu0 0.0
        %4510 = vmatpush1.msra.mxu0 0.0
        %4511 = vmatprep.subr.mxu0 0.0
        %4512 = vmatpush1.msra.mxu0 0.0
        %4513 = vmatprep.subr.mxu0 0.0
        %4514 = vmatpush1.msra.mxu0 0.0
        %4515 = vmatprep.subr.mxu0 0.0
        %4516 = vmatpush1.msra.mxu0 0.0
        %4517 = vmatprep.mubr.f32.mxu0 %v4372
        %4518 = vmatmul.mubr.f32.gmra.mrb[0].mxu0 %v4024
        %v4519 = vpop.f32.mrb[0].mxu0
        %v4520 = vadd.f32 %v4364, %v4519
        %v4521 = vpop.f32.mrb[0].mxu0
        %4522 = vmatprep.mubr.f32.mxu0 %v4374
        %4523 = vmatmul.mubr.f32.gmra.mrb[0].mxu0 %v4030
        %v4524 = vpop.f32.mrb[0].mxu0
        %v4525 = vadd.f32 %v4369, %v4524
        %v4526 = vpop.f32.mrb[0].mxu0
        %4527 = vdwg.mxu0
        %s4528 = scalar_lea.vmem %s9, 1344
        %v4529 = vld [vmem:[%s4528] sm:$0xff]
        %v4530 = vld [vmem:[%s4528 + $0x8] sm:$0xff]
        %v4531 = vld [vmem:[%s4528 + $0x10] sm:$0xff]
        %v4532 = vld [vmem:[%s4528 + $0x18] sm:$0xff]
        %v4533 = vld [vmem:[%s4528 + $0x20] sm:$0xff]
        %v4534 = vld [vmem:[%s4528 + $0x28] sm:$0xff]
        %v4535 = vld [vmem:[%s4528 + $0x30] sm:$0xff]
        %v4536 = vld [vmem:[%s4528 + $0x38] sm:$0xff]
        %v4537 = vld [vmem:[%s4528 + $0x40] sm:$0xff]
        %v4538 = vld [vmem:[%s4528 + $0x48] sm:$0xff]
        %v4539 = vld [vmem:[%s4528 + $0x50] sm:$0xff]
        %v4540 = vld [vmem:[%s4528 + $0x58] sm:$0xff]
        %v4541 = vld [vmem:[%s4528 + $0x60] sm:$0xff]
        %v4542 = vld [vmem:[%s4528 + $0x68] sm:$0xff]
        %v4543 = vld [vmem:[%s4528 + $0x70] sm:$0xff]
        %v4544 = vld [vmem:[%s4528 + $0x78] sm:$0xff]
        %v4545 = vld [vmem:[%s4528 + $0x80] sm:$0xff]
        %v4546 = vld [vmem:[%s4528 + $0x88] sm:$0xff]
        %v4547 = vld [vmem:[%s4528 + $0x90] sm:$0xff]
        %v4548 = vld [vmem:[%s4528 + $0x98] sm:$0xff]
        %v4549 = vld [vmem:[%s4528 + $0xa0] sm:$0xff]
        %v4550 = vld [vmem:[%s4528 + $0xa8] sm:$0xff]
        %v4551 = vld [vmem:[%s4528 + $0xb0] sm:$0xff]
        %v4552 = vld [vmem:[%s4528 + $0xb8] sm:$0xff]
        %v4553 = vld [vmem:[%s4528 + $0xc0] sm:$0xff]
        %v4554 = vld [vmem:[%s4528 + $0xc8] sm:$0xff]
        %v4555 = vld [vmem:[%s4528 + $0xd0] sm:$0xff]
        %v4556 = vld [vmem:[%s4528 + $0xd8] sm:$0xff]
        %v4557 = vld [vmem:[%s4528 + $0xe0] sm:$0xff]
        %v4558 = vld [vmem:[%s4528 + $0xe8] sm:$0xff]
        %v4559 = vld [vmem:[%s4528 + $0xf0] sm:$0xff]
        %v4560 = vld [vmem:[%s4528 + $0xf8] sm:$0xff]
        %v4561 = vld [vmem:[%s4528 + $0x100] sm:$0xff]
        %v4562 = vld [vmem:[%s4528 + $0x108] sm:$0xff]
        %v4563 = vld [vmem:[%s4528 + $0x110] sm:$0xff]
        %v4564 = vld [vmem:[%s4528 + $0x118] sm:$0xff]
        %v4565 = vld [vmem:[%s4528 + $0x120] sm:$0xff]
        %v4566 = vld [vmem:[%s4528 + $0x128] sm:$0xff]
        %v4567 = vld [vmem:[%s4528 + $0x130] sm:$0xff]
        %v4568 = vld [vmem:[%s4528 + $0x138] sm:$0xff]
        %v4569 = vld [vmem:[%s4528 + $0x140] sm:$0xff]
        %v4570 = vld [vmem:[%s4528 + $0x148] sm:$0xff]
        %v4571 = vld [vmem:[%s4528 + $0x150] sm:$0xff]
        %v4572 = vld [vmem:[%s4528 + $0x158] sm:$0xff]
        %v4573 = vld [vmem:[%s4528 + $0x160] sm:$0xff]
        %v4574 = vld [vmem:[%s4528 + $0x168] sm:$0xff]
        %v4575 = vld [vmem:[%s4528 + $0x170] sm:$0xff]
        %v4576 = vld [vmem:[%s4528 + $0x178] sm:$0xff]
        %v4577 = vld [vmem:[%s4528 + $0x180] sm:$0xff]
        %v4578 = vld [vmem:[%s4528 + $0x188] sm:$0xff]
        %v4579 = vld [vmem:[%s4528 + $0x190] sm:$0xff]
        %v4580 = vld [vmem:[%s4528 + $0x198] sm:$0xff]
        %v4581 = vld [vmem:[%s4528 + $0x1a0] sm:$0xff]
        %v4582 = vld [vmem:[%s4528 + $0x1a8] sm:$0xff]
        %v4583 = vld [vmem:[%s4528 + $0x1b0] sm:$0xff]
        %v4584 = vld [vmem:[%s4528 + $0x1b8] sm:$0xff]
        %v4585 = vld [vmem:[%s4528 + $0x1c0] sm:$0xff]
        %v4586 = vld [vmem:[%s4528 + $0x1c8] sm:$0xff]
        %v4587 = vld [vmem:[%s4528 + $0x1d0] sm:$0xff]
        %v4588 = vld [vmem:[%s4528 + $0x1d8] sm:$0xff]
        %v4589 = vld [vmem:[%s4528 + $0x1e0] sm:$0xff]
        %v4590 = vld [vmem:[%s4528 + $0x1e8] sm:$0xff]
        %v4591 = vld [vmem:[%s4528 + $0x1f0] sm:$0xff]
        %v4592 = vld [vmem:[%s4528 + $0x1f8] sm:$0xff]
        %v4593 = vld [vmem:[%s4528 + $0x200] sm:$0xff]
        %v4594 = vld [vmem:[%s4528 + $0x208] sm:$0xff]
        %v4595 = vld [vmem:[%s4528 + $0x210] sm:$0xff]
        %v4596 = vld [vmem:[%s4528 + $0x218] sm:$0xff]
        %v4597 = vld [vmem:[%s4528 + $0x220] sm:$0xff]
        %v4598 = vld [vmem:[%s4528 + $0x228] sm:$0xff]
        %v4599 = vld [vmem:[%s4528 + $0x230] sm:$0xff]
        %v4600 = vld [vmem:[%s4528 + $0x238] sm:$0xff]
        %v4601 = vld [vmem:[%s4528 + $0x240] sm:$0xff]
        %v4602 = vld [vmem:[%s4528 + $0x248] sm:$0xff]
        %v4603 = vld [vmem:[%s4528 + $0x250] sm:$0xff]
        %v4604 = vld [vmem:[%s4528 + $0x258] sm:$0xff]
        %v4605 = vld [vmem:[%s4528 + $0x260] sm:$0xff]
        %v4606 = vld [vmem:[%s4528 + $0x268] sm:$0xff]
        %v4607 = vld [vmem:[%s4528 + $0x270] sm:$0xff]
        %v4608 = vld [vmem:[%s4528 + $0x278] sm:$0xff]
        %v4609 = vld [vmem:[%s4528 + $0x280] sm:$0xff]
        %v4610 = vld [vmem:[%s4528 + $0x288] sm:$0xff]
        %v4611 = vld [vmem:[%s4528 + $0x290] sm:$0xff]
        %v4612 = vld [vmem:[%s4528 + $0x298] sm:$0xff]
        %v4613 = vrot.slane %v4024, 2
        %v4614 = vrot.slane %v4030, 2
        %v4615 = vsel %vm3188, %v4613, %v4614
        %v4616 = vrot.slane %v4026, 2
        %v4617 = vrot.slane %v4032, 2
        %v4618 = vsel %vm3188, %v4616, %v4617
        %v4621 = vsel %vm4215, %v4618, 0
        %v4623 = vsel %vm4215, %v4617, 0
        %4625 = vmatprep.subr.mxu0 %v4530
        %4626 = vmatpush1.msra.mxu0 %v4529
        %4627 = vmatprep.subr.mxu0 %v4533
        %4628 = vmatpush1.msra.mxu0 %v4532
        %4629 = vmatprep.subr.mxu0 %v4536
        %4630 = vmatpush1.msra.mxu0 %v4535
        %4631 = vmatprep.subr.mxu0 %v4539
        %4632 = vmatpush1.msra.mxu0 %v4538
        %4633 = vmatprep.subr.mxu0 %v4542
        %4634 = vmatpush1.msra.mxu0 %v4541
        %4635 = vmatprep.subr.mxu0 %v4545
        %4636 = vmatpush1.msra.mxu0 %v4544
        %4637 = vmatprep.subr.mxu0 %v4548
        %4638 = vmatpush1.msra.mxu0 %v4547
        %4639 = vmatprep.subr.mxu0 %v4551
        %4640 = vmatpush1.msra.mxu0 %v4550
        %4641 = vmatprep.subr.mxu0 %v4554
        %4642 = vmatpush1.msra.mxu0 %v4553
        %4643 = vmatprep.subr.mxu0 %v4557
        %4644 = vmatpush1.msra.mxu0 %v4556
        %4645 = vmatprep.subr.mxu0 %v4560
        %4646 = vmatpush1.msra.mxu0 %v4559
        %4647 = vmatprep.subr.mxu0 %v4563
        %4648 = vmatpush1.msra.mxu0 %v4562
        %4649 = vmatprep.subr.mxu0 %v4566
        %4650 = vmatpush1.msra.mxu0 %v4565
        %4651 = vmatprep.subr.mxu0 %v4569
        %4652 = vmatpush1.msra.mxu0 %v4568
        %4653 = vmatprep.subr.mxu0 %v4572
        %4654 = vmatpush1.msra.mxu0 %v4571
        %4655 = vmatprep.subr.mxu0 %v4575
        %4656 = vmatpush1.msra.mxu0 %v4574
        %4657 = vmatprep.subr.mxu0 %v4578
        %4658 = vmatpush1.msra.mxu0 %v4577
        %4659 = vmatprep.subr.mxu0 %v4581
        %4660 = vmatpush1.msra.mxu0 %v4580
        %4661 = vmatprep.subr.mxu0 %v4584
        %4662 = vmatpush1.msra.mxu0 %v4583
        %4663 = vmatprep.subr.mxu0 %v4587
        %4664 = vmatpush1.msra.mxu0 %v4586
        %4665 = vmatprep.subr.mxu0 %v4590
        %4666 = vmatpush1.msra.mxu0 %v4589
        %4667 = vmatprep.subr.mxu0 %v4593
        %4668 = vmatpush1.msra.mxu0 %v4592
        %4669 = vmatprep.subr.mxu0 %v4596
        %4670 = vmatpush1.msra.mxu0 %v4595
        %4671 = vmatprep.subr.mxu0 %v4599
        %4672 = vmatpush1.msra.mxu0 %v4598
        %4673 = vmatprep.subr.mxu0 %v4602
        %4674 = vmatpush1.msra.mxu0 %v4601
        %4675 = vmatprep.subr.mxu0 %v4605
        %4676 = vmatpush1.msra.mxu0 %v4604
        %4677 = vmatprep.subr.mxu0 %v4608
        %4678 = vmatpush1.msra.mxu0 %v4607
        %4679 = vmatprep.subr.mxu0 %v4611
        %4680 = vmatpush1.msra.mxu0 %v4610
        %4681 = vmatprep.subr.mxu0 0.0
        %4682 = vmatpush1.msra.mxu0 0.0
        %4683 = vmatprep.subr.mxu0 0.0
        %4684 = vmatpush1.msra.mxu0 0.0
        %4685 = vmatprep.subr.mxu0 0.0
        %4686 = vmatpush1.msra.mxu0 0.0
        %4687 = vmatprep.subr.mxu0 0.0
        %4688 = vmatpush1.msra.mxu0 0.0
        %4689 = vmatprep.mubr.f32.mxu0 %v4621
        %4690 = vmatmul.mubr.f32.gmra.mrb[0].mxu0 %v4615
        %v4691 = vpop.f32.mrb[0].mxu0
        %v4692 = vadd.f32 0.0, %v4691
        %v4693 = vpop.f32.mrb[0].mxu0
        %v4694 = vadd.f32 0.0, %v4693
        %4695 = vmatprep.mubr.f32.mxu0 %v4623
        %4696 = vmatmul.mubr.f32.gmra.mrb[0].mxu0 %v4614
        %v4697 = vpop.f32.mrb[0].mxu0
        %v4698 = vadd.f32 0.0, %v4697
        %v4699 = vpop.f32.mrb[0].mxu0
        %v4700 = vadd.f32 0.0, %v4699
        %4701 = vdwg.mxu0
        %4702 = vmatprep.subr.mxu0 0.0
        %4703 = vmatpush1.msra.mxu0 %v4531
        %4704 = vmatprep.subr.mxu0 0.0
        %4705 = vmatpush1.msra.mxu0 %v4534
        %4706 = vmatprep.subr.mxu0 0.0
        %4707 = vmatpush1.msra.mxu0 %v4537
        %4708 = vmatprep.subr.mxu0 0.0
        %4709 = vmatpush1.msra.mxu0 %v4540
        %4710 = vmatprep.subr.mxu0 0.0
        %4711 = vmatpush1.msra.mxu0 %v4543
        %4712 = vmatprep.subr.mxu0 0.0
        %4713 = vmatpush1.msra.mxu0 %v4546
        %4714 = vmatprep.subr.mxu0 0.0
        %4715 = vmatpush1.msra.mxu0 %v4549
        %4716 = vmatprep.subr.mxu0 0.0
        %4717 = vmatpush1.msra.mxu0 %v4552
        %4718 = vmatprep.subr.mxu0 0.0
        %4719 = vmatpush1.msra.mxu0 %v4555
        %4720 = vmatprep.subr.mxu0 0.0
        %4721 = vmatpush1.msra.mxu0 %v4558
        %4722 = vmatprep.subr.mxu0 0.0
        %4723 = vmatpush1.msra.mxu0 %v4561
        %4724 = vmatprep.subr.mxu0 0.0
        %4725 = vmatpush1.msra.mxu0 %v4564
        %4726 = vmatprep.subr.mxu0 0.0
        %4727 = vmatpush1.msra.mxu0 %v4567
        %4728 = vmatprep.subr.mxu0 0.0
        %4729 = vmatpush1.msra.mxu0 %v4570
        %4730 = vmatprep.subr.mxu0 0.0
        %4731 = vmatpush1.msra.mxu0 %v4573
        %4732 = vmatprep.subr.mxu0 0.0
        %4733 = vmatpush1.msra.mxu0 %v4576
        %4734 = vmatprep.subr.mxu0 0.0
        %4735 = vmatpush1.msra.mxu0 %v4579
        %4736 = vmatprep.subr.mxu0 0.0
        %4737 = vmatpush1.msra.mxu0 %v4582
        %4738 = vmatprep.subr.mxu0 0.0
        %4739 = vmatpush1.msra.mxu0 %v4585
        %4740 = vmatprep.subr.mxu0 0.0
        %4741 = vmatpush1.msra.mxu0 %v4588
        %4742 = vmatprep.subr.mxu0 0.0
        %4743 = vmatpush1.msra.mxu0 %v4591
        %4744 = vmatprep.subr.mxu0 0.0
        %4745 = vmatpush1.msra.mxu0 %v4594
        %4746 = vmatprep.subr.mxu0 0.0
        %4747 = vmatpush1.msra.mxu0 %v4597
        %4748 = vmatprep.subr.mxu0 0.0
        %4749 = vmatpush1.msra.mxu0 %v4600
        %4750 = vmatprep.subr.mxu0 0.0
        %4751 = vmatpush1.msra.mxu0 %v4603
        %4752 = vmatprep.subr.mxu0 0.0
        %4753 = vmatpush1.msra.mxu0 %v4606
        %4754 = vmatprep.subr.mxu0 0.0
        %4755 = vmatpush1.msra.mxu0 %v4609
        %4756 = vmatprep.subr.mxu0 0.0
        %4757 = vmatpush1.msra.mxu0 %v4612
        %4758 = vmatprep.subr.mxu0 0.0
        %4759 = vmatpush1.msra.mxu0 0.0
        %4760 = vmatprep.subr.mxu0 0.0
        %4761 = vmatpush1.msra.mxu0 0.0
        %4762 = vmatprep.subr.mxu0 0.0
        %4763 = vmatpush1.msra.mxu0 0.0
        %4764 = vmatprep.subr.mxu0 0.0
        %4765 = vmatpush1.msra.mxu0 0.0
        %4766 = vmatprep.mubr.f32.mxu0 %v4621
        %4767 = vmatmul.mubr.f32.gmra.mrb[0].mxu0 %v4615
        %v4768 = vpop.f32.mrb[0].mxu0
        %v4769 = vadd.f32 0.0, %v4768
        %v4770 = vpop.f32.mrb[0].mxu0
        %4771 = vmatprep.mubr.f32.mxu0 %v4623
        %4772 = vmatmul.mubr.f32.gmra.mrb[0].mxu0 %v4614
        %v4773 = vpop.f32.mrb[0].mxu0
        %v4774 = vadd.f32 0.0, %v4773
        %v4775 = vpop.f32.mrb[0].mxu0
        %4776 = vdwg.mxu0
        %v4777 = vadd.f32 %v4443, %v4692
        %v4778 = vadd.f32 %v4445, %v4694
        %v4779 = vadd.f32 %v4520, %v4769
        %v4780 = vadd.f32 %v4449, %v4698
        %v4781 = vadd.f32 %v4451, %v4700
        %v4782 = vadd.f32 %v4525, %v4774
        %v4783 = vld [vmem:[%s10] sm:$0x7]
        %v4785 = vlaneseq
        %v4786 = vshrl.u32 %v4785, 7
        %v4787 = vsub.s32 0, %v4786
        %v4788 = vrot.slane %v4783, %v4787
        %v4789 = vlaneseq
        %v4790 = vshrl.u32 %v4789, 7
        %v4791 = vsub.s32 1, %v4790
        %v4792 = vrot.slane %v4783, %v4791
        %v4793 = vlaneseq
        %v4794 = vshrl.u32 %v4793, 7
        %v4795 = vsub.s32 2, %v4794
        %v4796 = vrot.slane %v4783, %v4795
        %v4800 = vadd.f32 %v4777, %v4788
        %v4801 = vadd.f32 %v4778, %v4792
        %v4802 = vadd.f32 %v4779, %v4796
        %v4803 = vadd.f32 %v4780, %v4788
        %v4804 = vadd.f32 %v4781, %v4792
        %v4805 = vadd.f32 %v4782, %v4796
        %v4806 = vmax.f32 %v4800, 0.0
        %v4807 = vmax.f32 %v4801, 0.0
        %v4808 = vmax.f32 %v4802, 0.0
        %v4809 = vmax.f32 %v4803, 0.0
        %v4810 = vmax.f32 %v4804, 0.0
        %v4811 = vmax.f32 %v4805, 0.0
        %v4818 = vrot.slane %v4806, 1
        %v4819 = vrot.slane %v4809, 1
        %v4820 = vsel %vm1677, %v4818, %v4819
        %v4821 = vrot.slane %v4807, 1
        %v4822 = vrot.slane %v4810, 1
        %v4823 = vsel %vm1677, %v4821, %v4822
        %v4824 = vrot.slane %v4808, 1
        %v4825 = vrot.slane %v4811, 1
        %v4826 = vsel %vm1677, %v4824, %v4825
        %v4833 = vmax.f32 %v4806, %v4820
        %v4834 = vmax.f32 %v4807, %v4823
        %v4835 = vmax.f32 %v4808, %v4826
        %v4836 = vmax.f32 %v4809, %v4819
        %v4837 = vmax.f32 %v4810, %v4822
        %v4838 = vmax.f32 %v4811, %v4825
        %v4839 = vld [vmem:[%s11] sm:$0x3f]
        %vm4840 = vcmask 89088
        %v4842 = vsel %vm4840, %v4839, 0
        %vm4844 = vcmask 1042432
        %v4846 = vsel %vm4844, %v4836, 0
        %v4849 = vsel %vm4844, %v4837, 0
        %v4852 = vsel %vm4844, %v4838, 0
        %4854 = vmatprep.subr.mxu0 %v4834
        %4855 = vmatpush1.msra.mxu0 %v4833
        %4856 = vmatprep.subr.mxu0 %v4849
        %4857 = vmatpush1.msra.mxu0 %v4846
        %4858 = vmatprep.subr.mxu0 0.0
        %4859 = vmatpush1.msra.mxu0 0.0
        %4860 = vmatprep.subr.mxu0 0.0
        %4861 = vmatpush1.msra.mxu0 0.0
        %4862 = vmatprep.subr.mxu0 0.0
        %4863 = vmatpush1.msra.mxu0 0.0
        %4864 = vmatprep.subr.mxu0 0.0
        %4865 = vmatpush1.msra.mxu0 0.0
        %4866 = vmatprep.subr.mxu0 0.0
        %4867 = vmatpush1.msra.mxu0 0.0
        %4868 = vmatprep.subr.mxu0 0.0
        %4869 = vmatpush1.msra.mxu0 0.0
        %4870 = vmatprep.subr.mxu0 0.0
        %4871 = vmatpush1.msra.mxu0 0.0
        %4872 = vmatprep.subr.mxu0 0.0
        %4873 = vmatpush1.msra.mxu0 0.0
        %4874 = vmatprep.subr.mxu0 0.0
        %4875 = vmatpush1.msra.mxu0 0.0
        %4876 = vmatprep.subr.mxu0 0.0
        %4877 = vmatpush1.msra.mxu0 0.0
        %4878 = vmatprep.subr.mxu0 0.0
        %4879 = vmatpush1.msra.mxu0 0.0
        %4880 = vmatprep.subr.mxu0 0.0
        %4881 = vmatpush1.msra.mxu0 0.0
        %4882 = vmatprep.subr.mxu0 0.0
        %4883 = vmatpush1.msra.mxu0 0.0
        %4884 = vmatprep.subr.mxu0 0.0
        %4885 = vmatpush1.msra.mxu0 0.0
        %4886 = vmatprep.subr.mxu0 0.0
        %4887 = vmatpush1.msra.mxu0 0.0
        %4888 = vmatprep.subr.mxu0 0.0
        %4889 = vmatpush1.msra.mxu0 0.0
        %4890 = vmatprep.subr.mxu0 0.0
        %4891 = vmatpush1.msra.mxu0 0.0
        %4892 = vmatprep.subr.mxu0 0.0
        %4893 = vmatpush1.msra.mxu0 0.0
        %4894 = vmatprep.subr.mxu0 0.0
        %4895 = vmatpush1.msra.mxu0 0.0
        %4896 = vmatprep.subr.mxu0 0.0
        %4897 = vmatpush1.msra.mxu0 0.0
        %4898 = vmatprep.subr.mxu0 0.0
        %4899 = vmatpush1.msra.mxu0 0.0
        %4900 = vmatprep.subr.mxu0 0.0
        %4901 = vmatpush1.msra.mxu0 0.0
        %4902 = vmatprep.subr.mxu0 0.0
        %4903 = vmatpush1.msra.mxu0 0.0
        %4904 = vmatprep.subr.mxu0 0.0
        %4905 = vmatpush1.msra.mxu0 0.0
        %4906 = vmatprep.subr.mxu0 0.0
        %4907 = vmatpush1.msra.mxu0 0.0
        %4908 = vmatprep.subr.mxu0 0.0
        %4909 = vmatpush1.msra.mxu0 0.0
        %4910 = vmatprep.subr.mxu0 0.0
        %4911 = vmatpush1.msra.mxu0 0.0
        %4912 = vmatprep.subr.mxu0 0.0
        %4913 = vmatpush1.msra.mxu0 0.0
        %4914 = vmatprep.subr.mxu0 0.0
        %4915 = vmatpush1.msra.mxu0 0.0
        %4916 = vmatprep.subr.mxu0 0.0
        %4917 = vmatpush1.msra.mxu0 0.0
        %4918 = vmatprep.mubr.f32.mxu0 0.0
        %4919 = vmatmul.mubr.f32.gmra.mrb[0].mxu0 %v4842
        %v4920 = vpop.f32.mrb[0].mxu0
        %v4921 = vadd.f32 0.0, %v4920
        %v4922 = vpop.f32.mrb[0].mxu0
        %v4923 = vadd.f32 0.0, %v4922
        %4924 = vdwg.mxu0
        %4925 = vmatprep.subr.mxu0 0.0
        %4926 = vmatpush1.msra.mxu0 %v4835
        %4927 = vmatprep.subr.mxu0 0.0
        %4928 = vmatpush1.msra.mxu0 %v4852
        %4929 = vmatprep.subr.mxu0 0.0
        %4930 = vmatpush1.msra.mxu0 0.0
        %4931 = vmatprep.subr.mxu0 0.0
        %4932 = vmatpush1.msra.mxu0 0.0
        %4933 = vmatprep.subr.mxu0 0.0
        %4934 = vmatpush1.msra.mxu0 0.0
        %4935 = vmatprep.subr.mxu0 0.0
        %4936 = vmatpush1.msra.mxu0 0.0
        %4937 = vmatprep.subr.mxu0 0.0
        %4938 = vmatpush1.msra.mxu0 0.0
        %4939 = vmatprep.subr.mxu0 0.0
        %4940 = vmatpush1.msra.mxu0 0.0
        %4941 = vmatprep.subr.mxu0 0.0
        %4942 = vmatpush1.msra.mxu0 0.0
        %4943 = vmatprep.subr.mxu0 0.0
        %4944 = vmatpush1.msra.mxu0 0.0
        %4945 = vmatprep.subr.mxu0 0.0
        %4946 = vmatpush1.msra.mxu0 0.0
        %4947 = vmatprep.subr.mxu0 0.0
        %4948 = vmatpush1.msra.mxu0 0.0
        %4949 = vmatprep.subr.mxu0 0.0
        %4950 = vmatpush1.msra.mxu0 0.0
        %4951 = vmatprep.subr.mxu0 0.0
        %4952 = vmatpush1.msra.mxu0 0.0
        %4953 = vmatprep.subr.mxu0 0.0
        %4954 = vmatpush1.msra.mxu0 0.0
        %4955 = vmatprep.subr.mxu0 0.0
        %4956 = vmatpush1.msra.mxu0 0.0
        %4957 = vmatprep.subr.mxu0 0.0
        %4958 = vmatpush1.msra.mxu0 0.0
        %4959 = vmatprep.subr.mxu0 0.0
        %4960 = vmatpush1.msra.mxu0 0.0
        %4961 = vmatprep.subr.mxu0 0.0
        %4962 = vmatpush1.msra.mxu0 0.0
        %4963 = vmatprep.subr.mxu0 0.0
        %4964 = vmatpush1.msra.mxu0 0.0
        %4965 = vmatprep.subr.mxu0 0.0
        %4966 = vmatpush1.msra.mxu0 0.0
        %4967 = vmatprep.subr.mxu0 0.0
        %4968 = vmatpush1.msra.mxu0 0.0
        %4969 = vmatprep.subr.mxu0 0.0
        %4970 = vmatpush1.msra.mxu0 0.0
        %4971 = vmatprep.subr.mxu0 0.0
        %4972 = vmatpush1.msra.mxu0 0.0
        %4973 = vmatprep.subr.mxu0 0.0
        %4974 = vmatpush1.msra.mxu0 0.0
        %4975 = vmatprep.subr.mxu0 0.0
        %4976 = vmatpush1.msra.mxu0 0.0
        %4977 = vmatprep.subr.mxu0 0.0
        %4978 = vmatpush1.msra.mxu0 0.0
        %4979 = vmatprep.subr.mxu0 0.0
        %4980 = vmatpush1.msra.mxu0 0.0
        %4981 = vmatprep.subr.mxu0 0.0
        %4982 = vmatpush1.msra.mxu0 0.0
        %4983 = vmatprep.subr.mxu0 0.0
        %4984 = vmatpush1.msra.mxu0 0.0
        %4985 = vmatprep.subr.mxu0 0.0
        %4986 = vmatpush1.msra.mxu0 0.0
        %4987 = vmatprep.subr.mxu0 0.0
        %4988 = vmatpush1.msra.mxu0 0.0
        %4989 = vmatprep.mubr.f32.mxu0 0.0
        %4990 = vmatmul.mubr.f32.gmra.mrb[0].mxu0 %v4842
        %v4991 = vpop.f32.mrb[0].mxu0
        %v4992 = vadd.f32 0.0, %v4991
        %v4993 = vpop.f32.mrb[0].mxu0
        %4994 = vdwg.mxu0
        %4998 = vrot.lane.b32.xlu0 %v4921, 96
        %v4999 = vpop.permute.xlu0 %4998
        %5000 = vrot.lane.b32.xlu0 %v4923, 96
        %v5001 = vpop.permute.xlu0 %5000
        %5002 = vrot.lane.b32.xlu0 %v4992, 96
        %v5003 = vpop.permute.xlu0 %5002
        %v5004 = vsel %vm4215, %v4999, %v5001
        %v5005 = vsel %vm4215, %v5001, %v5003
        %v5009 = vmax.f32 %v4921, %v5004
        %v5010 = vmax.f32 %v4923, %v5005
        %v5011 = vmax.f32 %v4992, %v5003
        %v5012 = vld [vmem:[%s12] sm:$0xff]
        %v5013 = vld [vmem:[%s12 + $0x8] sm:$0xff]
        %v5014 = vld [vmem:[%s12 + $0x10] sm:$0xff]
        %v5015 = vld [vmem:[%s12 + $0x18] sm:$0xff]
        %v5016 = vld [vmem:[%s12 + $0x20] sm:$0xff]
        %v5017 = vld [vmem:[%s12 + $0x28] sm:$0xff]
        %v5018 = vld [vmem:[%s12 + $0x30] sm:$0xff]
        %v5019 = vld [vmem:[%s12 + $0x38] sm:$0xff]
        %v5020 = vld [vmem:[%s12 + $0x40] sm:$0xff]
        %v5021 = vld [vmem:[%s12 + $0x48] sm:$0xff]
        %v5022 = vld [vmem:[%s12 + $0x50] sm:$0xff]
        %v5023 = vld [vmem:[%s12 + $0x58] sm:$0xff]
        %v5024 = vld [vmem:[%s12 + $0x60] sm:$0xff]
        %v5025 = vld [vmem:[%s12 + $0x68] sm:$0xff]
        %v5026 = vld [vmem:[%s12 + $0x70] sm:$0xff]
        %v5027 = vld [vmem:[%s12 + $0x78] sm:$0xff]
        %v5028 = vld [vmem:[%s12 + $0x80] sm:$0xff]
        %v5029 = vld [vmem:[%s12 + $0x88] sm:$0xff]
        %v5030 = vld [vmem:[%s12 + $0x90] sm:$0xff]
        %v5031 = vld [vmem:[%s12 + $0x98] sm:$0xff]
        %v5032 = vld [vmem:[%s12 + $0xa0] sm:$0xff]
        %v5033 = vld [vmem:[%s12 + $0xa8] sm:$0xff]
        %v5034 = vld [vmem:[%s12 + $0xb0] sm:$0xff]
        %v5035 = vld [vmem:[%s12 + $0xb8] sm:$0xff]
        %v5036 = vld [vmem:[%s12 + $0xc0] sm:$0xff]
        %v5037 = vld [vmem:[%s12 + $0xc8] sm:$0xff]
        %v5038 = vld [vmem:[%s12 + $0xd0] sm:$0xff]
        %v5039 = vld [vmem:[%s12 + $0xd8] sm:$0xff]
        %v5040 = vld [vmem:[%s12 + $0xe0] sm:$0xff]
        %v5041 = vld [vmem:[%s12 + $0xe8] sm:$0xff]
        %v5042 = vld [vmem:[%s12 + $0xf0] sm:$0xff]
        %v5043 = vld [vmem:[%s12 + $0xf8] sm:$0xff]
        %v5044 = vld [vmem:[%s12 + $0x100] sm:$0xff]
        %v5045 = vld [vmem:[%s12 + $0x108] sm:$0xff]
        %v5046 = vld [vmem:[%s12 + $0x110] sm:$0xff]
        %v5047 = vld [vmem:[%s12 + $0x118] sm:$0xff]
        %v5048 = vld [vmem:[%s12 + $0x120] sm:$0xff]
        %v5049 = vld [vmem:[%s12 + $0x128] sm:$0xff]
        %v5050 = vld [vmem:[%s12 + $0x130] sm:$0xff]
        %v5051 = vld [vmem:[%s12 + $0x138] sm:$0xff]
        %v5052 = vld [vmem:[%s12 + $0x140] sm:$0xff]
        %v5053 = vld [vmem:[%s12 + $0x148] sm:$0xff]
        %v5054 = vld [vmem:[%s12 + $0x150] sm:$0xff]
        %v5055 = vld [vmem:[%s12 + $0x158] sm:$0xff]
        %v5056 = vld [vmem:[%s12 + $0x160] sm:$0xff]
        %v5057 = vld [vmem:[%s12 + $0x168] sm:$0xff]
        %v5058 = vld [vmem:[%s12 + $0x170] sm:$0xff]
        %v5059 = vld [vmem:[%s12 + $0x178] sm:$0xff]
        %v5060 = vld [vmem:[%s12 + $0x180] sm:$0xff]
        %v5061 = vld [vmem:[%s12 + $0x188] sm:$0xff]
        %v5062 = vld [vmem:[%s12 + $0x190] sm:$0xff]
        %v5063 = vld [vmem:[%s12 + $0x198] sm:$0xff]
        %v5064 = vld [vmem:[%s12 + $0x1a0] sm:$0xff]
        %v5065 = vld [vmem:[%s12 + $0x1a8] sm:$0xff]
        %v5066 = vld [vmem:[%s12 + $0x1b0] sm:$0xff]
        %v5067 = vld [vmem:[%s12 + $0x1b8] sm:$0xff]
        %v5068 = vld [vmem:[%s12 + $0x1c0] sm:$0xff]
        %v5069 = vld [vmem:[%s12 + $0x1c8] sm:$0xff]
        %v5070 = vld [vmem:[%s12 + $0x1d0] sm:$0xff]
        %v5071 = vld [vmem:[%s12 + $0x1d8] sm:$0xff]
        %v5072 = vld [vmem:[%s12 + $0x1e0] sm:$0xff]
        %v5073 = vld [vmem:[%s12 + $0x1e8] sm:$0xff]
        %v5074 = vld [vmem:[%s12 + $0x1f0] sm:$0xff]
        %v5075 = vld [vmem:[%s12 + $0x1f8] sm:$0xff]
        %v5076 = vld [vmem:[%s12 + $0x200] sm:$0xff]
        %v5077 = vld [vmem:[%s12 + $0x208] sm:$0xff]
        %v5078 = vld [vmem:[%s12 + $0x210] sm:$0xff]
        %v5079 = vld [vmem:[%s12 + $0x218] sm:$0xff]
        %v5080 = vld [vmem:[%s12 + $0x220] sm:$0xff]
        %v5081 = vld [vmem:[%s12 + $0x228] sm:$0xff]
        %v5082 = vld [vmem:[%s12 + $0x230] sm:$0xff]
        %v5083 = vld [vmem:[%s12 + $0x238] sm:$0xff]
        %v5084 = vld [vmem:[%s12 + $0x240] sm:$0xff]
        %v5085 = vld [vmem:[%s12 + $0x248] sm:$0xff]
        %v5086 = vld [vmem:[%s12 + $0x250] sm:$0xff]
        %v5087 = vld [vmem:[%s12 + $0x258] sm:$0xff]
        %v5088 = vld [vmem:[%s12 + $0x260] sm:$0xff]
        %v5089 = vld [vmem:[%s12 + $0x268] sm:$0xff]
        %v5090 = vld [vmem:[%s12 + $0x270] sm:$0xff]
        %v5091 = vld [vmem:[%s12 + $0x278] sm:$0xff]
        %v5092 = vld [vmem:[%s12 + $0x280] sm:$0xff]
        %v5093 = vld [vmem:[%s12 + $0x288] sm:$0xff]
        %v5094 = vld [vmem:[%s12 + $0x290] sm:$0xff]
        %v5095 = vld [vmem:[%s12 + $0x298] sm:$0xff]
        %v5096 = vld [vmem:[%s12 + $0x2a0] sm:$0xff]
        %v5097 = vld [vmem:[%s12 + $0x2a8] sm:$0xff]
        %v5098 = vld [vmem:[%s12 + $0x2b0] sm:$0xff]
        %v5099 = vld [vmem:[%s12 + $0x2b8] sm:$0xff]
        %v5101 = vsel %vm4215, %v5011, 0
        %5103 = vmatprep.subr.mxu0 %v5013
        %5104 = vmatpush1.msra.mxu0 %v5012
        %5105 = vmatprep.subr.mxu0 %v5015
        %5106 = vmatpush1.msra.mxu0 %v5014
        %5107 = vmatprep.subr.mxu0 %v5017
        %5108 = vmatpush1.msra.mxu0 %v5016
        %5109 = vmatprep.subr.mxu0 %v5019
        %5110 = vmatpush1.msra.mxu0 %v5018
        %5111 = vmatprep.subr.mxu0 %v5021
        %5112 = vmatpush1.msra.mxu0 %v5020
        %5113 = vmatprep.subr.mxu0 %v5023
        %5114 = vmatpush1.msra.mxu0 %v5022
        %5115 = vmatprep.subr.mxu0 %v5025
        %5116 = vmatpush1.msra.mxu0 %v5024
        %5117 = vmatprep.subr.mxu0 %v5027
        %5118 = vmatpush1.msra.mxu0 %v5026
        %5119 = vmatprep.subr.mxu0 %v5029
        %5120 = vmatpush1.msra.mxu0 %v5028
        %5121 = vmatprep.subr.mxu0 %v5031
        %5122 = vmatpush1.msra.mxu0 %v5030
        %5123 = vmatprep.subr.mxu0 %v5033
        %5124 = vmatpush1.msra.mxu0 %v5032
        %5125 = vmatprep.subr.mxu0 %v5035
        %5126 = vmatpush1.msra.mxu0 %v5034
        %5127 = vmatprep.subr.mxu0 %v5037
        %5128 = vmatpush1.msra.mxu0 %v5036
        %5129 = vmatprep.subr.mxu0 %v5039
        %5130 = vmatpush1.msra.mxu0 %v5038
        %5131 = vmatprep.subr.mxu0 %v5041
        %5132 = vmatpush1.msra.mxu0 %v5040
        %5133 = vmatprep.subr.mxu0 %v5043
        %5134 = vmatpush1.msra.mxu0 %v5042
        %5135 = vmatprep.subr.mxu0 %v5045
        %5136 = vmatpush1.msra.mxu0 %v5044
        %5137 = vmatprep.subr.mxu0 %v5047
        %5138 = vmatpush1.msra.mxu0 %v5046
        %5139 = vmatprep.subr.mxu0 %v5049
        %5140 = vmatpush1.msra.mxu0 %v5048
        %5141 = vmatprep.subr.mxu0 %v5051
        %5142 = vmatpush1.msra.mxu0 %v5050
        %5143 = vmatprep.subr.mxu0 %v5053
        %5144 = vmatpush1.msra.mxu0 %v5052
        %5145 = vmatprep.subr.mxu0 %v5055
        %5146 = vmatpush1.msra.mxu0 %v5054
        %5147 = vmatprep.subr.mxu0 %v5057
        %5148 = vmatpush1.msra.mxu0 %v5056
        %5149 = vmatprep.subr.mxu0 %v5059
        %5150 = vmatpush1.msra.mxu0 %v5058
        %5151 = vmatprep.subr.mxu0 %v5061
        %5152 = vmatpush1.msra.mxu0 %v5060
        %5153 = vmatprep.subr.mxu0 %v5063
        %5154 = vmatpush1.msra.mxu0 %v5062
        %5155 = vmatprep.subr.mxu0 %v5065
        %5156 = vmatpush1.msra.mxu0 %v5064
        %5157 = vmatprep.subr.mxu0 %v5067
        %5158 = vmatpush1.msra.mxu0 %v5066
        %5159 = vmatprep.subr.mxu0 %v5069
        %5160 = vmatpush1.msra.mxu0 %v5068
        %5161 = vmatprep.subr.mxu0 %v5071
        %5162 = vmatpush1.msra.mxu0 %v5070
        %5163 = vmatprep.subr.mxu0 %v5073
        %5164 = vmatpush1.msra.mxu0 %v5072
        %5165 = vmatprep.subr.mxu0 %v5075
        %5166 = vmatpush1.msra.mxu0 %v5074
        %5167 = vmatprep.mubr.f32.mxu0 %v5010
        %5168 = vmatmul.mubr.f32.gmra.mrb[0].mxu0 %v5009
        %v5169 = vpop.f32.mrb[0].mxu0
        %v5170 = vadd.f32 0.0, %v5169
        %v5171 = vpop.f32.mrb[0].mxu0
        %v5172 = vadd.f32 0.0, %v5171
        %5173 = vdwg.mxu0
        %5174 = vmatprep.subr.mxu0 %v5077
        %5175 = vmatpush1.msra.mxu0 %v5076
        %5176 = vmatprep.subr.mxu0 %v5079
        %5177 = vmatpush1.msra.mxu0 %v5078
        %5178 = vmatprep.subr.mxu0 %v5081
        %5179 = vmatpush1.msra.mxu0 %v5080
        %5180 = vmatprep.subr.mxu0 %v5083
        %5181 = vmatpush1.msra.mxu0 %v5082
        %5182 = vmatprep.subr.mxu0 %v5085
        %5183 = vmatpush1.msra.mxu0 %v5084
        %5184 = vmatprep.subr.mxu0 %v5087
        %5185 = vmatpush1.msra.mxu0 %v5086
        %5186 = vmatprep.subr.mxu0 %v5089
        %5187 = vmatpush1.msra.mxu0 %v5088
        %5188 = vmatprep.subr.mxu0 %v5091
        %5189 = vmatpush1.msra.mxu0 %v5090
        %5190 = vmatprep.subr.mxu0 %v5093
        %5191 = vmatpush1.msra.mxu0 %v5092
        %5192 = vmatprep.subr.mxu0 %v5095
        %5193 = vmatpush1.msra.mxu0 %v5094
        %5194 = vmatprep.subr.mxu0 %v5097
        %5195 = vmatpush1.msra.mxu0 %v5096
        %5196 = vmatprep.subr.mxu0 %v5099
        %5197 = vmatpush1.msra.mxu0 %v5098
        %5198 = vmatprep.subr.mxu0 0.0
        %5199 = vmatpush1.msra.mxu0 0.0
        %5200 = vmatprep.subr.mxu0 0.0
        %5201 = vmatpush1.msra.mxu0 0.0
        %5202 = vmatprep.subr.mxu0 0.0
        %5203 = vmatpush1.msra.mxu0 0.0
        %5204 = vmatprep.subr.mxu0 0.0
        %5205 = vmatpush1.msra.mxu0 0.0
        %5206 = vmatprep.subr.mxu0 0.0
        %5207 = vmatpush1.msra.mxu0 0.0
        %5208 = vmatprep.subr.mxu0 0.0
        %5209 = vmatpush1.msra.mxu0 0.0
        %5210 = vmatprep.subr.mxu0 0.0
        %5211 = vmatpush1.msra.mxu0 0.0
        %5212 = vmatprep.subr.mxu0 0.0
        %5213 = vmatpush1.msra.mxu0 0.0
        %5214 = vmatprep.subr.mxu0 0.0
        %5215 = vmatpush1.msra.mxu0 0.0
        %5216 = vmatprep.subr.mxu0 0.0
        %5217 = vmatpush1.msra.mxu0 0.0
        %5218 = vmatprep.subr.mxu0 0.0
        %5219 = vmatpush1.msra.mxu0 0.0
        %5220 = vmatprep.subr.mxu0 0.0
        %5221 = vmatpush1.msra.mxu0 0.0
        %5222 = vmatprep.subr.mxu0 0.0
        %5223 = vmatpush1.msra.mxu0 0.0
        %5224 = vmatprep.subr.mxu0 0.0
        %5225 = vmatpush1.msra.mxu0 0.0
        %5226 = vmatprep.subr.mxu0 0.0
        %5227 = vmatpush1.msra.mxu0 0.0
        %5228 = vmatprep.subr.mxu0 0.0
        %5229 = vmatpush1.msra.mxu0 0.0
        %5230 = vmatprep.subr.mxu0 0.0
        %5231 = vmatpush1.msra.mxu0 0.0
        %5232 = vmatprep.subr.mxu0 0.0
        %5233 = vmatpush1.msra.mxu0 0.0
        %5234 = vmatprep.subr.mxu0 0.0
        %5235 = vmatpush1.msra.mxu0 0.0
        %5236 = vmatprep.subr.mxu0 0.0
        %5237 = vmatpush1.msra.mxu0 0.0
        %5238 = vmatprep.mubr.f32.mxu0 0.0
        %5239 = vmatmul.mubr.f32.gmra.mrb[0].mxu0 %v5101
        %v5240 = vpop.f32.mrb[0].mxu0
        %v5241 = vadd.f32 %v5170, %v5240
        %v5242 = vpop.f32.mrb[0].mxu0
        %v5243 = vadd.f32 %v5172, %v5242
        %5244 = vdwg.mxu0
        %v5245 = vld [vmem:[%s13] sm:$0xff]
        %v5246 = vld [vmem:[%s13 + $0x8] sm:$0xff]
        %v5247 = vld [vmem:[%s13 + $0x10] sm:$0xff]
        %v5248 = vld [vmem:[%s13 + $0x18] sm:$0xff]
        %v5249 = vld [vmem:[%s13 + $0x20] sm:$0xff]
        %v5250 = vld [vmem:[%s13 + $0x28] sm:$0xff]
        %v5251 = vld [vmem:[%s13 + $0x30] sm:$0xff]
        %v5252 = vld [vmem:[%s13 + $0x38] sm:$0xff]
        %v5253 = vld [vmem:[%s13 + $0x40] sm:$0xff]
        %v5254 = vld [vmem:[%s13 + $0x48] sm:$0xff]
        %v5255 = vld [vmem:[%s13 + $0x50] sm:$0xff]
        %v5256 = vld [vmem:[%s13 + $0x58] sm:$0xff]
        %v5257 = vld [vmem:[%s13 + $0x60] sm:$0xff]
        %v5258 = vld [vmem:[%s13 + $0x68] sm:$0xff]
        %v5259 = vld [vmem:[%s13 + $0x70] sm:$0xff]
        %v5260 = vld [vmem:[%s13 + $0x78] sm:$0xff]
        %v5261 = vld [vmem:[%s13 + $0x80] sm:$0xff]
        %v5262 = vld [vmem:[%s13 + $0x88] sm:$0xff]
        %v5263 = vld [vmem:[%s13 + $0x90] sm:$0xff]
        %v5264 = vld [vmem:[%s13 + $0x98] sm:$0xff]
        %v5265 = vld [vmem:[%s13 + $0xa0] sm:$0xff]
        %v5266 = vld [vmem:[%s13 + $0xa8] sm:$0xff]
        %v5267 = vld [vmem:[%s13 + $0xb0] sm:$0xff]
        %v5268 = vld [vmem:[%s13 + $0xb8] sm:$0xff]
        %v5269 = vld [vmem:[%s13 + $0xc0] sm:$0xff]
        %v5270 = vld [vmem:[%s13 + $0xc8] sm:$0xff]
        %v5271 = vld [vmem:[%s13 + $0xd0] sm:$0xff]
        %v5272 = vld [vmem:[%s13 + $0xd8] sm:$0xff]
        %v5273 = vld [vmem:[%s13 + $0xe0] sm:$0xff]
        %v5274 = vld [vmem:[%s13 + $0xe8] sm:$0xff]
        %v5275 = vld [vmem:[%s13 + $0xf0] sm:$0xff]
        %v5276 = vld [vmem:[%s13 + $0xf8] sm:$0xff]
        %v5277 = vld [vmem:[%s13 + $0x100] sm:$0xff]
        %v5278 = vld [vmem:[%s13 + $0x108] sm:$0xff]
        %v5279 = vld [vmem:[%s13 + $0x110] sm:$0xff]
        %v5280 = vld [vmem:[%s13 + $0x118] sm:$0xff]
        %v5281 = vld [vmem:[%s13 + $0x120] sm:$0xff]
        %v5282 = vld [vmem:[%s13 + $0x128] sm:$0xff]
        %v5283 = vld [vmem:[%s13 + $0x130] sm:$0xff]
        %v5284 = vld [vmem:[%s13 + $0x138] sm:$0xff]
        %v5285 = vld [vmem:[%s13 + $0x140] sm:$0xff]
        %v5286 = vld [vmem:[%s13 + $0x148] sm:$0xff]
        %v5287 = vld [vmem:[%s13 + $0x150] sm:$0xff]
        %v5288 = vld [vmem:[%s13 + $0x158] sm:$0xff]
        %v5289 = vld [vmem:[%s13 + $0x160] sm:$0xff]
        %v5290 = vld [vmem:[%s13 + $0x168] sm:$0xff]
        %v5291 = vld [vmem:[%s13 + $0x170] sm:$0xff]
        %v5292 = vld [vmem:[%s13 + $0x178] sm:$0xff]
        %s5293 = scalar_lea.vmem %s13, 384
        %v5294 = vld [vmem:[%s5293] sm:$0xff]
        %v5295 = vld [vmem:[%s5293 + $0x8] sm:$0xff]
        %v5296 = vld [vmem:[%s5293 + $0x10] sm:$0xff]
        %v5297 = vld [vmem:[%s5293 + $0x18] sm:$0xff]
        %v5298 = vld [vmem:[%s5293 + $0x20] sm:$0xff]
        %v5299 = vld [vmem:[%s5293 + $0x28] sm:$0xff]
        %v5300 = vld [vmem:[%s5293 + $0x30] sm:$0xff]
        %v5301 = vld [vmem:[%s5293 + $0x38] sm:$0xff]
        %v5302 = vld [vmem:[%s5293 + $0x40] sm:$0xff]
        %v5303 = vld [vmem:[%s5293 + $0x48] sm:$0xff]
        %v5304 = vld [vmem:[%s5293 + $0x50] sm:$0xff]
        %v5305 = vld [vmem:[%s5293 + $0x58] sm:$0xff]
        %v5306 = vld [vmem:[%s5293 + $0x60] sm:$0xff]
        %v5307 = vld [vmem:[%s5293 + $0x68] sm:$0xff]
        %v5308 = vld [vmem:[%s5293 + $0x70] sm:$0xff]
        %v5309 = vld [vmem:[%s5293 + $0x78] sm:$0xff]
        %v5310 = vld [vmem:[%s5293 + $0x80] sm:$0xff]
        %v5311 = vld [vmem:[%s5293 + $0x88] sm:$0xff]
        %v5312 = vld [vmem:[%s5293 + $0x90] sm:$0xff]
        %v5313 = vld [vmem:[%s5293 + $0x98] sm:$0xff]
        %v5314 = vld [vmem:[%s5293 + $0xa0] sm:$0xff]
        %v5315 = vld [vmem:[%s5293 + $0xa8] sm:$0xff]
        %v5316 = vld [vmem:[%s5293 + $0xb0] sm:$0xff]
        %v5317 = vld [vmem:[%s5293 + $0xb8] sm:$0xff]
        %v5318 = vld [vmem:[%s5293 + $0xc0] sm:$0xff]
        %v5319 = vld [vmem:[%s5293 + $0xc8] sm:$0xff]
        %v5320 = vld [vmem:[%s5293 + $0xd0] sm:$0xff]
        %v5321 = vld [vmem:[%s5293 + $0xd8] sm:$0xff]
        %v5322 = vld [vmem:[%s5293 + $0xe0] sm:$0xff]
        %v5323 = vld [vmem:[%s5293 + $0xe8] sm:$0xff]
        %v5324 = vld [vmem:[%s5293 + $0xf0] sm:$0xff]
        %v5325 = vld [vmem:[%s5293 + $0xf8] sm:$0xff]
        %v5326 = vld [vmem:[%s5293 + $0x100] sm:$0xff]
        %v5327 = vld [vmem:[%s5293 + $0x108] sm:$0xff]
        %v5328 = vld [vmem:[%s5293 + $0x110] sm:$0xff]
        %v5329 = vld [vmem:[%s5293 + $0x118] sm:$0xff]
        %v5330 = vld [vmem:[%s5293 + $0x120] sm:$0xff]
        %v5331 = vld [vmem:[%s5293 + $0x128] sm:$0xff]
        %v5332 = vld [vmem:[%s5293 + $0x130] sm:$0xff]
        %v5333 = vld [vmem:[%s5293 + $0x138] sm:$0xff]
        %v5334 = vld [vmem:[%s5293 + $0x140] sm:$0xff]
        %v5335 = vld [vmem:[%s5293 + $0x148] sm:$0xff]
        %v5336 = vld [vmem:[%s5293 + $0x150] sm:$0xff]
        %v5337 = vld [vmem:[%s5293 + $0x158] sm:$0xff]
        %v5338 = vld [vmem:[%s5293 + $0x160] sm:$0xff]
        %v5339 = vld [vmem:[%s5293 + $0x168] sm:$0xff]
        %v5340 = vld [vmem:[%s5293 + $0x170] sm:$0xff]
        %v5341 = vld [vmem:[%s5293 + $0x178] sm:$0xff]
        %v5344 = vrot.slane %v5241, 1
        %v5345 = vrot.slane %v5243, 1
        %v5347 = vsel %vm735, %v5345, 0
        %5349 = vmatprep.subr.mxu0 %v5295
        %5350 = vmatpush1.msra.mxu0 %v5294
        %5351 = vmatprep.subr.mxu0 %v5297
        %5352 = vmatpush1.msra.mxu0 %v5296
        %5353 = vmatprep.subr.mxu0 %v5299
        %5354 = vmatpush1.msra.mxu0 %v5298
        %5355 = vmatprep.subr.mxu0 %v5301
        %5356 = vmatpush1.msra.mxu0 %v5300
        %5357 = vmatprep.subr.mxu0 %v5303
        %5358 = vmatpush1.msra.mxu0 %v5302
        %5359 = vmatprep.subr.mxu0 %v5305
        %5360 = vmatpush1.msra.mxu0 %v5304
        %5361 = vmatprep.subr.mxu0 %v5307
        %5362 = vmatpush1.msra.mxu0 %v5306
        %5363 = vmatprep.subr.mxu0 %v5309
        %5364 = vmatpush1.msra.mxu0 %v5308
        %5365 = vmatprep.subr.mxu0 %v5311
        %5366 = vmatpush1.msra.mxu0 %v5310
        %5367 = vmatprep.subr.mxu0 %v5313
        %5368 = vmatpush1.msra.mxu0 %v5312
        %5369 = vmatprep.subr.mxu0 %v5315
        %5370 = vmatpush1.msra.mxu0 %v5314
        %5371 = vmatprep.subr.mxu0 %v5317
        %5372 = vmatpush1.msra.mxu0 %v5316
        %5373 = vmatprep.subr.mxu0 %v5319
        %5374 = vmatpush1.msra.mxu0 %v5318
        %5375 = vmatprep.subr.mxu0 %v5321
        %5376 = vmatpush1.msra.mxu0 %v5320
        %5377 = vmatprep.subr.mxu0 %v5323
        %5378 = vmatpush1.msra.mxu0 %v5322
        %5379 = vmatprep.subr.mxu0 %v5325
        %5380 = vmatpush1.msra.mxu0 %v5324
        %5381 = vmatprep.subr.mxu0 %v5327
        %5382 = vmatpush1.msra.mxu0 %v5326
        %5383 = vmatprep.subr.mxu0 %v5329
        %5384 = vmatpush1.msra.mxu0 %v5328
        %5385 = vmatprep.subr.mxu0 %v5331
        %5386 = vmatpush1.msra.mxu0 %v5330
        %5387 = vmatprep.subr.mxu0 %v5333
        %5388 = vmatpush1.msra.mxu0 %v5332
        %5389 = vmatprep.subr.mxu0 %v5335
        %5390 = vmatpush1.msra.mxu0 %v5334
        %5391 = vmatprep.subr.mxu0 %v5337
        %5392 = vmatpush1.msra.mxu0 %v5336
        %5393 = vmatprep.subr.mxu0 %v5339
        %5394 = vmatpush1.msra.mxu0 %v5338
        %5395 = vmatprep.subr.mxu0 %v5341
        %5396 = vmatpush1.msra.mxu0 %v5340
        %5397 = vmatprep.subr.mxu0 0.0
        %5398 = vmatpush1.msra.mxu0 0.0
        %5399 = vmatprep.subr.mxu0 0.0
        %5400 = vmatpush1.msra.mxu0 0.0
        %5401 = vmatprep.subr.mxu0 0.0
        %5402 = vmatpush1.msra.mxu0 0.0
        %5403 = vmatprep.subr.mxu0 0.0
        %5404 = vmatpush1.msra.mxu0 0.0
        %5405 = vmatprep.subr.mxu0 0.0
        %5406 = vmatpush1.msra.mxu0 0.0
        %5407 = vmatprep.subr.mxu0 0.0
        %5408 = vmatpush1.msra.mxu0 0.0
        %5409 = vmatprep.subr.mxu0 0.0
        %5410 = vmatpush1.msra.mxu0 0.0
        %5411 = vmatprep.subr.mxu0 0.0
        %5412 = vmatpush1.msra.mxu0 0.0
        %5413 = vmatprep.mubr.f32.mxu0 %v5347
        %5414 = vmatmul.mubr.f32.gmra.mrb[0].mxu0 %v5344
        %v5415 = vpop.f32.mrb[0].mxu0
        %v5416 = vadd.f32 0.0, %v5415
        %v5417 = vpop.f32.mrb[0].mxu0
        %v5418 = vadd.f32 0.0, %v5417
        %5419 = vdwg.mxu0
        %v5420 = vsel %vm735, %v5243, 0
        %5422 = vmatprep.subr.mxu0 %v5246
        %5423 = vmatpush1.msra.mxu0 %v5245
        %5424 = vmatprep.subr.mxu0 %v5248
        %5425 = vmatpush1.msra.mxu0 %v5247
        %5426 = vmatprep.subr.mxu0 %v5250
        %5427 = vmatpush1.msra.mxu0 %v5249
        %5428 = vmatprep.subr.mxu0 %v5252
        %5429 = vmatpush1.msra.mxu0 %v5251
        %5430 = vmatprep.subr.mxu0 %v5254
        %5431 = vmatpush1.msra.mxu0 %v5253
        %5432 = vmatprep.subr.mxu0 %v5256
        %5433 = vmatpush1.msra.mxu0 %v5255
        %5434 = vmatprep.subr.mxu0 %v5258
        %5435 = vmatpush1.msra.mxu0 %v5257
        %5436 = vmatprep.subr.mxu0 %v5260
        %5437 = vmatpush1.msra.mxu0 %v5259
        %5438 = vmatprep.subr.mxu0 %v5262
        %5439 = vmatpush1.msra.mxu0 %v5261
        %5440 = vmatprep.subr.mxu0 %v5264
        %5441 = vmatpush1.msra.mxu0 %v5263
        %5442 = vmatprep.subr.mxu0 %v5266
        %5443 = vmatpush1.msra.mxu0 %v5265
        %5444 = vmatprep.subr.mxu0 %v5268
        %5445 = vmatpush1.msra.mxu0 %v5267
        %5446 = vmatprep.subr.mxu0 %v5270
        %5447 = vmatpush1.msra.mxu0 %v5269
        %5448 = vmatprep.subr.mxu0 %v5272
        %5449 = vmatpush1.msra.mxu0 %v5271
        %5450 = vmatprep.subr.mxu0 %v5274
        %5451 = vmatpush1.msra.mxu0 %v5273
        %5452 = vmatprep.subr.mxu0 %v5276
        %5453 = vmatpush1.msra.mxu0 %v5275
        %5454 = vmatprep.subr.mxu0 %v5278
        %5455 = vmatpush1.msra.mxu0 %v5277
        %5456 = vmatprep.subr.mxu0 %v5280
        %5457 = vmatpush1.msra.mxu0 %v5279
        %5458 = vmatprep.subr.mxu0 %v5282
        %5459 = vmatpush1.msra.mxu0 %v5281
        %5460 = vmatprep.subr.mxu0 %v5284
        %5461 = vmatpush1.msra.mxu0 %v5283
        %5462 = vmatprep.subr.mxu0 %v5286
        %5463 = vmatpush1.msra.mxu0 %v5285
        %5464 = vmatprep.subr.mxu0 %v5288
        %5465 = vmatpush1.msra.mxu0 %v5287
        %5466 = vmatprep.subr.mxu0 %v5290
        %5467 = vmatpush1.msra.mxu0 %v5289
        %5468 = vmatprep.subr.mxu0 %v5292
        %5469 = vmatpush1.msra.mxu0 %v5291
        %5470 = vmatprep.subr.mxu0 0.0
        %5471 = vmatpush1.msra.mxu0 0.0
        %5472 = vmatprep.subr.mxu0 0.0
        %5473 = vmatpush1.msra.mxu0 0.0
        %5474 = vmatprep.subr.mxu0 0.0
        %5475 = vmatpush1.msra.mxu0 0.0
        %5476 = vmatprep.subr.mxu0 0.0
        %5477 = vmatpush1.msra.mxu0 0.0
        %5478 = vmatprep.subr.mxu0 0.0
        %5479 = vmatpush1.msra.mxu0 0.0
        %5480 = vmatprep.subr.mxu0 0.0
        %5481 = vmatpush1.msra.mxu0 0.0
        %5482 = vmatprep.subr.mxu0 0.0
        %5483 = vmatpush1.msra.mxu0 0.0
        %5484 = vmatprep.subr.mxu0 0.0
        %5485 = vmatpush1.msra.mxu0 0.0
        %5486 = vmatprep.mubr.f32.mxu0 %v5420
        %5487 = vmatmul.mubr.f32.gmra.mrb[0].mxu0 %v5241
        %v5488 = vpop.f32.mrb[0].mxu0
        %v5489 = vadd.f32 %v5416, %v5488
        %v5490 = vpop.f32.mrb[0].mxu0
        %v5491 = vadd.f32 %v5418, %v5490
        %5492 = vdwg.mxu0
        %s5493 = scalar_lea.vmem %s13, 768
        %v5494 = vld [vmem:[%s5493] sm:$0xff]
        %v5495 = vld [vmem:[%s5493 + $0x8] sm:$0xff]
        %v5496 = vld [vmem:[%s5493 + $0x10] sm:$0xff]
        %v5497 = vld [vmem:[%s5493 + $0x18] sm:$0xff]
        %v5498 = vld [vmem:[%s5493 + $0x20] sm:$0xff]
        %v5499 = vld [vmem:[%s5493 + $0x28] sm:$0xff]
        %v5500 = vld [vmem:[%s5493 + $0x30] sm:$0xff]
        %v5501 = vld [vmem:[%s5493 + $0x38] sm:$0xff]
        %v5502 = vld [vmem:[%s5493 + $0x40] sm:$0xff]
        %v5503 = vld [vmem:[%s5493 + $0x48] sm:$0xff]
        %v5504 = vld [vmem:[%s5493 + $0x50] sm:$0xff]
        %v5505 = vld [vmem:[%s5493 + $0x58] sm:$0xff]
        %v5506 = vld [vmem:[%s5493 + $0x60] sm:$0xff]
        %v5507 = vld [vmem:[%s5493 + $0x68] sm:$0xff]
        %v5508 = vld [vmem:[%s5493 + $0x70] sm:$0xff]
        %v5509 = vld [vmem:[%s5493 + $0x78] sm:$0xff]
        %v5510 = vld [vmem:[%s5493 + $0x80] sm:$0xff]
        %v5511 = vld [vmem:[%s5493 + $0x88] sm:$0xff]
        %v5512 = vld [vmem:[%s5493 + $0x90] sm:$0xff]
        %v5513 = vld [vmem:[%s5493 + $0x98] sm:$0xff]
        %v5514 = vld [vmem:[%s5493 + $0xa0] sm:$0xff]
        %v5515 = vld [vmem:[%s5493 + $0xa8] sm:$0xff]
        %v5516 = vld [vmem:[%s5493 + $0xb0] sm:$0xff]
        %v5517 = vld [vmem:[%s5493 + $0xb8] sm:$0xff]
        %v5518 = vld [vmem:[%s5493 + $0xc0] sm:$0xff]
        %v5519 = vld [vmem:[%s5493 + $0xc8] sm:$0xff]
        %v5520 = vld [vmem:[%s5493 + $0xd0] sm:$0xff]
        %v5521 = vld [vmem:[%s5493 + $0xd8] sm:$0xff]
        %v5522 = vld [vmem:[%s5493 + $0xe0] sm:$0xff]
        %v5523 = vld [vmem:[%s5493 + $0xe8] sm:$0xff]
        %v5524 = vld [vmem:[%s5493 + $0xf0] sm:$0xff]
        %v5525 = vld [vmem:[%s5493 + $0xf8] sm:$0xff]
        %v5526 = vld [vmem:[%s5493 + $0x100] sm:$0xff]
        %v5527 = vld [vmem:[%s5493 + $0x108] sm:$0xff]
        %v5528 = vld [vmem:[%s5493 + $0x110] sm:$0xff]
        %v5529 = vld [vmem:[%s5493 + $0x118] sm:$0xff]
        %v5530 = vld [vmem:[%s5493 + $0x120] sm:$0xff]
        %v5531 = vld [vmem:[%s5493 + $0x128] sm:$0xff]
        %v5532 = vld [vmem:[%s5493 + $0x130] sm:$0xff]
        %v5533 = vld [vmem:[%s5493 + $0x138] sm:$0xff]
        %v5534 = vld [vmem:[%s5493 + $0x140] sm:$0xff]
        %v5535 = vld [vmem:[%s5493 + $0x148] sm:$0xff]
        %v5536 = vld [vmem:[%s5493 + $0x150] sm:$0xff]
        %v5537 = vld [vmem:[%s5493 + $0x158] sm:$0xff]
        %v5538 = vld [vmem:[%s5493 + $0x160] sm:$0xff]
        %v5539 = vld [vmem:[%s5493 + $0x168] sm:$0xff]
        %v5540 = vld [vmem:[%s5493 + $0x170] sm:$0xff]
        %v5541 = vld [vmem:[%s5493 + $0x178] sm:$0xff]
        %v5542 = vrot.slane %v5241, 2
        %v5543 = vrot.slane %v5243, 2
        %v5545 = vsel %vm735, %v5543, 0
        %5547 = vmatprep.subr.mxu0 %v5495
        %5548 = vmatpush1.msra.mxu0 %v5494
        %5549 = vmatprep.subr.mxu0 %v5497
        %5550 = vmatpush1.msra.mxu0 %v5496
        %5551 = vmatprep.subr.mxu0 %v5499
        %5552 = vmatpush1.msra.mxu0 %v5498
        %5553 = vmatprep.subr.mxu0 %v5501
        %5554 = vmatpush1.msra.mxu0 %v5500
        %5555 = vmatprep.subr.mxu0 %v5503
        %5556 = vmatpush1.msra.mxu0 %v5502
        %5557 = vmatprep.subr.mxu0 %v5505
        %5558 = vmatpush1.msra.mxu0 %v5504
        %5559 = vmatprep.subr.mxu0 %v5507
        %5560 = vmatpush1.msra.mxu0 %v5506
        %5561 = vmatprep.subr.mxu0 %v5509
        %5562 = vmatpush1.msra.mxu0 %v5508
        %5563 = vmatprep.subr.mxu0 %v5511
        %5564 = vmatpush1.msra.mxu0 %v5510
        %5565 = vmatprep.subr.mxu0 %v5513
        %5566 = vmatpush1.msra.mxu0 %v5512
        %5567 = vmatprep.subr.mxu0 %v5515
        %5568 = vmatpush1.msra.mxu0 %v5514
        %5569 = vmatprep.subr.mxu0 %v5517
        %5570 = vmatpush1.msra.mxu0 %v5516
        %5571 = vmatprep.subr.mxu0 %v5519
        %5572 = vmatpush1.msra.mxu0 %v5518
        %5573 = vmatprep.subr.mxu0 %v5521
        %5574 = vmatpush1.msra.mxu0 %v5520
        %5575 = vmatprep.subr.mxu0 %v5523
        %5576 = vmatpush1.msra.mxu0 %v5522
        %5577 = vmatprep.subr.mxu0 %v5525
        %5578 = vmatpush1.msra.mxu0 %v5524
        %5579 = vmatprep.subr.mxu0 %v5527
        %5580 = vmatpush1.msra.mxu0 %v5526
        %5581 = vmatprep.subr.mxu0 %v5529
        %5582 = vmatpush1.msra.mxu0 %v5528
        %5583 = vmatprep.subr.mxu0 %v5531
        %5584 = vmatpush1.msra.mxu0 %v5530
        %5585 = vmatprep.subr.mxu0 %v5533
        %5586 = vmatpush1.msra.mxu0 %v5532
        %5587 = vmatprep.subr.mxu0 %v5535
        %5588 = vmatpush1.msra.mxu0 %v5534
        %5589 = vmatprep.subr.mxu0 %v5537
        %5590 = vmatpush1.msra.mxu0 %v5536
        %5591 = vmatprep.subr.mxu0 %v5539
        %5592 = vmatpush1.msra.mxu0 %v5538
        %5593 = vmatprep.subr.mxu0 %v5541
        %5594 = vmatpush1.msra.mxu0 %v5540
        %5595 = vmatprep.subr.mxu0 0.0
        %5596 = vmatpush1.msra.mxu0 0.0
        %5597 = vmatprep.subr.mxu0 0.0
        %5598 = vmatpush1.msra.mxu0 0.0
        %5599 = vmatprep.subr.mxu0 0.0
        %5600 = vmatpush1.msra.mxu0 0.0
        %5601 = vmatprep.subr.mxu0 0.0
        %5602 = vmatpush1.msra.mxu0 0.0
        %5603 = vmatprep.subr.mxu0 0.0
        %5604 = vmatpush1.msra.mxu0 0.0
        %5605 = vmatprep.subr.mxu0 0.0
        %5606 = vmatpush1.msra.mxu0 0.0
        %5607 = vmatprep.subr.mxu0 0.0
        %5608 = vmatpush1.msra.mxu0 0.0
        %5609 = vmatprep.subr.mxu0 0.0
        %5610 = vmatpush1.msra.mxu0 0.0
        %5611 = vmatprep.mubr.f32.mxu0 %v5545
        %5612 = vmatmul.mubr.f32.gmra.mrb[0].mxu0 %v5542
        %v5613 = vpop.f32.mrb[0].mxu0
        %v5614 = vadd.f32 0.0, %v5613
        %v5615 = vpop.f32.mrb[0].mxu0
        %v5616 = vadd.f32 0.0, %v5615
        %5617 = vdwg.mxu0
        %v5618 = vadd.f32 %v5489, %v5614
        %v5619 = vadd.f32 %v5491, %v5616
        %v5620 = vld [vmem:[%s14] sm:$0x3]
        %v5622 = vlaneseq
        %v5623 = vshrl.u32 %v5622, 7
        %v5624 = vsub.s32 0, %v5623
        %v5625 = vrot.slane %v5620, %v5624
        %v5626 = vlaneseq
        %v5627 = vshrl.u32 %v5626, 7
        %v5628 = vsub.s32 1, %v5627
        %v5629 = vrot.slane %v5620, %v5628
        %v5632 = vadd.f32 %v5618, %v5625
        %v5633 = vadd.f32 %v5619, %v5629
        %v5634 = vmax.f32 %v5632, 0.0
        %v5635 = vmax.f32 %v5633, 0.0
        %v5638 = vrot.slane %v5634, 1
        %v5639 = vrot.slane %v5635, 1
        %v5642 = vmax.f32 %v5634, %v5638
        %v5643 = vmax.f32 %v5635, %v5639
        %v5644 = vld [vmem:[%s15] sm:$0x3]
        %vm5645 = vcmask 23552
        %v5647 = vsel %vm5645, %v5644, 0
        %v5650 = vsel %vm4844, %v5642, 0
        %v5653 = vsel %vm4844, %v5643, 0
        %5655 = vmatprep.subr.mxu0 %v5653
        %5656 = vmatpush1.msra.mxu0 %v5650
        %5657 = vmatprep.subr.mxu0 0.0
        %5658 = vmatpush1.msra.mxu0 0.0
        %5659 = vmatprep.subr.mxu0 0.0
        %5660 = vmatpush1.msra.mxu0 0.0
        %5661 = vmatprep.subr.mxu0 0.0
        %5662 = vmatpush1.msra.mxu0 0.0
        %5663 = vmatprep.subr.mxu0 0.0
        %5664 = vmatpush1.msra.mxu0 0.0
        %5665 = vmatprep.subr.mxu0 0.0
        %5666 = vmatpush1.msra.mxu0 0.0
        %5667 = vmatprep.subr.mxu0 0.0
        %5668 = vmatpush1.msra.mxu0 0.0
        %5669 = vmatprep.subr.mxu0 0.0
        %5670 = vmatpush1.msra.mxu0 0.0
        %5671 = vmatprep.subr.mxu0 0.0
        %5672 = vmatpush1.msra.mxu0 0.0
        %5673 = vmatprep.subr.mxu0 0.0
        %5674 = vmatpush1.msra.mxu0 0.0
        %5675 = vmatprep.subr.mxu0 0.0
        %5676 = vmatpush1.msra.mxu0 0.0
        %5677 = vmatprep.subr.mxu0 0.0
        %5678 = vmatpush1.msra.mxu0 0.0
        %5679 = vmatprep.subr.mxu0 0.0
        %5680 = vmatpush1.msra.mxu0 0.0
        %5681 = vmatprep.subr.mxu0 0.0
        %5682 = vmatpush1.msra.mxu0 0.0
        %5683 = vmatprep.subr.mxu0 0.0
        %5684 = vmatpush1.msra.mxu0 0.0
        %5685 = vmatprep.subr.mxu0 0.0
        %5686 = vmatpush1.msra.mxu0 0.0
        %5687 = vmatprep.subr.mxu0 0.0
        %5688 = vmatpush1.msra.mxu0 0.0
        %5689 = vmatprep.subr.mxu0 0.0
        %5690 = vmatpush1.msra.mxu0 0.0
        %5691 = vmatprep.subr.mxu0 0.0
        %5692 = vmatpush1.msra.mxu0 0.0
        %5693 = vmatprep.subr.mxu0 0.0
        %5694 = vmatpush1.msra.mxu0 0.0
        %5695 = vmatprep.subr.mxu0 0.0
        %5696 = vmatpush1.msra.mxu0 0.0
        %5697 = vmatprep.subr.mxu0 0.0
        %5698 = vmatpush1.msra.mxu0 0.0
        %5699 = vmatprep.subr.mxu0 0.0
        %5700 = vmatpush1.msra.mxu0 0.0
        %5701 = vmatprep.subr.mxu0 0.0
        %5702 = vmatpush1.msra.mxu0 0.0
        %5703 = vmatprep.subr.mxu0 0.0
        %5704 = vmatpush1.msra.mxu0 0.0
        %5705 = vmatprep.subr.mxu0 0.0
        %5706 = vmatpush1.msra.mxu0 0.0
        %5707 = vmatprep.subr.mxu0 0.0
        %5708 = vmatpush1.msra.mxu0 0.0
        %5709 = vmatprep.subr.mxu0 0.0
        %5710 = vmatpush1.msra.mxu0 0.0
        %5711 = vmatprep.subr.mxu0 0.0
        %5712 = vmatpush1.msra.mxu0 0.0
        %5713 = vmatprep.subr.mxu0 0.0
        %5714 = vmatpush1.msra.mxu0 0.0
        %5715 = vmatprep.subr.mxu0 0.0
        %5716 = vmatpush1.msra.mxu0 0.0
        %5717 = vmatprep.subr.mxu0 0.0
        %5718 = vmatpush1.msra.mxu0 0.0
        %5719 = vmatprep.mubr.f32.mxu0 0.0
        %5720 = vmatmul.mubr.f32.gmra.mrb[0].mxu0 %v5647
        %v5721 = vpop.f32.mrb[0].mxu0
        %v5722 = vadd.f32 0.0, %v5721
        %v5723 = vpop.f32.mrb[0].mxu0
        %v5724 = vadd.f32 0.0, %v5723
        %5725 = vdwg.mxu0
        %5728 = vrot.lane.b32.xlu0 %v5722, 64
        %v5729 = vpop.permute.xlu0 %5728
        %5730 = vrot.lane.b32.xlu0 %v5724, 64
        %v5731 = vpop.permute.xlu0 %5730
        %v5732 = vsel %vm735, %v5729, %v5731
        %v5735 = vmax.f32 %v5722, %v5732
        %v5736 = vmax.f32 %v5724, %v5731
        %v5737 = vld [vmem:[%s16] sm:$0xff]
        %v5738 = vld [vmem:[%s16 + $0x8] sm:$0xff]
        %v5739 = vld [vmem:[%s16 + $0x10] sm:$0xff]
        %v5740 = vld [vmem:[%s16 + $0x18] sm:$0xff]
        %v5741 = vld [vmem:[%s16 + $0x20] sm:$0xff]
        %v5742 = vld [vmem:[%s16 + $0x28] sm:$0xff]
        %v5743 = vld [vmem:[%s16 + $0x30] sm:$0xff]
        %v5744 = vld [vmem:[%s16 + $0x38] sm:$0xff]
        %v5745 = vld [vmem:[%s16 + $0x40] sm:$0xff]
        %v5746 = vld [vmem:[%s16 + $0x48] sm:$0xff]
        %v5747 = vld [vmem:[%s16 + $0x50] sm:$0xff]
        %v5748 = vld [vmem:[%s16 + $0x58] sm:$0xff]
        %v5749 = vld [vmem:[%s16 + $0x60] sm:$0xff]
        %v5750 = vld [vmem:[%s16 + $0x68] sm:$0xff]
        %v5751 = vld [vmem:[%s16 + $0x70] sm:$0xff]
        %v5752 = vld [vmem:[%s16 + $0x78] sm:$0xff]
        %v5753 = vld [vmem:[%s16 + $0x80] sm:$0xff]
        %v5754 = vld [vmem:[%s16 + $0x88] sm:$0xff]
        %v5755 = vld [vmem:[%s16 + $0x90] sm:$0xff]
        %v5756 = vld [vmem:[%s16 + $0x98] sm:$0xff]
        %v5757 = vld [vmem:[%s16 + $0xa0] sm:$0xff]
        %v5758 = vld [vmem:[%s16 + $0xa8] sm:$0xff]
        %v5759 = vld [vmem:[%s16 + $0xb0] sm:$0xff]
        %v5760 = vld [vmem:[%s16 + $0xb8] sm:$0xff]
        %v5762 = vsel %vm735, %v5736, 0
        %5764 = vmatprep.subr.mxu0 0.0
        %5765 = vmatpush1.msra.mxu0 %v5737
        %5766 = vmatprep.subr.mxu0 0.0
        %5767 = vmatpush1.msra.mxu0 %v5738
        %5768 = vmatprep.subr.mxu0 0.0
        %5769 = vmatpush1.msra.mxu0 %v5739
        %5770 = vmatprep.subr.mxu0 0.0
        %5771 = vmatpush1.msra.mxu0 %v5740
        %5772 = vmatprep.subr.mxu0 0.0
        %5773 = vmatpush1.msra.mxu0 %v5741
        %5774 = vmatprep.subr.mxu0 0.0
        %5775 = vmatpush1.msra.mxu0 %v5742
        %5776 = vmatprep.subr.mxu0 0.0
        %5777 = vmatpush1.msra.mxu0 %v5743
        %5778 = vmatprep.subr.mxu0 0.0
        %5779 = vmatpush1.msra.mxu0 %v5744
        %5780 = vmatprep.subr.mxu0 0.0
        %5781 = vmatpush1.msra.mxu0 %v5745
        %5782 = vmatprep.subr.mxu0 0.0
        %5783 = vmatpush1.msra.mxu0 %v5746
        %5784 = vmatprep.subr.mxu0 0.0
        %5785 = vmatpush1.msra.mxu0 %v5747
        %5786 = vmatprep.subr.mxu0 0.0
        %5787 = vmatpush1.msra.mxu0 %v5748
        %5788 = vmatprep.subr.mxu0 0.0
        %5789 = vmatpush1.msra.mxu0 %v5749
        %5790 = vmatprep.subr.mxu0 0.0
        %5791 = vmatpush1.msra.mxu0 %v5750
        %5792 = vmatprep.subr.mxu0 0.0
        %5793 = vmatpush1.msra.mxu0 %v5751
        %5794 = vmatprep.subr.mxu0 0.0
        %5795 = vmatpush1.msra.mxu0 %v5752
        %5796 = vmatprep.subr.mxu0 0.0
        %5797 = vmatpush1.msra.mxu0 %v5753
        %5798 = vmatprep.subr.mxu0 0.0
        %5799 = vmatpush1.msra.mxu0 %v5754
        %5800 = vmatprep.subr.mxu0 0.0
        %5801 = vmatpush1.msra.mxu0 %v5755
        %5802 = vmatprep.subr.mxu0 0.0
        %5803 = vmatpush1.msra.mxu0 %v5756
        %5804 = vmatprep.subr.mxu0 0.0
        %5805 = vmatpush1.msra.mxu0 %v5757
        %5806 = vmatprep.subr.mxu0 0.0
        %5807 = vmatpush1.msra.mxu0 %v5758
        %5808 = vmatprep.subr.mxu0 0.0
        %5809 = vmatpush1.msra.mxu0 %v5759
        %5810 = vmatprep.subr.mxu0 0.0
        %5811 = vmatpush1.msra.mxu0 %v5760
        %5812 = vmatprep.subr.mxu0 0.0
        %5813 = vmatpush1.msra.mxu0 0.0
        %5814 = vmatprep.subr.mxu0 0.0
        %5815 = vmatpush1.msra.mxu0 0.0
        %5816 = vmatprep.subr.mxu0 0.0
        %5817 = vmatpush1.msra.mxu0 0.0
        %5818 = vmatprep.subr.mxu0 0.0
        %5819 = vmatpush1.msra.mxu0 0.0
        %5820 = vmatprep.subr.mxu0 0.0
        %5821 = vmatpush1.msra.mxu0 0.0
        %5822 = vmatprep.subr.mxu0 0.0
        %5823 = vmatpush1.msra.mxu0 0.0
        %5824 = vmatprep.subr.mxu0 0.0
        %5825 = vmatpush1.msra.mxu0 0.0
        %5826 = vmatprep.subr.mxu0 0.0
        %5827 = vmatpush1.msra.mxu0 0.0
        %5828 = vmatprep.mubr.f32.mxu0 %v5762
        %5829 = vmatmul.mubr.f32.gmra.mrb[0].mxu0 %v5735
        %v5830 = vpop.f32.mrb[0].mxu0
        %v5831 = vadd.f32 0.0, %v5830
        %v5832 = vpop.f32.mrb[0].mxu0
        %5833 = vdwg.mxu0
        %v5834 = vld [vmem:[%s17] sm:$0xff]
        %v5835 = vld [vmem:[%s17 + $0x8] sm:$0xff]
        %v5836 = vld [vmem:[%s17 + $0x10] sm:$0xff]
        %v5837 = vld [vmem:[%s17 + $0x18] sm:$0xff]
        %v5838 = vld [vmem:[%s17 + $0x20] sm:$0xff]
        %v5839 = vld [vmem:[%s17 + $0x28] sm:$0xff]
        %v5840 = vld [vmem:[%s17 + $0x30] sm:$0xff]
        %v5841 = vld [vmem:[%s17 + $0x38] sm:$0xff]
        %v5842 = vld [vmem:[%s17 + $0x40] sm:$0xff]
        %v5843 = vld [vmem:[%s17 + $0x48] sm:$0xff]
        %v5844 = vld [vmem:[%s17 + $0x50] sm:$0xff]
        %v5845 = vld [vmem:[%s17 + $0x58] sm:$0xff]
        %v5846 = vld [vmem:[%s17 + $0x60] sm:$0xff]
        %v5847 = vld [vmem:[%s17 + $0x68] sm:$0xff]
        %v5848 = vld [vmem:[%s17 + $0x70] sm:$0xff]
        %v5849 = vld [vmem:[%s17 + $0x78] sm:$0xff]
        %s5850 = scalar_lea.vmem %s17, 128
        %v5851 = vld [vmem:[%s5850] sm:$0xff]
        %v5852 = vld [vmem:[%s5850 + $0x8] sm:$0xff]
        %v5853 = vld [vmem:[%s5850 + $0x10] sm:$0xff]
        %v5854 = vld [vmem:[%s5850 + $0x18] sm:$0xff]
        %v5855 = vld [vmem:[%s5850 + $0x20] sm:$0xff]
        %v5856 = vld [vmem:[%s5850 + $0x28] sm:$0xff]
        %v5857 = vld [vmem:[%s5850 + $0x30] sm:$0xff]
        %v5858 = vld [vmem:[%s5850 + $0x38] sm:$0xff]
        %v5859 = vld [vmem:[%s5850 + $0x40] sm:$0xff]
        %v5860 = vld [vmem:[%s5850 + $0x48] sm:$0xff]
        %v5861 = vld [vmem:[%s5850 + $0x50] sm:$0xff]
        %v5862 = vld [vmem:[%s5850 + $0x58] sm:$0xff]
        %v5863 = vld [vmem:[%s5850 + $0x60] sm:$0xff]
        %v5864 = vld [vmem:[%s5850 + $0x68] sm:$0xff]
        %v5865 = vld [vmem:[%s5850 + $0x70] sm:$0xff]
        %v5866 = vld [vmem:[%s5850 + $0x78] sm:$0xff]
        %v5868 = vrot.slane %v5831, 1
        %5870 = vmatprep.subr.mxu0 0.0
        %5871 = vmatpush1.msra.mxu0 %v5851
        %5872 = vmatprep.subr.mxu0 0.0
        %5873 = vmatpush1.msra.mxu0 %v5852
        %5874 = vmatprep.subr.mxu0 0.0
        %5875 = vmatpush1.msra.mxu0 %v5853
        %5876 = vmatprep.subr.mxu0 0.0
        %5877 = vmatpush1.msra.mxu0 %v5854
        %5878 = vmatprep.subr.mxu0 0.0
        %5879 = vmatpush1.msra.mxu0 %v5855
        %5880 = vmatprep.subr.mxu0 0.0
        %5881 = vmatpush1.msra.mxu0 %v5856
        %5882 = vmatprep.subr.mxu0 0.0
        %5883 = vmatpush1.msra.mxu0 %v5857
        %5884 = vmatprep.subr.mxu0 0.0
        %5885 = vmatpush1.msra.mxu0 %v5858
        %5886 = vmatprep.subr.mxu0 0.0
        %5887 = vmatpush1.msra.mxu0 %v5859
        %5888 = vmatprep.subr.mxu0 0.0
        %5889 = vmatpush1.msra.mxu0 %v5860
        %5890 = vmatprep.subr.mxu0 0.0
        %5891 = vmatpush1.msra.mxu0 %v5861
        %5892 = vmatprep.subr.mxu0 0.0
        %5893 = vmatpush1.msra.mxu0 %v5862
        %5894 = vmatprep.subr.mxu0 0.0
        %5895 = vmatpush1.msra.mxu0 %v5863
        %5896 = vmatprep.subr.mxu0 0.0
        %5897 = vmatpush1.msra.mxu0 %v5864
        %5898 = vmatprep.subr.mxu0 0.0
        %5899 = vmatpush1.msra.mxu0 %v5865
        %5900 = vmatprep.subr.mxu0 0.0
        %5901 = vmatpush1.msra.mxu0 %v5866
        %5902 = vmatprep.subr.mxu0 0.0
        %5903 = vmatpush1.msra.mxu0 0.0
        %5904 = vmatprep.subr.mxu0 0.0
        %5905 = vmatpush1.msra.mxu0 0.0
        %5906 = vmatprep.subr.mxu0 0.0
        %5907 = vmatpush1.msra.mxu0 0.0
        %5908 = vmatprep.subr.mxu0 0.0
        %5909 = vmatpush1.msra.mxu0 0.0
        %5910 = vmatprep.subr.mxu0 0.0
        %5911 = vmatpush1.msra.mxu0 0.0
        %5912 = vmatprep.subr.mxu0 0.0
        %5913 = vmatpush1.msra.mxu0 0.0
        %5914 = vmatprep.subr.mxu0 0.0
        %5915 = vmatpush1.msra.mxu0 0.0
        %5916 = vmatprep.subr.mxu0 0.0
        %5917 = vmatpush1.msra.mxu0 0.0
        %5918 = vmatprep.subr.mxu0 0.0
        %5919 = vmatpush1.msra.mxu0 0.0
        %5920 = vmatprep.subr.mxu0 0.0
        %5921 = vmatpush1.msra.mxu0 0.0
        %5922 = vmatprep.subr.mxu0 0.0
        %5923 = vmatpush1.msra.mxu0 0.0
        %5924 = vmatprep.subr.mxu0 0.0
        %5925 = vmatpush1.msra.mxu0 0.0
        %5926 = vmatprep.subr.mxu0 0.0
        %5927 = vmatpush1.msra.mxu0 0.0
        %5928 = vmatprep.subr.mxu0 0.0
        %5929 = vmatpush1.msra.mxu0 0.0
        %5930 = vmatprep.subr.mxu0 0.0
        %5931 = vmatpush1.msra.mxu0 0.0
        %5932 = vmatprep.subr.mxu0 0.0
        %5933 = vmatpush1.msra.mxu0 0.0
        %5934 = vmatprep.mubr.f32.mxu0 0.0
        %5935 = vmatmul.mubr.f32.gmra.mrb[0].mxu0 %v5868
        %v5936 = vpop.f32.mrb[0].mxu0
        %v5937 = vadd.f32 0.0, %v5936
        %v5938 = vpop.f32.mrb[0].mxu0
        %5939 = vdwg.mxu0
        %5940 = vmatprep.subr.mxu0 0.0
        %5941 = vmatpush1.msra.mxu0 %v5834
        %5942 = vmatprep.subr.mxu0 0.0
        %5943 = vmatpush1.msra.mxu0 %v5835
        %5944 = vmatprep.subr.mxu0 0.0
        %5945 = vmatpush1.msra.mxu0 %v5836
        %5946 = vmatprep.subr.mxu0 0.0
        %5947 = vmatpush1.msra.mxu0 %v5837
        %5948 = vmatprep.subr.mxu0 0.0
        %5949 = vmatpush1.msra.mxu0 %v5838
        %5950 = vmatprep.subr.mxu0 0.0
        %5951 = vmatpush1.msra.mxu0 %v5839
        %5952 = vmatprep.subr.mxu0 0.0
        %5953 = vmatpush1.msra.mxu0 %v5840
        %5954 = vmatprep.subr.mxu0 0.0
        %5955 = vmatpush1.msra.mxu0 %v5841
        %5956 = vmatprep.subr.mxu0 0.0
        %5957 = vmatpush1.msra.mxu0 %v5842
        %5958 = vmatprep.subr.mxu0 0.0
        %5959 = vmatpush1.msra.mxu0 %v5843
        %5960 = vmatprep.subr.mxu0 0.0
        %5961 = vmatpush1.msra.mxu0 %v5844
        %5962 = vmatprep.subr.mxu0 0.0
        %5963 = vmatpush1.msra.mxu0 %v5845
        %5964 = vmatprep.subr.mxu0 0.0
        %5965 = vmatpush1.msra.mxu0 %v5846
        %5966 = vmatprep.subr.mxu0 0.0
        %5967 = vmatpush1.msra.mxu0 %v5847
        %5968 = vmatprep.subr.mxu0 0.0
        %5969 = vmatpush1.msra.mxu0 %v5848
        %5970 = vmatprep.subr.mxu0 0.0
        %5971 = vmatpush1.msra.mxu0 %v5849
        %5972 = vmatprep.subr.mxu0 0.0
        %5973 = vmatpush1.msra.mxu0 0.0
        %5974 = vmatprep.subr.mxu0 0.0
        %5975 = vmatpush1.msra.mxu0 0.0
        %5976 = vmatprep.subr.mxu0 0.0
        %5977 = vmatpush1.msra.mxu0 0.0
        %5978 = vmatprep.subr.mxu0 0.0
        %5979 = vmatpush1.msra.mxu0 0.0
        %5980 = vmatprep.subr.mxu0 0.0
        %5981 = vmatpush1.msra.mxu0 0.0
        %5982 = vmatprep.subr.mxu0 0.0
        %5983 = vmatpush1.msra.mxu0 0.0
        %5984 = vmatprep.subr.mxu0 0.0
        %5985 = vmatpush1.msra.mxu0 0.0
        %5986 = vmatprep.subr.mxu0 0.0
        %5987 = vmatpush1.msra.mxu0 0.0
        %5988 = vmatprep.subr.mxu0 0.0
        %5989 = vmatpush1.msra.mxu0 0.0
        %5990 = vmatprep.subr.mxu0 0.0
        %5991 = vmatpush1.msra.mxu0 0.0
        %5992 = vmatprep.subr.mxu0 0.0
        %5993 = vmatpush1.msra.mxu0 0.0
        %5994 = vmatprep.subr.mxu0 0.0
        %5995 = vmatpush1.msra.mxu0 0.0
        %5996 = vmatprep.subr.mxu0 0.0
        %5997 = vmatpush1.msra.mxu0 0.0
        %5998 = vmatprep.subr.mxu0 0.0
        %5999 = vmatpush1.msra.mxu0 0.0
        %6000 = vmatprep.subr.mxu0 0.0
        %6001 = vmatpush1.msra.mxu0 0.0
        %6002 = vmatprep.subr.mxu0 0.0
        %6003 = vmatpush1.msra.mxu0 0.0
        %6004 = vmatprep.mubr.f32.mxu0 0.0
        %6005 = vmatmul.mubr.f32.gmra.mrb[0].mxu0 %v5831
        %v6006 = vpop.f32.mrb[0].mxu0
        %v6007 = vadd.f32 %v5937, %v6006
        %v6008 = vpop.f32.mrb[0].mxu0
        %6009 = vdwg.mxu0
        %v6010 = vld [vmem:[%s18] sm:$0x1]
        %v6011 = vadd.f32 %v6007, %v6010
        %v6012 = vmax.f32 %v6011, 0.0
        %v6013 = vld [vmem:[%s19] sm:$0xff]
        %v6014 = vld [vmem:[%s19 + $0x8] sm:$0xff]
        %v6015 = vld [vmem:[%s19 + $0x10] sm:$0xff]
        %v6016 = vld [vmem:[%s19 + $0x18] sm:$0xff]
        %v6017 = vld [vmem:[%s19 + $0x20] sm:$0xff]
        %v6018 = vld [vmem:[%s19 + $0x28] sm:$0xff]
        %v6019 = vld [vmem:[%s19 + $0x30] sm:$0xff]
        %v6020 = vld [vmem:[%s19 + $0x38] sm:$0xff]
        %v6021 = vld [vmem:[%s20] sm:$0x1]
        %v6023 = vsel %vm735, %v6012, 0
        %6025 = vmatprep.subr.mxu0 0.0
        %6026 = vmatpush1.msra.mxu0 %v6013
        %6027 = vmatprep.subr.mxu0 0.0
        %6028 = vmatpush1.msra.mxu0 %v6014
        %6029 = vmatprep.subr.mxu0 0.0
        %6030 = vmatpush1.msra.mxu0 %v6015
        %6031 = vmatprep.subr.mxu0 0.0
        %6032 = vmatpush1.msra.mxu0 %v6016
        %6033 = vmatprep.subr.mxu0 0.0
        %6034 = vmatpush1.msra.mxu0 %v6017
        %6035 = vmatprep.subr.mxu0 0.0
        %6036 = vmatpush1.msra.mxu0 %v6018
        %6037 = vmatprep.subr.mxu0 0.0
        %6038 = vmatpush1.msra.mxu0 %v6019
        %6039 = vmatprep.subr.mxu0 0.0
        %6040 = vmatpush1.msra.mxu0 %v6020
        %6041 = vmatprep.subr.mxu0 0.0
        %6042 = vmatpush1.msra.mxu0 0.0
        %6043 = vmatprep.subr.mxu0 0.0
        %6044 = vmatpush1.msra.mxu0 0.0
        %6045 = vmatprep.subr.mxu0 0.0
        %6046 = vmatpush1.msra.mxu0 0.0
        %6047 = vmatprep.subr.mxu0 0.0
        %6048 = vmatpush1.msra.mxu0 0.0
        %6049 = vmatprep.subr.mxu0 0.0
        %6050 = vmatpush1.msra.mxu0 0.0
        %6051 = vmatprep.subr.mxu0 0.0
        %6052 = vmatpush1.msra.mxu0 0.0
        %6053 = vmatprep.subr.mxu0 0.0
        %6054 = vmatpush1.msra.mxu0 0.0
        %6055 = vmatprep.subr.mxu0 0.0
        %6056 = vmatpush1.msra.mxu0 0.0
        %6057 = vmatprep.subr.mxu0 0.0
        %6058 = vmatpush1.msra.mxu0 0.0
        %6059 = vmatprep.subr.mxu0 0.0
        %6060 = vmatpush1.msra.mxu0 0.0
        %6061 = vmatprep.subr.mxu0 0.0
        %6062 = vmatpush1.msra.mxu0 0.0
        %6063 = vmatprep.subr.mxu0 0.0
        %6064 = vmatpush1.msra.mxu0 0.0
        %6065 = vmatprep.subr.mxu0 0.0
        %6066 = vmatpush1.msra.mxu0 0.0
        %6067 = vmatprep.subr.mxu0 0.0
        %6068 = vmatpush1.msra.mxu0 0.0
        %6069 = vmatprep.subr.mxu0 0.0
        %6070 = vmatpush1.msra.mxu0 0.0
        %6071 = vmatprep.subr.mxu0 0.0
        %6072 = vmatpush1.msra.mxu0 0.0
        %6073 = vmatprep.subr.mxu0 0.0
        %6074 = vmatpush1.msra.mxu0 0.0
        %6075 = vmatprep.subr.mxu0 0.0
        %6076 = vmatpush1.msra.mxu0 0.0
        %6077 = vmatprep.subr.mxu0 0.0
        %6078 = vmatpush1.msra.mxu0 0.0
        %6079 = vmatprep.subr.mxu0 0.0
        %6080 = vmatpush1.msra.mxu0 0.0
        %6081 = vmatprep.subr.mxu0 0.0
        %6082 = vmatpush1.msra.mxu0 0.0
        %6083 = vmatprep.subr.mxu0 0.0
        %6084 = vmatpush1.msra.mxu0 0.0
        %6085 = vmatprep.subr.mxu0 0.0
        %6086 = vmatpush1.msra.mxu0 0.0
        %6087 = vmatprep.subr.mxu0 0.0
        %6088 = vmatpush1.msra.mxu0 0.0
        %6089 = vmatprep.mubr.f32.mxu0 0.0
        %6090 = vmatmul.mubr.f32.gmra.mrb[0].mxu0 %v6023
        %v6091 = vpop.f32.mrb[0].mxu0
        %v6092 = vadd.f32 %v6021, %v6091
        %v6093 = vpop.f32.mrb[0].mxu0
        %6094 = vdwg.mxu0
        %vm6095 = vcmask 32768
        %v6096 = vsel %vm6095, %v6092, -inf
        %6097 = vmax.xlane.f32.xlu0 %v6096
        %v6098 = vpop.xlane.xlu0 %6097
        %v6099 = vsub.f32 %v6092, %v6098
        %v6100 = vmul.f32 %v6099, 1.442695
        %v6101 = vpow.pop %v6100
        %v6102 = vsel %vm6095, %v6101, 0.0
        %6103 = vadd.xlane.f32.xlu0 %v6102
        %v6104 = vpop.xlane.xlu0 %6103
        %v6105 = vrcp.pop %v6104
        %v6106 = vmul.f32 %v6101, %v6105
        %6107 = vst.msk [vmem:[%s648] sm:$0x1] %vm6095, %v6106
        %s6108 = sand.u32 %s489, 1
        %s6109 = scalar_lea.sflag [#allocation3], %s6108
        %s6110 = sand.u32 %s489, 1
        %s6111 = scalar_lea.vmem [#allocation2], %s6110
        // Predicated region
        $region105: #{net_forward.1} parent=103 // pred_check
          %p6112 = pneg %p499
        $region106: #{net_forward.1} parent=103 // pred_check_branch
          %6114 = sbr.rel (%p6112) target = $region108
        $region107: #{net_forward.1} parent=103 // pred_region
          %s6116 = ssub.s32 16, 16
          %6117 = vsyncadd %s6109, %s6116
          %s6118 = smul.addr %s35, 16
          %s6119 = scalar_lea.hbm %s21, %s6118
          %s6121 = sshll.u32 %s6111, 4
          %s6122 = int_to_ptr.vmem [resolvable:$true] %s6121
          %6124 = dma.vmem_to_hbm [thread:$0]  %s6122, 16, %s6119, %s6109
        $region108: #{net_forward.1} parent=103 // pred_fallthru
          _
      $region104: #{net_forward.1} parent=5 // pred_fallthru
        _
      %p6125 = scmp.le.s32.totalorder 2, %s30
      // Predicated region
      $region109: #{net_forward.1} parent=5 // pred_check
        %p6126 = pneg %p6125
      $region110: #{net_forward.1} parent=5 // pred_check_branch
        %6128 = sbr.rel (%p6126) target = $region112
      $region111: #{net_forward.1} parent=5 // pred_region
        %s6129 = ssub.s32 %s30, 2
        // Predicated region
        $region113: #{net_forward.1} parent=111 // pred_check
          %p6130 = pneg %p505
        $region114: #{net_forward.1} parent=111 // pred_check_branch
          %6132 = sbr.rel (%p6130) target = $region116
        $region115: #{net_forward.1} parent=111 // pred_region
          %s6133 = sand.u32 %s490, 1
          %s6134 = scalar_lea.sflag [#allocation3], %s6133
          %s6135 = sand.u32 %s490, 1
          %s6136 = scalar_lea.vmem [#allocation2], %s6135
          %6137 = dma.done %s6134, 16
        $region116: #{net_forward.1} parent=111 // pred_fallthru
          _
      $region112: #{net_forward.1} parent=5 // pred_fallthru
        _
    $region6: #{net_forward.1} parent=1 // loop_footer
      %s34 = sadd.s32 1, %s30
    $region7: #{net_forward.1} parent=1 // loop_footer_branch
      %29 = sbr.rel target = $region3
    $region8: #{net_forward.1} parent=1 // loop_exit
      _
    %6138 = vsyncpa [#allocation3], 1
    %s6139 = scalar_lea.sflag [#allocation3], 1
    %6140 = vsyncpa %s6139, 1

</llo_original>
